<compile_context>
chip_gen: v6e
topology: v6e:2x2x1
jax: 0.10.0
libtpu: 0.0.40
codegen_flags: <defaults>
</compile_context>

<pallas_src>
import jax
import jax.numpy as jnp
from jax import lax
from jax.experimental import pallas as pl
from jax.experimental.pallas import tpu as pltpu


# ----------------------------------------------------------------------------
# Model configuration (simplified EnCodec: encoder, RVQ, decoder)
# ----------------------------------------------------------------------------
CHANNELS = 1
N_FILTERS = 8
RATIOS = (2, 2)                  # encoder hop length = 4
HOP = RATIOS[0] * RATIOS[1]
DIMENSION = 16                   # latent dim
N_Q = 4                          # number of codebooks
BINS = 64                        # codebook cardinality (power of 2)

# (transposed, Cin, Cout, kernel, stride, activation)
ENC_LAYERS = [
    (False, CHANNELS, N_FILTERS, 7, 1, "elu"),
    (False, N_FILTERS, 2 * N_FILTERS, 4, 2, "elu"),
    (False, 2 * N_FILTERS, 4 * N_FILTERS, 4, 2, "elu"),
    (False, 4 * N_FILTERS, DIMENSION, 7, 1, "none"),
]
DEC_LAYERS = [
    (False, DIMENSION, 4 * N_FILTERS, 7, 1, "elu"),
    (True, 4 * N_FILTERS, 2 * N_FILTERS, 4, 2, "elu"),
    (True, 2 * N_FILTERS, N_FILTERS, 4, 2, "elu"),
    (False, N_FILTERS, CHANNELS, 7, 1, "none"),
]
ALL_LAYERS = ENC_LAYERS + DEC_LAYERS


# ----------------------------------------------------------------------------
# Phase ("space-to-depth") plan: every activation is carried as `P` phase
# columns of exactly T/hop rows, so every strided/upsampling conv becomes plain
# shifted reads.  Regular conv: out_P = in_P // s.  Transposed conv: out_P = in_P * s.
# ----------------------------------------------------------------------------
def _phase_plan(layers, p0):
    plan, p = [], p0
    for (transposed, cin, cout, k, s, act) in layers:
        if transposed:
            po = p * s
        else:
            assert p % s == 0, "phase granularity must absorb the stride"
            po = p // s
        plan.append((transposed, cin, cout, k, s, act, p, po))
        p = po
    return plan


ENC_PLAN = _phase_plan(ENC_LAYERS, HOP)   # granularities: 4,4 / 4,2 / 2,1 / 1,1
DEC_PLAN = _phase_plan(DEC_LAYERS, 1)     # granularities: 1,1 / 1,2 / 2,4 / 4,4


def _tap_offsets(spec):
    """Static (tap j, input phase, row shift q<=0) triples for one output phase r."""
    transposed, _cin, _cout, k, s, _act, in_p, _out_p = spec

    def offsets(r):
        out = []
        for j in range(k):
            if transposed:
                if (r - j) % s != 0:
                    continue
                g = (r - j) // s
            else:
                g = s * r + j - (k - s)      # causal left pad = k - s
            out.append((j, g % in_p, g // in_p))
        return out
    return offsets


def _max_shift():
    m = 0
    for spec in ENC_PLAN + DEC_PLAN:
        offs = _tap_offsets(spec)
        for r in range(spec[7]):
            for (_j, _rin, q) in offs(r):
                assert q <= 0, "causal model must never read future rows"
                m = max(m, -q)
    return m


PAD = ((_max_shift() + 7) // 8) * 8                                  # zero-pad rows (=> 8)
MAXW = max(max(p[6] * p[1], p[7] * p[2]) for p in ENC_PLAN + DEC_PLAN)   # scratch lanes (=> 32)


# ----------------------------------------------------------------------------
# In-kernel helpers
# ----------------------------------------------------------------------------
def _iota2(shape, dim):
    return lax.broadcasted_iota(jnp.int32, shape, dim)


def _mm(a, b):
    """f32-accumulated matmul; K == 1 handled as an outer product on the VPU."""
    if a.shape[-1] == 1:
        return a.astype(jnp.float32) * b.astype(jnp.float32)
    return jnp.dot(a, b, preferred_element_type=jnp.float32)


def _elu(y):
    # clamp the exp argument so no inf is ever produced (then masked) by the where
    return jnp.where(y > 0.0, y, jnp.exp(jnp.minimum(y, 0.0)) - 1.0)


def _rvq(h, cb_ref, cbT_ref, csq_ref):
    """Fused ResidualVectorQuantizer.encode + .decode.

    h: (U, D) f32 latent rows.  Returns (quantized sum (U, D) f32, codes (U, n_q) int32).
    """
    u, d = h.shape
    iota_b = _iota2((u, BINS), 1).astype(jnp.float32)
    lane_q = _iota2((u, N_Q), 1)

    residual = h
    qsum = jnp.zeros((u, d), jnp.float32)
    codes = jnp.zeros((u, N_Q), jnp.int32)

    for q in range(N_Q):                    # inherently serial; static unroll
        # ||r - c||^2 up to a per-row constant: ||c||^2 - 2 r.c   (exact f32 search)
        dots = jnp.dot(residual, cbT_ref[q], preferred_element_type=jnp.float32)
        dist = csq_ref[q] - 2.0 * dots                             # (1,bins)+(U,bins)
        mind = jnp.min(dist, axis=-1, keepdims=True)
        cand = jnp.where(dist <= mind, iota_b, float(BINS))
        code_f = jnp.min(cand, axis=-1, keepdims=True)             # (U, 1) first argmin
        onehot = (iota_b == code_f).astype(jnp.float32)
        quant = jnp.dot(onehot, cb_ref[q], preferred_element_type=jnp.float32)
        residual = residual - quant
        qsum = qsum + quant
        codes = jnp.where(lane_q == q, code_f.astype(jnp.int32), codes)

    return qsum, codes


def _make_kernel(U):
    n_layers = len(ENC_PLAN) + len(DEC_PLAN)

    def kernel(*refs):
        x_ref = refs[0]
        w_refs = refs[1:1 + n_layers]
        b_refs = refs[1 + n_layers:1 + 2 * n_layers]
        cb_ref, cbT_ref, csq_ref = refs[1 + 2 * n_layers:4 + 2 * n_layers]
        out_ref = refs[4 + 2 * n_layers]
        codes_ref = refs[5 + 2 * n_layers]
        buf = refs[6 + 2 * n_layers]         # (PAD + U, MAXW) f32 scratch

        # Causal zero-pad rows (never written again) + layer-0 input: the waveform,
        # already phase-split on the host into HOP columns of U rows each.
        buf[0:PAD, :] = jnp.zeros((PAD, MAXW), jnp.float32)
        buf[PAD:PAD + U, 0:HOP] = x_ref[...]

        def run_layer(spec, w_ref, b_ref, to_scratch):
            transposed, cin, cout, k, s, actfn, in_p, out_p = spec
            offsets = _tap_offsets(spec)
            cache = {}                       # one load + bf16 cast per distinct shifted read

            def read(r_in, q):               # input phase r_in shifted down by |q| rows
                key = (r_in, q)
                if key not in cache:
                    v = buf[PAD + q:PAD + q + U, r_in * cin:(r_in + 1) * cin]
                    cache[key] = v.astype(jnp.bfloat16)
                return cache[key]

            outs = []
            for r in range(out_p):           # static unroll over output phases
                acc = jnp.zeros((U, cout), jnp.float32)
                for (j, r_in, q) in offsets(r):
                    acc = acc + _mm(read(r_in, q), w_ref[j])
                y = acc + b_ref[...]
                outs.append(_elu(y) if actfn == "elu" else y)

            if to_scratch:                   # all reads above precede these stores
                for r, y in enumerate(outs):
                    buf[PAD:PAD + U, r * cout:(r + 1) * cout] = y
            return outs

        # ---- encoder ----
        li = 0
        for spec in ENC_PLAN[:-1]:
            run_layer(spec, w_refs[li], b_refs[li], True)
            li += 1
        latent = run_layer(ENC_PLAN[-1], w_refs[li], b_refs[li], False)[0]   # (U, D) f32
        li += 1

        # ---- fused residual VQ (quantizer.encode + quantizer.decode) ----
        qsum, codes = _rvq(latent, cb_ref, cbT_ref, csq_ref)
        codes_ref[...] = codes               # single (U, n_q) int32 store

        # ---- decoder ----
        buf[PAD:PAD + U, 0:DIMENSION] = qsum
        for spec in DEC_PLAN[:-1]:
            run_layer(spec, w_refs[li], b_refs[li], True)
            li += 1
        wave_ph = run_layer(DEC_PLAN[-1], w_refs[li], b_refs[li], False)     # HOP x (U, 1)

        # assemble the HOP phase columns and store the waveform block once
        lane = _iota2((U, HOP), 1)
        y = jnp.zeros((U, HOP), jnp.float32)
        for r, ph in enumerate(wave_ph):
            y = jnp.where(lane == r, ph, y)
        out_ref[...] = y.astype(out_ref.dtype)

    return kernel


# ----------------------------------------------------------------------------
# Host-side wrapper: one pallas_call, only free reshape/transpose glue
# ----------------------------------------------------------------------------
def _resident_spec(shape):
    # whole-array block, constant index_map -> stays resident in VMEM across the grid
    return pl.BlockSpec(shape, lambda b: (0,) * len(shape))


def encodec_forward(x, params):
    """x: (B, C, T) float32 (PyTorch NCT).  Returns (reconstruction (B, C, T),
    codes (B, n_q, T//hop) int32) -- the outputs of EncodecModel.forward / .encode."""
    B, C, T = x.shape
    assert C == CHANNELS and T % HOP == 0
    U = T // HOP
    ws, bs = params["ws"], params["bs"]

    # host-side phase split (free layout plumbing): x_prep[b, u, r] = x[b, 0, HOP*u + r]
    x_prep = x.reshape(B, U, HOP)

    kernel = _make_kernel(U)

    in_specs = [pl.BlockSpec((None, U, HOP), lambda b: (b, 0, 0))]
    in_specs += [_resident_spec(tuple(w.shape)) for w in ws]
    in_specs += [_resident_spec(tuple(bb.shape)) for bb in bs]
    in_specs += [_resident_spec(tuple(params[name].shape))
                 for name in ("cb", "cbT", "csq")]

    out_shape = (jax.ShapeDtypeStruct((B, U, HOP), jnp.float32),
                 jax.ShapeDtypeStruct((B, U, N_Q), jnp.int32))
    out_specs = (pl.BlockSpec((None, U, HOP), lambda b: (b, 0, 0)),
                 pl.BlockSpec((None, U, N_Q), lambda b: (b, 0, 0)))

    fwd = pl.pallas_call(
        kernel,
        out_shape=out_shape,
        grid=(B,),
        in_specs=in_specs,
        out_specs=out_specs,
        scratch_shapes=[pltpu.VMEM((PAD + U, MAXW), jnp.float32)],
        compiler_params=pltpu.CompilerParams(
            dimension_semantics=("parallel",),   # batch items independent (megacore-shardable)
        ),
    )
    recon_ph, codes_ph = fwd(x_prep, *ws, *bs, params["cb"], params["cbT"], params["csq"])

    recon = recon_ph.reshape(B, CHANNELS, T)        # exact host-side de-interleave
    codes = jnp.transpose(codes_ph, (0, 2, 1))      # (B, n_q, T//hop) like torch codes
    return recon, codes


# ----------------------------------------------------------------------------
# Deterministic synthetic parameters
# ----------------------------------------------------------------------------
def init_params(key):
    keys = jax.random.split(key, 2 * len(ALL_LAYERS) + 1)
    ws, bs = [], []
    for i, (transposed, cin, cout, k, _s, _act) in enumerate(ALL_LAYERS):
        wk, bk = keys[2 * i], keys[2 * i + 1]
        scale = 1.0 / jnp.sqrt(cin * k)
        if transposed:
            w_pt = jax.random.normal(wk, (cin, cout, k), jnp.float32) * scale   # ConvT layout
            w_kio = jnp.transpose(w_pt, (2, 0, 1))                              # (k, Cin, Cout)
        else:
            w_pt = jax.random.normal(wk, (cout, cin, k), jnp.float32) * scale   # Conv1d layout
            w_kio = jnp.transpose(w_pt, (2, 1, 0))                              # (k, Cin, Cout)
        ws.append(w_kio.astype(jnp.bfloat16))                    # bf16 MXU operands
        bs.append(0.01 * jax.random.normal(bk, (1, cout), jnp.float32))

    cb = jax.random.normal(keys[-1], (N_Q, BINS, DIMENSION), jnp.float32)
    return {
        "ws": ws,
        "bs": bs,
        "cb": cb,                                    # (n_q, bins, D) f32 (exact codewords)
        "cbT": jnp.transpose(cb, (0, 2, 1)),         # (n_q, D, bins) f32 (exact code search)
        "csq": jnp.sum(cb * cb, axis=-1)[:, None, :],  # (n_q, 1, bins) f32
    }


if __name__ == "__main__":
    key = jax.random.PRNGKey(0)
    pkey, xkey = jax.random.split(key)
    params = init_params(pkey)

    # small, shape-consistent input: (batch=2, channels=1, time=64), time % hop == 0
    x = jax.random.normal(xkey, (2, CHANNELS, 64), jnp.float32)

    out, codes = encodec_forward(x, params)
    jax.block_until_ready(out)
    jax.block_until_ready(codes)

    assert out.shape == x.shape, (out.shape, x.shape)
    assert codes.shape == (2, N_Q, 64 // HOP), codes.shape
    assert bool(jnp.all(jnp.isfinite(out)))
    assert bool(jnp.all((codes >= 0) & (codes < BINS)))
    print("KERNEL_OK")
</pallas_src>

<mosaic_0001>
module attributes {stable_mosaic.version = 11 : i64} {
  func.func @kernel(%arg0: i32, %arg1: memref<1x16x4xf32, #tpu.memory_space<vmem>>, %arg2: memref<7x1x8xbf16, #tpu.memory_space<vmem>>, %arg3: memref<4x8x16xbf16, #tpu.memory_space<vmem>>, %arg4: memref<4x16x32xbf16, #tpu.memory_space<vmem>>, %arg5: memref<7x32x16xbf16, #tpu.memory_space<vmem>>, %arg6: memref<7x16x32xbf16, #tpu.memory_space<vmem>>, %arg7: memref<4x32x16xbf16, #tpu.memory_space<vmem>>, %arg8: memref<4x16x8xbf16, #tpu.memory_space<vmem>>, %arg9: memref<7x8x1xbf16, #tpu.memory_space<vmem>>, %arg10: memref<1x8xf32, #tpu.memory_space<vmem>>, %arg11: memref<1x16xf32, #tpu.memory_space<vmem>>, %arg12: memref<1x32xf32, #tpu.memory_space<vmem>>, %arg13: memref<1x16xf32, #tpu.memory_space<vmem>>, %arg14: memref<1x32xf32, #tpu.memory_space<vmem>>, %arg15: memref<1x16xf32, #tpu.memory_space<vmem>>, %arg16: memref<1x8xf32, #tpu.memory_space<vmem>>, %arg17: memref<1x1xf32, #tpu.memory_space<vmem>>, %arg18: memref<4x64x16xf32, #tpu.memory_space<vmem>>, %arg19: memref<4x16x64xf32, #tpu.memory_space<vmem>>, %arg20: memref<4x1x64xf32, #tpu.memory_space<vmem>>, %arg21: memref<1x16x4xf32, #tpu.memory_space<vmem>>, %arg22: memref<1x16x4xi32, #tpu.memory_space<vmem>>, %arg23: memref<24x32xf32, #tpu.memory_space<vmem>>) attributes {dimension_semantics = [#tpu.dimension_semantics<parallel>], iteration_bounds = array<i64: 2>, scalar_prefetch = 0 : i64, scratch_operands = 1 : i64, tpu.core_type = #tpu.core_type<tc>, window_params = [{transform_indices = @transform_0, window_bounds = array<i64: 1, 16, 4>}, {pipeline_mode = #tpu.pipeline_mode<synchronous>, transform_indices = @transform_1, window_bounds = array<i64: 7, 1, 8>}, {pipeline_mode = #tpu.pipeline_mode<synchronous>, transform_indices = @transform_2, window_bounds = array<i64: 4, 8, 16>}, {pipeline_mode = #tpu.pipeline_mode<synchronous>, transform_indices = @transform_3, window_bounds = array<i64: 4, 16, 32>}, {pipeline_mode = #tpu.pipeline_mode<synchronous>, transform_indices = @transform_4, window_bounds = array<i64: 7, 32, 16>}, {pipeline_mode = #tpu.pipeline_mode<synchronous>, transform_indices = @transform_5, window_bounds = array<i64: 7, 16, 32>}, {pipeline_mode = #tpu.pipeline_mode<synchronous>, transform_indices = @transform_6, window_bounds = array<i64: 4, 32, 16>}, {pipeline_mode = #tpu.pipeline_mode<synchronous>, transform_indices = @transform_7, window_bounds = array<i64: 4, 16, 8>}, {pipeline_mode = #tpu.pipeline_mode<synchronous>, transform_indices = @transform_8, window_bounds = array<i64: 7, 8, 1>}, {pipeline_mode = #tpu.pipeline_mode<synchronous>, transform_indices = @transform_9, window_bounds = array<i64: 1, 8>}, {pipeline_mode = #tpu.pipeline_mode<synchronous>, transform_indices = @transform_10, window_bounds = array<i64: 1, 16>}, {pipeline_mode = #tpu.pipeline_mode<synchronous>, transform_indices = @transform_11, window_bounds = array<i64: 1, 32>}, {pipeline_mode = #tpu.pipeline_mode<synchronous>, transform_indices = @transform_12, window_bounds = array<i64: 1, 16>}, {pipeline_mode = #tpu.pipeline_mode<synchronous>, transform_indices = @transform_13, window_bounds = array<i64: 1, 32>}, {pipeline_mode = #tpu.pipeline_mode<synchronous>, transform_indices = @transform_14, window_bounds = array<i64: 1, 16>}, {pipeline_mode = #tpu.pipeline_mode<synchronous>, transform_indices = @transform_15, window_bounds = array<i64: 1, 8>}, {pipeline_mode = #tpu.pipeline_mode<synchronous>, transform_indices = @transform_16, window_bounds = array<i64: 1, 1>}, {pipeline_mode = #tpu.pipeline_mode<synchronous>, transform_indices = @transform_17, window_bounds = array<i64: 4, 64, 16>}, {pipeline_mode = #tpu.pipeline_mode<synchronous>, transform_indices = @transform_18, window_bounds = array<i64: 4, 16, 64>}, {pipeline_mode = #tpu.pipeline_mode<synchronous>, transform_indices = @transform_19, window_bounds = array<i64: 4, 1, 64>}, {transform_indices = @transform_20, window_bounds = array<i64: 1, 16, 4>}, {transform_indices = @transform_21, window_bounds = array<i64: 1, 16, 4>}]} {
    %cst = arith.constant 0.000000e+00 : f32
    %0 = vector.broadcast %cst : f32 to vector<8x32xf32>
    %c0 = arith.constant 0 : index
    %c0_0 = arith.constant 0 : index
    %1 = vector.load %arg23[%c0, %c0_0] : memref<24x32xf32, #tpu.memory_space<vmem>>, vector<8x32xf32>
    tpu.vector_store %arg23[%c0, %c0_0], %0 {strides = array<i32>} : memref<24x32xf32, #tpu.memory_space<vmem>>, vector<8x32xf32>,
    %c0_1 = arith.constant 0 : index
    %c0_2 = arith.constant 0 : index
    %c0_3 = arith.constant 0 : index
    %2 = vector.load %arg1[%c0_1, %c0_2, %c0_3] : memref<1x16x4xf32, #tpu.memory_space<vmem>>, vector<1x16x4xf32>
    %3 = vector.shape_cast %2 : vector<1x16x4xf32> to vector<16x4xf32>
    %c8 = arith.constant 8 : index
    %c0_4 = arith.constant 0 : index
    %4 = vector.load %arg23[%c8, %c0_4] : memref<24x32xf32, #tpu.memory_space<vmem>>, vector<16x4xf32>
    tpu.vector_store %arg23[%c8, %c0_4], %3 {strides = array<i32>} : memref<24x32xf32, #tpu.memory_space<vmem>>, vector<16x4xf32>,
    %cst_5 = arith.constant 0.000000e+00 : f32
    %5 = vector.broadcast %cst_5 : f32 to vector<16x8xf32>
    %c6 = arith.constant 6 : index
    %c2 = arith.constant 2 : index
    %6 = vector.load %arg23[%c6, %c2] : memref<24x32xf32, #tpu.memory_space<vmem>>, vector<16x1xf32>
    %7 = arith.truncf %6 : vector<16x1xf32> to vector<16x1xbf16>
    %c0_6 = arith.constant 0 : index
    %c0_7 = arith.constant 0 : index
    %c0_8 = arith.constant 0 : index
    %8 = vector.load %arg2[%c0_6, %c0_7, %c0_8] : memref<7x1x8xbf16, #tpu.memory_space<vmem>>, vector<1x1x8xbf16>
    %9 = vector.shape_cast %8 : vector<1x1x8xbf16> to vector<1x8xbf16>
    %10 = arith.extf %7 : vector<16x1xbf16> to vector<16x1xf32>
    %11 = arith.extf %9 : vector<1x8xbf16> to vector<1x8xf32>
    %12 = vector.broadcast %10 : vector<16x1xf32> to vector<16x8xf32>
    %13 = vector.broadcast %11 : vector<1x8xf32> to vector<16x8xf32>
    %14 = arith.mulf %12, %13 : vector<16x8xf32>
    %15 = arith.addf %5, %14 : vector<16x8xf32>
    %c6_9 = arith.constant 6 : index
    %c3 = arith.constant 3 : index
    %16 = vector.load %arg23[%c6_9, %c3] : memref<24x32xf32, #tpu.memory_space<vmem>>, vector<16x1xf32>
    %17 = arith.truncf %16 : vector<16x1xf32> to vector<16x1xbf16>
    %c1 = arith.constant 1 : index
    %c0_10 = arith.constant 0 : index
    %c0_11 = arith.constant 0 : index
    %18 = vector.load %arg2[%c1, %c0_10, %c0_11] : memref<7x1x8xbf16, #tpu.memory_space<vmem>>, vector<1x1x8xbf16>
    %19 = vector.shape_cast %18 : vector<1x1x8xbf16> to vector<1x8xbf16>
    %20 = arith.extf %17 : vector<16x1xbf16> to vector<16x1xf32>
    %21 = arith.extf %19 : vector<1x8xbf16> to vector<1x8xf32>
    %22 = vector.broadcast %20 : vector<16x1xf32> to vector<16x8xf32>
    %23 = vector.broadcast %21 : vector<1x8xf32> to vector<16x8xf32>
    %24 = arith.mulf %22, %23 : vector<16x8xf32>
    %25 = arith.addf %15, %24 : vector<16x8xf32>
    %c7 = arith.constant 7 : index
    %c0_12 = arith.constant 0 : index
    %26 = vector.load %arg23[%c7, %c0_12] : memref<24x32xf32, #tpu.memory_space<vmem>>, vector<16x1xf32>
    %27 = arith.truncf %26 : vector<16x1xf32> to vector<16x1xbf16>
    %c2_13 = arith.constant 2 : index
    %c0_14 = arith.constant 0 : index
    %c0_15 = arith.constant 0 : index
    %28 = vector.load %arg2[%c2_13, %c0_14, %c0_15] : memref<7x1x8xbf16, #tpu.memory_space<vmem>>, vector<1x1x8xbf16>
    %29 = vector.shape_cast %28 : vector<1x1x8xbf16> to vector<1x8xbf16>
    %30 = arith.extf %27 : vector<16x1xbf16> to vector<16x1xf32>
    %31 = arith.extf %29 : vector<1x8xbf16> to vector<1x8xf32>
    %32 = vector.broadcast %30 : vector<16x1xf32> to vector<16x8xf32>
    %33 = vector.broadcast %31 : vector<1x8xf32> to vector<16x8xf32>
    %34 = arith.mulf %32, %33 : vector<16x8xf32>
    %35 = arith.addf %25, %34 : vector<16x8xf32>
    %c7_16 = arith.constant 7 : index
    %c1_17 = arith.constant 1 : index
    %36 = vector.load %arg23[%c7_16, %c1_17] : memref<24x32xf32, #tpu.memory_space<vmem>>, vector<16x1xf32>
    %37 = arith.truncf %36 : vector<16x1xf32> to vector<16x1xbf16>
    %c3_18 = arith.constant 3 : index
    %c0_19 = arith.constant 0 : index
    %c0_20 = arith.constant 0 : index
    %38 = vector.load %arg2[%c3_18, %c0_19, %c0_20] : memref<7x1x8xbf16, #tpu.memory_space<vmem>>, vector<1x1x8xbf16>
    %39 = vector.shape_cast %38 : vector<1x1x8xbf16> to vector<1x8xbf16>
    %40 = arith.extf %37 : vector<16x1xbf16> to vector<16x1xf32>
    %41 = arith.extf %39 : vector<1x8xbf16> to vector<1x8xf32>
    %42 = vector.broadcast %40 : vector<16x1xf32> to vector<16x8xf32>
    %43 = vector.broadcast %41 : vector<1x8xf32> to vector<16x8xf32>
    %44 = arith.mulf %42, %43 : vector<16x8xf32>
    %45 = arith.addf %35, %44 : vector<16x8xf32>
    %c7_21 = arith.constant 7 : index
    %c2_22 = arith.constant 2 : index
    %46 = vector.load %arg23[%c7_21, %c2_22] : memref<24x32xf32, #tpu.memory_space<vmem>>, vector<16x1xf32>
    %47 = arith.truncf %46 : vector<16x1xf32> to vector<16x1xbf16>
    %c4 = arith.constant 4 : index
    %c0_23 = arith.constant 0 : index
    %c0_24 = arith.constant 0 : index
    %48 = vector.load %arg2[%c4, %c0_23, %c0_24] : memref<7x1x8xbf16, #tpu.memory_space<vmem>>, vector<1x1x8xbf16>
    %49 = vector.shape_cast %48 : vector<1x1x8xbf16> to vector<1x8xbf16>
    %50 = arith.extf %47 : vector<16x1xbf16> to vector<16x1xf32>
    %51 = arith.extf %49 : vector<1x8xbf16> to vector<1x8xf32>
    %52 = vector.broadcast %50 : vector<16x1xf32> to vector<16x8xf32>
    %53 = vector.broadcast %51 : vector<1x8xf32> to vector<16x8xf32>
    %54 = arith.mulf %52, %53 : vector<16x8xf32>
    %55 = arith.addf %45, %54 : vector<16x8xf32>
    %c7_25 = arith.constant 7 : index
    %c3_26 = arith.constant 3 : index
    %56 = vector.load %arg23[%c7_25, %c3_26] : memref<24x32xf32, #tpu.memory_space<vmem>>, vector<16x1xf32>
    %57 = arith.truncf %56 : vector<16x1xf32> to vector<16x1xbf16>
    %c5 = arith.constant 5 : index
    %c0_27 = arith.constant 0 : index
    %c0_28 = arith.constant 0 : index
    %58 = vector.load %arg2[%c5, %c0_27, %c0_28] : memref<7x1x8xbf16, #tpu.memory_space<vmem>>, vector<1x1x8xbf16>
    %59 = vector.shape_cast %58 : vector<1x1x8xbf16> to vector<1x8xbf16>
    %60 = arith.extf %57 : vector<16x1xbf16> to vector<16x1xf32>
    %61 = arith.extf %59 : vector<1x8xbf16> to vector<1x8xf32>
    %62 = vector.broadcast %60 : vector<16x1xf32> to vector<16x8xf32>
    %63 = vector.broadcast %61 : vector<1x8xf32> to vector<16x8xf32>
    %64 = arith.mulf %62, %63 : vector<16x8xf32>
    %65 = arith.addf %55, %64 : vector<16x8xf32>
    %c8_29 = arith.constant 8 : index
    %c0_30 = arith.constant 0 : index
    %66 = vector.load %arg23[%c8_29, %c0_30] : memref<24x32xf32, #tpu.memory_space<vmem>>, vector<16x1xf32>
    %67 = arith.truncf %66 : vector<16x1xf32> to vector<16x1xbf16>
    %c6_31 = arith.constant 6 : index
    %c0_32 = arith.constant 0 : index
    %c0_33 = arith.constant 0 : index
    %68 = vector.load %arg2[%c6_31, %c0_32, %c0_33] : memref<7x1x8xbf16, #tpu.memory_space<vmem>>, vector<1x1x8xbf16>
    %69 = vector.shape_cast %68 : vector<1x1x8xbf16> to vector<1x8xbf16>
    %70 = arith.extf %67 : vector<16x1xbf16> to vector<16x1xf32>
    %71 = arith.extf %69 : vector<1x8xbf16> to vector<1x8xf32>
    %72 = vector.broadcast %70 : vector<16x1xf32> to vector<16x8xf32>
    %73 = vector.broadcast %71 : vector<1x8xf32> to vector<16x8xf32>
    %74 = arith.mulf %72, %73 : vector<16x8xf32>
    %75 = arith.addf %65, %74 : vector<16x8xf32>
    %c0_34 = arith.constant 0 : index
    %c0_35 = arith.constant 0 : index
    %76 = vector.load %arg10[%c0_34, %c0_35] : memref<1x8xf32, #tpu.memory_space<vmem>>, vector<1x8xf32>
    %77 = vector.broadcast %76 : vector<1x8xf32> to vector<16x8xf32>
    %78 = arith.addf %75, %77 : vector<16x8xf32>
    %cst_36 = arith.constant 0.000000e+00 : f32
    %79 = vector.broadcast %cst_36 : f32 to vector<16x8xf32>
    %80 = arith.cmpf ogt, %78, %79 : vector<16x8xf32>
    %cst_37 = arith.constant 0.000000e+00 : f32
    %81 = vector.broadcast %cst_37 : f32 to vector<16x8xf32>
    %82 = arith.minimumf %78, %81 : vector<16x8xf32>
    %83 = math.exp %82 : vector<16x8xf32>
    %cst_38 = arith.constant 1.000000e+00 : f32
    %84 = vector.broadcast %cst_38 : f32 to vector<16x8xf32>
    %85 = arith.subf %83, %84 : vector<16x8xf32>
    %86 = arith.select %80, %78, %85 : vector<16x8xi1>, vector<16x8xf32>
    %cst_39 = arith.constant 0.000000e+00 : f32
    %87 = vector.broadcast %cst_39 : f32 to vector<16x8xf32>
    %c0_40 = arith.constant 0 : index
    %c0_41 = arith.constant 0 : index
    %c0_42 = arith.constant 0 : index
    %88 = vector.load %arg2[%c0_40, %c0_41, %c0_42] : memref<7x1x8xbf16, #tpu.memory_space<vmem>>, vector<1x1x8xbf16>
    %89 = vector.shape_cast %88 : vector<1x1x8xbf16> to vector<1x8xbf16>
    %90 = arith.extf %17 : vector<16x1xbf16> to vector<16x1xf32>
    %91 = arith.extf %89 : vector<1x8xbf16> to vector<1x8xf32>
    %92 = vector.broadcast %90 : vector<16x1xf32> to vector<16x8xf32>
    %93 = vector.broadcast %91 : vector<1x8xf32> to vector<16x8xf32>
    %94 = arith.mulf %92, %93 : vector<16x8xf32>
    %95 = arith.addf %87, %94 : vector<16x8xf32>
    %c1_43 = arith.constant 1 : index
    %c0_44 = arith.constant 0 : index
    %c0_45 = arith.constant 0 : index
    %96 = vector.load %arg2[%c1_43, %c0_44, %c0_45] : memref<7x1x8xbf16, #tpu.memory_space<vmem>>, vector<1x1x8xbf16>
    %97 = vector.shape_cast %96 : vector<1x1x8xbf16> to vector<1x8xbf16>
    %98 = arith.extf %27 : vector<16x1xbf16> to vector<16x1xf32>
    %99 = arith.extf %97 : vector<1x8xbf16> to vector<1x8xf32>
    %100 = vector.broadcast %98 : vector<16x1xf32> to vector<16x8xf32>
    %101 = vector.broadcast %99 : vector<1x8xf32> to vector<16x8xf32>
    %102 = arith.mulf %100, %101 : vector<16x8xf32>
    %103 = arith.addf %95, %102 : vector<16x8xf32>
    %c2_46 = arith.constant 2 : index
    %c0_47 = arith.constant 0 : index
    %c0_48 = arith.constant 0 : index
    %104 = vector.load %arg2[%c2_46, %c0_47, %c0_48] : memref<7x1x8xbf16, #tpu.memory_space<vmem>>, vector<1x1x8xbf16>
    %105 = vector.shape_cast %104 : vector<1x1x8xbf16> to vector<1x8xbf16>
    %106 = arith.extf %37 : vector<16x1xbf16> to vector<16x1xf32>
    %107 = arith.extf %105 : vector<1x8xbf16> to vector<1x8xf32>
    %108 = vector.broadcast %106 : vector<16x1xf32> to vector<16x8xf32>
    %109 = vector.broadcast %107 : vector<1x8xf32> to vector<16x8xf32>
    %110 = arith.mulf %108, %109 : vector<16x8xf32>
    %111 = arith.addf %103, %110 : vector<16x8xf32>
    %c3_49 = arith.constant 3 : index
    %c0_50 = arith.constant 0 : index
    %c0_51 = arith.constant 0 : index
    %112 = vector.load %arg2[%c3_49, %c0_50, %c0_51] : memref<7x1x8xbf16, #tpu.memory_space<vmem>>, vector<1x1x8xbf16>
    %113 = vector.shape_cast %112 : vector<1x1x8xbf16> to vector<1x8xbf16>
    %114 = arith.extf %47 : vector<16x1xbf16> to vector<16x1xf32>
    %115 = arith.extf %113 : vector<1x8xbf16> to vector<1x8xf32>
    %116 = vector.broadcast %114 : vector<16x1xf32> to vector<16x8xf32>
    %117 = vector.broadcast %115 : vector<1x8xf32> to vector<16x8xf32>
    %118 = arith.mulf %116, %117 : vector<16x8xf32>
    %119 = arith.addf %111, %118 : vector<16x8xf32>
    %c4_52 = arith.constant 4 : index
    %c0_53 = arith.constant 0 : index
    %c0_54 = arith.constant 0 : index
    %120 = vector.load %arg2[%c4_52, %c0_53, %c0_54] : memref<7x1x8xbf16, #tpu.memory_space<vmem>>, vector<1x1x8xbf16>
    %121 = vector.shape_cast %120 : vector<1x1x8xbf16> to vector<1x8xbf16>
    %122 = arith.extf %57 : vector<16x1xbf16> to vector<16x1xf32>
    %123 = arith.extf %121 : vector<1x8xbf16> to vector<1x8xf32>
    %124 = vector.broadcast %122 : vector<16x1xf32> to vector<16x8xf32>
    %125 = vector.broadcast %123 : vector<1x8xf32> to vector<16x8xf32>
    %126 = arith.mulf %124, %125 : vector<16x8xf32>
    %127 = arith.addf %119, %126 : vector<16x8xf32>
    %c5_55 = arith.constant 5 : index
    %c0_56 = arith.constant 0 : index
    %c0_57 = arith.constant 0 : index
    %128 = vector.load %arg2[%c5_55, %c0_56, %c0_57] : memref<7x1x8xbf16, #tpu.memory_space<vmem>>, vector<1x1x8xbf16>
    %129 = vector.shape_cast %128 : vector<1x1x8xbf16> to vector<1x8xbf16>
    %130 = arith.extf %67 : vector<16x1xbf16> to vector<16x1xf32>
    %131 = arith.extf %129 : vector<1x8xbf16> to vector<1x8xf32>
    %132 = vector.broadcast %130 : vector<16x1xf32> to vector<16x8xf32>
    %133 = vector.broadcast %131 : vector<1x8xf32> to vector<16x8xf32>
    %134 = arith.mulf %132, %133 : vector<16x8xf32>
    %135 = arith.addf %127, %134 : vector<16x8xf32>
    %c8_58 = arith.constant 8 : index
    %c1_59 = arith.constant 1 : index
    %136 = vector.load %arg23[%c8_58, %c1_59] : memref<24x32xf32, #tpu.memory_space<vmem>>, vector<16x1xf32>
    %137 = arith.truncf %136 : vector<16x1xf32> to vector<16x1xbf16>
    %c6_60 = arith.constant 6 : index
    %c0_61 = arith.constant 0 : index
    %c0_62 = arith.constant 0 : index
    %138 = vector.load %arg2[%c6_60, %c0_61, %c0_62] : memref<7x1x8xbf16, #tpu.memory_space<vmem>>, vector<1x1x8xbf16>
    %139 = vector.shape_cast %138 : vector<1x1x8xbf16> to vector<1x8xbf16>
    %140 = arith.extf %137 : vector<16x1xbf16> to vector<16x1xf32>
    %141 = arith.extf %139 : vector<1x8xbf16> to vector<1x8xf32>
    %142 = vector.broadcast %140 : vector<16x1xf32> to vector<16x8xf32>
    %143 = vector.broadcast %141 : vector<1x8xf32> to vector<16x8xf32>
    %144 = arith.mulf %142, %143 : vector<16x8xf32>
    %145 = arith.addf %135, %144 : vector<16x8xf32>
    %c0_63 = arith.constant 0 : index
    %c0_64 = arith.constant 0 : index
    %146 = vector.load %arg10[%c0_63, %c0_64] : memref<1x8xf32, #tpu.memory_space<vmem>>, vector<1x8xf32>
    %147 = vector.broadcast %146 : vector<1x8xf32> to vector<16x8xf32>
    %148 = arith.addf %145, %147 : vector<16x8xf32>
    %cst_65 = arith.constant 0.000000e+00 : f32
    %149 = vector.broadcast %cst_65 : f32 to vector<16x8xf32>
    %150 = arith.cmpf ogt, %148, %149 : vector<16x8xf32>
    %cst_66 = arith.constant 0.000000e+00 : f32
    %151 = vector.broadcast %cst_66 : f32 to vector<16x8xf32>
    %152 = arith.minimumf %148, %151 : vector<16x8xf32>
    %153 = math.exp %152 : vector<16x8xf32>
    %cst_67 = arith.constant 1.000000e+00 : f32
    %154 = vector.broadcast %cst_67 : f32 to vector<16x8xf32>
    %155 = arith.subf %153, %154 : vector<16x8xf32>
    %156 = arith.select %150, %148, %155 : vector<16x8xi1>, vector<16x8xf32>
    %cst_68 = arith.constant 0.000000e+00 : f32
    %157 = vector.broadcast %cst_68 : f32 to vector<16x8xf32>
    %c0_69 = arith.constant 0 : index
    %c0_70 = arith.constant 0 : index
    %c0_71 = arith.constant 0 : index
    %158 = vector.load %arg2[%c0_69, %c0_70, %c0_71] : memref<7x1x8xbf16, #tpu.memory_space<vmem>>, vector<1x1x8xbf16>
    %159 = vector.shape_cast %158 : vector<1x1x8xbf16> to vector<1x8xbf16>
    %160 = arith.extf %27 : vector<16x1xbf16> to vector<16x1xf32>
    %161 = arith.extf %159 : vector<1x8xbf16> to vector<1x8xf32>
    %162 = vector.broadcast %160 : vector<16x1xf32> to vector<16x8xf32>
    %163 = vector.broadcast %161 : vector<1x8xf32> to vector<16x8xf32>
    %164 = arith.mulf %162, %163 : vector<16x8xf32>
    %165 = arith.addf %157, %164 : vector<16x8xf32>
    %c1_72 = arith.constant 1 : index
    %c0_73 = arith.constant 0 : index
    %c0_74 = arith.constant 0 : index
    %166 = vector.load %arg2[%c1_72, %c0_73, %c0_74] : memref<7x1x8xbf16, #tpu.memory_space<vmem>>, vector<1x1x8xbf16>
    %167 = vector.shape_cast %166 : vector<1x1x8xbf16> to vector<1x8xbf16>
    %168 = arith.extf %37 : vector<16x1xbf16> to vector<16x1xf32>
    %169 = arith.extf %167 : vector<1x8xbf16> to vector<1x8xf32>
    %170 = vector.broadcast %168 : vector<16x1xf32> to vector<16x8xf32>
    %171 = vector.broadcast %169 : vector<1x8xf32> to vector<16x8xf32>
    %172 = arith.mulf %170, %171 : vector<16x8xf32>
    %173 = arith.addf %165, %172 : vector<16x8xf32>
    %c2_75 = arith.constant 2 : index
    %c0_76 = arith.constant 0 : index
    %c0_77 = arith.constant 0 : index
    %174 = vector.load %arg2[%c2_75, %c0_76, %c0_77] : memref<7x1x8xbf16, #tpu.memory_space<vmem>>, vector<1x1x8xbf16>
    %175 = vector.shape_cast %174 : vector<1x1x8xbf16> to vector<1x8xbf16>
    %176 = arith.extf %47 : vector<16x1xbf16> to vector<16x1xf32>
    %177 = arith.extf %175 : vector<1x8xbf16> to vector<1x8xf32>
    %178 = vector.broadcast %176 : vector<16x1xf32> to vector<16x8xf32>
    %179 = vector.broadcast %177 : vector<1x8xf32> to vector<16x8xf32>
    %180 = arith.mulf %178, %179 : vector<16x8xf32>
    %181 = arith.addf %173, %180 : vector<16x8xf32>
    %c3_78 = arith.constant 3 : index
    %c0_79 = arith.constant 0 : index
    %c0_80 = arith.constant 0 : index
    %182 = vector.load %arg2[%c3_78, %c0_79, %c0_80] : memref<7x1x8xbf16, #tpu.memory_space<vmem>>, vector<1x1x8xbf16>
    %183 = vector.shape_cast %182 : vector<1x1x8xbf16> to vector<1x8xbf16>
    %184 = arith.extf %57 : vector<16x1xbf16> to vector<16x1xf32>
    %185 = arith.extf %183 : vector<1x8xbf16> to vector<1x8xf32>
    %186 = vector.broadcast %184 : vector<16x1xf32> to vector<16x8xf32>
    %187 = vector.broadcast %185 : vector<1x8xf32> to vector<16x8xf32>
    %188 = arith.mulf %186, %187 : vector<16x8xf32>
    %189 = arith.addf %181, %188 : vector<16x8xf32>
    %c4_81 = arith.constant 4 : index
    %c0_82 = arith.constant 0 : index
    %c0_83 = arith.constant 0 : index
    %190 = vector.load %arg2[%c4_81, %c0_82, %c0_83] : memref<7x1x8xbf16, #tpu.memory_space<vmem>>, vector<1x1x8xbf16>
    %191 = vector.shape_cast %190 : vector<1x1x8xbf16> to vector<1x8xbf16>
    %192 = arith.extf %67 : vector<16x1xbf16> to vector<16x1xf32>
    %193 = arith.extf %191 : vector<1x8xbf16> to vector<1x8xf32>
    %194 = vector.broadcast %192 : vector<16x1xf32> to vector<16x8xf32>
    %195 = vector.broadcast %193 : vector<1x8xf32> to vector<16x8xf32>
    %196 = arith.mulf %194, %195 : vector<16x8xf32>
    %197 = arith.addf %189, %196 : vector<16x8xf32>
    %c5_84 = arith.constant 5 : index
    %c0_85 = arith.constant 0 : index
    %c0_86 = arith.constant 0 : index
    %198 = vector.load %arg2[%c5_84, %c0_85, %c0_86] : memref<7x1x8xbf16, #tpu.memory_space<vmem>>, vector<1x1x8xbf16>
    %199 = vector.shape_cast %198 : vector<1x1x8xbf16> to vector<1x8xbf16>
    %200 = arith.extf %137 : vector<16x1xbf16> to vector<16x1xf32>
    %201 = arith.extf %199 : vector<1x8xbf16> to vector<1x8xf32>
    %202 = vector.broadcast %200 : vector<16x1xf32> to vector<16x8xf32>
    %203 = vector.broadcast %201 : vector<1x8xf32> to vector<16x8xf32>
    %204 = arith.mulf %202, %203 : vector<16x8xf32>
    %205 = arith.addf %197, %204 : vector<16x8xf32>
    %c8_87 = arith.constant 8 : index
    %c2_88 = arith.constant 2 : index
    %206 = vector.load %arg23[%c8_87, %c2_88] : memref<24x32xf32, #tpu.memory_space<vmem>>, vector<16x1xf32>
    %207 = arith.truncf %206 : vector<16x1xf32> to vector<16x1xbf16>
    %c6_89 = arith.constant 6 : index
    %c0_90 = arith.constant 0 : index
    %c0_91 = arith.constant 0 : index
    %208 = vector.load %arg2[%c6_89, %c0_90, %c0_91] : memref<7x1x8xbf16, #tpu.memory_space<vmem>>, vector<1x1x8xbf16>
    %209 = vector.shape_cast %208 : vector<1x1x8xbf16> to vector<1x8xbf16>
    %210 = arith.extf %207 : vector<16x1xbf16> to vector<16x1xf32>
    %211 = arith.extf %209 : vector<1x8xbf16> to vector<1x8xf32>
    %212 = vector.broadcast %210 : vector<16x1xf32> to vector<16x8xf32>
    %213 = vector.broadcast %211 : vector<1x8xf32> to vector<16x8xf32>
    %214 = arith.mulf %212, %213 : vector<16x8xf32>
    %215 = arith.addf %205, %214 : vector<16x8xf32>
    %c0_92 = arith.constant 0 : index
    %c0_93 = arith.constant 0 : index
    %216 = vector.load %arg10[%c0_92, %c0_93] : memref<1x8xf32, #tpu.memory_space<vmem>>, vector<1x8xf32>
    %217 = vector.broadcast %216 : vector<1x8xf32> to vector<16x8xf32>
    %218 = arith.addf %215, %217 : vector<16x8xf32>
    %cst_94 = arith.constant 0.000000e+00 : f32
    %219 = vector.broadcast %cst_94 : f32 to vector<16x8xf32>
    %220 = arith.cmpf ogt, %218, %219 : vector<16x8xf32>
    %cst_95 = arith.constant 0.000000e+00 : f32
    %221 = vector.broadcast %cst_95 : f32 to vector<16x8xf32>
    %222 = arith.minimumf %218, %221 : vector<16x8xf32>
    %223 = math.exp %222 : vector<16x8xf32>
    %cst_96 = arith.constant 1.000000e+00 : f32
    %224 = vector.broadcast %cst_96 : f32 to vector<16x8xf32>
    %225 = arith.subf %223, %224 : vector<16x8xf32>
    %226 = arith.select %220, %218, %225 : vector<16x8xi1>, vector<16x8xf32>
    %cst_97 = arith.constant 0.000000e+00 : f32
    %227 = vector.broadcast %cst_97 : f32 to vector<16x8xf32>
    %c0_98 = arith.constant 0 : index
    %c0_99 = arith.constant 0 : index
    %c0_100 = arith.constant 0 : index
    %228 = vector.load %arg2[%c0_98, %c0_99, %c0_100] : memref<7x1x8xbf16, #tpu.memory_space<vmem>>, vector<1x1x8xbf16>
    %229 = vector.shape_cast %228 : vector<1x1x8xbf16> to vector<1x8xbf16>
    %230 = arith.extf %37 : vector<16x1xbf16> to vector<16x1xf32>
    %231 = arith.extf %229 : vector<1x8xbf16> to vector<1x8xf32>
    %232 = vector.broadcast %230 : vector<16x1xf32> to vector<16x8xf32>
    %233 = vector.broadcast %231 : vector<1x8xf32> to vector<16x8xf32>
    %234 = arith.mulf %232, %233 : vector<16x8xf32>
    %235 = arith.addf %227, %234 : vector<16x8xf32>
    %c1_101 = arith.constant 1 : index
    %c0_102 = arith.constant 0 : index
    %c0_103 = arith.constant 0 : index
    %236 = vector.load %arg2[%c1_101, %c0_102, %c0_103] : memref<7x1x8xbf16, #tpu.memory_space<vmem>>, vector<1x1x8xbf16>
    %237 = vector.shape_cast %236 : vector<1x1x8xbf16> to vector<1x8xbf16>
    %238 = arith.extf %47 : vector<16x1xbf16> to vector<16x1xf32>
    %239 = arith.extf %237 : vector<1x8xbf16> to vector<1x8xf32>
    %240 = vector.broadcast %238 : vector<16x1xf32> to vector<16x8xf32>
    %241 = vector.broadcast %239 : vector<1x8xf32> to vector<16x8xf32>
    %242 = arith.mulf %240, %241 : vector<16x8xf32>
    %243 = arith.addf %235, %242 : vector<16x8xf32>
    %c2_104 = arith.constant 2 : index
    %c0_105 = arith.constant 0 : index
    %c0_106 = arith.constant 0 : index
    %244 = vector.load %arg2[%c2_104, %c0_105, %c0_106] : memref<7x1x8xbf16, #tpu.memory_space<vmem>>, vector<1x1x8xbf16>
    %245 = vector.shape_cast %244 : vector<1x1x8xbf16> to vector<1x8xbf16>
    %246 = arith.extf %57 : vector<16x1xbf16> to vector<16x1xf32>
    %247 = arith.extf %245 : vector<1x8xbf16> to vector<1x8xf32>
    %248 = vector.broadcast %246 : vector<16x1xf32> to vector<16x8xf32>
    %249 = vector.broadcast %247 : vector<1x8xf32> to vector<16x8xf32>
    %250 = arith.mulf %248, %249 : vector<16x8xf32>
    %251 = arith.addf %243, %250 : vector<16x8xf32>
    %c3_107 = arith.constant 3 : index
    %c0_108 = arith.constant 0 : index
    %c0_109 = arith.constant 0 : index
    %252 = vector.load %arg2[%c3_107, %c0_108, %c0_109] : memref<7x1x8xbf16, #tpu.memory_space<vmem>>, vector<1x1x8xbf16>
    %253 = vector.shape_cast %252 : vector<1x1x8xbf16> to vector<1x8xbf16>
    %254 = arith.extf %67 : vector<16x1xbf16> to vector<16x1xf32>
    %255 = arith.extf %253 : vector<1x8xbf16> to vector<1x8xf32>
    %256 = vector.broadcast %254 : vector<16x1xf32> to vector<16x8xf32>
    %257 = vector.broadcast %255 : vector<1x8xf32> to vector<16x8xf32>
    %258 = arith.mulf %256, %257 : vector<16x8xf32>
    %259 = arith.addf %251, %258 : vector<16x8xf32>
    %c4_110 = arith.constant 4 : index
    %c0_111 = arith.constant 0 : index
    %c0_112 = arith.constant 0 : index
    %260 = vector.load %arg2[%c4_110, %c0_111, %c0_112] : memref<7x1x8xbf16, #tpu.memory_space<vmem>>, vector<1x1x8xbf16>
    %261 = vector.shape_cast %260 : vector<1x1x8xbf16> to vector<1x8xbf16>
    %262 = arith.extf %137 : vector<16x1xbf16> to vector<16x1xf32>
    %263 = arith.extf %261 : vector<1x8xbf16> to vector<1x8xf32>
    %264 = vector.broadcast %262 : vector<16x1xf32> to vector<16x8xf32>
    %265 = vector.broadcast %263 : vector<1x8xf32> to vector<16x8xf32>
    %266 = arith.mulf %264, %265 : vector<16x8xf32>
    %267 = arith.addf %259, %266 : vector<16x8xf32>
    %c5_113 = arith.constant 5 : index
    %c0_114 = arith.constant 0 : index
    %c0_115 = arith.constant 0 : index
    %268 = vector.load %arg2[%c5_113, %c0_114, %c0_115] : memref<7x1x8xbf16, #tpu.memory_space<vmem>>, vector<1x1x8xbf16>
    %269 = vector.shape_cast %268 : vector<1x1x8xbf16> to vector<1x8xbf16>
    %270 = arith.extf %207 : vector<16x1xbf16> to vector<16x1xf32>
    %271 = arith.extf %269 : vector<1x8xbf16> to vector<1x8xf32>
    %272 = vector.broadcast %270 : vector<16x1xf32> to vector<16x8xf32>
    %273 = vector.broadcast %271 : vector<1x8xf32> to vector<16x8xf32>
    %274 = arith.mulf %272, %273 : vector<16x8xf32>
    %275 = arith.addf %267, %274 : vector<16x8xf32>
    %c8_116 = arith.constant 8 : index
    %c3_117 = arith.constant 3 : index
    %276 = vector.load %arg23[%c8_116, %c3_117] : memref<24x32xf32, #tpu.memory_space<vmem>>, vector<16x1xf32>
    %277 = arith.truncf %276 : vector<16x1xf32> to vector<16x1xbf16>
    %c6_118 = arith.constant 6 : index
    %c0_119 = arith.constant 0 : index
    %c0_120 = arith.constant 0 : index
    %278 = vector.load %arg2[%c6_118, %c0_119, %c0_120] : memref<7x1x8xbf16, #tpu.memory_space<vmem>>, vector<1x1x8xbf16>
    %279 = vector.shape_cast %278 : vector<1x1x8xbf16> to vector<1x8xbf16>
    %280 = arith.extf %277 : vector<16x1xbf16> to vector<16x1xf32>
    %281 = arith.extf %279 : vector<1x8xbf16> to vector<1x8xf32>
    %282 = vector.broadcast %280 : vector<16x1xf32> to vector<16x8xf32>
    %283 = vector.broadcast %281 : vector<1x8xf32> to vector<16x8xf32>
    %284 = arith.mulf %282, %283 : vector<16x8xf32>
    %285 = arith.addf %275, %284 : vector<16x8xf32>
    %c0_121 = arith.constant 0 : index
    %c0_122 = arith.constant 0 : index
    %286 = vector.load %arg10[%c0_121, %c0_122] : memref<1x8xf32, #tpu.memory_space<vmem>>, vector<1x8xf32>
    %287 = vector.broadcast %286 : vector<1x8xf32> to vector<16x8xf32>
    %288 = arith.addf %285, %287 : vector<16x8xf32>
    %cst_123 = arith.constant 0.000000e+00 : f32
    %289 = vector.broadcast %cst_123 : f32 to vector<16x8xf32>
    %290 = arith.cmpf ogt, %288, %289 : vector<16x8xf32>
    %cst_124 = arith.constant 0.000000e+00 : f32
    %291 = vector.broadcast %cst_124 : f32 to vector<16x8xf32>
    %292 = arith.minimumf %288, %291 : vector<16x8xf32>
    %293 = math.exp %292 : vector<16x8xf32>
    %cst_125 = arith.constant 1.000000e+00 : f32
    %294 = vector.broadcast %cst_125 : f32 to vector<16x8xf32>
    %295 = arith.subf %293, %294 : vector<16x8xf32>
    %296 = arith.select %290, %288, %295 : vector<16x8xi1>, vector<16x8xf32>
    %c8_126 = arith.constant 8 : index
    %c0_127 = arith.constant 0 : index
    %297 = vector.load %arg23[%c8_126, %c0_127] : memref<24x32xf32, #tpu.memory_space<vmem>>, vector<16x8xf32>
    tpu.vector_store %arg23[%c8_126, %c0_127], %86 {strides = array<i32>} : memref<24x32xf32, #tpu.memory_space<vmem>>, vector<16x8xf32>,
    %c8_128 = arith.constant 8 : index
    %c8_129 = arith.constant 8 : index
    %298 = vector.load %arg23[%c8_128, %c8_129] : memref<24x32xf32, #tpu.memory_space<vmem>>, vector<16x8xf32>
    tpu.vector_store %arg23[%c8_128, %c8_129], %156 {strides = array<i32>} : memref<24x32xf32, #tpu.memory_space<vmem>>, vector<16x8xf32>,
    %c8_130 = arith.constant 8 : index
    %c16 = arith.constant 16 : index
    %299 = vector.load %arg23[%c8_130, %c16] : memref<24x32xf32, #tpu.memory_space<vmem>>, vector<16x8xf32>
    tpu.vector_store %arg23[%c8_130, %c16], %226 {strides = array<i32>} : memref<24x32xf32, #tpu.memory_space<vmem>>, vector<16x8xf32>,
    %c8_131 = arith.constant 8 : index
    %c24 = arith.constant 24 : index
    %300 = vector.load %arg23[%c8_131, %c24] : memref<24x32xf32, #tpu.memory_space<vmem>>, vector<16x8xf32>
    tpu.vector_store %arg23[%c8_131, %c24], %296 {strides = array<i32>} : memref<24x32xf32, #tpu.memory_space<vmem>>, vector<16x8xf32>,
    %cst_132 = arith.constant 0.000000e+00 : f32
    %301 = vector.broadcast %cst_132 : f32 to vector<16x16xf32>
    %c7_133 = arith.constant 7 : index
    %c16_134 = arith.constant 16 : index
    %302 = vector.load %arg23[%c7_133, %c16_134] : memref<24x32xf32, #tpu.memory_space<vmem>>, vector<16x8xf32>
    %303 = arith.truncf %302 : vector<16x8xf32> to vector<16x8xbf16>
    %c0_135 = arith.constant 0 : index
    %c0_136 = arith.constant 0 : index
    %c0_137 = arith.constant 0 : index
    %304 = vector.load %arg3[%c0_135, %c0_136, %c0_137] : memref<4x8x16xbf16, #tpu.memory_space<vmem>>, vector<1x8x16xbf16>
    %305 = vector.shape_cast %304 : vector<1x8x16xbf16> to vector<8x16xbf16>
    %cst_138 = arith.constant dense<0.000000e+00> : vector<16x16xf32>
    %306 = tpu.matmul %303, %305, %cst_138 {dimension_numbers = #tpu.dot_dimension_numbers<[1], [0], [0], [1], [0, 0, 1, 1], [], []>} : vector<16x8xbf16>, vector<8x16xbf16>, vector<16x16xf32> -> vector<16x16xf32>
    %307 = arith.addf %301, %306 : vector<16x16xf32>
    %c7_139 = arith.constant 7 : index
    %c24_140 = arith.constant 24 : index
    %308 = vector.load %arg23[%c7_139, %c24_140] : memref<24x32xf32, #tpu.memory_space<vmem>>, vector<16x8xf32>
    %309 = arith.truncf %308 : vector<16x8xf32> to vector<16x8xbf16>
    %c1_141 = arith.constant 1 : index
    %c0_142 = arith.constant 0 : index
    %c0_143 = arith.constant 0 : index
    %310 = vector.load %arg3[%c1_141, %c0_142, %c0_143] : memref<4x8x16xbf16, #tpu.memory_space<vmem>>, vector<1x8x16xbf16>
    %311 = vector.shape_cast %310 : vector<1x8x16xbf16> to vector<8x16xbf16>
    %cst_144 = arith.constant dense<0.000000e+00> : vector<16x16xf32>
    %312 = tpu.matmul %309, %311, %cst_144 {dimension_numbers = #tpu.dot_dimension_numbers<[1], [0], [0], [1], [0, 0, 1, 1], [], []>} : vector<16x8xbf16>, vector<8x16xbf16>, vector<16x16xf32> -> vector<16x16xf32>
    %313 = arith.addf %307, %312 : vector<16x16xf32>
    %c8_145 = arith.constant 8 : index
    %c0_146 = arith.constant 0 : index
    %314 = vector.load %arg23[%c8_145, %c0_146] : memref<24x32xf32, #tpu.memory_space<vmem>>, vector<16x8xf32>
    %315 = arith.truncf %314 : vector<16x8xf32> to vector<16x8xbf16>
    %c2_147 = arith.constant 2 : index
    %c0_148 = arith.constant 0 : index
    %c0_149 = arith.constant 0 : index
    %316 = vector.load %arg3[%c2_147, %c0_148, %c0_149] : memref<4x8x16xbf16, #tpu.memory_space<vmem>>, vector<1x8x16xbf16>
    %317 = vector.shape_cast %316 : vector<1x8x16xbf16> to vector<8x16xbf16>
    %cst_150 = arith.constant dense<0.000000e+00> : vector<16x16xf32>
    %318 = tpu.matmul %315, %317, %cst_150 {dimension_numbers = #tpu.dot_dimension_numbers<[1], [0], [0], [1], [0, 0, 1, 1], [], []>} : vector<16x8xbf16>, vector<8x16xbf16>, vector<16x16xf32> -> vector<16x16xf32>
    %319 = arith.addf %313, %318 : vector<16x16xf32>
    %c8_151 = arith.constant 8 : index
    %c8_152 = arith.constant 8 : index
    %320 = vector.load %arg23[%c8_151, %c8_152] : memref<24x32xf32, #tpu.memory_space<vmem>>, vector<16x8xf32>
    %321 = arith.truncf %320 : vector<16x8xf32> to vector<16x8xbf16>
    %c3_153 = arith.constant 3 : index
    %c0_154 = arith.constant 0 : index
    %c0_155 = arith.constant 0 : index
    %322 = vector.load %arg3[%c3_153, %c0_154, %c0_155] : memref<4x8x16xbf16, #tpu.memory_space<vmem>>, vector<1x8x16xbf16>
    %323 = vector.shape_cast %322 : vector<1x8x16xbf16> to vector<8x16xbf16>
    %cst_156 = arith.constant dense<0.000000e+00> : vector<16x16xf32>
    %324 = tpu.matmul %321, %323, %cst_156 {dimension_numbers = #tpu.dot_dimension_numbers<[1], [0], [0], [1], [0, 0, 1, 1], [], []>} : vector<16x8xbf16>, vector<8x16xbf16>, vector<16x16xf32> -> vector<16x16xf32>
    %325 = arith.addf %319, %324 : vector<16x16xf32>
    %c0_157 = arith.constant 0 : index
    %c0_158 = arith.constant 0 : index
    %326 = vector.load %arg11[%c0_157, %c0_158] : memref<1x16xf32, #tpu.memory_space<vmem>>, vector<1x16xf32>
    %327 = vector.broadcast %326 : vector<1x16xf32> to vector<16x16xf32>
    %328 = arith.addf %325, %327 : vector<16x16xf32>
    %cst_159 = arith.constant 0.000000e+00 : f32
    %329 = vector.broadcast %cst_159 : f32 to vector<16x16xf32>
    %330 = arith.cmpf ogt, %328, %329 : vector<16x16xf32>
    %cst_160 = arith.constant 0.000000e+00 : f32
    %331 = vector.broadcast %cst_160 : f32 to vector<16x16xf32>
    %332 = arith.minimumf %328, %331 : vector<16x16xf32>
    %333 = math.exp %332 : vector<16x16xf32>
    %cst_161 = arith.constant 1.000000e+00 : f32
    %334 = vector.broadcast %cst_161 : f32 to vector<16x16xf32>
    %335 = arith.subf %333, %334 : vector<16x16xf32>
    %336 = arith.select %330, %328, %335 : vector<16x16xi1>, vector<16x16xf32>
    %cst_162 = arith.constant 0.000000e+00 : f32
    %337 = vector.broadcast %cst_162 : f32 to vector<16x16xf32>
    %c0_163 = arith.constant 0 : index
    %c0_164 = arith.constant 0 : index
    %c0_165 = arith.constant 0 : index
    %338 = vector.load %arg3[%c0_163, %c0_164, %c0_165] : memref<4x8x16xbf16, #tpu.memory_space<vmem>>, vector<1x8x16xbf16>
    %339 = vector.shape_cast %338 : vector<1x8x16xbf16> to vector<8x16xbf16>
    %cst_166 = arith.constant dense<0.000000e+00> : vector<16x16xf32>
    %340 = tpu.matmul %315, %339, %cst_166 {dimension_numbers = #tpu.dot_dimension_numbers<[1], [0], [0], [1], [0, 0, 1, 1], [], []>} : vector<16x8xbf16>, vector<8x16xbf16>, vector<16x16xf32> -> vector<16x16xf32>
    %341 = arith.addf %337, %340 : vector<16x16xf32>
    %c1_167 = arith.constant 1 : index
    %c0_168 = arith.constant 0 : index
    %c0_169 = arith.constant 0 : index
    %342 = vector.load %arg3[%c1_167, %c0_168, %c0_169] : memref<4x8x16xbf16, #tpu.memory_space<vmem>>, vector<1x8x16xbf16>
    %343 = vector.shape_cast %342 : vector<1x8x16xbf16> to vector<8x16xbf16>
    %cst_170 = arith.constant dense<0.000000e+00> : vector<16x16xf32>
    %344 = tpu.matmul %321, %343, %cst_170 {dimension_numbers = #tpu.dot_dimension_numbers<[1], [0], [0], [1], [0, 0, 1, 1], [], []>} : vector<16x8xbf16>, vector<8x16xbf16>, vector<16x16xf32> -> vector<16x16xf32>
    %345 = arith.addf %341, %344 : vector<16x16xf32>
    %c8_171 = arith.constant 8 : index
    %c16_172 = arith.constant 16 : index
    %346 = vector.load %arg23[%c8_171, %c16_172] : memref<24x32xf32, #tpu.memory_space<vmem>>, vector<16x8xf32>
    %347 = arith.truncf %346 : vector<16x8xf32> to vector<16x8xbf16>
    %c2_173 = arith.constant 2 : index
    %c0_174 = arith.constant 0 : index
    %c0_175 = arith.constant 0 : index
    %348 = vector.load %arg3[%c2_173, %c0_174, %c0_175] : memref<4x8x16xbf16, #tpu.memory_space<vmem>>, vector<1x8x16xbf16>
    %349 = vector.shape_cast %348 : vector<1x8x16xbf16> to vector<8x16xbf16>
    %cst_176 = arith.constant dense<0.000000e+00> : vector<16x16xf32>
    %350 = tpu.matmul %347, %349, %cst_176 {dimension_numbers = #tpu.dot_dimension_numbers<[1], [0], [0], [1], [0, 0, 1, 1], [], []>} : vector<16x8xbf16>, vector<8x16xbf16>, vector<16x16xf32> -> vector<16x16xf32>
    %351 = arith.addf %345, %350 : vector<16x16xf32>
    %c8_177 = arith.constant 8 : index
    %c24_178 = arith.constant 24 : index
    %352 = vector.load %arg23[%c8_177, %c24_178] : memref<24x32xf32, #tpu.memory_space<vmem>>, vector<16x8xf32>
    %353 = arith.truncf %352 : vector<16x8xf32> to vector<16x8xbf16>
    %c3_179 = arith.constant 3 : index
    %c0_180 = arith.constant 0 : index
    %c0_181 = arith.constant 0 : index
    %354 = vector.load %arg3[%c3_179, %c0_180, %c0_181] : memref<4x8x16xbf16, #tpu.memory_space<vmem>>, vector<1x8x16xbf16>
    %355 = vector.shape_cast %354 : vector<1x8x16xbf16> to vector<8x16xbf16>
    %cst_182 = arith.constant dense<0.000000e+00> : vector<16x16xf32>
    %356 = tpu.matmul %353, %355, %cst_182 {dimension_numbers = #tpu.dot_dimension_numbers<[1], [0], [0], [1], [0, 0, 1, 1], [], []>} : vector<16x8xbf16>, vector<8x16xbf16>, vector<16x16xf32> -> vector<16x16xf32>
    %357 = arith.addf %351, %356 : vector<16x16xf32>
    %c0_183 = arith.constant 0 : index
    %c0_184 = arith.constant 0 : index
    %358 = vector.load %arg11[%c0_183, %c0_184] : memref<1x16xf32, #tpu.memory_space<vmem>>, vector<1x16xf32>
    %359 = vector.broadcast %358 : vector<1x16xf32> to vector<16x16xf32>
    %360 = arith.addf %357, %359 : vector<16x16xf32>
    %cst_185 = arith.constant 0.000000e+00 : f32
    %361 = vector.broadcast %cst_185 : f32 to vector<16x16xf32>
    %362 = arith.cmpf ogt, %360, %361 : vector<16x16xf32>
    %cst_186 = arith.constant 0.000000e+00 : f32
    %363 = vector.broadcast %cst_186 : f32 to vector<16x16xf32>
    %364 = arith.minimumf %360, %363 : vector<16x16xf32>
    %365 = math.exp %364 : vector<16x16xf32>
    %cst_187 = arith.constant 1.000000e+00 : f32
    %366 = vector.broadcast %cst_187 : f32 to vector<16x16xf32>
    %367 = arith.subf %365, %366 : vector<16x16xf32>
    %368 = arith.select %362, %360, %367 : vector<16x16xi1>, vector<16x16xf32>
    %c8_188 = arith.constant 8 : index
    %c0_189 = arith.constant 0 : index
    %369 = vector.load %arg23[%c8_188, %c0_189] : memref<24x32xf32, #tpu.memory_space<vmem>>, vector<16x16xf32>
    tpu.vector_store %arg23[%c8_188, %c0_189], %336 {strides = array<i32>} : memref<24x32xf32, #tpu.memory_space<vmem>>, vector<16x16xf32>,
    %c8_190 = arith.constant 8 : index
    %c16_191 = arith.constant 16 : index
    %370 = vector.load %arg23[%c8_190, %c16_191] : memref<24x32xf32, #tpu.memory_space<vmem>>, vector<16x16xf32>
    tpu.vector_store %arg23[%c8_190, %c16_191], %368 {strides = array<i32>} : memref<24x32xf32, #tpu.memory_space<vmem>>, vector<16x16xf32>,
    %cst_192 = arith.constant 0.000000e+00 : f32
    %371 = vector.broadcast %cst_192 : f32 to vector<16x32xf32>
    %c7_193 = arith.constant 7 : index
    %c0_194 = arith.constant 0 : index
    %372 = vector.load %arg23[%c7_193, %c0_194] : memref<24x32xf32, #tpu.memory_space<vmem>>, vector<16x16xf32>
    %373 = arith.truncf %372 : vector<16x16xf32> to vector<16x16xbf16>
    %c0_195 = arith.constant 0 : index
    %c0_196 = arith.constant 0 : index
    %c0_197 = arith.constant 0 : index
    %374 = vector.load %arg4[%c0_195, %c0_196, %c0_197] : memref<4x16x32xbf16, #tpu.memory_space<vmem>>, vector<1x16x32xbf16>
    %375 = vector.shape_cast %374 : vector<1x16x32xbf16> to vector<16x32xbf16>
    %cst_198 = arith.constant dense<0.000000e+00> : vector<16x32xf32>
    %376 = tpu.matmul %373, %375, %cst_198 {dimension_numbers = #tpu.dot_dimension_numbers<[1], [0], [0], [1], [0, 0, 1, 1], [], []>} : vector<16x16xbf16>, vector<16x32xbf16>, vector<16x32xf32> -> vector<16x32xf32>
    %377 = arith.addf %371, %376 : vector<16x32xf32>
    %c7_199 = arith.constant 7 : index
    %c16_200 = arith.constant 16 : index
    %378 = vector.load %arg23[%c7_199, %c16_200] : memref<24x32xf32, #tpu.memory_space<vmem>>, vector<16x16xf32>
    %379 = arith.truncf %378 : vector<16x16xf32> to vector<16x16xbf16>
    %c1_201 = arith.constant 1 : index
    %c0_202 = arith.constant 0 : index
    %c0_203 = arith.constant 0 : index
    %380 = vector.load %arg4[%c1_201, %c0_202, %c0_203] : memref<4x16x32xbf16, #tpu.memory_space<vmem>>, vector<1x16x32xbf16>
    %381 = vector.shape_cast %380 : vector<1x16x32xbf16> to vector<16x32xbf16>
    %cst_204 = arith.constant dense<0.000000e+00> : vector<16x32xf32>
    %382 = tpu.matmul %379, %381, %cst_204 {dimension_numbers = #tpu.dot_dimension_numbers<[1], [0], [0], [1], [0, 0, 1, 1], [], []>} : vector<16x16xbf16>, vector<16x32xbf16>, vector<16x32xf32> -> vector<16x32xf32>
    %383 = arith.addf %377, %382 : vector<16x32xf32>
    %c8_205 = arith.constant 8 : index
    %c0_206 = arith.constant 0 : index
    %384 = vector.load %arg23[%c8_205, %c0_206] : memref<24x32xf32, #tpu.memory_space<vmem>>, vector<16x16xf32>
    %385 = arith.truncf %384 : vector<16x16xf32> to vector<16x16xbf16>
    %c2_207 = arith.constant 2 : index
    %c0_208 = arith.constant 0 : index
    %c0_209 = arith.constant 0 : index
    %386 = vector.load %arg4[%c2_207, %c0_208, %c0_209] : memref<4x16x32xbf16, #tpu.memory_space<vmem>>, vector<1x16x32xbf16>
    %387 = vector.shape_cast %386 : vector<1x16x32xbf16> to vector<16x32xbf16>
    %cst_210 = arith.constant dense<0.000000e+00> : vector<16x32xf32>
    %388 = tpu.matmul %385, %387, %cst_210 {dimension_numbers = #tpu.dot_dimension_numbers<[1], [0], [0], [1], [0, 0, 1, 1], [], []>} : vector<16x16xbf16>, vector<16x32xbf16>, vector<16x32xf32> -> vector<16x32xf32>
    %389 = arith.addf %383, %388 : vector<16x32xf32>
    %c8_211 = arith.constant 8 : index
    %c16_212 = arith.constant 16 : index
    %390 = vector.load %arg23[%c8_211, %c16_212] : memref<24x32xf32, #tpu.memory_space<vmem>>, vector<16x16xf32>
    %391 = arith.truncf %390 : vector<16x16xf32> to vector<16x16xbf16>
    %c3_213 = arith.constant 3 : index
    %c0_214 = arith.constant 0 : index
    %c0_215 = arith.constant 0 : index
    %392 = vector.load %arg4[%c3_213, %c0_214, %c0_215] : memref<4x16x32xbf16, #tpu.memory_space<vmem>>, vector<1x16x32xbf16>
    %393 = vector.shape_cast %392 : vector<1x16x32xbf16> to vector<16x32xbf16>
    %cst_216 = arith.constant dense<0.000000e+00> : vector<16x32xf32>
    %394 = tpu.matmul %391, %393, %cst_216 {dimension_numbers = #tpu.dot_dimension_numbers<[1], [0], [0], [1], [0, 0, 1, 1], [], []>} : vector<16x16xbf16>, vector<16x32xbf16>, vector<16x32xf32> -> vector<16x32xf32>
    %395 = arith.addf %389, %394 : vector<16x32xf32>
    %c0_217 = arith.constant 0 : index
    %c0_218 = arith.constant 0 : index
    %396 = vector.load %arg12[%c0_217, %c0_218] : memref<1x32xf32, #tpu.memory_space<vmem>>, vector<1x32xf32>
    %397 = vector.broadcast %396 : vector<1x32xf32> to vector<16x32xf32>
    %398 = arith.addf %395, %397 : vector<16x32xf32>
    %cst_219 = arith.constant 0.000000e+00 : f32
    %399 = vector.broadcast %cst_219 : f32 to vector<16x32xf32>
    %400 = arith.cmpf ogt, %398, %399 : vector<16x32xf32>
    %cst_220 = arith.constant 0.000000e+00 : f32
    %401 = vector.broadcast %cst_220 : f32 to vector<16x32xf32>
    %402 = arith.minimumf %398, %401 : vector<16x32xf32>
    %403 = math.exp %402 : vector<16x32xf32>
    %cst_221 = arith.constant 1.000000e+00 : f32
    %404 = vector.broadcast %cst_221 : f32 to vector<16x32xf32>
    %405 = arith.subf %403, %404 : vector<16x32xf32>
    %406 = arith.select %400, %398, %405 : vector<16x32xi1>, vector<16x32xf32>
    %c8_222 = arith.constant 8 : index
    %c0_223 = arith.constant 0 : index
    %407 = vector.load %arg23[%c8_222, %c0_223] : memref<24x32xf32, #tpu.memory_space<vmem>>, vector<16x32xf32>
    tpu.vector_store %arg23[%c8_222, %c0_223], %406 {strides = array<i32>} : memref<24x32xf32, #tpu.memory_space<vmem>>, vector<16x32xf32>,
    %cst_224 = arith.constant 0.000000e+00 : f32
    %408 = vector.broadcast %cst_224 : f32 to vector<16x16xf32>
    %c2_225 = arith.constant 2 : index
    %c0_226 = arith.constant 0 : index
    %409 = vector.load %arg23[%c2_225, %c0_226] : memref<24x32xf32, #tpu.memory_space<vmem>>, vector<16x32xf32>
    %410 = arith.truncf %409 : vector<16x32xf32> to vector<16x32xbf16>
    %c0_227 = arith.constant 0 : index
    %c0_228 = arith.constant 0 : index
    %c0_229 = arith.constant 0 : index
    %411 = vector.load %arg5[%c0_227, %c0_228, %c0_229] : memref<7x32x16xbf16, #tpu.memory_space<vmem>>, vector<1x32x16xbf16>
    %412 = vector.shape_cast %411 : vector<1x32x16xbf16> to vector<32x16xbf16>
    %cst_230 = arith.constant dense<0.000000e+00> : vector<16x16xf32>
    %413 = tpu.matmul %410, %412, %cst_230 {dimension_numbers = #tpu.dot_dimension_numbers<[1], [0], [0], [1], [0, 0, 1, 1], [], []>} : vector<16x32xbf16>, vector<32x16xbf16>, vector<16x16xf32> -> vector<16x16xf32>
    %414 = arith.addf %408, %413 : vector<16x16xf32>
    %c3_231 = arith.constant 3 : index
    %c0_232 = arith.constant 0 : index
    %415 = vector.load %arg23[%c3_231, %c0_232] : memref<24x32xf32, #tpu.memory_space<vmem>>, vector<16x32xf32>
    %416 = arith.truncf %415 : vector<16x32xf32> to vector<16x32xbf16>
    %c1_233 = arith.constant 1 : index
    %c0_234 = arith.constant 0 : index
    %c0_235 = arith.constant 0 : index
    %417 = vector.load %arg5[%c1_233, %c0_234, %c0_235] : memref<7x32x16xbf16, #tpu.memory_space<vmem>>, vector<1x32x16xbf16>
    %418 = vector.shape_cast %417 : vector<1x32x16xbf16> to vector<32x16xbf16>
    %cst_236 = arith.constant dense<0.000000e+00> : vector<16x16xf32>
    %419 = tpu.matmul %416, %418, %cst_236 {dimension_numbers = #tpu.dot_dimension_numbers<[1], [0], [0], [1], [0, 0, 1, 1], [], []>} : vector<16x32xbf16>, vector<32x16xbf16>, vector<16x16xf32> -> vector<16x16xf32>
    %420 = arith.addf %414, %419 : vector<16x16xf32>
    %c4_237 = arith.constant 4 : index
    %c0_238 = arith.constant 0 : index
    %421 = vector.load %arg23[%c4_237, %c0_238] : memref<24x32xf32, #tpu.memory_space<vmem>>, vector<16x32xf32>
    %422 = arith.truncf %421 : vector<16x32xf32> to vector<16x32xbf16>
    %c2_239 = arith.constant 2 : index
    %c0_240 = arith.constant 0 : index
    %c0_241 = arith.constant 0 : index
    %423 = vector.load %arg5[%c2_239, %c0_240, %c0_241] : memref<7x32x16xbf16, #tpu.memory_space<vmem>>, vector<1x32x16xbf16>
    %424 = vector.shape_cast %423 : vector<1x32x16xbf16> to vector<32x16xbf16>
    %cst_242 = arith.constant dense<0.000000e+00> : vector<16x16xf32>
    %425 = tpu.matmul %422, %424, %cst_242 {dimension_numbers = #tpu.dot_dimension_numbers<[1], [0], [0], [1], [0, 0, 1, 1], [], []>} : vector<16x32xbf16>, vector<32x16xbf16>, vector<16x16xf32> -> vector<16x16xf32>
    %426 = arith.addf %420, %425 : vector<16x16xf32>
    %c5_243 = arith.constant 5 : index
    %c0_244 = arith.constant 0 : index
    %427 = vector.load %arg23[%c5_243, %c0_244] : memref<24x32xf32, #tpu.memory_space<vmem>>, vector<16x32xf32>
    %428 = arith.truncf %427 : vector<16x32xf32> to vector<16x32xbf16>
    %c3_245 = arith.constant 3 : index
    %c0_246 = arith.constant 0 : index
    %c0_247 = arith.constant 0 : index
    %429 = vector.load %arg5[%c3_245, %c0_246, %c0_247] : memref<7x32x16xbf16, #tpu.memory_space<vmem>>, vector<1x32x16xbf16>
    %430 = vector.shape_cast %429 : vector<1x32x16xbf16> to vector<32x16xbf16>
    %cst_248 = arith.constant dense<0.000000e+00> : vector<16x16xf32>
    %431 = tpu.matmul %428, %430, %cst_248 {dimension_numbers = #tpu.dot_dimension_numbers<[1], [0], [0], [1], [0, 0, 1, 1], [], []>} : vector<16x32xbf16>, vector<32x16xbf16>, vector<16x16xf32> -> vector<16x16xf32>
    %432 = arith.addf %426, %431 : vector<16x16xf32>
    %c6_249 = arith.constant 6 : index
    %c0_250 = arith.constant 0 : index
    %433 = vector.load %arg23[%c6_249, %c0_250] : memref<24x32xf32, #tpu.memory_space<vmem>>, vector<16x32xf32>
    %434 = arith.truncf %433 : vector<16x32xf32> to vector<16x32xbf16>
    %c4_251 = arith.constant 4 : index
    %c0_252 = arith.constant 0 : index
    %c0_253 = arith.constant 0 : index
    %435 = vector.load %arg5[%c4_251, %c0_252, %c0_253] : memref<7x32x16xbf16, #tpu.memory_space<vmem>>, vector<1x32x16xbf16>
    %436 = vector.shape_cast %435 : vector<1x32x16xbf16> to vector<32x16xbf16>
    %cst_254 = arith.constant dense<0.000000e+00> : vector<16x16xf32>
    %437 = tpu.matmul %434, %436, %cst_254 {dimension_numbers = #tpu.dot_dimension_numbers<[1], [0], [0], [1], [0, 0, 1, 1], [], []>} : vector<16x32xbf16>, vector<32x16xbf16>, vector<16x16xf32> -> vector<16x16xf32>
    %438 = arith.addf %432, %437 : vector<16x16xf32>
    %c7_255 = arith.constant 7 : index
    %c0_256 = arith.constant 0 : index
    %439 = vector.load %arg23[%c7_255, %c0_256] : memref<24x32xf32, #tpu.memory_space<vmem>>, vector<16x32xf32>
    %440 = arith.truncf %439 : vector<16x32xf32> to vector<16x32xbf16>
    %c5_257 = arith.constant 5 : index
    %c0_258 = arith.constant 0 : index
    %c0_259 = arith.constant 0 : index
    %441 = vector.load %arg5[%c5_257, %c0_258, %c0_259] : memref<7x32x16xbf16, #tpu.memory_space<vmem>>, vector<1x32x16xbf16>
    %442 = vector.shape_cast %441 : vector<1x32x16xbf16> to vector<32x16xbf16>
    %cst_260 = arith.constant dense<0.000000e+00> : vector<16x16xf32>
    %443 = tpu.matmul %440, %442, %cst_260 {dimension_numbers = #tpu.dot_dimension_numbers<[1], [0], [0], [1], [0, 0, 1, 1], [], []>} : vector<16x32xbf16>, vector<32x16xbf16>, vector<16x16xf32> -> vector<16x16xf32>
    %444 = arith.addf %438, %443 : vector<16x16xf32>
    %c8_261 = arith.constant 8 : index
    %c0_262 = arith.constant 0 : index
    %445 = vector.load %arg23[%c8_261, %c0_262] : memref<24x32xf32, #tpu.memory_space<vmem>>, vector<16x32xf32>
    %446 = arith.truncf %445 : vector<16x32xf32> to vector<16x32xbf16>
    %c6_263 = arith.constant 6 : index
    %c0_264 = arith.constant 0 : index
    %c0_265 = arith.constant 0 : index
    %447 = vector.load %arg5[%c6_263, %c0_264, %c0_265] : memref<7x32x16xbf16, #tpu.memory_space<vmem>>, vector<1x32x16xbf16>
    %448 = vector.shape_cast %447 : vector<1x32x16xbf16> to vector<32x16xbf16>
    %cst_266 = arith.constant dense<0.000000e+00> : vector<16x16xf32>
    %449 = tpu.matmul %446, %448, %cst_266 {dimension_numbers = #tpu.dot_dimension_numbers<[1], [0], [0], [1], [0, 0, 1, 1], [], []>} : vector<16x32xbf16>, vector<32x16xbf16>, vector<16x16xf32> -> vector<16x16xf32>
    %450 = arith.addf %444, %449 : vector<16x16xf32>
    %c0_267 = arith.constant 0 : index
    %c0_268 = arith.constant 0 : index
    %451 = vector.load %arg13[%c0_267, %c0_268] : memref<1x16xf32, #tpu.memory_space<vmem>>, vector<1x16xf32>
    %452 = vector.broadcast %451 : vector<1x16xf32> to vector<16x16xf32>
    %453 = arith.addf %450, %452 : vector<16x16xf32>
    %454 = tpu.iota {dimensions = array<i32: 1>} : vector<16x64xi32>
    %455 = arith.sitofp %454 : vector<16x64xi32> to vector<16x64xf32>
    %456 = tpu.iota {dimensions = array<i32: 1>} : vector<16x4xi32>
    %cst_269 = arith.constant 0.000000e+00 : f32
    %457 = vector.broadcast %cst_269 : f32 to vector<16x16xf32>
    %c0_i32 = arith.constant 0 : i32
    %458 = vector.broadcast %c0_i32 : i32 to vector<16x4xi32>
    %c0_270 = arith.constant 0 : index
    %c0_271 = arith.constant 0 : index
    %c0_272 = arith.constant 0 : index
    %459 = vector.load %arg19[%c0_270, %c0_271, %c0_272] : memref<4x16x64xf32, #tpu.memory_space<vmem>>, vector<1x16x64xf32>
    %460 = vector.shape_cast %459 : vector<1x16x64xf32> to vector<16x64xf32>
    %cst_273 = arith.constant dense<0.000000e+00> : vector<16x64xf32>
    %461 = tpu.matmul %453, %460, %cst_273 {dimension_numbers = #tpu.dot_dimension_numbers<[1], [0], [0], [1], [0, 0, 1, 1], [], []>} : vector<16x16xf32>, vector<16x64xf32>, vector<16x64xf32> -> vector<16x64xf32>
    %c0_274 = arith.constant 0 : index
    %c0_275 = arith.constant 0 : index
    %c0_276 = arith.constant 0 : index
    %462 = vector.load %arg20[%c0_274, %c0_275, %c0_276] : memref<4x1x64xf32, #tpu.memory_space<vmem>>, vector<1x1x64xf32>
    %463 = vector.shape_cast %462 : vector<1x1x64xf32> to vector<1x64xf32>
    %cst_277 = arith.constant 2.000000e+00 : f32
    %464 = vector.broadcast %cst_277 : f32 to vector<16x64xf32>
    %465 = arith.mulf %464, %461 : vector<16x64xf32>
    %466 = vector.broadcast %463 : vector<1x64xf32> to vector<16x64xf32>
    %467 = arith.subf %466, %465 : vector<16x64xf32>
    %cst_278 = arith.constant dense<0x7F800000> : vector<16xf32>
    %468 = vector.multi_reduction <minimumf>, %467, %cst_278 [1] : vector<16x64xf32> to vector<16xf32>
    %469 = vector.shape_cast %468 : vector<16xf32> to vector<16x1xf32>
    %470 = vector.broadcast %469 : vector<16x1xf32> to vector<16x64xf32>
    %471 = arith.cmpf ole, %467, %470 : vector<16x64xf32>
    %cst_279 = arith.constant 6.400000e+01 : f32
    %472 = vector.broadcast %cst_279 : f32 to vector<16x64xf32>
    %473 = arith.select %471, %455, %472 : vector<16x64xi1>, vector<16x64xf32>
    %cst_280 = arith.constant dense<0x7F800000> : vector<16xf32>
    %474 = vector.multi_reduction <minimumf>, %473, %cst_280 [1] : vector<16x64xf32> to vector<16xf32>
    %475 = vector.shape_cast %474 : vector<16xf32> to vector<16x1xf32>
    %476 = vector.broadcast %475 : vector<16x1xf32> to vector<16x64xf32>
    %477 = arith.cmpf oeq, %455, %476 : vector<16x64xf32>
    %478 = arith.extui %477 : vector<16x64xi1> to vector<16x64xi32>
    %479 = arith.sitofp %478 : vector<16x64xi32> to vector<16x64xf32>
    %c0_281 = arith.constant 0 : index
    %c0_282 = arith.constant 0 : index
    %c0_283 = arith.constant 0 : index
    %480 = vector.load %arg18[%c0_281, %c0_282, %c0_283] : memref<4x64x16xf32, #tpu.memory_space<vmem>>, vector<1x64x16xf32>
    %481 = vector.shape_cast %480 : vector<1x64x16xf32> to vector<64x16xf32>
    %cst_284 = arith.constant dense<0.000000e+00> : vector<16x16xf32>
    %482 = tpu.matmul %479, %481, %cst_284 {dimension_numbers = #tpu.dot_dimension_numbers<[1], [0], [0], [1], [0, 0, 1, 1], [], []>} : vector<16x64xf32>, vector<64x16xf32>, vector<16x16xf32> -> vector<16x16xf32>
    %483 = arith.subf %453, %482 : vector<16x16xf32>
    %484 = arith.addf %457, %482 : vector<16x16xf32>
    %c0_i32_285 = arith.constant 0 : i32
    %485 = vector.broadcast %c0_i32_285 : i32 to vector<16x4xi32>
    %486 = arith.cmpi eq, %456, %485 : vector<16x4xi32>
    %487 = arith.fptosi %475 : vector<16x1xf32> to vector<16x1xi32>
    %488 = vector.shape_cast %487 : vector<16x1xi32> to vector<16x1xi32>
    %489 = vector.broadcast %488 : vector<16x1xi32> to vector<16x4xi32>
    %490 = arith.select %486, %489, %458 : vector<16x4xi1>, vector<16x4xi32>
    %c1_286 = arith.constant 1 : index
    %c0_287 = arith.constant 0 : index
    %c0_288 = arith.constant 0 : index
    %491 = vector.load %arg19[%c1_286, %c0_287, %c0_288] : memref<4x16x64xf32, #tpu.memory_space<vmem>>, vector<1x16x64xf32>
    %492 = vector.shape_cast %491 : vector<1x16x64xf32> to vector<16x64xf32>
    %cst_289 = arith.constant dense<0.000000e+00> : vector<16x64xf32>
    %493 = tpu.matmul %483, %492, %cst_289 {dimension_numbers = #tpu.dot_dimension_numbers<[1], [0], [0], [1], [0, 0, 1, 1], [], []>} : vector<16x16xf32>, vector<16x64xf32>, vector<16x64xf32> -> vector<16x64xf32>
    %c1_290 = arith.constant 1 : index
    %c0_291 = arith.constant 0 : index
    %c0_292 = arith.constant 0 : index
    %494 = vector.load %arg20[%c1_290, %c0_291, %c0_292] : memref<4x1x64xf32, #tpu.memory_space<vmem>>, vector<1x1x64xf32>
    %495 = vector.shape_cast %494 : vector<1x1x64xf32> to vector<1x64xf32>
    %cst_293 = arith.constant 2.000000e+00 : f32
    %496 = vector.broadcast %cst_293 : f32 to vector<16x64xf32>
    %497 = arith.mulf %496, %493 : vector<16x64xf32>
    %498 = vector.broadcast %495 : vector<1x64xf32> to vector<16x64xf32>
    %499 = arith.subf %498, %497 : vector<16x64xf32>
    %cst_294 = arith.constant dense<0x7F800000> : vector<16xf32>
    %500 = vector.multi_reduction <minimumf>, %499, %cst_294 [1] : vector<16x64xf32> to vector<16xf32>
    %501 = vector.shape_cast %500 : vector<16xf32> to vector<16x1xf32>
    %502 = vector.broadcast %501 : vector<16x1xf32> to vector<16x64xf32>
    %503 = arith.cmpf ole, %499, %502 : vector<16x64xf32>
    %cst_295 = arith.constant 6.400000e+01 : f32
    %504 = vector.broadcast %cst_295 : f32 to vector<16x64xf32>
    %505 = arith.select %503, %455, %504 : vector<16x64xi1>, vector<16x64xf32>
    %cst_296 = arith.constant dense<0x7F800000> : vector<16xf32>
    %506 = vector.multi_reduction <minimumf>, %505, %cst_296 [1] : vector<16x64xf32> to vector<16xf32>
    %507 = vector.shape_cast %506 : vector<16xf32> to vector<16x1xf32>
    %508 = vector.broadcast %507 : vector<16x1xf32> to vector<16x64xf32>
    %509 = arith.cmpf oeq, %455, %508 : vector<16x64xf32>
    %510 = arith.extui %509 : vector<16x64xi1> to vector<16x64xi32>
    %511 = arith.sitofp %510 : vector<16x64xi32> to vector<16x64xf32>
    %c1_297 = arith.constant 1 : index
    %c0_298 = arith.constant 0 : index
    %c0_299 = arith.constant 0 : index
    %512 = vector.load %arg18[%c1_297, %c0_298, %c0_299] : memref<4x64x16xf32, #tpu.memory_space<vmem>>, vector<1x64x16xf32>
    %513 = vector.shape_cast %512 : vector<1x64x16xf32> to vector<64x16xf32>
    %cst_300 = arith.constant dense<0.000000e+00> : vector<16x16xf32>
    %514 = tpu.matmul %511, %513, %cst_300 {dimension_numbers = #tpu.dot_dimension_numbers<[1], [0], [0], [1], [0, 0, 1, 1], [], []>} : vector<16x64xf32>, vector<64x16xf32>, vector<16x16xf32> -> vector<16x16xf32>
    %515 = arith.subf %483, %514 : vector<16x16xf32>
    %516 = arith.addf %484, %514 : vector<16x16xf32>
    %c1_i32 = arith.constant 1 : i32
    %517 = vector.broadcast %c1_i32 : i32 to vector<16x4xi32>
    %518 = arith.cmpi eq, %456, %517 : vector<16x4xi32>
    %519 = arith.fptosi %507 : vector<16x1xf32> to vector<16x1xi32>
    %520 = vector.shape_cast %519 : vector<16x1xi32> to vector<16x1xi32>
    %521 = vector.broadcast %520 : vector<16x1xi32> to vector<16x4xi32>
    %522 = arith.select %518, %521, %490 : vector<16x4xi1>, vector<16x4xi32>
    %c2_301 = arith.constant 2 : index
    %c0_302 = arith.constant 0 : index
    %c0_303 = arith.constant 0 : index
    %523 = vector.load %arg19[%c2_301, %c0_302, %c0_303] : memref<4x16x64xf32, #tpu.memory_space<vmem>>, vector<1x16x64xf32>
    %524 = vector.shape_cast %523 : vector<1x16x64xf32> to vector<16x64xf32>
    %cst_304 = arith.constant dense<0.000000e+00> : vector<16x64xf32>
    %525 = tpu.matmul %515, %524, %cst_304 {dimension_numbers = #tpu.dot_dimension_numbers<[1], [0], [0], [1], [0, 0, 1, 1], [], []>} : vector<16x16xf32>, vector<16x64xf32>, vector<16x64xf32> -> vector<16x64xf32>
    %c2_305 = arith.constant 2 : index
    %c0_306 = arith.constant 0 : index
    %c0_307 = arith.constant 0 : index
    %526 = vector.load %arg20[%c2_305, %c0_306, %c0_307] : memref<4x1x64xf32, #tpu.memory_space<vmem>>, vector<1x1x64xf32>
    %527 = vector.shape_cast %526 : vector<1x1x64xf32> to vector<1x64xf32>
    %cst_308 = arith.constant 2.000000e+00 : f32
    %528 = vector.broadcast %cst_308 : f32 to vector<16x64xf32>
    %529 = arith.mulf %528, %525 : vector<16x64xf32>
    %530 = vector.broadcast %527 : vector<1x64xf32> to vector<16x64xf32>
    %531 = arith.subf %530, %529 : vector<16x64xf32>
    %cst_309 = arith.constant dense<0x7F800000> : vector<16xf32>
    %532 = vector.multi_reduction <minimumf>, %531, %cst_309 [1] : vector<16x64xf32> to vector<16xf32>
    %533 = vector.shape_cast %532 : vector<16xf32> to vector<16x1xf32>
    %534 = vector.broadcast %533 : vector<16x1xf32> to vector<16x64xf32>
    %535 = arith.cmpf ole, %531, %534 : vector<16x64xf32>
    %cst_310 = arith.constant 6.400000e+01 : f32
    %536 = vector.broadcast %cst_310 : f32 to vector<16x64xf32>
    %537 = arith.select %535, %455, %536 : vector<16x64xi1>, vector<16x64xf32>
    %cst_311 = arith.constant dense<0x7F800000> : vector<16xf32>
    %538 = vector.multi_reduction <minimumf>, %537, %cst_311 [1] : vector<16x64xf32> to vector<16xf32>
    %539 = vector.shape_cast %538 : vector<16xf32> to vector<16x1xf32>
    %540 = vector.broadcast %539 : vector<16x1xf32> to vector<16x64xf32>
    %541 = arith.cmpf oeq, %455, %540 : vector<16x64xf32>
    %542 = arith.extui %541 : vector<16x64xi1> to vector<16x64xi32>
    %543 = arith.sitofp %542 : vector<16x64xi32> to vector<16x64xf32>
    %c2_312 = arith.constant 2 : index
    %c0_313 = arith.constant 0 : index
    %c0_314 = arith.constant 0 : index
    %544 = vector.load %arg18[%c2_312, %c0_313, %c0_314] : memref<4x64x16xf32, #tpu.memory_space<vmem>>, vector<1x64x16xf32>
    %545 = vector.shape_cast %544 : vector<1x64x16xf32> to vector<64x16xf32>
    %cst_315 = arith.constant dense<0.000000e+00> : vector<16x16xf32>
    %546 = tpu.matmul %543, %545, %cst_315 {dimension_numbers = #tpu.dot_dimension_numbers<[1], [0], [0], [1], [0, 0, 1, 1], [], []>} : vector<16x64xf32>, vector<64x16xf32>, vector<16x16xf32> -> vector<16x16xf32>
    %547 = arith.subf %515, %546 : vector<16x16xf32>
    %548 = arith.addf %516, %546 : vector<16x16xf32>
    %c2_i32 = arith.constant 2 : i32
    %549 = vector.broadcast %c2_i32 : i32 to vector<16x4xi32>
    %550 = arith.cmpi eq, %456, %549 : vector<16x4xi32>
    %551 = arith.fptosi %539 : vector<16x1xf32> to vector<16x1xi32>
    %552 = vector.shape_cast %551 : vector<16x1xi32> to vector<16x1xi32>
    %553 = vector.broadcast %552 : vector<16x1xi32> to vector<16x4xi32>
    %554 = arith.select %550, %553, %522 : vector<16x4xi1>, vector<16x4xi32>
    %c3_316 = arith.constant 3 : index
    %c0_317 = arith.constant 0 : index
    %c0_318 = arith.constant 0 : index
    %555 = vector.load %arg19[%c3_316, %c0_317, %c0_318] : memref<4x16x64xf32, #tpu.memory_space<vmem>>, vector<1x16x64xf32>
    %556 = vector.shape_cast %555 : vector<1x16x64xf32> to vector<16x64xf32>
    %cst_319 = arith.constant dense<0.000000e+00> : vector<16x64xf32>
    %557 = tpu.matmul %547, %556, %cst_319 {dimension_numbers = #tpu.dot_dimension_numbers<[1], [0], [0], [1], [0, 0, 1, 1], [], []>} : vector<16x16xf32>, vector<16x64xf32>, vector<16x64xf32> -> vector<16x64xf32>
    %c3_320 = arith.constant 3 : index
    %c0_321 = arith.constant 0 : index
    %c0_322 = arith.constant 0 : index
    %558 = vector.load %arg20[%c3_320, %c0_321, %c0_322] : memref<4x1x64xf32, #tpu.memory_space<vmem>>, vector<1x1x64xf32>
    %559 = vector.shape_cast %558 : vector<1x1x64xf32> to vector<1x64xf32>
    %cst_323 = arith.constant 2.000000e+00 : f32
    %560 = vector.broadcast %cst_323 : f32 to vector<16x64xf32>
    %561 = arith.mulf %560, %557 : vector<16x64xf32>
    %562 = vector.broadcast %559 : vector<1x64xf32> to vector<16x64xf32>
    %563 = arith.subf %562, %561 : vector<16x64xf32>
    %cst_324 = arith.constant dense<0x7F800000> : vector<16xf32>
    %564 = vector.multi_reduction <minimumf>, %563, %cst_324 [1] : vector<16x64xf32> to vector<16xf32>
    %565 = vector.shape_cast %564 : vector<16xf32> to vector<16x1xf32>
    %566 = vector.broadcast %565 : vector<16x1xf32> to vector<16x64xf32>
    %567 = arith.cmpf ole, %563, %566 : vector<16x64xf32>
    %cst_325 = arith.constant 6.400000e+01 : f32
    %568 = vector.broadcast %cst_325 : f32 to vector<16x64xf32>
    %569 = arith.select %567, %455, %568 : vector<16x64xi1>, vector<16x64xf32>
    %cst_326 = arith.constant dense<0x7F800000> : vector<16xf32>
    %570 = vector.multi_reduction <minimumf>, %569, %cst_326 [1] : vector<16x64xf32> to vector<16xf32>
    %571 = vector.shape_cast %570 : vector<16xf32> to vector<16x1xf32>
    %572 = vector.broadcast %571 : vector<16x1xf32> to vector<16x64xf32>
    %573 = arith.cmpf oeq, %455, %572 : vector<16x64xf32>
    %574 = arith.extui %573 : vector<16x64xi1> to vector<16x64xi32>
    %575 = arith.sitofp %574 : vector<16x64xi32> to vector<16x64xf32>
    %c3_327 = arith.constant 3 : index
    %c0_328 = arith.constant 0 : index
    %c0_329 = arith.constant 0 : index
    %576 = vector.load %arg18[%c3_327, %c0_328, %c0_329] : memref<4x64x16xf32, #tpu.memory_space<vmem>>, vector<1x64x16xf32>
    %577 = vector.shape_cast %576 : vector<1x64x16xf32> to vector<64x16xf32>
    %cst_330 = arith.constant dense<0.000000e+00> : vector<16x16xf32>
    %578 = tpu.matmul %575, %577, %cst_330 {dimension_numbers = #tpu.dot_dimension_numbers<[1], [0], [0], [1], [0, 0, 1, 1], [], []>} : vector<16x64xf32>, vector<64x16xf32>, vector<16x16xf32> -> vector<16x16xf32>
    %579 = arith.addf %548, %578 : vector<16x16xf32>
    %c3_i32 = arith.constant 3 : i32
    %580 = vector.broadcast %c3_i32 : i32 to vector<16x4xi32>
    %581 = arith.cmpi eq, %456, %580 : vector<16x4xi32>
    %582 = arith.fptosi %571 : vector<16x1xf32> to vector<16x1xi32>
    %583 = vector.shape_cast %582 : vector<16x1xi32> to vector<16x1xi32>
    %584 = vector.broadcast %583 : vector<16x1xi32> to vector<16x4xi32>
    %585 = arith.select %581, %584, %554 : vector<16x4xi1>, vector<16x4xi32>
    %c0_331 = arith.constant 0 : index
    %c0_332 = arith.constant 0 : index
    %c0_333 = arith.constant 0 : index
    %586 = vector.load %arg22[%c0_331, %c0_332, %c0_333] : memref<1x16x4xi32, #tpu.memory_space<vmem>>, vector<1x16x4xi32>
    %587 = vector.shape_cast %586 : vector<1x16x4xi32> to vector<16x4xi32>
    %588 = vector.shape_cast %585 : vector<16x4xi32> to vector<1x16x4xi32>
    tpu.vector_store %arg22[%c0_331, %c0_332, %c0_333], %588 {strides = array<i32>} : memref<1x16x4xi32, #tpu.memory_space<vmem>>, vector<1x16x4xi32>,
    %c8_334 = arith.constant 8 : index
    %c0_335 = arith.constant 0 : index
    %589 = vector.load %arg23[%c8_334, %c0_335] : memref<24x32xf32, #tpu.memory_space<vmem>>, vector<16x16xf32>
    tpu.vector_store %arg23[%c8_334, %c0_335], %579 {strides = array<i32>} : memref<24x32xf32, #tpu.memory_space<vmem>>, vector<16x16xf32>,
    %cst_336 = arith.constant 0.000000e+00 : f32
    %590 = vector.broadcast %cst_336 : f32 to vector<16x32xf32>
    %c2_337 = arith.constant 2 : index
    %c0_338 = arith.constant 0 : index
    %591 = vector.load %arg23[%c2_337, %c0_338] : memref<24x32xf32, #tpu.memory_space<vmem>>, vector<16x16xf32>
    %592 = arith.truncf %591 : vector<16x16xf32> to vector<16x16xbf16>
    %c0_339 = arith.constant 0 : index
    %c0_340 = arith.constant 0 : index
    %c0_341 = arith.constant 0 : index
    %593 = vector.load %arg6[%c0_339, %c0_340, %c0_341] : memref<7x16x32xbf16, #tpu.memory_space<vmem>>, vector<1x16x32xbf16>
    %594 = vector.shape_cast %593 : vector<1x16x32xbf16> to vector<16x32xbf16>
    %cst_342 = arith.constant dense<0.000000e+00> : vector<16x32xf32>
    %595 = tpu.matmul %592, %594, %cst_342 {dimension_numbers = #tpu.dot_dimension_numbers<[1], [0], [0], [1], [0, 0, 1, 1], [], []>} : vector<16x16xbf16>, vector<16x32xbf16>, vector<16x32xf32> -> vector<16x32xf32>
    %596 = arith.addf %590, %595 : vector<16x32xf32>
    %c3_343 = arith.constant 3 : index
    %c0_344 = arith.constant 0 : index
    %597 = vector.load %arg23[%c3_343, %c0_344] : memref<24x32xf32, #tpu.memory_space<vmem>>, vector<16x16xf32>
    %598 = arith.truncf %597 : vector<16x16xf32> to vector<16x16xbf16>
    %c1_345 = arith.constant 1 : index
    %c0_346 = arith.constant 0 : index
    %c0_347 = arith.constant 0 : index
    %599 = vector.load %arg6[%c1_345, %c0_346, %c0_347] : memref<7x16x32xbf16, #tpu.memory_space<vmem>>, vector<1x16x32xbf16>
    %600 = vector.shape_cast %599 : vector<1x16x32xbf16> to vector<16x32xbf16>
    %cst_348 = arith.constant dense<0.000000e+00> : vector<16x32xf32>
    %601 = tpu.matmul %598, %600, %cst_348 {dimension_numbers = #tpu.dot_dimension_numbers<[1], [0], [0], [1], [0, 0, 1, 1], [], []>} : vector<16x16xbf16>, vector<16x32xbf16>, vector<16x32xf32> -> vector<16x32xf32>
    %602 = arith.addf %596, %601 : vector<16x32xf32>
    %c4_349 = arith.constant 4 : index
    %c0_350 = arith.constant 0 : index
    %603 = vector.load %arg23[%c4_349, %c0_350] : memref<24x32xf32, #tpu.memory_space<vmem>>, vector<16x16xf32>
    %604 = arith.truncf %603 : vector<16x16xf32> to vector<16x16xbf16>
    %c2_351 = arith.constant 2 : index
    %c0_352 = arith.constant 0 : index
    %c0_353 = arith.constant 0 : index
    %605 = vector.load %arg6[%c2_351, %c0_352, %c0_353] : memref<7x16x32xbf16, #tpu.memory_space<vmem>>, vector<1x16x32xbf16>
    %606 = vector.shape_cast %605 : vector<1x16x32xbf16> to vector<16x32xbf16>
    %cst_354 = arith.constant dense<0.000000e+00> : vector<16x32xf32>
    %607 = tpu.matmul %604, %606, %cst_354 {dimension_numbers = #tpu.dot_dimension_numbers<[1], [0], [0], [1], [0, 0, 1, 1], [], []>} : vector<16x16xbf16>, vector<16x32xbf16>, vector<16x32xf32> -> vector<16x32xf32>
    %608 = arith.addf %602, %607 : vector<16x32xf32>
    %c5_355 = arith.constant 5 : index
    %c0_356 = arith.constant 0 : index
    %609 = vector.load %arg23[%c5_355, %c0_356] : memref<24x32xf32, #tpu.memory_space<vmem>>, vector<16x16xf32>
    %610 = arith.truncf %609 : vector<16x16xf32> to vector<16x16xbf16>
    %c3_357 = arith.constant 3 : index
    %c0_358 = arith.constant 0 : index
    %c0_359 = arith.constant 0 : index
    %611 = vector.load %arg6[%c3_357, %c0_358, %c0_359] : memref<7x16x32xbf16, #tpu.memory_space<vmem>>, vector<1x16x32xbf16>
    %612 = vector.shape_cast %611 : vector<1x16x32xbf16> to vector<16x32xbf16>
    %cst_360 = arith.constant dense<0.000000e+00> : vector<16x32xf32>
    %613 = tpu.matmul %610, %612, %cst_360 {dimension_numbers = #tpu.dot_dimension_numbers<[1], [0], [0], [1], [0, 0, 1, 1], [], []>} : vector<16x16xbf16>, vector<16x32xbf16>, vector<16x32xf32> -> vector<16x32xf32>
    %614 = arith.addf %608, %613 : vector<16x32xf32>
    %c6_361 = arith.constant 6 : index
    %c0_362 = arith.constant 0 : index
    %615 = vector.load %arg23[%c6_361, %c0_362] : memref<24x32xf32, #tpu.memory_space<vmem>>, vector<16x16xf32>
    %616 = arith.truncf %615 : vector<16x16xf32> to vector<16x16xbf16>
    %c4_363 = arith.constant 4 : index
    %c0_364 = arith.constant 0 : index
    %c0_365 = arith.constant 0 : index
    %617 = vector.load %arg6[%c4_363, %c0_364, %c0_365] : memref<7x16x32xbf16, #tpu.memory_space<vmem>>, vector<1x16x32xbf16>
    %618 = vector.shape_cast %617 : vector<1x16x32xbf16> to vector<16x32xbf16>
    %cst_366 = arith.constant dense<0.000000e+00> : vector<16x32xf32>
    %619 = tpu.matmul %616, %618, %cst_366 {dimension_numbers = #tpu.dot_dimension_numbers<[1], [0], [0], [1], [0, 0, 1, 1], [], []>} : vector<16x16xbf16>, vector<16x32xbf16>, vector<16x32xf32> -> vector<16x32xf32>
    %620 = arith.addf %614, %619 : vector<16x32xf32>
    %c7_367 = arith.constant 7 : index
    %c0_368 = arith.constant 0 : index
    %621 = vector.load %arg23[%c7_367, %c0_368] : memref<24x32xf32, #tpu.memory_space<vmem>>, vector<16x16xf32>
    %622 = arith.truncf %621 : vector<16x16xf32> to vector<16x16xbf16>
    %c5_369 = arith.constant 5 : index
    %c0_370 = arith.constant 0 : index
    %c0_371 = arith.constant 0 : index
    %623 = vector.load %arg6[%c5_369, %c0_370, %c0_371] : memref<7x16x32xbf16, #tpu.memory_space<vmem>>, vector<1x16x32xbf16>
    %624 = vector.shape_cast %623 : vector<1x16x32xbf16> to vector<16x32xbf16>
    %cst_372 = arith.constant dense<0.000000e+00> : vector<16x32xf32>
    %625 = tpu.matmul %622, %624, %cst_372 {dimension_numbers = #tpu.dot_dimension_numbers<[1], [0], [0], [1], [0, 0, 1, 1], [], []>} : vector<16x16xbf16>, vector<16x32xbf16>, vector<16x32xf32> -> vector<16x32xf32>
    %626 = arith.addf %620, %625 : vector<16x32xf32>
    %c8_373 = arith.constant 8 : index
    %c0_374 = arith.constant 0 : index
    %627 = vector.load %arg23[%c8_373, %c0_374] : memref<24x32xf32, #tpu.memory_space<vmem>>, vector<16x16xf32>
    %628 = arith.truncf %627 : vector<16x16xf32> to vector<16x16xbf16>
    %c6_375 = arith.constant 6 : index
    %c0_376 = arith.constant 0 : index
    %c0_377 = arith.constant 0 : index
    %629 = vector.load %arg6[%c6_375, %c0_376, %c0_377] : memref<7x16x32xbf16, #tpu.memory_space<vmem>>, vector<1x16x32xbf16>
    %630 = vector.shape_cast %629 : vector<1x16x32xbf16> to vector<16x32xbf16>
    %cst_378 = arith.constant dense<0.000000e+00> : vector<16x32xf32>
    %631 = tpu.matmul %628, %630, %cst_378 {dimension_numbers = #tpu.dot_dimension_numbers<[1], [0], [0], [1], [0, 0, 1, 1], [], []>} : vector<16x16xbf16>, vector<16x32xbf16>, vector<16x32xf32> -> vector<16x32xf32>
    %632 = arith.addf %626, %631 : vector<16x32xf32>
    %c0_379 = arith.constant 0 : index
    %c0_380 = arith.constant 0 : index
    %633 = vector.load %arg14[%c0_379, %c0_380] : memref<1x32xf32, #tpu.memory_space<vmem>>, vector<1x32xf32>
    %634 = vector.broadcast %633 : vector<1x32xf32> to vector<16x32xf32>
    %635 = arith.addf %632, %634 : vector<16x32xf32>
    %cst_381 = arith.constant 0.000000e+00 : f32
    %636 = vector.broadcast %cst_381 : f32 to vector<16x32xf32>
    %637 = arith.cmpf ogt, %635, %636 : vector<16x32xf32>
    %cst_382 = arith.constant 0.000000e+00 : f32
    %638 = vector.broadcast %cst_382 : f32 to vector<16x32xf32>
    %639 = arith.minimumf %635, %638 : vector<16x32xf32>
    %640 = math.exp %639 : vector<16x32xf32>
    %cst_383 = arith.constant 1.000000e+00 : f32
    %641 = vector.broadcast %cst_383 : f32 to vector<16x32xf32>
    %642 = arith.subf %640, %641 : vector<16x32xf32>
    %643 = arith.select %637, %635, %642 : vector<16x32xi1>, vector<16x32xf32>
    %c8_384 = arith.constant 8 : index
    %c0_385 = arith.constant 0 : index
    %644 = vector.load %arg23[%c8_384, %c0_385] : memref<24x32xf32, #tpu.memory_space<vmem>>, vector<16x32xf32>
    tpu.vector_store %arg23[%c8_384, %c0_385], %643 {strides = array<i32>} : memref<24x32xf32, #tpu.memory_space<vmem>>, vector<16x32xf32>,
    %cst_386 = arith.constant 0.000000e+00 : f32
    %645 = vector.broadcast %cst_386 : f32 to vector<16x16xf32>
    %c8_387 = arith.constant 8 : index
    %c0_388 = arith.constant 0 : index
    %646 = vector.load %arg23[%c8_387, %c0_388] : memref<24x32xf32, #tpu.memory_space<vmem>>, vector<16x32xf32>
    %647 = arith.truncf %646 : vector<16x32xf32> to vector<16x32xbf16>
    %c0_389 = arith.constant 0 : index
    %c0_390 = arith.constant 0 : index
    %c0_391 = arith.constant 0 : index
    %648 = vector.load %arg7[%c0_389, %c0_390, %c0_391] : memref<4x32x16xbf16, #tpu.memory_space<vmem>>, vector<1x32x16xbf16>
    %649 = vector.shape_cast %648 : vector<1x32x16xbf16> to vector<32x16xbf16>
    %cst_392 = arith.constant dense<0.000000e+00> : vector<16x16xf32>
    %650 = tpu.matmul %647, %649, %cst_392 {dimension_numbers = #tpu.dot_dimension_numbers<[1], [0], [0], [1], [0, 0, 1, 1], [], []>} : vector<16x32xbf16>, vector<32x16xbf16>, vector<16x16xf32> -> vector<16x16xf32>
    %651 = arith.addf %645, %650 : vector<16x16xf32>
    %c7_393 = arith.constant 7 : index
    %c0_394 = arith.constant 0 : index
    %652 = vector.load %arg23[%c7_393, %c0_394] : memref<24x32xf32, #tpu.memory_space<vmem>>, vector<16x32xf32>
    %653 = arith.truncf %652 : vector<16x32xf32> to vector<16x32xbf16>
    %c2_395 = arith.constant 2 : index
    %c0_396 = arith.constant 0 : index
    %c0_397 = arith.constant 0 : index
    %654 = vector.load %arg7[%c2_395, %c0_396, %c0_397] : memref<4x32x16xbf16, #tpu.memory_space<vmem>>, vector<1x32x16xbf16>
    %655 = vector.shape_cast %654 : vector<1x32x16xbf16> to vector<32x16xbf16>
    %cst_398 = arith.constant dense<0.000000e+00> : vector<16x16xf32>
    %656 = tpu.matmul %653, %655, %cst_398 {dimension_numbers = #tpu.dot_dimension_numbers<[1], [0], [0], [1], [0, 0, 1, 1], [], []>} : vector<16x32xbf16>, vector<32x16xbf16>, vector<16x16xf32> -> vector<16x16xf32>
    %657 = arith.addf %651, %656 : vector<16x16xf32>
    %c0_399 = arith.constant 0 : index
    %c0_400 = arith.constant 0 : index
    %658 = vector.load %arg15[%c0_399, %c0_400] : memref<1x16xf32, #tpu.memory_space<vmem>>, vector<1x16xf32>
    %659 = vector.broadcast %658 : vector<1x16xf32> to vector<16x16xf32>
    %660 = arith.addf %657, %659 : vector<16x16xf32>
    %cst_401 = arith.constant 0.000000e+00 : f32
    %661 = vector.broadcast %cst_401 : f32 to vector<16x16xf32>
    %662 = arith.cmpf ogt, %660, %661 : vector<16x16xf32>
    %cst_402 = arith.constant 0.000000e+00 : f32
    %663 = vector.broadcast %cst_402 : f32 to vector<16x16xf32>
    %664 = arith.minimumf %660, %663 : vector<16x16xf32>
    %665 = math.exp %664 : vector<16x16xf32>
    %cst_403 = arith.constant 1.000000e+00 : f32
    %666 = vector.broadcast %cst_403 : f32 to vector<16x16xf32>
    %667 = arith.subf %665, %666 : vector<16x16xf32>
    %668 = arith.select %662, %660, %667 : vector<16x16xi1>, vector<16x16xf32>
    %cst_404 = arith.constant 0.000000e+00 : f32
    %669 = vector.broadcast %cst_404 : f32 to vector<16x16xf32>
    %c1_405 = arith.constant 1 : index
    %c0_406 = arith.constant 0 : index
    %c0_407 = arith.constant 0 : index
    %670 = vector.load %arg7[%c1_405, %c0_406, %c0_407] : memref<4x32x16xbf16, #tpu.memory_space<vmem>>, vector<1x32x16xbf16>
    %671 = vector.shape_cast %670 : vector<1x32x16xbf16> to vector<32x16xbf16>
    %cst_408 = arith.constant dense<0.000000e+00> : vector<16x16xf32>
    %672 = tpu.matmul %647, %671, %cst_408 {dimension_numbers = #tpu.dot_dimension_numbers<[1], [0], [0], [1], [0, 0, 1, 1], [], []>} : vector<16x32xbf16>, vector<32x16xbf16>, vector<16x16xf32> -> vector<16x16xf32>
    %673 = arith.addf %669, %672 : vector<16x16xf32>
    %c3_409 = arith.constant 3 : index
    %c0_410 = arith.constant 0 : index
    %c0_411 = arith.constant 0 : index
    %674 = vector.load %arg7[%c3_409, %c0_410, %c0_411] : memref<4x32x16xbf16, #tpu.memory_space<vmem>>, vector<1x32x16xbf16>
    %675 = vector.shape_cast %674 : vector<1x32x16xbf16> to vector<32x16xbf16>
    %cst_412 = arith.constant dense<0.000000e+00> : vector<16x16xf32>
    %676 = tpu.matmul %653, %675, %cst_412 {dimension_numbers = #tpu.dot_dimension_numbers<[1], [0], [0], [1], [0, 0, 1, 1], [], []>} : vector<16x32xbf16>, vector<32x16xbf16>, vector<16x16xf32> -> vector<16x16xf32>
    %677 = arith.addf %673, %676 : vector<16x16xf32>
    %c0_413 = arith.constant 0 : index
    %c0_414 = arith.constant 0 : index
    %678 = vector.load %arg15[%c0_413, %c0_414] : memref<1x16xf32, #tpu.memory_space<vmem>>, vector<1x16xf32>
    %679 = vector.broadcast %678 : vector<1x16xf32> to vector<16x16xf32>
    %680 = arith.addf %677, %679 : vector<16x16xf32>
    %cst_415 = arith.constant 0.000000e+00 : f32
    %681 = vector.broadcast %cst_415 : f32 to vector<16x16xf32>
    %682 = arith.cmpf ogt, %680, %681 : vector<16x16xf32>
    %cst_416 = arith.constant 0.000000e+00 : f32
    %683 = vector.broadcast %cst_416 : f32 to vector<16x16xf32>
    %684 = arith.minimumf %680, %683 : vector<16x16xf32>
    %685 = math.exp %684 : vector<16x16xf32>
    %cst_417 = arith.constant 1.000000e+00 : f32
    %686 = vector.broadcast %cst_417 : f32 to vector<16x16xf32>
    %687 = arith.subf %685, %686 : vector<16x16xf32>
    %688 = arith.select %682, %680, %687 : vector<16x16xi1>, vector<16x16xf32>
    %c8_418 = arith.constant 8 : index
    %c0_419 = arith.constant 0 : index
    %689 = vector.load %arg23[%c8_418, %c0_419] : memref<24x32xf32, #tpu.memory_space<vmem>>, vector<16x16xf32>
    tpu.vector_store %arg23[%c8_418, %c0_419], %668 {strides = array<i32>} : memref<24x32xf32, #tpu.memory_space<vmem>>, vector<16x16xf32>,
    %c8_420 = arith.constant 8 : index
    %c16_421 = arith.constant 16 : index
    %690 = vector.load %arg23[%c8_420, %c16_421] : memref<24x32xf32, #tpu.memory_space<vmem>>, vector<16x16xf32>
    tpu.vector_store %arg23[%c8_420, %c16_421], %688 {strides = array<i32>} : memref<24x32xf32, #tpu.memory_space<vmem>>, vector<16x16xf32>,
    %cst_422 = arith.constant 0.000000e+00 : f32
    %691 = vector.broadcast %cst_422 : f32 to vector<16x8xf32>
    %c8_423 = arith.constant 8 : index
    %c0_424 = arith.constant 0 : index
    %692 = vector.load %arg23[%c8_423, %c0_424] : memref<24x32xf32, #tpu.memory_space<vmem>>, vector<16x16xf32>
    %693 = arith.truncf %692 : vector<16x16xf32> to vector<16x16xbf16>
    %c0_425 = arith.constant 0 : index
    %c0_426 = arith.constant 0 : index
    %c0_427 = arith.constant 0 : index
    %694 = vector.load %arg8[%c0_425, %c0_426, %c0_427] : memref<4x16x8xbf16, #tpu.memory_space<vmem>>, vector<1x16x8xbf16>
    %695 = vector.shape_cast %694 : vector<1x16x8xbf16> to vector<16x8xbf16>
    %cst_428 = arith.constant dense<0.000000e+00> : vector<16x8xf32>
    %696 = tpu.matmul %693, %695, %cst_428 {dimension_numbers = #tpu.dot_dimension_numbers<[1], [0], [0], [1], [0, 0, 1, 1], [], []>} : vector<16x16xbf16>, vector<16x8xbf16>, vector<16x8xf32> -> vector<16x8xf32>
    %697 = arith.addf %691, %696 : vector<16x8xf32>
    %c7_429 = arith.constant 7 : index
    %c16_430 = arith.constant 16 : index
    %698 = vector.load %arg23[%c7_429, %c16_430] : memref<24x32xf32, #tpu.memory_space<vmem>>, vector<16x16xf32>
    %699 = arith.truncf %698 : vector<16x16xf32> to vector<16x16xbf16>
    %c2_431 = arith.constant 2 : index
    %c0_432 = arith.constant 0 : index
    %c0_433 = arith.constant 0 : index
    %700 = vector.load %arg8[%c2_431, %c0_432, %c0_433] : memref<4x16x8xbf16, #tpu.memory_space<vmem>>, vector<1x16x8xbf16>
    %701 = vector.shape_cast %700 : vector<1x16x8xbf16> to vector<16x8xbf16>
    %cst_434 = arith.constant dense<0.000000e+00> : vector<16x8xf32>
    %702 = tpu.matmul %699, %701, %cst_434 {dimension_numbers = #tpu.dot_dimension_numbers<[1], [0], [0], [1], [0, 0, 1, 1], [], []>} : vector<16x16xbf16>, vector<16x8xbf16>, vector<16x8xf32> -> vector<16x8xf32>
    %703 = arith.addf %697, %702 : vector<16x8xf32>
    %c0_435 = arith.constant 0 : index
    %c0_436 = arith.constant 0 : index
    %704 = vector.load %arg16[%c0_435, %c0_436] : memref<1x8xf32, #tpu.memory_space<vmem>>, vector<1x8xf32>
    %705 = vector.broadcast %704 : vector<1x8xf32> to vector<16x8xf32>
    %706 = arith.addf %703, %705 : vector<16x8xf32>
    %cst_437 = arith.constant 0.000000e+00 : f32
    %707 = vector.broadcast %cst_437 : f32 to vector<16x8xf32>
    %708 = arith.cmpf ogt, %706, %707 : vector<16x8xf32>
    %cst_438 = arith.constant 0.000000e+00 : f32
    %709 = vector.broadcast %cst_438 : f32 to vector<16x8xf32>
    %710 = arith.minimumf %706, %709 : vector<16x8xf32>
    %711 = math.exp %710 : vector<16x8xf32>
    %cst_439 = arith.constant 1.000000e+00 : f32
    %712 = vector.broadcast %cst_439 : f32 to vector<16x8xf32>
    %713 = arith.subf %711, %712 : vector<16x8xf32>
    %714 = arith.select %708, %706, %713 : vector<16x8xi1>, vector<16x8xf32>
    %cst_440 = arith.constant 0.000000e+00 : f32
    %715 = vector.broadcast %cst_440 : f32 to vector<16x8xf32>
    %c1_441 = arith.constant 1 : index
    %c0_442 = arith.constant 0 : index
    %c0_443 = arith.constant 0 : index
    %716 = vector.load %arg8[%c1_441, %c0_442, %c0_443] : memref<4x16x8xbf16, #tpu.memory_space<vmem>>, vector<1x16x8xbf16>
    %717 = vector.shape_cast %716 : vector<1x16x8xbf16> to vector<16x8xbf16>
    %cst_444 = arith.constant dense<0.000000e+00> : vector<16x8xf32>
    %718 = tpu.matmul %693, %717, %cst_444 {dimension_numbers = #tpu.dot_dimension_numbers<[1], [0], [0], [1], [0, 0, 1, 1], [], []>} : vector<16x16xbf16>, vector<16x8xbf16>, vector<16x8xf32> -> vector<16x8xf32>
    %719 = arith.addf %715, %718 : vector<16x8xf32>
    %c3_445 = arith.constant 3 : index
    %c0_446 = arith.constant 0 : index
    %c0_447 = arith.constant 0 : index
    %720 = vector.load %arg8[%c3_445, %c0_446, %c0_447] : memref<4x16x8xbf16, #tpu.memory_space<vmem>>, vector<1x16x8xbf16>
    %721 = vector.shape_cast %720 : vector<1x16x8xbf16> to vector<16x8xbf16>
    %cst_448 = arith.constant dense<0.000000e+00> : vector<16x8xf32>
    %722 = tpu.matmul %699, %721, %cst_448 {dimension_numbers = #tpu.dot_dimension_numbers<[1], [0], [0], [1], [0, 0, 1, 1], [], []>} : vector<16x16xbf16>, vector<16x8xbf16>, vector<16x8xf32> -> vector<16x8xf32>
    %723 = arith.addf %719, %722 : vector<16x8xf32>
    %c0_449 = arith.constant 0 : index
    %c0_450 = arith.constant 0 : index
    %724 = vector.load %arg16[%c0_449, %c0_450] : memref<1x8xf32, #tpu.memory_space<vmem>>, vector<1x8xf32>
    %725 = vector.broadcast %724 : vector<1x8xf32> to vector<16x8xf32>
    %726 = arith.addf %723, %725 : vector<16x8xf32>
    %cst_451 = arith.constant 0.000000e+00 : f32
    %727 = vector.broadcast %cst_451 : f32 to vector<16x8xf32>
    %728 = arith.cmpf ogt, %726, %727 : vector<16x8xf32>
    %cst_452 = arith.constant 0.000000e+00 : f32
    %729 = vector.broadcast %cst_452 : f32 to vector<16x8xf32>
    %730 = arith.minimumf %726, %729 : vector<16x8xf32>
    %731 = math.exp %730 : vector<16x8xf32>
    %cst_453 = arith.constant 1.000000e+00 : f32
    %732 = vector.broadcast %cst_453 : f32 to vector<16x8xf32>
    %733 = arith.subf %731, %732 : vector<16x8xf32>
    %734 = arith.select %728, %726, %733 : vector<16x8xi1>, vector<16x8xf32>
    %cst_454 = arith.constant 0.000000e+00 : f32
    %735 = vector.broadcast %cst_454 : f32 to vector<16x8xf32>
    %c8_455 = arith.constant 8 : index
    %c16_456 = arith.constant 16 : index
    %736 = vector.load %arg23[%c8_455, %c16_456] : memref<24x32xf32, #tpu.memory_space<vmem>>, vector<16x16xf32>
    %737 = arith.truncf %736 : vector<16x16xf32> to vector<16x16xbf16>
    %c0_457 = arith.constant 0 : index
    %c0_458 = arith.constant 0 : index
    %c0_459 = arith.constant 0 : index
    %738 = vector.load %arg8[%c0_457, %c0_458, %c0_459] : memref<4x16x8xbf16, #tpu.memory_space<vmem>>, vector<1x16x8xbf16>
    %739 = vector.shape_cast %738 : vector<1x16x8xbf16> to vector<16x8xbf16>
    %cst_460 = arith.constant dense<0.000000e+00> : vector<16x8xf32>
    %740 = tpu.matmul %737, %739, %cst_460 {dimension_numbers = #tpu.dot_dimension_numbers<[1], [0], [0], [1], [0, 0, 1, 1], [], []>} : vector<16x16xbf16>, vector<16x8xbf16>, vector<16x8xf32> -> vector<16x8xf32>
    %741 = arith.addf %735, %740 : vector<16x8xf32>
    %c2_461 = arith.constant 2 : index
    %c0_462 = arith.constant 0 : index
    %c0_463 = arith.constant 0 : index
    %742 = vector.load %arg8[%c2_461, %c0_462, %c0_463] : memref<4x16x8xbf16, #tpu.memory_space<vmem>>, vector<1x16x8xbf16>
    %743 = vector.shape_cast %742 : vector<1x16x8xbf16> to vector<16x8xbf16>
    %cst_464 = arith.constant dense<0.000000e+00> : vector<16x8xf32>
    %744 = tpu.matmul %693, %743, %cst_464 {dimension_numbers = #tpu.dot_dimension_numbers<[1], [0], [0], [1], [0, 0, 1, 1], [], []>} : vector<16x16xbf16>, vector<16x8xbf16>, vector<16x8xf32> -> vector<16x8xf32>
    %745 = arith.addf %741, %744 : vector<16x8xf32>
    %c0_465 = arith.constant 0 : index
    %c0_466 = arith.constant 0 : index
    %746 = vector.load %arg16[%c0_465, %c0_466] : memref<1x8xf32, #tpu.memory_space<vmem>>, vector<1x8xf32>
    %747 = vector.broadcast %746 : vector<1x8xf32> to vector<16x8xf32>
    %748 = arith.addf %745, %747 : vector<16x8xf32>
    %cst_467 = arith.constant 0.000000e+00 : f32
    %749 = vector.broadcast %cst_467 : f32 to vector<16x8xf32>
    %750 = arith.cmpf ogt, %748, %749 : vector<16x8xf32>
    %cst_468 = arith.constant 0.000000e+00 : f32
    %751 = vector.broadcast %cst_468 : f32 to vector<16x8xf32>
    %752 = arith.minimumf %748, %751 : vector<16x8xf32>
    %753 = math.exp %752 : vector<16x8xf32>
    %cst_469 = arith.constant 1.000000e+00 : f32
    %754 = vector.broadcast %cst_469 : f32 to vector<16x8xf32>
    %755 = arith.subf %753, %754 : vector<16x8xf32>
    %756 = arith.select %750, %748, %755 : vector<16x8xi1>, vector<16x8xf32>
    %cst_470 = arith.constant 0.000000e+00 : f32
    %757 = vector.broadcast %cst_470 : f32 to vector<16x8xf32>
    %c1_471 = arith.constant 1 : index
    %c0_472 = arith.constant 0 : index
    %c0_473 = arith.constant 0 : index
    %758 = vector.load %arg8[%c1_471, %c0_472, %c0_473] : memref<4x16x8xbf16, #tpu.memory_space<vmem>>, vector<1x16x8xbf16>
    %759 = vector.shape_cast %758 : vector<1x16x8xbf16> to vector<16x8xbf16>
    %cst_474 = arith.constant dense<0.000000e+00> : vector<16x8xf32>
    %760 = tpu.matmul %737, %759, %cst_474 {dimension_numbers = #tpu.dot_dimension_numbers<[1], [0], [0], [1], [0, 0, 1, 1], [], []>} : vector<16x16xbf16>, vector<16x8xbf16>, vector<16x8xf32> -> vector<16x8xf32>
    %761 = arith.addf %757, %760 : vector<16x8xf32>
    %c3_475 = arith.constant 3 : index
    %c0_476 = arith.constant 0 : index
    %c0_477 = arith.constant 0 : index
    %762 = vector.load %arg8[%c3_475, %c0_476, %c0_477] : memref<4x16x8xbf16, #tpu.memory_space<vmem>>, vector<1x16x8xbf16>
    %763 = vector.shape_cast %762 : vector<1x16x8xbf16> to vector<16x8xbf16>
    %cst_478 = arith.constant dense<0.000000e+00> : vector<16x8xf32>
    %764 = tpu.matmul %693, %763, %cst_478 {dimension_numbers = #tpu.dot_dimension_numbers<[1], [0], [0], [1], [0, 0, 1, 1], [], []>} : vector<16x16xbf16>, vector<16x8xbf16>, vector<16x8xf32> -> vector<16x8xf32>
    %765 = arith.addf %761, %764 : vector<16x8xf32>
    %c0_479 = arith.constant 0 : index
    %c0_480 = arith.constant 0 : index
    %766 = vector.load %arg16[%c0_479, %c0_480] : memref<1x8xf32, #tpu.memory_space<vmem>>, vector<1x8xf32>
    %767 = vector.broadcast %766 : vector<1x8xf32> to vector<16x8xf32>
    %768 = arith.addf %765, %767 : vector<16x8xf32>
    %cst_481 = arith.constant 0.000000e+00 : f32
    %769 = vector.broadcast %cst_481 : f32 to vector<16x8xf32>
    %770 = arith.cmpf ogt, %768, %769 : vector<16x8xf32>
    %cst_482 = arith.constant 0.000000e+00 : f32
    %771 = vector.broadcast %cst_482 : f32 to vector<16x8xf32>
    %772 = arith.minimumf %768, %771 : vector<16x8xf32>
    %773 = math.exp %772 : vector<16x8xf32>
    %cst_483 = arith.constant 1.000000e+00 : f32
    %774 = vector.broadcast %cst_483 : f32 to vector<16x8xf32>
    %775 = arith.subf %773, %774 : vector<16x8xf32>
    %776 = arith.select %770, %768, %775 : vector<16x8xi1>, vector<16x8xf32>
    %c8_484 = arith.constant 8 : index
    %c0_485 = arith.constant 0 : index
    %777 = vector.load %arg23[%c8_484, %c0_485] : memref<24x32xf32, #tpu.memory_space<vmem>>, vector<16x8xf32>
    tpu.vector_store %arg23[%c8_484, %c0_485], %714 {strides = array<i32>} : memref<24x32xf32, #tpu.memory_space<vmem>>, vector<16x8xf32>,
    %c8_486 = arith.constant 8 : index
    %c8_487 = arith.constant 8 : index
    %778 = vector.load %arg23[%c8_486, %c8_487] : memref<24x32xf32, #tpu.memory_space<vmem>>, vector<16x8xf32>
    tpu.vector_store %arg23[%c8_486, %c8_487], %734 {strides = array<i32>} : memref<24x32xf32, #tpu.memory_space<vmem>>, vector<16x8xf32>,
    %c8_488 = arith.constant 8 : index
    %c16_489 = arith.constant 16 : index
    %779 = vector.load %arg23[%c8_488, %c16_489] : memref<24x32xf32, #tpu.memory_space<vmem>>, vector<16x8xf32>
    tpu.vector_store %arg23[%c8_488, %c16_489], %756 {strides = array<i32>} : memref<24x32xf32, #tpu.memory_space<vmem>>, vector<16x8xf32>,
    %c8_490 = arith.constant 8 : index
    %c24_491 = arith.constant 24 : index
    %780 = vector.load %arg23[%c8_490, %c24_491] : memref<24x32xf32, #tpu.memory_space<vmem>>, vector<16x8xf32>
    tpu.vector_store %arg23[%c8_490, %c24_491], %776 {strides = array<i32>} : memref<24x32xf32, #tpu.memory_space<vmem>>, vector<16x8xf32>,
    %cst_492 = arith.constant 0.000000e+00 : f32
    %781 = vector.broadcast %cst_492 : f32 to vector<16x1xf32>
    %c6_493 = arith.constant 6 : index
    %c16_494 = arith.constant 16 : index
    %782 = vector.load %arg23[%c6_493, %c16_494] : memref<24x32xf32, #tpu.memory_space<vmem>>, vector<16x8xf32>
    %783 = arith.truncf %782 : vector<16x8xf32> to vector<16x8xbf16>
    %c0_495 = arith.constant 0 : index
    %c0_496 = arith.constant 0 : index
    %c0_497 = arith.constant 0 : index
    %784 = vector.load %arg9[%c0_495, %c0_496, %c0_497] : memref<7x8x1xbf16, #tpu.memory_space<vmem>>, vector<1x8x1xbf16>
    %785 = vector.shape_cast %784 : vector<1x8x1xbf16> to vector<8x1xbf16>
    %cst_498 = arith.constant dense<0.000000e+00> : vector<16x1xf32>
    %786 = tpu.matmul %783, %785, %cst_498 {dimension_numbers = #tpu.dot_dimension_numbers<[1], [0], [0], [1], [0, 0, 1, 1], [], []>} : vector<16x8xbf16>, vector<8x1xbf16>, vector<16x1xf32> -> vector<16x1xf32>
    %787 = arith.addf %781, %786 : vector<16x1xf32>
    %c6_499 = arith.constant 6 : index
    %c24_500 = arith.constant 24 : index
    %788 = vector.load %arg23[%c6_499, %c24_500] : memref<24x32xf32, #tpu.memory_space<vmem>>, vector<16x8xf32>
    %789 = arith.truncf %788 : vector<16x8xf32> to vector<16x8xbf16>
    %c1_501 = arith.constant 1 : index
    %c0_502 = arith.constant 0 : index
    %c0_503 = arith.constant 0 : index
    %790 = vector.load %arg9[%c1_501, %c0_502, %c0_503] : memref<7x8x1xbf16, #tpu.memory_space<vmem>>, vector<1x8x1xbf16>
    %791 = vector.shape_cast %790 : vector<1x8x1xbf16> to vector<8x1xbf16>
    %cst_504 = arith.constant dense<0.000000e+00> : vector<16x1xf32>
    %792 = tpu.matmul %789, %791, %cst_504 {dimension_numbers = #tpu.dot_dimension_numbers<[1], [0], [0], [1], [0, 0, 1, 1], [], []>} : vector<16x8xbf16>, vector<8x1xbf16>, vector<16x1xf32> -> vector<16x1xf32>
    %793 = arith.addf %787, %792 : vector<16x1xf32>
    %c7_505 = arith.constant 7 : index
    %c0_506 = arith.constant 0 : index
    %794 = vector.load %arg23[%c7_505, %c0_506] : memref<24x32xf32, #tpu.memory_space<vmem>>, vector<16x8xf32>
    %795 = arith.truncf %794 : vector<16x8xf32> to vector<16x8xbf16>
    %c2_507 = arith.constant 2 : index
    %c0_508 = arith.constant 0 : index
    %c0_509 = arith.constant 0 : index
    %796 = vector.load %arg9[%c2_507, %c0_508, %c0_509] : memref<7x8x1xbf16, #tpu.memory_space<vmem>>, vector<1x8x1xbf16>
    %797 = vector.shape_cast %796 : vector<1x8x1xbf16> to vector<8x1xbf16>
    %cst_510 = arith.constant dense<0.000000e+00> : vector<16x1xf32>
    %798 = tpu.matmul %795, %797, %cst_510 {dimension_numbers = #tpu.dot_dimension_numbers<[1], [0], [0], [1], [0, 0, 1, 1], [], []>} : vector<16x8xbf16>, vector<8x1xbf16>, vector<16x1xf32> -> vector<16x1xf32>
    %799 = arith.addf %793, %798 : vector<16x1xf32>
    %c7_511 = arith.constant 7 : index
    %c8_512 = arith.constant 8 : index
    %800 = vector.load %arg23[%c7_511, %c8_512] : memref<24x32xf32, #tpu.memory_space<vmem>>, vector<16x8xf32>
    %801 = arith.truncf %800 : vector<16x8xf32> to vector<16x8xbf16>
    %c3_513 = arith.constant 3 : index
    %c0_514 = arith.constant 0 : index
    %c0_515 = arith.constant 0 : index
    %802 = vector.load %arg9[%c3_513, %c0_514, %c0_515] : memref<7x8x1xbf16, #tpu.memory_space<vmem>>, vector<1x8x1xbf16>
    %803 = vector.shape_cast %802 : vector<1x8x1xbf16> to vector<8x1xbf16>
    %cst_516 = arith.constant dense<0.000000e+00> : vector<16x1xf32>
    %804 = tpu.matmul %801, %803, %cst_516 {dimension_numbers = #tpu.dot_dimension_numbers<[1], [0], [0], [1], [0, 0, 1, 1], [], []>} : vector<16x8xbf16>, vector<8x1xbf16>, vector<16x1xf32> -> vector<16x1xf32>
    %805 = arith.addf %799, %804 : vector<16x1xf32>
    %c7_517 = arith.constant 7 : index
    %c16_518 = arith.constant 16 : index
    %806 = vector.load %arg23[%c7_517, %c16_518] : memref<24x32xf32, #tpu.memory_space<vmem>>, vector<16x8xf32>
    %807 = arith.truncf %806 : vector<16x8xf32> to vector<16x8xbf16>
    %c4_519 = arith.constant 4 : index
    %c0_520 = arith.constant 0 : index
    %c0_521 = arith.constant 0 : index
    %808 = vector.load %arg9[%c4_519, %c0_520, %c0_521] : memref<7x8x1xbf16, #tpu.memory_space<vmem>>, vector<1x8x1xbf16>
    %809 = vector.shape_cast %808 : vector<1x8x1xbf16> to vector<8x1xbf16>
    %cst_522 = arith.constant dense<0.000000e+00> : vector<16x1xf32>
    %810 = tpu.matmul %807, %809, %cst_522 {dimension_numbers = #tpu.dot_dimension_numbers<[1], [0], [0], [1], [0, 0, 1, 1], [], []>} : vector<16x8xbf16>, vector<8x1xbf16>, vector<16x1xf32> -> vector<16x1xf32>
    %811 = arith.addf %805, %810 : vector<16x1xf32>
    %c7_523 = arith.constant 7 : index
    %c24_524 = arith.constant 24 : index
    %812 = vector.load %arg23[%c7_523, %c24_524] : memref<24x32xf32, #tpu.memory_space<vmem>>, vector<16x8xf32>
    %813 = arith.truncf %812 : vector<16x8xf32> to vector<16x8xbf16>
    %c5_525 = arith.constant 5 : index
    %c0_526 = arith.constant 0 : index
    %c0_527 = arith.constant 0 : index
    %814 = vector.load %arg9[%c5_525, %c0_526, %c0_527] : memref<7x8x1xbf16, #tpu.memory_space<vmem>>, vector<1x8x1xbf16>
    %815 = vector.shape_cast %814 : vector<1x8x1xbf16> to vector<8x1xbf16>
    %cst_528 = arith.constant dense<0.000000e+00> : vector<16x1xf32>
    %816 = tpu.matmul %813, %815, %cst_528 {dimension_numbers = #tpu.dot_dimension_numbers<[1], [0], [0], [1], [0, 0, 1, 1], [], []>} : vector<16x8xbf16>, vector<8x1xbf16>, vector<16x1xf32> -> vector<16x1xf32>
    %817 = arith.addf %811, %816 : vector<16x1xf32>
    %c8_529 = arith.constant 8 : index
    %c0_530 = arith.constant 0 : index
    %818 = vector.load %arg23[%c8_529, %c0_530] : memref<24x32xf32, #tpu.memory_space<vmem>>, vector<16x8xf32>
    %819 = arith.truncf %818 : vector<16x8xf32> to vector<16x8xbf16>
    %c6_531 = arith.constant 6 : index
    %c0_532 = arith.constant 0 : index
    %c0_533 = arith.constant 0 : index
    %820 = vector.load %arg9[%c6_531, %c0_532, %c0_533] : memref<7x8x1xbf16, #tpu.memory_space<vmem>>, vector<1x8x1xbf16>
    %821 = vector.shape_cast %820 : vector<1x8x1xbf16> to vector<8x1xbf16>
    %cst_534 = arith.constant dense<0.000000e+00> : vector<16x1xf32>
    %822 = tpu.matmul %819, %821, %cst_534 {dimension_numbers = #tpu.dot_dimension_numbers<[1], [0], [0], [1], [0, 0, 1, 1], [], []>} : vector<16x8xbf16>, vector<8x1xbf16>, vector<16x1xf32> -> vector<16x1xf32>
    %823 = arith.addf %817, %822 : vector<16x1xf32>
    %c0_535 = arith.constant 0 : index
    %c0_536 = arith.constant 0 : index
    %824 = vector.load %arg17[%c0_535, %c0_536] : memref<1x1xf32, #tpu.memory_space<vmem>>, vector<1x1xf32>
    %825 = vector.broadcast %824 : vector<1x1xf32> to vector<16x1xf32>
    %826 = arith.addf %823, %825 : vector<16x1xf32>
    %cst_537 = arith.constant 0.000000e+00 : f32
    %827 = vector.broadcast %cst_537 : f32 to vector<16x1xf32>
    %c0_538 = arith.constant 0 : index
    %c0_539 = arith.constant 0 : index
    %c0_540 = arith.constant 0 : index
    %828 = vector.load %arg9[%c0_538, %c0_539, %c0_540] : memref<7x8x1xbf16, #tpu.memory_space<vmem>>, vector<1x8x1xbf16>
    %829 = vector.shape_cast %828 : vector<1x8x1xbf16> to vector<8x1xbf16>
    %cst_541 = arith.constant dense<0.000000e+00> : vector<16x1xf32>
    %830 = tpu.matmul %789, %829, %cst_541 {dimension_numbers = #tpu.dot_dimension_numbers<[1], [0], [0], [1], [0, 0, 1, 1], [], []>} : vector<16x8xbf16>, vector<8x1xbf16>, vector<16x1xf32> -> vector<16x1xf32>
    %831 = arith.addf %827, %830 : vector<16x1xf32>
    %c1_542 = arith.constant 1 : index
    %c0_543 = arith.constant 0 : index
    %c0_544 = arith.constant 0 : index
    %832 = vector.load %arg9[%c1_542, %c0_543, %c0_544] : memref<7x8x1xbf16, #tpu.memory_space<vmem>>, vector<1x8x1xbf16>
    %833 = vector.shape_cast %832 : vector<1x8x1xbf16> to vector<8x1xbf16>
    %cst_545 = arith.constant dense<0.000000e+00> : vector<16x1xf32>
    %834 = tpu.matmul %795, %833, %cst_545 {dimension_numbers = #tpu.dot_dimension_numbers<[1], [0], [0], [1], [0, 0, 1, 1], [], []>} : vector<16x8xbf16>, vector<8x1xbf16>, vector<16x1xf32> -> vector<16x1xf32>
    %835 = arith.addf %831, %834 : vector<16x1xf32>
    %c2_546 = arith.constant 2 : index
    %c0_547 = arith.constant 0 : index
    %c0_548 = arith.constant 0 : index
    %836 = vector.load %arg9[%c2_546, %c0_547, %c0_548] : memref<7x8x1xbf16, #tpu.memory_space<vmem>>, vector<1x8x1xbf16>
    %837 = vector.shape_cast %836 : vector<1x8x1xbf16> to vector<8x1xbf16>
    %cst_549 = arith.constant dense<0.000000e+00> : vector<16x1xf32>
    %838 = tpu.matmul %801, %837, %cst_549 {dimension_numbers = #tpu.dot_dimension_numbers<[1], [0], [0], [1], [0, 0, 1, 1], [], []>} : vector<16x8xbf16>, vector<8x1xbf16>, vector<16x1xf32> -> vector<16x1xf32>
    %839 = arith.addf %835, %838 : vector<16x1xf32>
    %c3_550 = arith.constant 3 : index
    %c0_551 = arith.constant 0 : index
    %c0_552 = arith.constant 0 : index
    %840 = vector.load %arg9[%c3_550, %c0_551, %c0_552] : memref<7x8x1xbf16, #tpu.memory_space<vmem>>, vector<1x8x1xbf16>
    %841 = vector.shape_cast %840 : vector<1x8x1xbf16> to vector<8x1xbf16>
    %cst_553 = arith.constant dense<0.000000e+00> : vector<16x1xf32>
    %842 = tpu.matmul %807, %841, %cst_553 {dimension_numbers = #tpu.dot_dimension_numbers<[1], [0], [0], [1], [0, 0, 1, 1], [], []>} : vector<16x8xbf16>, vector<8x1xbf16>, vector<16x1xf32> -> vector<16x1xf32>
    %843 = arith.addf %839, %842 : vector<16x1xf32>
    %c4_554 = arith.constant 4 : index
    %c0_555 = arith.constant 0 : index
    %c0_556 = arith.constant 0 : index
    %844 = vector.load %arg9[%c4_554, %c0_555, %c0_556] : memref<7x8x1xbf16, #tpu.memory_space<vmem>>, vector<1x8x1xbf16>
    %845 = vector.shape_cast %844 : vector<1x8x1xbf16> to vector<8x1xbf16>
    %cst_557 = arith.constant dense<0.000000e+00> : vector<16x1xf32>
    %846 = tpu.matmul %813, %845, %cst_557 {dimension_numbers = #tpu.dot_dimension_numbers<[1], [0], [0], [1], [0, 0, 1, 1], [], []>} : vector<16x8xbf16>, vector<8x1xbf16>, vector<16x1xf32> -> vector<16x1xf32>
    %847 = arith.addf %843, %846 : vector<16x1xf32>
    %c5_558 = arith.constant 5 : index
    %c0_559 = arith.constant 0 : index
    %c0_560 = arith.constant 0 : index
    %848 = vector.load %arg9[%c5_558, %c0_559, %c0_560] : memref<7x8x1xbf16, #tpu.memory_space<vmem>>, vector<1x8x1xbf16>
    %849 = vector.shape_cast %848 : vector<1x8x1xbf16> to vector<8x1xbf16>
    %cst_561 = arith.constant dense<0.000000e+00> : vector<16x1xf32>
    %850 = tpu.matmul %819, %849, %cst_561 {dimension_numbers = #tpu.dot_dimension_numbers<[1], [0], [0], [1], [0, 0, 1, 1], [], []>} : vector<16x8xbf16>, vector<8x1xbf16>, vector<16x1xf32> -> vector<16x1xf32>
    %851 = arith.addf %847, %850 : vector<16x1xf32>
    %c8_562 = arith.constant 8 : index
    %c8_563 = arith.constant 8 : index
    %852 = vector.load %arg23[%c8_562, %c8_563] : memref<24x32xf32, #tpu.memory_space<vmem>>, vector<16x8xf32>
    %853 = arith.truncf %852 : vector<16x8xf32> to vector<16x8xbf16>
    %c6_564 = arith.constant 6 : index
    %c0_565 = arith.constant 0 : index
    %c0_566 = arith.constant 0 : index
    %854 = vector.load %arg9[%c6_564, %c0_565, %c0_566] : memref<7x8x1xbf16, #tpu.memory_space<vmem>>, vector<1x8x1xbf16>
    %855 = vector.shape_cast %854 : vector<1x8x1xbf16> to vector<8x1xbf16>
    %cst_567 = arith.constant dense<0.000000e+00> : vector<16x1xf32>
    %856 = tpu.matmul %853, %855, %cst_567 {dimension_numbers = #tpu.dot_dimension_numbers<[1], [0], [0], [1], [0, 0, 1, 1], [], []>} : vector<16x8xbf16>, vector<8x1xbf16>, vector<16x1xf32> -> vector<16x1xf32>
    %857 = arith.addf %851, %856 : vector<16x1xf32>
    %c0_568 = arith.constant 0 : index
    %c0_569 = arith.constant 0 : index
    %858 = vector.load %arg17[%c0_568, %c0_569] : memref<1x1xf32, #tpu.memory_space<vmem>>, vector<1x1xf32>
    %859 = vector.broadcast %858 : vector<1x1xf32> to vector<16x1xf32>
    %860 = arith.addf %857, %859 : vector<16x1xf32>
    %cst_570 = arith.constant 0.000000e+00 : f32
    %861 = vector.broadcast %cst_570 : f32 to vector<16x1xf32>
    %c0_571 = arith.constant 0 : index
    %c0_572 = arith.constant 0 : index
    %c0_573 = arith.constant 0 : index
    %862 = vector.load %arg9[%c0_571, %c0_572, %c0_573] : memref<7x8x1xbf16, #tpu.memory_space<vmem>>, vector<1x8x1xbf16>
    %863 = vector.shape_cast %862 : vector<1x8x1xbf16> to vector<8x1xbf16>
    %cst_574 = arith.constant dense<0.000000e+00> : vector<16x1xf32>
    %864 = tpu.matmul %795, %863, %cst_574 {dimension_numbers = #tpu.dot_dimension_numbers<[1], [0], [0], [1], [0, 0, 1, 1], [], []>} : vector<16x8xbf16>, vector<8x1xbf16>, vector<16x1xf32> -> vector<16x1xf32>
    %865 = arith.addf %861, %864 : vector<16x1xf32>
    %c1_575 = arith.constant 1 : index
    %c0_576 = arith.constant 0 : index
    %c0_577 = arith.constant 0 : index
    %866 = vector.load %arg9[%c1_575, %c0_576, %c0_577] : memref<7x8x1xbf16, #tpu.memory_space<vmem>>, vector<1x8x1xbf16>
    %867 = vector.shape_cast %866 : vector<1x8x1xbf16> to vector<8x1xbf16>
    %cst_578 = arith.constant dense<0.000000e+00> : vector<16x1xf32>
    %868 = tpu.matmul %801, %867, %cst_578 {dimension_numbers = #tpu.dot_dimension_numbers<[1], [0], [0], [1], [0, 0, 1, 1], [], []>} : vector<16x8xbf16>, vector<8x1xbf16>, vector<16x1xf32> -> vector<16x1xf32>
    %869 = arith.addf %865, %868 : vector<16x1xf32>
    %c2_579 = arith.constant 2 : index
    %c0_580 = arith.constant 0 : index
    %c0_581 = arith.constant 0 : index
    %870 = vector.load %arg9[%c2_579, %c0_580, %c0_581] : memref<7x8x1xbf16, #tpu.memory_space<vmem>>, vector<1x8x1xbf16>
    %871 = vector.shape_cast %870 : vector<1x8x1xbf16> to vector<8x1xbf16>
    %cst_582 = arith.constant dense<0.000000e+00> : vector<16x1xf32>
    %872 = tpu.matmul %807, %871, %cst_582 {dimension_numbers = #tpu.dot_dimension_numbers<[1], [0], [0], [1], [0, 0, 1, 1], [], []>} : vector<16x8xbf16>, vector<8x1xbf16>, vector<16x1xf32> -> vector<16x1xf32>
    %873 = arith.addf %869, %872 : vector<16x1xf32>
    %c3_583 = arith.constant 3 : index
    %c0_584 = arith.constant 0 : index
    %c0_585 = arith.constant 0 : index
    %874 = vector.load %arg9[%c3_583, %c0_584, %c0_585] : memref<7x8x1xbf16, #tpu.memory_space<vmem>>, vector<1x8x1xbf16>
    %875 = vector.shape_cast %874 : vector<1x8x1xbf16> to vector<8x1xbf16>
    %cst_586 = arith.constant dense<0.000000e+00> : vector<16x1xf32>
    %876 = tpu.matmul %813, %875, %cst_586 {dimension_numbers = #tpu.dot_dimension_numbers<[1], [0], [0], [1], [0, 0, 1, 1], [], []>} : vector<16x8xbf16>, vector<8x1xbf16>, vector<16x1xf32> -> vector<16x1xf32>
    %877 = arith.addf %873, %876 : vector<16x1xf32>
    %c4_587 = arith.constant 4 : index
    %c0_588 = arith.constant 0 : index
    %c0_589 = arith.constant 0 : index
    %878 = vector.load %arg9[%c4_587, %c0_588, %c0_589] : memref<7x8x1xbf16, #tpu.memory_space<vmem>>, vector<1x8x1xbf16>
    %879 = vector.shape_cast %878 : vector<1x8x1xbf16> to vector<8x1xbf16>
    %cst_590 = arith.constant dense<0.000000e+00> : vector<16x1xf32>
    %880 = tpu.matmul %819, %879, %cst_590 {dimension_numbers = #tpu.dot_dimension_numbers<[1], [0], [0], [1], [0, 0, 1, 1], [], []>} : vector<16x8xbf16>, vector<8x1xbf16>, vector<16x1xf32> -> vector<16x1xf32>
    %881 = arith.addf %877, %880 : vector<16x1xf32>
    %c5_591 = arith.constant 5 : index
    %c0_592 = arith.constant 0 : index
    %c0_593 = arith.constant 0 : index
    %882 = vector.load %arg9[%c5_591, %c0_592, %c0_593] : memref<7x8x1xbf16, #tpu.memory_space<vmem>>, vector<1x8x1xbf16>
    %883 = vector.shape_cast %882 : vector<1x8x1xbf16> to vector<8x1xbf16>
    %cst_594 = arith.constant dense<0.000000e+00> : vector<16x1xf32>
    %884 = tpu.matmul %853, %883, %cst_594 {dimension_numbers = #tpu.dot_dimension_numbers<[1], [0], [0], [1], [0, 0, 1, 1], [], []>} : vector<16x8xbf16>, vector<8x1xbf16>, vector<16x1xf32> -> vector<16x1xf32>
    %885 = arith.addf %881, %884 : vector<16x1xf32>
    %c8_595 = arith.constant 8 : index
    %c16_596 = arith.constant 16 : index
    %886 = vector.load %arg23[%c8_595, %c16_596] : memref<24x32xf32, #tpu.memory_space<vmem>>, vector<16x8xf32>
    %887 = arith.truncf %886 : vector<16x8xf32> to vector<16x8xbf16>
    %c6_597 = arith.constant 6 : index
    %c0_598 = arith.constant 0 : index
    %c0_599 = arith.constant 0 : index
    %888 = vector.load %arg9[%c6_597, %c0_598, %c0_599] : memref<7x8x1xbf16, #tpu.memory_space<vmem>>, vector<1x8x1xbf16>
    %889 = vector.shape_cast %888 : vector<1x8x1xbf16> to vector<8x1xbf16>
    %cst_600 = arith.constant dense<0.000000e+00> : vector<16x1xf32>
    %890 = tpu.matmul %887, %889, %cst_600 {dimension_numbers = #tpu.dot_dimension_numbers<[1], [0], [0], [1], [0, 0, 1, 1], [], []>} : vector<16x8xbf16>, vector<8x1xbf16>, vector<16x1xf32> -> vector<16x1xf32>
    %891 = arith.addf %885, %890 : vector<16x1xf32>
    %c0_601 = arith.constant 0 : index
    %c0_602 = arith.constant 0 : index
    %892 = vector.load %arg17[%c0_601, %c0_602] : memref<1x1xf32, #tpu.memory_space<vmem>>, vector<1x1xf32>
    %893 = vector.broadcast %892 : vector<1x1xf32> to vector<16x1xf32>
    %894 = arith.addf %891, %893 : vector<16x1xf32>
    %cst_603 = arith.constant 0.000000e+00 : f32
    %895 = vector.broadcast %cst_603 : f32 to vector<16x1xf32>
    %c0_604 = arith.constant 0 : index
    %c0_605 = arith.constant 0 : index
    %c0_606 = arith.constant 0 : index
    %896 = vector.load %arg9[%c0_604, %c0_605, %c0_606] : memref<7x8x1xbf16, #tpu.memory_space<vmem>>, vector<1x8x1xbf16>
    %897 = vector.shape_cast %896 : vector<1x8x1xbf16> to vector<8x1xbf16>
    %cst_607 = arith.constant dense<0.000000e+00> : vector<16x1xf32>
    %898 = tpu.matmul %801, %897, %cst_607 {dimension_numbers = #tpu.dot_dimension_numbers<[1], [0], [0], [1], [0, 0, 1, 1], [], []>} : vector<16x8xbf16>, vector<8x1xbf16>, vector<16x1xf32> -> vector<16x1xf32>
    %899 = arith.addf %895, %898 : vector<16x1xf32>
    %c1_608 = arith.constant 1 : index
    %c0_609 = arith.constant 0 : index
    %c0_610 = arith.constant 0 : index
    %900 = vector.load %arg9[%c1_608, %c0_609, %c0_610] : memref<7x8x1xbf16, #tpu.memory_space<vmem>>, vector<1x8x1xbf16>
    %901 = vector.shape_cast %900 : vector<1x8x1xbf16> to vector<8x1xbf16>
    %cst_611 = arith.constant dense<0.000000e+00> : vector<16x1xf32>
    %902 = tpu.matmul %807, %901, %cst_611 {dimension_numbers = #tpu.dot_dimension_numbers<[1], [0], [0], [1], [0, 0, 1, 1], [], []>} : vector<16x8xbf16>, vector<8x1xbf16>, vector<16x1xf32> -> vector<16x1xf32>
    %903 = arith.addf %899, %902 : vector<16x1xf32>
    %c2_612 = arith.constant 2 : index
    %c0_613 = arith.constant 0 : index
    %c0_614 = arith.constant 0 : index
    %904 = vector.load %arg9[%c2_612, %c0_613, %c0_614] : memref<7x8x1xbf16, #tpu.memory_space<vmem>>, vector<1x8x1xbf16>
    %905 = vector.shape_cast %904 : vector<1x8x1xbf16> to vector<8x1xbf16>
    %cst_615 = arith.constant dense<0.000000e+00> : vector<16x1xf32>
    %906 = tpu.matmul %813, %905, %cst_615 {dimension_numbers = #tpu.dot_dimension_numbers<[1], [0], [0], [1], [0, 0, 1, 1], [], []>} : vector<16x8xbf16>, vector<8x1xbf16>, vector<16x1xf32> -> vector<16x1xf32>
    %907 = arith.addf %903, %906 : vector<16x1xf32>
    %c3_616 = arith.constant 3 : index
    %c0_617 = arith.constant 0 : index
    %c0_618 = arith.constant 0 : index
    %908 = vector.load %arg9[%c3_616, %c0_617, %c0_618] : memref<7x8x1xbf16, #tpu.memory_space<vmem>>, vector<1x8x1xbf16>
    %909 = vector.shape_cast %908 : vector<1x8x1xbf16> to vector<8x1xbf16>
    %cst_619 = arith.constant dense<0.000000e+00> : vector<16x1xf32>
    %910 = tpu.matmul %819, %909, %cst_619 {dimension_numbers = #tpu.dot_dimension_numbers<[1], [0], [0], [1], [0, 0, 1, 1], [], []>} : vector<16x8xbf16>, vector<8x1xbf16>, vector<16x1xf32> -> vector<16x1xf32>
    %911 = arith.addf %907, %910 : vector<16x1xf32>
    %c4_620 = arith.constant 4 : index
    %c0_621 = arith.constant 0 : index
    %c0_622 = arith.constant 0 : index
    %912 = vector.load %arg9[%c4_620, %c0_621, %c0_622] : memref<7x8x1xbf16, #tpu.memory_space<vmem>>, vector<1x8x1xbf16>
    %913 = vector.shape_cast %912 : vector<1x8x1xbf16> to vector<8x1xbf16>
    %cst_623 = arith.constant dense<0.000000e+00> : vector<16x1xf32>
    %914 = tpu.matmul %853, %913, %cst_623 {dimension_numbers = #tpu.dot_dimension_numbers<[1], [0], [0], [1], [0, 0, 1, 1], [], []>} : vector<16x8xbf16>, vector<8x1xbf16>, vector<16x1xf32> -> vector<16x1xf32>
    %915 = arith.addf %911, %914 : vector<16x1xf32>
    %c5_624 = arith.constant 5 : index
    %c0_625 = arith.constant 0 : index
    %c0_626 = arith.constant 0 : index
    %916 = vector.load %arg9[%c5_624, %c0_625, %c0_626] : memref<7x8x1xbf16, #tpu.memory_space<vmem>>, vector<1x8x1xbf16>
    %917 = vector.shape_cast %916 : vector<1x8x1xbf16> to vector<8x1xbf16>
    %cst_627 = arith.constant dense<0.000000e+00> : vector<16x1xf32>
    %918 = tpu.matmul %887, %917, %cst_627 {dimension_numbers = #tpu.dot_dimension_numbers<[1], [0], [0], [1], [0, 0, 1, 1], [], []>} : vector<16x8xbf16>, vector<8x1xbf16>, vector<16x1xf32> -> vector<16x1xf32>
    %919 = arith.addf %915, %918 : vector<16x1xf32>
    %c8_628 = arith.constant 8 : index
    %c24_629 = arith.constant 24 : index
    %920 = vector.load %arg23[%c8_628, %c24_629] : memref<24x32xf32, #tpu.memory_space<vmem>>, vector<16x8xf32>
    %921 = arith.truncf %920 : vector<16x8xf32> to vector<16x8xbf16>
    %c6_630 = arith.constant 6 : index
    %c0_631 = arith.constant 0 : index
    %c0_632 = arith.constant 0 : index
    %922 = vector.load %arg9[%c6_630, %c0_631, %c0_632] : memref<7x8x1xbf16, #tpu.memory_space<vmem>>, vector<1x8x1xbf16>
    %923 = vector.shape_cast %922 : vector<1x8x1xbf16> to vector<8x1xbf16>
    %cst_633 = arith.constant dense<0.000000e+00> : vector<16x1xf32>
    %924 = tpu.matmul %921, %923, %cst_633 {dimension_numbers = #tpu.dot_dimension_numbers<[1], [0], [0], [1], [0, 0, 1, 1], [], []>} : vector<16x8xbf16>, vector<8x1xbf16>, vector<16x1xf32> -> vector<16x1xf32>
    %925 = arith.addf %919, %924 : vector<16x1xf32>
    %c0_634 = arith.constant 0 : index
    %c0_635 = arith.constant 0 : index
    %926 = vector.load %arg17[%c0_634, %c0_635] : memref<1x1xf32, #tpu.memory_space<vmem>>, vector<1x1xf32>
    %927 = vector.broadcast %926 : vector<1x1xf32> to vector<16x1xf32>
    %928 = arith.addf %925, %927 : vector<16x1xf32>
    %929 = tpu.iota {dimensions = array<i32: 1>} : vector<16x4xi32>
    %cst_636 = arith.constant 0.000000e+00 : f32
    %930 = vector.broadcast %cst_636 : f32 to vector<16x4xf32>
    %c0_i32_637 = arith.constant 0 : i32
    %931 = vector.broadcast %c0_i32_637 : i32 to vector<16x4xi32>
    %932 = arith.cmpi eq, %929, %931 : vector<16x4xi32>
    %933 = vector.shape_cast %826 : vector<16x1xf32> to vector<16x1xf32>
    %934 = vector.broadcast %933 : vector<16x1xf32> to vector<16x4xf32>
    %935 = arith.select %932, %934, %930 : vector<16x4xi1>, vector<16x4xf32>
    %c1_i32_638 = arith.constant 1 : i32
    %936 = vector.broadcast %c1_i32_638 : i32 to vector<16x4xi32>
    %937 = arith.cmpi eq, %929, %936 : vector<16x4xi32>
    %938 = vector.shape_cast %860 : vector<16x1xf32> to vector<16x1xf32>
    %939 = vector.broadcast %938 : vector<16x1xf32> to vector<16x4xf32>
    %940 = arith.select %937, %939, %935 : vector<16x4xi1>, vector<16x4xf32>
    %c2_i32_639 = arith.constant 2 : i32
    %941 = vector.broadcast %c2_i32_639 : i32 to vector<16x4xi32>
    %942 = arith.cmpi eq, %929, %941 : vector<16x4xi32>
    %943 = vector.shape_cast %894 : vector<16x1xf32> to vector<16x1xf32>
    %944 = vector.broadcast %943 : vector<16x1xf32> to vector<16x4xf32>
    %945 = arith.select %942, %944, %940 : vector<16x4xi1>, vector<16x4xf32>
    %c3_i32_640 = arith.constant 3 : i32
    %946 = vector.broadcast %c3_i32_640 : i32 to vector<16x4xi32>
    %947 = arith.cmpi eq, %929, %946 : vector<16x4xi32>
    %948 = vector.shape_cast %928 : vector<16x1xf32> to vector<16x1xf32>
    %949 = vector.broadcast %948 : vector<16x1xf32> to vector<16x4xf32>
    %950 = arith.select %947, %949, %945 : vector<16x4xi1>, vector<16x4xf32>
    %c0_641 = arith.constant 0 : index
    %c0_642 = arith.constant 0 : index
    %c0_643 = arith.constant 0 : index
    %951 = vector.load %arg21[%c0_641, %c0_642, %c0_643] : memref<1x16x4xf32, #tpu.memory_space<vmem>>, vector<1x16x4xf32>
    %952 = vector.shape_cast %951 : vector<1x16x4xf32> to vector<16x4xf32>
    %953 = vector.shape_cast %950 : vector<16x4xf32> to vector<1x16x4xf32>
    tpu.vector_store %arg21[%c0_641, %c0_642, %c0_643], %953 {strides = array<i32>} : memref<1x16x4xf32, #tpu.memory_space<vmem>>, vector<1x16x4xf32>,
    return
  }
  func.func @transform_0(%arg0: i32) -> (i32, i32, i32) {
    %c0_i32 = arith.constant 0 : i32
    %c0_i32_0 = arith.constant 0 : i32
    %c0_i32_1 = arith.constant 0 : i32
    return %arg0, %c0_i32, %c0_i32_0 : i32, i32, i32
  }
  func.func @transform_1(%arg0: i32) -> (i32, i32, i32) {
    %c0_i32 = arith.constant 0 : i32
    %c0_i32_0 = arith.constant 0 : i32
    %c0_i32_1 = arith.constant 0 : i32
    %c0_i32_2 = arith.constant 0 : i32
    return %c0_i32, %c0_i32_0, %c0_i32_1 : i32, i32, i32
  }
  func.func @transform_2(%arg0: i32) -> (i32, i32, i32) {
    %c0_i32 = arith.constant 0 : i32
    %c0_i32_0 = arith.constant 0 : i32
    %c0_i32_1 = arith.constant 0 : i32
    %c0_i32_2 = arith.constant 0 : i32
    return %c0_i32, %c0_i32_0, %c0_i32_1 : i32, i32, i32
  }
  func.func @transform_3(%arg0: i32) -> (i32, i32, i32) {
    %c0_i32 = arith.constant 0 : i32
    %c0_i32_0 = arith.constant 0 : i32
    %c0_i32_1 = arith.constant 0 : i32
    %c0_i32_2 = arith.constant 0 : i32
    return %c0_i32, %c0_i32_0, %c0_i32_1 : i32, i32, i32
  }
  func.func @transform_4(%arg0: i32) -> (i32, i32, i32) {
    %c0_i32 = arith.constant 0 : i32
    %c0_i32_0 = arith.constant 0 : i32
    %c0_i32_1 = arith.constant 0 : i32
    %c0_i32_2 = arith.constant 0 : i32
    return %c0_i32, %c0_i32_0, %c0_i32_1 : i32, i32, i32
  }
  func.func @transform_5(%arg0: i32) -> (i32, i32, i32) {
    %c0_i32 = arith.constant 0 : i32
    %c0_i32_0 = arith.constant 0 : i32
    %c0_i32_1 = arith.constant 0 : i32
    %c0_i32_2 = arith.constant 0 : i32
    return %c0_i32, %c0_i32_0, %c0_i32_1 : i32, i32, i32
  }
  func.func @transform_6(%arg0: i32) -> (i32, i32, i32) {
    %c0_i32 = arith.constant 0 : i32
    %c0_i32_0 = arith.constant 0 : i32
    %c0_i32_1 = arith.constant 0 : i32
    %c0_i32_2 = arith.constant 0 : i32
    return %c0_i32, %c0_i32_0, %c0_i32_1 : i32, i32, i32
  }
  func.func @transform_7(%arg0: i32) -> (i32, i32, i32) {
    %c0_i32 = arith.constant 0 : i32
    %c0_i32_0 = arith.constant 0 : i32
    %c0_i32_1 = arith.constant 0 : i32
    %c0_i32_2 = arith.constant 0 : i32
    return %c0_i32, %c0_i32_0, %c0_i32_1 : i32, i32, i32
  }
  func.func @transform_8(%arg0: i32) -> (i32, i32, i32) {
    %c0_i32 = arith.constant 0 : i32
    %c0_i32_0 = arith.constant 0 : i32
    %c0_i32_1 = arith.constant 0 : i32
    %c0_i32_2 = arith.constant 0 : i32
    return %c0_i32, %c0_i32_0, %c0_i32_1 : i32, i32, i32
  }
  func.func @transform_9(%arg0: i32) -> (i32, i32) {
    %c0_i32 = arith.constant 0 : i32
    %c0_i32_0 = arith.constant 0 : i32
    %c0_i32_1 = arith.constant 0 : i32
    return %c0_i32, %c0_i32_0 : i32, i32
  }
  func.func @transform_10(%arg0: i32) -> (i32, i32) {
    %c0_i32 = arith.constant 0 : i32
    %c0_i32_0 = arith.constant 0 : i32
    %c0_i32_1 = arith.constant 0 : i32
    return %c0_i32, %c0_i32_0 : i32, i32
  }
  func.func @transform_11(%arg0: i32) -> (i32, i32) {
    %c0_i32 = arith.constant 0 : i32
    %c0_i32_0 = arith.constant 0 : i32
    %c0_i32_1 = arith.constant 0 : i32
    return %c0_i32, %c0_i32_0 : i32, i32
  }
  func.func @transform_12(%arg0: i32) -> (i32, i32) {
    %c0_i32 = arith.constant 0 : i32
    %c0_i32_0 = arith.constant 0 : i32
    %c0_i32_1 = arith.constant 0 : i32
    return %c0_i32, %c0_i32_0 : i32, i32
  }
  func.func @transform_13(%arg0: i32) -> (i32, i32) {
    %c0_i32 = arith.constant 0 : i32
    %c0_i32_0 = arith.constant 0 : i32
    %c0_i32_1 = arith.constant 0 : i32
    return %c0_i32, %c0_i32_0 : i32, i32
  }
  func.func @transform_14(%arg0: i32) -> (i32, i32) {
    %c0_i32 = arith.constant 0 : i32
    %c0_i32_0 = arith.constant 0 : i32
    %c0_i32_1 = arith.constant 0 : i32
    return %c0_i32, %c0_i32_0 : i32, i32
  }
  func.func @transform_15(%arg0: i32) -> (i32, i32) {
    %c0_i32 = arith.constant 0 : i32
    %c0_i32_0 = arith.constant 0 : i32
    %c0_i32_1 = arith.constant 0 : i32
    return %c0_i32, %c0_i32_0 : i32, i32
  }
  func.func @transform_16(%arg0: i32) -> (i32, i32) {
    %c0_i32 = arith.constant 0 : i32
    %c0_i32_0 = arith.constant 0 : i32
    %c0_i32_1 = arith.constant 0 : i32
    return %c0_i32, %c0_i32_0 : i32, i32
  }
  func.func @transform_17(%arg0: i32) -> (i32, i32, i32) {
    %c0_i32 = arith.constant 0 : i32
    %c0_i32_0 = arith.constant 0 : i32
    %c0_i32_1 = arith.constant 0 : i32
    %c0_i32_2 = arith.constant 0 : i32
    return %c0_i32, %c0_i32_0, %c0_i32_1 : i32, i32, i32
  }
  func.func @transform_18(%arg0: i32) -> (i32, i32, i32) {
    %c0_i32 = arith.constant 0 : i32
    %c0_i32_0 = arith.constant 0 : i32
    %c0_i32_1 = arith.constant 0 : i32
    %c0_i32_2 = arith.constant 0 : i32
    return %c0_i32, %c0_i32_0, %c0_i32_1 : i32, i32, i32
  }
  func.func @transform_19(%arg0: i32) -> (i32, i32, i32) {
    %c0_i32 = arith.constant 0 : i32
    %c0_i32_0 = arith.constant 0 : i32
    %c0_i32_1 = arith.constant 0 : i32
    %c0_i32_2 = arith.constant 0 : i32
    return %c0_i32, %c0_i32_0, %c0_i32_1 : i32, i32, i32
  }
  func.func @transform_20(%arg0: i32) -> (i32, i32, i32) {
    %c0_i32 = arith.constant 0 : i32
    %c0_i32_0 = arith.constant 0 : i32
    %c0_i32_1 = arith.constant 0 : i32
    return %arg0, %c0_i32, %c0_i32_0 : i32, i32, i32
  }
  func.func @transform_21(%arg0: i32) -> (i32, i32, i32) {
    %c0_i32 = arith.constant 0 : i32
    %c0_i32_0 = arith.constant 0 : i32
    %c0_i32_1 = arith.constant 0 : i32
    return %arg0, %c0_i32, %c0_i32_0 : i32, i32, i32
  }
}

</mosaic_0001>

<llo_original>
// kernel: tpu_custom_call.1
$region0: #{tpu_custom_call.1}
  #allocation0 [shape = 'u32[]', space=smem, size = 0x4, offset = 0x4, fixed_abs, tag = 'smem constant byte address 0x4 - core index']
  #allocation1 [shape = 'u32[144,128]{1,0:T(1,128)}', space=vmem, size = 0x12000, scoped, tag = 'internal scratch']
  #allocation2 [shape = 'f32[24,32]{1,0:T(8,128)}', space=vmem, size = 0x3000, scoped, tag = 'scratch operand']
  #allocation3 [shape = 'f32[1,1]{1,0:T(1,128)S(1)}', space=vmem, size = 0x200, scoped, tag = 'scoped memory for tpu_custom_call.1']
  %s0 = inlined_call_operand.vmem [shape: f32[2,16,4], index: 0, kind: input, shape index: {}]
  %s1 = inlined_call_operand.vmem [shape: bf16[7,1,8], index: 1, kind: input, shape index: {}]
  %s2 = inlined_call_operand.vmem [shape: bf16[4,8,16], index: 2, kind: input, shape index: {}]
  %s3 = inlined_call_operand.vmem [shape: bf16[4,16,32], index: 3, kind: input, shape index: {}]
  %s4 = inlined_call_operand.vmem [shape: bf16[7,32,16], index: 4, kind: input, shape index: {}]
  %s5 = inlined_call_operand.vmem [shape: bf16[7,16,32], index: 5, kind: input, shape index: {}]
  %s6 = inlined_call_operand.vmem [shape: bf16[4,32,16], index: 6, kind: input, shape index: {}]
  %s7 = inlined_call_operand.vmem [shape: bf16[4,16,8], index: 7, kind: input, shape index: {}]
  %s8 = inlined_call_operand.vmem [shape: bf16[7,8,1], index: 8, kind: input, shape index: {}]
  %s9 = inlined_call_operand.vmem [shape: f32[1,8], index: 9, kind: input, shape index: {}]
  %s10 = inlined_call_operand.vmem [shape: f32[1,16], index: 10, kind: input, shape index: {}]
  %s11 = inlined_call_operand.vmem [shape: f32[1,32], index: 11, kind: input, shape index: {}]
  %s12 = inlined_call_operand.vmem [shape: f32[1,16], index: 12, kind: input, shape index: {}]
  %s13 = inlined_call_operand.vmem [shape: f32[1,32], index: 13, kind: input, shape index: {}]
  %s14 = inlined_call_operand.vmem [shape: f32[1,16], index: 14, kind: input, shape index: {}]
  %s15 = inlined_call_operand.vmem [shape: f32[1,8], index: 15, kind: input, shape index: {}]
  %s16 = inlined_call_operand.<no memory space> [shape: f32[1,1], index: 16, kind: input, shape index: {}]
  %s17 = inlined_call_operand.vmem [shape: f32[4,64,16], index: 17, kind: input, shape index: {}]
  %s18 = inlined_call_operand.vmem [shape: f32[4,16,64], index: 18, kind: input, shape index: {}]
  %s19 = inlined_call_operand.vmem [shape: f32[4,1,64], index: 19, kind: input, shape index: {}]
  %s20 = inlined_call_operand.vmem [shape: f32[2,16,4], index: 20, kind: output, shape index: {0}]
  %s21 = inlined_call_operand.vmem [shape: s32[2,16,4], index: 21, kind: output, shape index: {1}]
  %22 = xla_tuple %s20, %s21
  %s23 = sld [smem:[#allocation0]]
  $region121: #{tpu_custom_call.1} parent=0
    _
  %s25 = ssub.s32 1, %s23
  %s26 = scalar_select 0, %s25, %s23
  %v27 = vstv %s16
  %28 = vst [vmem:[#allocation3] sm:$0x1] %v27
  loop: start=0, step=1, limit=4
  $region2: #{tpu_custom_call.1} parent=0 // loop_pre_header
    _
  $region3: #{tpu_custom_call.1} parent=0 // loop_header
    %s30 = sphi 0, %s34
    %p31 = scmp.ge.s32.totalorder %s30, 4
    %s40 = sphi 0, %s42
    %s43 = sphi 0, %s40
    %s44 = sphi 0, %s43
    %s60 = sphi 0, %s44
    %s64 = sphi 0, %s64
    %s66 = sphi 0, %s64
    %s67 = sphi 0, %s66
    %s81 = sphi 0, %s67
    %s85 = sphi 0, %s85
    %s87 = sphi 0, %s85
    %s88 = sphi 0, %s87
    %s102 = sphi 0, %s88
    %s106 = sphi 0, %s106
    %s108 = sphi 0, %s106
    %s109 = sphi 0, %s108
    %s123 = sphi 0, %s109
    %s127 = sphi 0, %s127
    %s129 = sphi 0, %s127
    %s130 = sphi 0, %s129
    %s144 = sphi 0, %s130
    %s148 = sphi 0, %s148
    %s150 = sphi 0, %s148
    %s151 = sphi 0, %s150
    %s165 = sphi 0, %s151
    %s169 = sphi 0, %s169
    %s171 = sphi 0, %s169
    %s172 = sphi 0, %s171
    %s186 = sphi 0, %s172
    %s190 = sphi 0, %s190
    %s192 = sphi 0, %s190
    %s193 = sphi 0, %s192
    %s207 = sphi 0, %s193
    %s211 = sphi 0, %s211
    %s213 = sphi 0, %s211
    %s214 = sphi 0, %s213
    %s228 = sphi 0, %s214
    %s232 = sphi 0, %s232
    %s234 = sphi 0, %s232
    %s235 = sphi 0, %s234
    %s249 = sphi 0, %s235
    %s253 = sphi 0, %s253
    %s255 = sphi 0, %s253
    %s256 = sphi 0, %s255
    %s270 = sphi 0, %s256
    %s274 = sphi 0, %s274
    %s276 = sphi 0, %s274
    %s277 = sphi 0, %s276
    %s291 = sphi 0, %s277
    %s295 = sphi 0, %s295
    %s297 = sphi 0, %s295
    %s298 = sphi 0, %s297
    %s312 = sphi 0, %s298
    %s316 = sphi 0, %s316
    %s318 = sphi 0, %s316
    %s319 = sphi 0, %s318
    %s333 = sphi 0, %s319
    %s337 = sphi 0, %s337
    %s339 = sphi 0, %s337
    %s340 = sphi 0, %s339
    %s354 = sphi 0, %s340
    %s358 = sphi 0, %s358
    %s360 = sphi 0, %s358
    %s361 = sphi 0, %s360
    %s375 = sphi 0, %s361
    %s379 = sphi 0, %s379
    %s381 = sphi 0, %s379
    %s382 = sphi 0, %s381
    %s396 = sphi 0, %s382
    %s400 = sphi 0, %s400
    %s402 = sphi 0, %s400
    %s403 = sphi 0, %s402
    %s417 = sphi 0, %s403
    %s421 = sphi 0, %s421
    %s423 = sphi 0, %s421
    %s424 = sphi 0, %s423
    %s438 = sphi 0, %s424
    %s442 = sphi 0, %s442
    %s444 = sphi 0, %s442
    %s445 = sphi 0, %s444
    %s459 = sphi 0, %s445
    %s465 = sphi 0, %s467
    %s468 = sphi 0, %s465
    %s469 = sphi 0, %s468
    %s485 = sphi 0, %s469
    %s491 = sphi 0, %s493
    %s494 = sphi 0, %s491
    %s495 = sphi 0, %s494
    %s511 = sphi 0, %s495
  $region4: #{tpu_custom_call.1} parent=0 // loop_header_branch
    %33 = sbr.rel (%p31) target = $region8
  $region5: #{tpu_custom_call.1} parent=0 // loop_body
    %s35 = ssub.s32 %s30, 1
    %s36 = ssub.s32 %s30, 2
    %s37 = sadd.s32 %s30, 1
    %s38 = ssub.s32 %s30, %s37
    %p39 = scmp.eq.s32.totalorder %s38, 0
    %s41 = sadd.s32 %s40, 1
    %s42 = scalar_select %p39, %s40, %s41
    %p45 = pneg %p39
    %p46 = scmp.eq.s32.totalorder %s30, 1
    %p47 = por %p45, %p46
    %p48 = scmp.ne.s32.totalorder %s40, %s43
    %p49 = scmp.eq.s32.totalorder %s30, 0
    %p50 = por %p48, %p49
    %p51 = scmp.ne.s32.totalorder %s40, %s43
    %p52 = scmp.eq.s32.totalorder %s35, 1
    %p53 = por %p51, %p52
    %p54 = scmp.ne.s32.totalorder %s43, %s44
    %p55 = scmp.eq.s32.totalorder %s35, 0
    %p56 = por %p54, %p55
    %p57 = scmp.ne.s32.totalorder %s43, %s44
    %p58 = scmp.eq.s32.totalorder %s36, 1
    %p59 = por %p57, %p58
    %p61 = scmp.ne.s32.totalorder %s44, %s60
    %p62 = scmp.eq.s32.totalorder %s36, 0
    %p63 = por %p61, %p62
    %s65 = sadd.s32 %s64, 1
    %p68 = scmp.eq.s32.totalorder %s30, 1
    %p69 = scmp.ne.s32.totalorder %s64, %s66
    %p70 = scmp.eq.s32.totalorder %s30, 0
    %p71 = por %p69, %p70
    %p72 = scmp.ne.s32.totalorder %s64, %s66
    %p73 = scmp.eq.s32.totalorder %s35, 1
    %p74 = por %p72, %p73
    %p75 = scmp.ne.s32.totalorder %s66, %s67
    %p76 = scmp.eq.s32.totalorder %s35, 0
    %p77 = por %p75, %p76
    %p78 = scmp.ne.s32.totalorder %s66, %s67
    %p79 = scmp.eq.s32.totalorder %s36, 1
    %p80 = por %p78, %p79
    %p82 = scmp.ne.s32.totalorder %s67, %s81
    %p83 = scmp.eq.s32.totalorder %s36, 0
    %p84 = por %p82, %p83
    %s86 = sadd.s32 %s85, 1
    %p89 = scmp.eq.s32.totalorder %s30, 1
    %p90 = scmp.ne.s32.totalorder %s85, %s87
    %p91 = scmp.eq.s32.totalorder %s30, 0
    %p92 = por %p90, %p91
    %p93 = scmp.ne.s32.totalorder %s85, %s87
    %p94 = scmp.eq.s32.totalorder %s35, 1
    %p95 = por %p93, %p94
    %p96 = scmp.ne.s32.totalorder %s87, %s88
    %p97 = scmp.eq.s32.totalorder %s35, 0
    %p98 = por %p96, %p97
    %p99 = scmp.ne.s32.totalorder %s87, %s88
    %p100 = scmp.eq.s32.totalorder %s36, 1
    %p101 = por %p99, %p100
    %p103 = scmp.ne.s32.totalorder %s88, %s102
    %p104 = scmp.eq.s32.totalorder %s36, 0
    %p105 = por %p103, %p104
    %s107 = sadd.s32 %s106, 1
    %p110 = scmp.eq.s32.totalorder %s30, 1
    %p111 = scmp.ne.s32.totalorder %s106, %s108
    %p112 = scmp.eq.s32.totalorder %s30, 0
    %p113 = por %p111, %p112
    %p114 = scmp.ne.s32.totalorder %s106, %s108
    %p115 = scmp.eq.s32.totalorder %s35, 1
    %p116 = por %p114, %p115
    %p117 = scmp.ne.s32.totalorder %s108, %s109
    %p118 = scmp.eq.s32.totalorder %s35, 0
    %p119 = por %p117, %p118
    %p120 = scmp.ne.s32.totalorder %s108, %s109
    %p121 = scmp.eq.s32.totalorder %s36, 1
    %p122 = por %p120, %p121
    %p124 = scmp.ne.s32.totalorder %s109, %s123
    %p125 = scmp.eq.s32.totalorder %s36, 0
    %p126 = por %p124, %p125
    %s128 = sadd.s32 %s127, 1
    %p131 = scmp.eq.s32.totalorder %s30, 1
    %p132 = scmp.ne.s32.totalorder %s127, %s129
    %p133 = scmp.eq.s32.totalorder %s30, 0
    %p134 = por %p132, %p133
    %p135 = scmp.ne.s32.totalorder %s127, %s129
    %p136 = scmp.eq.s32.totalorder %s35, 1
    %p137 = por %p135, %p136
    %p138 = scmp.ne.s32.totalorder %s129, %s130
    %p139 = scmp.eq.s32.totalorder %s35, 0
    %p140 = por %p138, %p139
    %p141 = scmp.ne.s32.totalorder %s129, %s130
    %p142 = scmp.eq.s32.totalorder %s36, 1
    %p143 = por %p141, %p142
    %p145 = scmp.ne.s32.totalorder %s130, %s144
    %p146 = scmp.eq.s32.totalorder %s36, 0
    %p147 = por %p145, %p146
    %s149 = sadd.s32 %s148, 1
    %p152 = scmp.eq.s32.totalorder %s30, 1
    %p153 = scmp.ne.s32.totalorder %s148, %s150
    %p154 = scmp.eq.s32.totalorder %s30, 0
    %p155 = por %p153, %p154
    %p156 = scmp.ne.s32.totalorder %s148, %s150
    %p157 = scmp.eq.s32.totalorder %s35, 1
    %p158 = por %p156, %p157
    %p159 = scmp.ne.s32.totalorder %s150, %s151
    %p160 = scmp.eq.s32.totalorder %s35, 0
    %p161 = por %p159, %p160
    %p162 = scmp.ne.s32.totalorder %s150, %s151
    %p163 = scmp.eq.s32.totalorder %s36, 1
    %p164 = por %p162, %p163
    %p166 = scmp.ne.s32.totalorder %s151, %s165
    %p167 = scmp.eq.s32.totalorder %s36, 0
    %p168 = por %p166, %p167
    %s170 = sadd.s32 %s169, 1
    %p173 = scmp.eq.s32.totalorder %s30, 1
    %p174 = scmp.ne.s32.totalorder %s169, %s171
    %p175 = scmp.eq.s32.totalorder %s30, 0
    %p176 = por %p174, %p175
    %p177 = scmp.ne.s32.totalorder %s169, %s171
    %p178 = scmp.eq.s32.totalorder %s35, 1
    %p179 = por %p177, %p178
    %p180 = scmp.ne.s32.totalorder %s171, %s172
    %p181 = scmp.eq.s32.totalorder %s35, 0
    %p182 = por %p180, %p181
    %p183 = scmp.ne.s32.totalorder %s171, %s172
    %p184 = scmp.eq.s32.totalorder %s36, 1
    %p185 = por %p183, %p184
    %p187 = scmp.ne.s32.totalorder %s172, %s186
    %p188 = scmp.eq.s32.totalorder %s36, 0
    %p189 = por %p187, %p188
    %s191 = sadd.s32 %s190, 1
    %p194 = scmp.eq.s32.totalorder %s30, 1
    %p195 = scmp.ne.s32.totalorder %s190, %s192
    %p196 = scmp.eq.s32.totalorder %s30, 0
    %p197 = por %p195, %p196
    %p198 = scmp.ne.s32.totalorder %s190, %s192
    %p199 = scmp.eq.s32.totalorder %s35, 1
    %p200 = por %p198, %p199
    %p201 = scmp.ne.s32.totalorder %s192, %s193
    %p202 = scmp.eq.s32.totalorder %s35, 0
    %p203 = por %p201, %p202
    %p204 = scmp.ne.s32.totalorder %s192, %s193
    %p205 = scmp.eq.s32.totalorder %s36, 1
    %p206 = por %p204, %p205
    %p208 = scmp.ne.s32.totalorder %s193, %s207
    %p209 = scmp.eq.s32.totalorder %s36, 0
    %p210 = por %p208, %p209
    %s212 = sadd.s32 %s211, 1
    %p215 = scmp.eq.s32.totalorder %s30, 1
    %p216 = scmp.ne.s32.totalorder %s211, %s213
    %p217 = scmp.eq.s32.totalorder %s30, 0
    %p218 = por %p216, %p217
    %p219 = scmp.ne.s32.totalorder %s211, %s213
    %p220 = scmp.eq.s32.totalorder %s35, 1
    %p221 = por %p219, %p220
    %p222 = scmp.ne.s32.totalorder %s213, %s214
    %p223 = scmp.eq.s32.totalorder %s35, 0
    %p224 = por %p222, %p223
    %p225 = scmp.ne.s32.totalorder %s213, %s214
    %p226 = scmp.eq.s32.totalorder %s36, 1
    %p227 = por %p225, %p226
    %p229 = scmp.ne.s32.totalorder %s214, %s228
    %p230 = scmp.eq.s32.totalorder %s36, 0
    %p231 = por %p229, %p230
    %s233 = sadd.s32 %s232, 1
    %p236 = scmp.eq.s32.totalorder %s30, 1
    %p237 = scmp.ne.s32.totalorder %s232, %s234
    %p238 = scmp.eq.s32.totalorder %s30, 0
    %p239 = por %p237, %p238
    %p240 = scmp.ne.s32.totalorder %s232, %s234
    %p241 = scmp.eq.s32.totalorder %s35, 1
    %p242 = por %p240, %p241
    %p243 = scmp.ne.s32.totalorder %s234, %s235
    %p244 = scmp.eq.s32.totalorder %s35, 0
    %p245 = por %p243, %p244
    %p246 = scmp.ne.s32.totalorder %s234, %s235
    %p247 = scmp.eq.s32.totalorder %s36, 1
    %p248 = por %p246, %p247
    %p250 = scmp.ne.s32.totalorder %s235, %s249
    %p251 = scmp.eq.s32.totalorder %s36, 0
    %p252 = por %p250, %p251
    %s254 = sadd.s32 %s253, 1
    %p257 = scmp.eq.s32.totalorder %s30, 1
    %p258 = scmp.ne.s32.totalorder %s253, %s255
    %p259 = scmp.eq.s32.totalorder %s30, 0
    %p260 = por %p258, %p259
    %p261 = scmp.ne.s32.totalorder %s253, %s255
    %p262 = scmp.eq.s32.totalorder %s35, 1
    %p263 = por %p261, %p262
    %p264 = scmp.ne.s32.totalorder %s255, %s256
    %p265 = scmp.eq.s32.totalorder %s35, 0
    %p266 = por %p264, %p265
    %p267 = scmp.ne.s32.totalorder %s255, %s256
    %p268 = scmp.eq.s32.totalorder %s36, 1
    %p269 = por %p267, %p268
    %p271 = scmp.ne.s32.totalorder %s256, %s270
    %p272 = scmp.eq.s32.totalorder %s36, 0
    %p273 = por %p271, %p272
    %s275 = sadd.s32 %s274, 1
    %p278 = scmp.eq.s32.totalorder %s30, 1
    %p279 = scmp.ne.s32.totalorder %s274, %s276
    %p280 = scmp.eq.s32.totalorder %s30, 0
    %p281 = por %p279, %p280
    %p282 = scmp.ne.s32.totalorder %s274, %s276
    %p283 = scmp.eq.s32.totalorder %s35, 1
    %p284 = por %p282, %p283
    %p285 = scmp.ne.s32.totalorder %s276, %s277
    %p286 = scmp.eq.s32.totalorder %s35, 0
    %p287 = por %p285, %p286
    %p288 = scmp.ne.s32.totalorder %s276, %s277
    %p289 = scmp.eq.s32.totalorder %s36, 1
    %p290 = por %p288, %p289
    %p292 = scmp.ne.s32.totalorder %s277, %s291
    %p293 = scmp.eq.s32.totalorder %s36, 0
    %p294 = por %p292, %p293
    %s296 = sadd.s32 %s295, 1
    %p299 = scmp.eq.s32.totalorder %s30, 1
    %p300 = scmp.ne.s32.totalorder %s295, %s297
    %p301 = scmp.eq.s32.totalorder %s30, 0
    %p302 = por %p300, %p301
    %p303 = scmp.ne.s32.totalorder %s295, %s297
    %p304 = scmp.eq.s32.totalorder %s35, 1
    %p305 = por %p303, %p304
    %p306 = scmp.ne.s32.totalorder %s297, %s298
    %p307 = scmp.eq.s32.totalorder %s35, 0
    %p308 = por %p306, %p307
    %p309 = scmp.ne.s32.totalorder %s297, %s298
    %p310 = scmp.eq.s32.totalorder %s36, 1
    %p311 = por %p309, %p310
    %p313 = scmp.ne.s32.totalorder %s298, %s312
    %p314 = scmp.eq.s32.totalorder %s36, 0
    %p315 = por %p313, %p314
    %s317 = sadd.s32 %s316, 1
    %p320 = scmp.eq.s32.totalorder %s30, 1
    %p321 = scmp.ne.s32.totalorder %s316, %s318
    %p322 = scmp.eq.s32.totalorder %s30, 0
    %p323 = por %p321, %p322
    %p324 = scmp.ne.s32.totalorder %s316, %s318
    %p325 = scmp.eq.s32.totalorder %s35, 1
    %p326 = por %p324, %p325
    %p327 = scmp.ne.s32.totalorder %s318, %s319
    %p328 = scmp.eq.s32.totalorder %s35, 0
    %p329 = por %p327, %p328
    %p330 = scmp.ne.s32.totalorder %s318, %s319
    %p331 = scmp.eq.s32.totalorder %s36, 1
    %p332 = por %p330, %p331
    %p334 = scmp.ne.s32.totalorder %s319, %s333
    %p335 = scmp.eq.s32.totalorder %s36, 0
    %p336 = por %p334, %p335
    %s338 = sadd.s32 %s337, 1
    %p341 = scmp.eq.s32.totalorder %s30, 1
    %p342 = scmp.ne.s32.totalorder %s337, %s339
    %p343 = scmp.eq.s32.totalorder %s30, 0
    %p344 = por %p342, %p343
    %p345 = scmp.ne.s32.totalorder %s337, %s339
    %p346 = scmp.eq.s32.totalorder %s35, 1
    %p347 = por %p345, %p346
    %p348 = scmp.ne.s32.totalorder %s339, %s340
    %p349 = scmp.eq.s32.totalorder %s35, 0
    %p350 = por %p348, %p349
    %p351 = scmp.ne.s32.totalorder %s339, %s340
    %p352 = scmp.eq.s32.totalorder %s36, 1
    %p353 = por %p351, %p352
    %p355 = scmp.ne.s32.totalorder %s340, %s354
    %p356 = scmp.eq.s32.totalorder %s36, 0
    %p357 = por %p355, %p356
    %s359 = sadd.s32 %s358, 1
    %p362 = scmp.eq.s32.totalorder %s30, 1
    %p363 = scmp.ne.s32.totalorder %s358, %s360
    %p364 = scmp.eq.s32.totalorder %s30, 0
    %p365 = por %p363, %p364
    %p366 = scmp.ne.s32.totalorder %s358, %s360
    %p367 = scmp.eq.s32.totalorder %s35, 1
    %p368 = por %p366, %p367
    %p369 = scmp.ne.s32.totalorder %s360, %s361
    %p370 = scmp.eq.s32.totalorder %s35, 0
    %p371 = por %p369, %p370
    %p372 = scmp.ne.s32.totalorder %s360, %s361
    %p373 = scmp.eq.s32.totalorder %s36, 1
    %p374 = por %p372, %p373
    %p376 = scmp.ne.s32.totalorder %s361, %s375
    %p377 = scmp.eq.s32.totalorder %s36, 0
    %p378 = por %p376, %p377
    %s380 = sadd.s32 %s379, 1
    %p383 = scmp.eq.s32.totalorder %s30, 1
    %p384 = scmp.ne.s32.totalorder %s379, %s381
    %p385 = scmp.eq.s32.totalorder %s30, 0
    %p386 = por %p384, %p385
    %p387 = scmp.ne.s32.totalorder %s379, %s381
    %p388 = scmp.eq.s32.totalorder %s35, 1
    %p389 = por %p387, %p388
    %p390 = scmp.ne.s32.totalorder %s381, %s382
    %p391 = scmp.eq.s32.totalorder %s35, 0
    %p392 = por %p390, %p391
    %p393 = scmp.ne.s32.totalorder %s381, %s382
    %p394 = scmp.eq.s32.totalorder %s36, 1
    %p395 = por %p393, %p394
    %p397 = scmp.ne.s32.totalorder %s382, %s396
    %p398 = scmp.eq.s32.totalorder %s36, 0
    %p399 = por %p397, %p398
    %s401 = sadd.s32 %s400, 1
    %p404 = scmp.eq.s32.totalorder %s30, 1
    %p405 = scmp.ne.s32.totalorder %s400, %s402
    %p406 = scmp.eq.s32.totalorder %s30, 0
    %p407 = por %p405, %p406
    %p408 = scmp.ne.s32.totalorder %s400, %s402
    %p409 = scmp.eq.s32.totalorder %s35, 1
    %p410 = por %p408, %p409
    %p411 = scmp.ne.s32.totalorder %s402, %s403
    %p412 = scmp.eq.s32.totalorder %s35, 0
    %p413 = por %p411, %p412
    %p414 = scmp.ne.s32.totalorder %s402, %s403
    %p415 = scmp.eq.s32.totalorder %s36, 1
    %p416 = por %p414, %p415
    %p418 = scmp.ne.s32.totalorder %s403, %s417
    %p419 = scmp.eq.s32.totalorder %s36, 0
    %p420 = por %p418, %p419
    %s422 = sadd.s32 %s421, 1
    %p425 = scmp.eq.s32.totalorder %s30, 1
    %p426 = scmp.ne.s32.totalorder %s421, %s423
    %p427 = scmp.eq.s32.totalorder %s30, 0
    %p428 = por %p426, %p427
    %p429 = scmp.ne.s32.totalorder %s421, %s423
    %p430 = scmp.eq.s32.totalorder %s35, 1
    %p431 = por %p429, %p430
    %p432 = scmp.ne.s32.totalorder %s423, %s424
    %p433 = scmp.eq.s32.totalorder %s35, 0
    %p434 = por %p432, %p433
    %p435 = scmp.ne.s32.totalorder %s423, %s424
    %p436 = scmp.eq.s32.totalorder %s36, 1
    %p437 = por %p435, %p436
    %p439 = scmp.ne.s32.totalorder %s424, %s438
    %p440 = scmp.eq.s32.totalorder %s36, 0
    %p441 = por %p439, %p440
    %s443 = sadd.s32 %s442, 1
    %p446 = scmp.eq.s32.totalorder %s30, 1
    %p447 = scmp.ne.s32.totalorder %s442, %s444
    %p448 = scmp.eq.s32.totalorder %s30, 0
    %p449 = por %p447, %p448
    %p450 = scmp.ne.s32.totalorder %s442, %s444
    %p451 = scmp.eq.s32.totalorder %s35, 1
    %p452 = por %p450, %p451
    %p453 = scmp.ne.s32.totalorder %s444, %s445
    %p454 = scmp.eq.s32.totalorder %s35, 0
    %p455 = por %p453, %p454
    %p456 = scmp.ne.s32.totalorder %s444, %s445
    %p457 = scmp.eq.s32.totalorder %s36, 1
    %p458 = por %p456, %p457
    %p460 = scmp.ne.s32.totalorder %s445, %s459
    %p461 = scmp.eq.s32.totalorder %s36, 0
    %p462 = por %p460, %p461
    %s463 = ssub.s32 %s30, %s37
    %p464 = scmp.eq.s32.totalorder %s463, 0
    %s466 = sadd.s32 %s465, 1
    %s467 = scalar_select %p464, %s465, %s466
    %p470 = pneg %p464
    %p471 = scmp.eq.s32.totalorder %s30, 1
    %p472 = por %p470, %p471
    %p473 = scmp.ne.s32.totalorder %s465, %s468
    %p474 = scmp.eq.s32.totalorder %s30, 0
    %p475 = por %p473, %p474
    %p476 = scmp.ne.s32.totalorder %s465, %s468
    %p477 = scmp.eq.s32.totalorder %s35, 1
    %p478 = por %p476, %p477
    %p479 = scmp.ne.s32.totalorder %s468, %s469
    %p480 = scmp.eq.s32.totalorder %s35, 0
    %p481 = por %p479, %p480
    %p482 = scmp.ne.s32.totalorder %s468, %s469
    %p483 = scmp.eq.s32.totalorder %s36, 1
    %p484 = por %p482, %p483
    %p486 = scmp.ne.s32.totalorder %s469, %s485
    %p487 = scmp.eq.s32.totalorder %s36, 0
    %p488 = por %p486, %p487
    %s489 = ssub.s32 %s30, %s37
    %p490 = scmp.eq.s32.totalorder %s489, 0
    %s492 = sadd.s32 %s491, 1
    %s493 = scalar_select %p490, %s491, %s492
    %p496 = pneg %p490
    %p497 = scmp.eq.s32.totalorder %s30, 1
    %p498 = por %p496, %p497
    %p499 = scmp.ne.s32.totalorder %s491, %s494
    %p500 = scmp.eq.s32.totalorder %s30, 0
    %p501 = por %p499, %p500
    %p502 = scmp.ne.s32.totalorder %s491, %s494
    %p503 = scmp.eq.s32.totalorder %s35, 1
    %p504 = por %p502, %p503
    %p505 = scmp.ne.s32.totalorder %s494, %s495
    %p506 = scmp.eq.s32.totalorder %s35, 0
    %p507 = por %p505, %p506
    %p508 = scmp.ne.s32.totalorder %s494, %s495
    %p509 = scmp.eq.s32.totalorder %s36, 1
    %p510 = por %p508, %p509
    %p512 = scmp.ne.s32.totalorder %s495, %s511
    %p513 = scmp.eq.s32.totalorder %s36, 0
    %p514 = por %p512, %p513
    %p515 = scmp.le.s32.totalorder 1, %s30
    %p516 = scmp.lt.s32.totalorder %s30, 3
    %p517 = pnand %p515, %p516
    %p518 = pneg %p517
    // Predicated region
    $region9: #{tpu_custom_call.1} parent=5 // pred_check
      _
    $region10: #{tpu_custom_call.1} parent=5 // pred_check_branch
      %520 = sbr.rel (%p517) target = $region12
    $region11: #{tpu_custom_call.1} parent=5 // pred_region
      %s521 = ssub.s32 %s30, 1
      // Predicated region
      $region13: #{tpu_custom_call.1} parent=11 // pred_check
        %p522 = pneg %p77
      $region14: #{tpu_custom_call.1} parent=11 // pred_check_branch
        %524 = sbr.rel (%p522) target = $region16
      $region15: #{tpu_custom_call.1} parent=11 // pred_region
        _
      $region16: #{tpu_custom_call.1} parent=11 // pred_fallthru
        _
      // Predicated region
      $region17: #{tpu_custom_call.1} parent=11 // pred_check
        %p525 = pneg %p98
      $region18: #{tpu_custom_call.1} parent=11 // pred_check_branch
        %527 = sbr.rel (%p525) target = $region20
      $region19: #{tpu_custom_call.1} parent=11 // pred_region
        _
      $region20: #{tpu_custom_call.1} parent=11 // pred_fallthru
        _
      // Predicated region
      $region21: #{tpu_custom_call.1} parent=11 // pred_check
        %p528 = pneg %p119
      $region22: #{tpu_custom_call.1} parent=11 // pred_check_branch
        %530 = sbr.rel (%p528) target = $region24
      $region23: #{tpu_custom_call.1} parent=11 // pred_region
        _
      $region24: #{tpu_custom_call.1} parent=11 // pred_fallthru
        _
      // Predicated region
      $region25: #{tpu_custom_call.1} parent=11 // pred_check
        %p531 = pneg %p140
      $region26: #{tpu_custom_call.1} parent=11 // pred_check_branch
        %533 = sbr.rel (%p531) target = $region28
      $region27: #{tpu_custom_call.1} parent=11 // pred_region
        _
      $region28: #{tpu_custom_call.1} parent=11 // pred_fallthru
        _
      // Predicated region
      $region29: #{tpu_custom_call.1} parent=11 // pred_check
        %p534 = pneg %p161
      $region30: #{tpu_custom_call.1} parent=11 // pred_check_branch
        %536 = sbr.rel (%p534) target = $region32
      $region31: #{tpu_custom_call.1} parent=11 // pred_region
        _
      $region32: #{tpu_custom_call.1} parent=11 // pred_fallthru
        _
      // Predicated region
      $region33: #{tpu_custom_call.1} parent=11 // pred_check
        %p537 = pneg %p182
      $region34: #{tpu_custom_call.1} parent=11 // pred_check_branch
        %539 = sbr.rel (%p537) target = $region36
      $region35: #{tpu_custom_call.1} parent=11 // pred_region
        _
      $region36: #{tpu_custom_call.1} parent=11 // pred_fallthru
        _
      // Predicated region
      $region37: #{tpu_custom_call.1} parent=11 // pred_check
        %p540 = pneg %p203
      $region38: #{tpu_custom_call.1} parent=11 // pred_check_branch
        %542 = sbr.rel (%p540) target = $region40
      $region39: #{tpu_custom_call.1} parent=11 // pred_region
        _
      $region40: #{tpu_custom_call.1} parent=11 // pred_fallthru
        _
      // Predicated region
      $region41: #{tpu_custom_call.1} parent=11 // pred_check
        %p543 = pneg %p224
      $region42: #{tpu_custom_call.1} parent=11 // pred_check_branch
        %545 = sbr.rel (%p543) target = $region44
      $region43: #{tpu_custom_call.1} parent=11 // pred_region
        _
      $region44: #{tpu_custom_call.1} parent=11 // pred_fallthru
        _
      // Predicated region
      $region45: #{tpu_custom_call.1} parent=11 // pred_check
        %p546 = pneg %p245
      $region46: #{tpu_custom_call.1} parent=11 // pred_check_branch
        %548 = sbr.rel (%p546) target = $region48
      $region47: #{tpu_custom_call.1} parent=11 // pred_region
        _
      $region48: #{tpu_custom_call.1} parent=11 // pred_fallthru
        _
      // Predicated region
      $region49: #{tpu_custom_call.1} parent=11 // pred_check
        %p549 = pneg %p266
      $region50: #{tpu_custom_call.1} parent=11 // pred_check_branch
        %551 = sbr.rel (%p549) target = $region52
      $region51: #{tpu_custom_call.1} parent=11 // pred_region
        _
      $region52: #{tpu_custom_call.1} parent=11 // pred_fallthru
        _
      // Predicated region
      $region53: #{tpu_custom_call.1} parent=11 // pred_check
        %p552 = pneg %p287
      $region54: #{tpu_custom_call.1} parent=11 // pred_check_branch
        %554 = sbr.rel (%p552) target = $region56
      $region55: #{tpu_custom_call.1} parent=11 // pred_region
        _
      $region56: #{tpu_custom_call.1} parent=11 // pred_fallthru
        _
      // Predicated region
      $region57: #{tpu_custom_call.1} parent=11 // pred_check
        %p555 = pneg %p308
      $region58: #{tpu_custom_call.1} parent=11 // pred_check_branch
        %557 = sbr.rel (%p555) target = $region60
      $region59: #{tpu_custom_call.1} parent=11 // pred_region
        _
      $region60: #{tpu_custom_call.1} parent=11 // pred_fallthru
        _
      // Predicated region
      $region61: #{tpu_custom_call.1} parent=11 // pred_check
        %p558 = pneg %p329
      $region62: #{tpu_custom_call.1} parent=11 // pred_check_branch
        %560 = sbr.rel (%p558) target = $region64
      $region63: #{tpu_custom_call.1} parent=11 // pred_region
        _
      $region64: #{tpu_custom_call.1} parent=11 // pred_fallthru
        _
      // Predicated region
      $region65: #{tpu_custom_call.1} parent=11 // pred_check
        %p561 = pneg %p350
      $region66: #{tpu_custom_call.1} parent=11 // pred_check_branch
        %563 = sbr.rel (%p561) target = $region68
      $region67: #{tpu_custom_call.1} parent=11 // pred_region
        _
      $region68: #{tpu_custom_call.1} parent=11 // pred_fallthru
        _
      // Predicated region
      $region69: #{tpu_custom_call.1} parent=11 // pred_check
        %p564 = pneg %p371
      $region70: #{tpu_custom_call.1} parent=11 // pred_check_branch
        %566 = sbr.rel (%p564) target = $region72
      $region71: #{tpu_custom_call.1} parent=11 // pred_region
        _
      $region72: #{tpu_custom_call.1} parent=11 // pred_fallthru
        _
      // Predicated region
      $region73: #{tpu_custom_call.1} parent=11 // pred_check
        %p567 = pneg %p392
      $region74: #{tpu_custom_call.1} parent=11 // pred_check_branch
        %569 = sbr.rel (%p567) target = $region76
      $region75: #{tpu_custom_call.1} parent=11 // pred_region
        _
      $region76: #{tpu_custom_call.1} parent=11 // pred_fallthru
        _
      // Predicated region
      $region77: #{tpu_custom_call.1} parent=11 // pred_check
        %p570 = pneg %p413
      $region78: #{tpu_custom_call.1} parent=11 // pred_check_branch
        %572 = sbr.rel (%p570) target = $region80
      $region79: #{tpu_custom_call.1} parent=11 // pred_region
        _
      $region80: #{tpu_custom_call.1} parent=11 // pred_fallthru
        _
      // Predicated region
      $region81: #{tpu_custom_call.1} parent=11 // pred_check
        %p573 = pneg %p434
      $region82: #{tpu_custom_call.1} parent=11 // pred_check_branch
        %575 = sbr.rel (%p573) target = $region84
      $region83: #{tpu_custom_call.1} parent=11 // pred_region
        _
      $region84: #{tpu_custom_call.1} parent=11 // pred_fallthru
        _
      // Predicated region
      $region85: #{tpu_custom_call.1} parent=11 // pred_check
        %p576 = pneg %p455
      $region86: #{tpu_custom_call.1} parent=11 // pred_check_branch
        %578 = sbr.rel (%p576) target = $region88
      $region87: #{tpu_custom_call.1} parent=11 // pred_region
        _
      $region88: #{tpu_custom_call.1} parent=11 // pred_fallthru
        _
    $region12: #{tpu_custom_call.1} parent=5 // pred_fallthru
      _
    %p579 = scmp.lt.s32.totalorder %s30, 2
    // Predicated region
    $region89: #{tpu_custom_call.1} parent=5 // pred_check
      %p580 = pneg %p579
    $region90: #{tpu_custom_call.1} parent=5 // pred_check_branch
      %582 = sbr.rel (%p580) target = $region92
    $region91: #{tpu_custom_call.1} parent=5 // pred_region
      // Predicated region
      $region93: #{tpu_custom_call.1} parent=91 // pred_check
        %p583 = pneg %p50
      $region94: #{tpu_custom_call.1} parent=91 // pred_check_branch
        %585 = sbr.rel (%p583) target = $region96
      $region95: #{tpu_custom_call.1} parent=91 // pred_region
        %p586 = scmp.lt.s32.totalorder %s30, 1
        %s587 = scalar_select %p586, %s30, 1
        %s588 = smul.addr %s587, 2
        %s589 = smul.addr %s588, 8
        %s590 = scalar_lea.vmem %s0, %s589
      $region96: #{tpu_custom_call.1} parent=91 // pred_fallthru
        _
    $region92: #{tpu_custom_call.1} parent=5 // pred_fallthru
      _
    %p591 = scmp.le.s32.totalorder 1, %s30
    %p592 = scmp.lt.s32.totalorder %s30, 3
    %p593 = pnand %p591, %p592
    %p594 = pneg %p593
    // Predicated region
    $region97: #{tpu_custom_call.1} parent=5 // pred_check
      _
    $region98: #{tpu_custom_call.1} parent=5 // pred_check_branch
      %596 = sbr.rel (%p593) target = $region100
    $region99: #{tpu_custom_call.1} parent=5 // pred_region
      %s597 = ssub.s32 %s30, 1
      %p598 = scmp.lt.s32.totalorder %s35, 1
      %s599 = scalar_select %p598, %s35, 1
      %s600 = smul.addr %s599, 2
      %s601 = smul.addr %s600, 8
      %s602 = scalar_lea.vmem %s0, %s601
      %p603 = pneg %p56
      %p604 = pneg %p53
      %p605 = pneg %p77
      %p606 = pneg %p74
      %p607 = pneg %p98
      %p608 = pneg %p95
      %p609 = pneg %p119
      %p610 = pneg %p116
      %p611 = pneg %p140
      %p612 = pneg %p137
      %p613 = pneg %p161
      %p614 = pneg %p158
      %p615 = pneg %p182
      %p616 = pneg %p179
      %p617 = pneg %p203
      %p618 = pneg %p200
      %p619 = pneg %p224
      %p620 = pneg %p221
      %p621 = pneg %p245
      %p622 = pneg %p242
      %p623 = pneg %p266
      %p624 = pneg %p263
      %p625 = pneg %p287
      %p626 = pneg %p284
      %p627 = pneg %p308
      %p628 = pneg %p305
      %p629 = pneg %p329
      %p630 = pneg %p326
      %p631 = pneg %p350
      %p632 = pneg %p347
      %p633 = pneg %p371
      %p634 = pneg %p368
      %p635 = pneg %p392
      %p636 = pneg %p389
      %p637 = pneg %p413
      %p638 = pneg %p410
      %p639 = pneg %p434
      %p640 = pneg %p431
      %p641 = pneg %p455
      %p642 = pneg %p452
      %p643 = pneg %p481
      %p644 = pneg %p478
      %p645 = scmp.lt.s32.totalorder %s35, 1
      %s646 = scalar_select %p645, %s35, 1
      %s647 = smul.addr %s646, 2
      %s648 = smul.addr %s647, 8
      %s649 = scalar_lea.vmem %s20, %s648
      %p650 = pneg %p507
      %p651 = pneg %p504
      %p652 = scmp.lt.s32.totalorder %s35, 1
      %s653 = scalar_select %p652, %s35, 1
      %s654 = smul.addr %s653, 2
      %s655 = smul.addr %s654, 8
      %s656 = scalar_lea.vmem %s21, %s655
      %p657 = scmp.lt.s32.totalorder %s35, 1
      %s658 = scalar_select %p657, %s35, 1
      %s659 = smul.addr %s658, 2
      %s660 = smul.addr %s659, 8
      %s661 = scalar_lea.vmem %s0, %s660
      %p662 = scmp.lt.s32.totalorder %s35, 1
      %s663 = scalar_select %p662, %s35, 1
      %s664 = smul.addr %s663, 2
      %s665 = smul.addr %s664, 8
      %s666 = scalar_lea.vmem %s20, %s665
      %p667 = scmp.lt.s32.totalorder %s35, 1
      %s668 = scalar_select %p667, %s35, 1
      %s669 = smul.addr %s668, 2
      %s670 = smul.addr %s669, 8
      %s671 = scalar_lea.vmem %s21, %s670
      %vm673 = vcmask 261120
      %674 = vst.msk [vmem:[#allocation2] sm:$0xff] %vm673, 0.0
      %v675 = vld [vmem:[%s661] sm:$0xff]
      %v676 = vld [vmem:[%s661 + $0x8] sm:$0xff]
      %vm677 = vcmask 31744
      %678 = vst.msk [vmem:[#allocation2 + $0x8] sm:$0xff] %vm677, %v675
      %679 = vst.msk [vmem:[#allocation2 + $0x10] sm:$0xff] %vm677, %v676
      %v680 = vld [vmem:[#allocation2 + $0x6] sm:$0xff]
      %v681 = vld [vmem:[#allocation2 + $0xe] sm:$0xff]
      %v682 = vpack.c.bf16 %v681, %v680
      %v683 = vld [vmem:[%s1] sm:$0x1]
      %v684 = vunpack.c.l.bf16 %v682
      %v685 = vunpack.c.h.bf16 %v682
      %v686 = vunpack.c.l.bf16 %v683
      %688 = vset.pattern.permute.xlu0 2
      %689 = vperm.xlu0 %688, %v684
      %v690 = vpop.permute.xlu0 %689
      %693 = vset.pattern.permute.xlu0 2
      %694 = vperm.xlu0 %693, %v685
      %v695 = vpop.permute.xlu0 %694
      %v697 = vlaneseq
      %v698 = vshrl.u32 %v697, 7
      %v699 = vsub.s32 0, %v698
      %v700 = vrot.slane %v686, %v699
      %v701 = vmul.f32 %v690, %v700
      %v702 = vmul.f32 %v695, %v700
      %v703 = vadd.f32 %v701, 0.0
      %v704 = vadd.f32 %v702, 0.0
      %s705 = scalar_lea.vmem %s1, 1
      %v706 = vld [vmem:[%s705] sm:$0x1]
      %v707 = vunpack.c.l.bf16 %v706
      %708 = vset.pattern.permute.xlu0 3
      %709 = vperm.xlu0 %708, %v684
      %v710 = vpop.permute.xlu0 %709
      %712 = vset.pattern.permute.xlu0 3
      %713 = vperm.xlu0 %712, %v685
      %v714 = vpop.permute.xlu0 %713
      %v716 = vlaneseq
      %v717 = vshrl.u32 %v716, 7
      %v718 = vsub.s32 0, %v717
      %v719 = vrot.slane %v707, %v718
      %v720 = vmul.f32 %v710, %v719
      %v721 = vmul.f32 %v714, %v719
      %v722 = vadd.f32 %v703, %v720
      %v723 = vadd.f32 %v704, %v721
      %v724 = vld [vmem:[#allocation2 + $0x7] sm:$0xff]
      %v725 = vld [vmem:[#allocation2 + $0xf] sm:$0xff]
      %v726 = vpack.c.bf16 %v725, %v724
      %s727 = scalar_lea.vmem %s1, 2
      %v728 = vld [vmem:[%s727] sm:$0x1]
      %v729 = vunpack.c.l.bf16 %v726
      %v730 = vunpack.c.h.bf16 %v726
      %v731 = vunpack.c.l.bf16 %v728
      %733 = vset.pattern.permute.xlu0 0
      %734 = vperm.xlu0 %733, %v729
      %v735 = vpop.permute.xlu0 %734
      %738 = vset.pattern.permute.xlu0 0
      %739 = vperm.xlu0 %738, %v730
      %v740 = vpop.permute.xlu0 %739
      %v742 = vlaneseq
      %v743 = vshrl.u32 %v742, 7
      %v744 = vsub.s32 0, %v743
      %v745 = vrot.slane %v731, %v744
      %v746 = vmul.f32 %v735, %v745
      %v747 = vmul.f32 %v740, %v745
      %v748 = vadd.f32 %v722, %v746
      %v749 = vadd.f32 %v723, %v747
      %s750 = scalar_lea.vmem %s1, 3
      %v751 = vld [vmem:[%s750] sm:$0x1]
      %v752 = vunpack.c.l.bf16 %v751
      %753 = vset.pattern.permute.xlu0 1
      %754 = vperm.xlu0 %753, %v729
      %v755 = vpop.permute.xlu0 %754
      %757 = vset.pattern.permute.xlu0 1
      %758 = vperm.xlu0 %757, %v730
      %v759 = vpop.permute.xlu0 %758
      %v761 = vlaneseq
      %v762 = vshrl.u32 %v761, 7
      %v763 = vsub.s32 0, %v762
      %v764 = vrot.slane %v752, %v763
      %v765 = vmul.f32 %v755, %v764
      %v766 = vmul.f32 %v759, %v764
      %v767 = vadd.f32 %v748, %v765
      %v768 = vadd.f32 %v749, %v766
      %s769 = scalar_lea.vmem %s1, 4
      %v770 = vld [vmem:[%s769] sm:$0x1]
      %v771 = vunpack.c.l.bf16 %v770
      %772 = vset.pattern.permute.xlu0 2
      %773 = vperm.xlu0 %772, %v729
      %v774 = vpop.permute.xlu0 %773
      %776 = vset.pattern.permute.xlu0 2
      %777 = vperm.xlu0 %776, %v730
      %v778 = vpop.permute.xlu0 %777
      %v780 = vlaneseq
      %v781 = vshrl.u32 %v780, 7
      %v782 = vsub.s32 0, %v781
      %v783 = vrot.slane %v771, %v782
      %v784 = vmul.f32 %v774, %v783
      %v785 = vmul.f32 %v778, %v783
      %v786 = vadd.f32 %v767, %v784
      %v787 = vadd.f32 %v768, %v785
      %s788 = scalar_lea.vmem %s1, 5
      %v789 = vld [vmem:[%s788] sm:$0x1]
      %v790 = vunpack.c.l.bf16 %v789
      %791 = vset.pattern.permute.xlu0 3
      %792 = vperm.xlu0 %791, %v729
      %v793 = vpop.permute.xlu0 %792
      %795 = vset.pattern.permute.xlu0 3
      %796 = vperm.xlu0 %795, %v730
      %v797 = vpop.permute.xlu0 %796
      %v799 = vlaneseq
      %v800 = vshrl.u32 %v799, 7
      %v801 = vsub.s32 0, %v800
      %v802 = vrot.slane %v790, %v801
      %v803 = vmul.f32 %v793, %v802
      %v804 = vmul.f32 %v797, %v802
      %v805 = vadd.f32 %v786, %v803
      %v806 = vadd.f32 %v787, %v804
      %v807 = vld [vmem:[#allocation2 + $0x8] sm:$0xff]
      %v808 = vld [vmem:[#allocation2 + $0x10] sm:$0xff]
      %v809 = vpack.c.bf16 %v808, %v807
      %s810 = scalar_lea.vmem %s1, 6
      %v811 = vld [vmem:[%s810] sm:$0x1]
      %v812 = vunpack.c.l.bf16 %v809
      %v813 = vunpack.c.h.bf16 %v809
      %v814 = vunpack.c.l.bf16 %v811
      %816 = vset.pattern.permute.xlu0 0
      %817 = vperm.xlu0 %816, %v812
      %v818 = vpop.permute.xlu0 %817
      %821 = vset.pattern.permute.xlu0 0
      %822 = vperm.xlu0 %821, %v813
      %v823 = vpop.permute.xlu0 %822
      %v825 = vlaneseq
      %v826 = vshrl.u32 %v825, 7
      %v827 = vsub.s32 0, %v826
      %v828 = vrot.slane %v814, %v827
      %v829 = vmul.f32 %v818, %v828
      %v830 = vmul.f32 %v823, %v828
      %v831 = vadd.f32 %v805, %v829
      %v832 = vadd.f32 %v806, %v830
      %v833 = vld [vmem:[%s9] sm:$0x1]
      %v835 = vlaneseq
      %v836 = vshrl.u32 %v835, 7
      %v837 = vsub.s32 0, %v836
      %v838 = vrot.slane %v833, %v837
      %v840 = vadd.f32 %v831, %v838
      %v841 = vadd.f32 %v832, %v838
      %vm842 = vcmp.gt.f32.partialorder %v840, 0.0
      %vm843 = vcmp.gt.f32.partialorder %v841, 0.0
      %v844 = vmin.f32 %v840, 0.0
      %v845 = vmin.f32 %v841, 0.0
      %v846 = vmul.f32 %v844, 1.442695
      %v847 = vpow.pop %v846
      %v848 = vmul.f32 %v845, 1.442695
      %v849 = vpow.pop %v848
      %v850 = vsub.f32 %v847, 1.0
      %v851 = vsub.f32 %v849, 1.0
      %v852 = vsel %vm842, %v840, %v850
      %v853 = vsel %vm843, %v841, %v851
      %v854 = vmul.f32 %v710, %v700
      %v855 = vmul.f32 %v714, %v700
      %v856 = vadd.f32 %v854, 0.0
      %v857 = vadd.f32 %v855, 0.0
      %v858 = vmul.f32 %v735, %v719
      %v859 = vmul.f32 %v740, %v719
      %v860 = vadd.f32 %v856, %v858
      %v861 = vadd.f32 %v857, %v859
      %v862 = vmul.f32 %v755, %v745
      %v863 = vmul.f32 %v759, %v745
      %v864 = vadd.f32 %v860, %v862
      %v865 = vadd.f32 %v861, %v863
      %v866 = vmul.f32 %v774, %v764
      %v867 = vmul.f32 %v778, %v764
      %v868 = vadd.f32 %v864, %v866
      %v869 = vadd.f32 %v865, %v867
      %v870 = vmul.f32 %v793, %v783
      %v871 = vmul.f32 %v797, %v783
      %v872 = vadd.f32 %v868, %v870
      %v873 = vadd.f32 %v869, %v871
      %v874 = vmul.f32 %v818, %v802
      %v875 = vmul.f32 %v823, %v802
      %v876 = vadd.f32 %v872, %v874
      %v877 = vadd.f32 %v873, %v875
      %878 = vset.pattern.permute.xlu0 1
      %879 = vperm.xlu0 %878, %v812
      %v880 = vpop.permute.xlu0 %879
      %882 = vset.pattern.permute.xlu0 1
      %883 = vperm.xlu0 %882, %v813
      %v884 = vpop.permute.xlu0 %883
      %v886 = vmul.f32 %v880, %v828
      %v887 = vmul.f32 %v884, %v828
      %v888 = vadd.f32 %v876, %v886
      %v889 = vadd.f32 %v877, %v887
      %v890 = vadd.f32 %v888, %v838
      %v891 = vadd.f32 %v889, %v838
      %vm892 = vcmp.gt.f32.partialorder %v890, 0.0
      %vm893 = vcmp.gt.f32.partialorder %v891, 0.0
      %v894 = vmin.f32 %v890, 0.0
      %v895 = vmin.f32 %v891, 0.0
      %v896 = vmul.f32 %v894, 1.442695
      %v897 = vpow.pop %v896
      %v898 = vmul.f32 %v895, 1.442695
      %v899 = vpow.pop %v898
      %v900 = vsub.f32 %v897, 1.0
      %v901 = vsub.f32 %v899, 1.0
      %v902 = vsel %vm892, %v890, %v900
      %v903 = vsel %vm893, %v891, %v901
      %v904 = vmul.f32 %v735, %v700
      %v905 = vmul.f32 %v740, %v700
      %v906 = vadd.f32 %v904, 0.0
      %v907 = vadd.f32 %v905, 0.0
      %v908 = vmul.f32 %v755, %v719
      %v909 = vmul.f32 %v759, %v719
      %v910 = vadd.f32 %v906, %v908
      %v911 = vadd.f32 %v907, %v909
      %v912 = vmul.f32 %v774, %v745
      %v913 = vmul.f32 %v778, %v745
      %v914 = vadd.f32 %v910, %v912
      %v915 = vadd.f32 %v911, %v913
      %v916 = vmul.f32 %v793, %v764
      %v917 = vmul.f32 %v797, %v764
      %v918 = vadd.f32 %v914, %v916
      %v919 = vadd.f32 %v915, %v917
      %v920 = vmul.f32 %v818, %v783
      %v921 = vmul.f32 %v823, %v783
      %v922 = vadd.f32 %v918, %v920
      %v923 = vadd.f32 %v919, %v921
      %v924 = vmul.f32 %v880, %v802
      %v925 = vmul.f32 %v884, %v802
      %v926 = vadd.f32 %v922, %v924
      %v927 = vadd.f32 %v923, %v925
      %928 = vset.pattern.permute.xlu0 2
      %929 = vperm.xlu0 %928, %v812
      %v930 = vpop.permute.xlu0 %929
      %932 = vset.pattern.permute.xlu0 2
      %933 = vperm.xlu0 %932, %v813
      %v934 = vpop.permute.xlu0 %933
      %v936 = vmul.f32 %v930, %v828
      %v937 = vmul.f32 %v934, %v828
      %v938 = vadd.f32 %v926, %v936
      %v939 = vadd.f32 %v927, %v937
      %v940 = vadd.f32 %v938, %v838
      %v941 = vadd.f32 %v939, %v838
      %vm942 = vcmp.gt.f32.partialorder %v940, 0.0
      %vm943 = vcmp.gt.f32.partialorder %v941, 0.0
      %v944 = vmin.f32 %v940, 0.0
      %v945 = vmin.f32 %v941, 0.0
      %v946 = vmul.f32 %v944, 1.442695
      %v947 = vpow.pop %v946
      %v948 = vmul.f32 %v945, 1.442695
      %v949 = vpow.pop %v948
      %v950 = vsub.f32 %v947, 1.0
      %v951 = vsub.f32 %v949, 1.0
      %v952 = vsel %vm942, %v940, %v950
      %v953 = vsel %vm943, %v941, %v951
      %v954 = vmul.f32 %v755, %v700
      %v955 = vmul.f32 %v759, %v700
      %v956 = vadd.f32 %v954, 0.0
      %v957 = vadd.f32 %v955, 0.0
      %v958 = vmul.f32 %v774, %v719
      %v959 = vmul.f32 %v778, %v719
      %v960 = vadd.f32 %v956, %v958
      %v961 = vadd.f32 %v957, %v959
      %v962 = vmul.f32 %v793, %v745
      %v963 = vmul.f32 %v797, %v745
      %v964 = vadd.f32 %v960, %v962
      %v965 = vadd.f32 %v961, %v963
      %v966 = vmul.f32 %v818, %v764
      %v967 = vmul.f32 %v823, %v764
      %v968 = vadd.f32 %v964, %v966
      %v969 = vadd.f32 %v965, %v967
      %v970 = vmul.f32 %v880, %v783
      %v971 = vmul.f32 %v884, %v783
      %v972 = vadd.f32 %v968, %v970
      %v973 = vadd.f32 %v969, %v971
      %v974 = vmul.f32 %v930, %v802
      %v975 = vmul.f32 %v934, %v802
      %v976 = vadd.f32 %v972, %v974
      %v977 = vadd.f32 %v973, %v975
      %978 = vset.pattern.permute.xlu0 3
      %979 = vperm.xlu0 %978, %v812
      %v980 = vpop.permute.xlu0 %979
      %982 = vset.pattern.permute.xlu0 3
      %983 = vperm.xlu0 %982, %v813
      %v984 = vpop.permute.xlu0 %983
      %v986 = vmul.f32 %v980, %v828
      %v987 = vmul.f32 %v984, %v828
      %v988 = vadd.f32 %v976, %v986
      %v989 = vadd.f32 %v977, %v987
      %v990 = vadd.f32 %v988, %v838
      %v991 = vadd.f32 %v989, %v838
      %vm992 = vcmp.gt.f32.partialorder %v990, 0.0
      %vm993 = vcmp.gt.f32.partialorder %v991, 0.0
      %v994 = vmin.f32 %v990, 0.0
      %v995 = vmin.f32 %v991, 0.0
      %v996 = vmul.f32 %v994, 1.442695
      %v997 = vpow.pop %v996
      %v998 = vmul.f32 %v995, 1.442695
      %v999 = vpow.pop %v998
      %v1000 = vsub.f32 %v997, 1.0
      %v1001 = vsub.f32 %v999, 1.0
      %v1002 = vsel %vm992, %v990, %v1000
      %v1003 = vsel %vm993, %v991, %v1001
      %vm1004 = vcmask 64512
      %1005 = vst.msk [vmem:[#allocation2 + $0x8] sm:$0xff] %vm1004, %v852
      %1006 = vst.msk [vmem:[#allocation2 + $0x10] sm:$0xff] %vm1004, %v853
      %1009 = vrot.lane.b32.xlu0 %v902, 8
      %v1010 = vpop.permute.xlu0 %1009
      %1011 = vrot.lane.b32.xlu0 %v903, 8
      %v1012 = vpop.permute.xlu0 %1011
      %vm1015 = vcmask 130112
      %1016 = vst.msk [vmem:[#allocation2 + $0x8] sm:$0xff] %vm1015, %v1010
      %1017 = vst.msk [vmem:[#allocation2 + $0x10] sm:$0xff] %vm1015, %v1012
      %1020 = vrot.lane.b32.xlu0 %v952, 16
      %v1021 = vpop.permute.xlu0 %1020
      %1022 = vrot.lane.b32.xlu0 %v953, 16
      %v1023 = vpop.permute.xlu0 %1022
      %vm1026 = vcmask 195712
      %1027 = vst.msk [vmem:[#allocation2 + $0x8] sm:$0xff] %vm1026, %v1021
      %1028 = vst.msk [vmem:[#allocation2 + $0x10] sm:$0xff] %vm1026, %v1023
      %1031 = vrot.lane.b32.xlu0 %v1002, 24
      %v1032 = vpop.permute.xlu0 %1031
      %1033 = vrot.lane.b32.xlu0 %v1003, 24
      %v1034 = vpop.permute.xlu0 %1033
      %vm1037 = vcmask 261312
      %1038 = vst.msk [vmem:[#allocation2 + $0x8] sm:$0xff] %vm1037, %v1032
      %1039 = vst.msk [vmem:[#allocation2 + $0x10] sm:$0xff] %vm1037, %v1034
      %v1040 = vld [vmem:[#allocation2 + $0x7] sm:$0xff]
      %v1041 = vld [vmem:[#allocation2 + $0xf] sm:$0xff]
      %v1042 = vpack.c.bf16 %v1041, %v1040
      %v1043 = vld [vmem:[%s2] sm:$0xf]
      %s1044 = scalar_lea.vmem %s2, 4
      %v1045 = vld [vmem:[%s1044] sm:$0xf]
      %1047 = vrot.lane.b32.xlu0 %v1042, 104
      %v1048 = vpop.permute.xlu0 %1047
      %v1050 = vsel %vm1004, %v1048, 0
      %vm1052 = vcmask 1043456
      %v1054 = vsel %vm1052, %v1045, 0
      %1056 = vmatprep.subr.bf16.mxu0 0
      %1057 = vmatpush1.bf16.msra.mxu0 0
      %1058 = vmatprep.subr.bf16.mxu0 0
      %1059 = vmatpush1.bf16.msra.mxu0 0
      %1060 = vmatprep.subr.bf16.mxu0 0
      %1061 = vmatpush1.bf16.msra.mxu0 0
      %1062 = vmatprep.subr.bf16.mxu0 0
      %1063 = vmatpush1.bf16.msra.mxu0 0
      %1064 = vmatprep.subr.bf16.mxu0 0
      %1065 = vmatpush1.bf16.msra.mxu0 0
      %1066 = vmatprep.subr.bf16.mxu0 0
      %1067 = vmatpush1.bf16.msra.mxu0 0
      %1068 = vmatprep.subr.bf16.mxu0 0
      %1069 = vmatpush1.bf16.msra.mxu0 0
      %1070 = vmatprep.subr.bf16.mxu0 0
      %1071 = vmatpush1.bf16.msra.mxu0 %v1054
      %1072 = vmatprep.subr.bf16.mxu0 0
      %1073 = vmatpush2.bf16.msra.mxu0 0
      %1074 = vmatprep.subr.bf16.mxu0 0
      %1075 = vmatpush2.bf16.msra.mxu0 0
      %1076 = vmatprep.subr.bf16.mxu0 0
      %1077 = vmatpush2.bf16.msra.mxu0 0
      %1078 = vmatprep.subr.bf16.mxu0 0
      %1079 = vmatpush2.bf16.msra.mxu0 0
      %1080 = vmatprep.subr.bf16.mxu0 0
      %1081 = vmatpush2.bf16.msra.mxu0 0
      %1082 = vmatprep.subr.bf16.mxu0 0
      %1083 = vmatpush2.bf16.msra.mxu0 0
      %1084 = vmatprep.subr.bf16.mxu0 0
      %1085 = vmatpush2.bf16.msra.mxu0 0
      %1086 = vmatprep.subr.bf16.mxu0 0
      %1087 = vmatpush2.bf16.msra.mxu0 0
      %1088 = vmatprep.mubr.bf16.mxu0 0
      %1089 = vmatmul.mubr.bf16.gmra.mxu0 %v1050
      %v1090 = vpop.f32.mrf.mxu0
      %v1091 = vadd.f32 0.0, %v1090
      %v1092 = vpop.f32.mrf.mxu0
      %v1093 = vpop.f32.mrf.mxu0
      %v1094 = vadd.f32 0.0, %v1093
      %v1095 = vpop.f32.mrf.mxu0
      %1096 = vdwg.mxu0
      %1097 = vrot.lane.b32.xlu0 %v1042, 112
      %v1098 = vpop.permute.xlu0 %1097
      %v1100 = vsel %vm1004, %v1098, 0
      %v1103 = vsel %vm1052, %v1043, 0
      %1105 = vmatprep.subr.bf16.mxu0 0
      %1106 = vmatpush1.bf16.msra.mxu0 0
      %1107 = vmatprep.subr.bf16.mxu0 0
      %1108 = vmatpush1.bf16.msra.mxu0 0
      %1109 = vmatprep.subr.bf16.mxu0 0
      %1110 = vmatpush1.bf16.msra.mxu0 0
      %1111 = vmatprep.subr.bf16.mxu0 0
      %1112 = vmatpush1.bf16.msra.mxu0 0
      %1113 = vmatprep.subr.bf16.mxu0 0
      %1114 = vmatpush1.bf16.msra.mxu0 0
      %1115 = vmatprep.subr.bf16.mxu0 0
      %1116 = vmatpush1.bf16.msra.mxu0 0
      %1117 = vmatprep.subr.bf16.mxu0 0
      %1118 = vmatpush1.bf16.msra.mxu0 0
      %1119 = vmatprep.subr.bf16.mxu0 0
      %1120 = vmatpush1.bf16.msra.mxu0 %v1103
      %1121 = vmatprep.subr.bf16.mxu0 0
      %1122 = vmatpush2.bf16.msra.mxu0 0
      %1123 = vmatprep.subr.bf16.mxu0 0
      %1124 = vmatpush2.bf16.msra.mxu0 0
      %1125 = vmatprep.subr.bf16.mxu0 0
      %1126 = vmatpush2.bf16.msra.mxu0 0
      %1127 = vmatprep.subr.bf16.mxu0 0
      %1128 = vmatpush2.bf16.msra.mxu0 0
      %1129 = vmatprep.subr.bf16.mxu0 0
      %1130 = vmatpush2.bf16.msra.mxu0 0
      %1131 = vmatprep.subr.bf16.mxu0 0
      %1132 = vmatpush2.bf16.msra.mxu0 0
      %1133 = vmatprep.subr.bf16.mxu0 0
      %1134 = vmatpush2.bf16.msra.mxu0 0
      %1135 = vmatprep.subr.bf16.mxu0 0
      %1136 = vmatpush2.bf16.msra.mxu0 0
      %1137 = vmatprep.mubr.bf16.mxu0 0
      %1138 = vmatmul.mubr.bf16.gmra.mxu0 %v1100
      %v1139 = vpop.f32.mrf.mxu0
      %v1140 = vadd.f32 %v1091, %v1139
      %v1141 = vpop.f32.mrf.mxu0
      %v1142 = vpop.f32.mrf.mxu0
      %v1143 = vadd.f32 %v1094, %v1142
      %v1144 = vpop.f32.mrf.mxu0
      %1145 = vdwg.mxu0
      %v1146 = vld [vmem:[#allocation2 + $0x8] sm:$0xff]
      %v1147 = vld [vmem:[#allocation2 + $0x10] sm:$0xff]
      %v1148 = vpack.c.bf16 %v1147, %v1146
      %s1149 = scalar_lea.vmem %s2, 8
      %v1150 = vld [vmem:[%s1149] sm:$0xf]
      %v1152 = vsel %vm1004, %v1148, 0
      %v1155 = vsel %vm1052, %v1150, 0
      %1157 = vmatprep.subr.bf16.mxu0 0
      %1158 = vmatpush1.bf16.msra.mxu0 0
      %1159 = vmatprep.subr.bf16.mxu0 0
      %1160 = vmatpush1.bf16.msra.mxu0 0
      %1161 = vmatprep.subr.bf16.mxu0 0
      %1162 = vmatpush1.bf16.msra.mxu0 0
      %1163 = vmatprep.subr.bf16.mxu0 0
      %1164 = vmatpush1.bf16.msra.mxu0 0
      %1165 = vmatprep.subr.bf16.mxu0 0
      %1166 = vmatpush1.bf16.msra.mxu0 0
      %1167 = vmatprep.subr.bf16.mxu0 0
      %1168 = vmatpush1.bf16.msra.mxu0 0
      %1169 = vmatprep.subr.bf16.mxu0 0
      %1170 = vmatpush1.bf16.msra.mxu0 0
      %1171 = vmatprep.subr.bf16.mxu0 0
      %1172 = vmatpush1.bf16.msra.mxu0 %v1155
      %1173 = vmatprep.subr.bf16.mxu0 0
      %1174 = vmatpush2.bf16.msra.mxu0 0
      %1175 = vmatprep.subr.bf16.mxu0 0
      %1176 = vmatpush2.bf16.msra.mxu0 0
      %1177 = vmatprep.subr.bf16.mxu0 0
      %1178 = vmatpush2.bf16.msra.mxu0 0
      %1179 = vmatprep.subr.bf16.mxu0 0
      %1180 = vmatpush2.bf16.msra.mxu0 0
      %1181 = vmatprep.subr.bf16.mxu0 0
      %1182 = vmatpush2.bf16.msra.mxu0 0
      %1183 = vmatprep.subr.bf16.mxu0 0
      %1184 = vmatpush2.bf16.msra.mxu0 0
      %1185 = vmatprep.subr.bf16.mxu0 0
      %1186 = vmatpush2.bf16.msra.mxu0 0
      %1187 = vmatprep.subr.bf16.mxu0 0
      %1188 = vmatpush2.bf16.msra.mxu0 0
      %1189 = vmatprep.mubr.bf16.mxu0 0
      %1190 = vmatmul.mubr.bf16.gmra.mxu0 %v1152
      %v1191 = vpop.f32.mrf.mxu0
      %v1192 = vadd.f32 0.0, %v1191
      %v1193 = vpop.f32.mrf.mxu0
      %v1194 = vpop.f32.mrf.mxu0
      %v1195 = vadd.f32 0.0, %v1194
      %v1196 = vpop.f32.mrf.mxu0
      %1197 = vdwg.mxu0
      %v1198 = vadd.f32 %v1140, %v1192
      %v1199 = vadd.f32 %v1143, %v1195
      %s1200 = scalar_lea.vmem %s2, 12
      %v1201 = vld [vmem:[%s1200] sm:$0xf]
      %1203 = vrot.lane.b32.xlu0 %v1148, 120
      %v1204 = vpop.permute.xlu0 %1203
      %v1206 = vsel %vm1004, %v1204, 0
      %v1209 = vsel %vm1052, %v1201, 0
      %1211 = vmatprep.subr.bf16.mxu0 0
      %1212 = vmatpush1.bf16.msra.mxu0 0
      %1213 = vmatprep.subr.bf16.mxu0 0
      %1214 = vmatpush1.bf16.msra.mxu0 0
      %1215 = vmatprep.subr.bf16.mxu0 0
      %1216 = vmatpush1.bf16.msra.mxu0 0
      %1217 = vmatprep.subr.bf16.mxu0 0
      %1218 = vmatpush1.bf16.msra.mxu0 0
      %1219 = vmatprep.subr.bf16.mxu0 0
      %1220 = vmatpush1.bf16.msra.mxu0 0
      %1221 = vmatprep.subr.bf16.mxu0 0
      %1222 = vmatpush1.bf16.msra.mxu0 0
      %1223 = vmatprep.subr.bf16.mxu0 0
      %1224 = vmatpush1.bf16.msra.mxu0 0
      %1225 = vmatprep.subr.bf16.mxu0 0
      %1226 = vmatpush1.bf16.msra.mxu0 %v1209
      %1227 = vmatprep.subr.bf16.mxu0 0
      %1228 = vmatpush2.bf16.msra.mxu0 0
      %1229 = vmatprep.subr.bf16.mxu0 0
      %1230 = vmatpush2.bf16.msra.mxu0 0
      %1231 = vmatprep.subr.bf16.mxu0 0
      %1232 = vmatpush2.bf16.msra.mxu0 0
      %1233 = vmatprep.subr.bf16.mxu0 0
      %1234 = vmatpush2.bf16.msra.mxu0 0
      %1235 = vmatprep.subr.bf16.mxu0 0
      %1236 = vmatpush2.bf16.msra.mxu0 0
      %1237 = vmatprep.subr.bf16.mxu0 0
      %1238 = vmatpush2.bf16.msra.mxu0 0
      %1239 = vmatprep.subr.bf16.mxu0 0
      %1240 = vmatpush2.bf16.msra.mxu0 0
      %1241 = vmatprep.subr.bf16.mxu0 0
      %1242 = vmatpush2.bf16.msra.mxu0 0
      %1243 = vmatprep.mubr.bf16.mxu0 0
      %1244 = vmatmul.mubr.bf16.gmra.mxu0 %v1206
      %v1245 = vpop.f32.mrf.mxu0
      %v1246 = vadd.f32 0.0, %v1245
      %v1247 = vpop.f32.mrf.mxu0
      %v1248 = vpop.f32.mrf.mxu0
      %v1249 = vadd.f32 0.0, %v1248
      %v1250 = vpop.f32.mrf.mxu0
      %1251 = vdwg.mxu0
      %v1252 = vadd.f32 %v1198, %v1246
      %v1253 = vadd.f32 %v1199, %v1249
      %v1254 = vld [vmem:[%s10] sm:$0x1]
      %v1256 = vlaneseq
      %v1257 = vshrl.u32 %v1256, 7
      %v1258 = vsub.s32 0, %v1257
      %v1259 = vrot.slane %v1254, %v1258
      %v1261 = vadd.f32 %v1252, %v1259
      %v1262 = vadd.f32 %v1253, %v1259
      %vm1263 = vcmp.gt.f32.partialorder %v1261, 0.0
      %vm1264 = vcmp.gt.f32.partialorder %v1262, 0.0
      %v1265 = vmin.f32 %v1261, 0.0
      %v1266 = vmin.f32 %v1262, 0.0
      %v1267 = vmul.f32 %v1265, 1.442695
      %v1268 = vpow.pop %v1267
      %v1269 = vmul.f32 %v1266, 1.442695
      %v1270 = vpow.pop %v1269
      %v1271 = vsub.f32 %v1268, 1.0
      %v1272 = vsub.f32 %v1270, 1.0
      %v1273 = vsel %vm1263, %v1261, %v1271
      %v1274 = vsel %vm1264, %v1262, %v1272
      %1275 = vmatprep.subr.bf16.mxu0 0
      %1276 = vmatpush1.bf16.msra.mxu0 0
      %1277 = vmatprep.subr.bf16.mxu0 0
      %1278 = vmatpush1.bf16.msra.mxu0 0
      %1279 = vmatprep.subr.bf16.mxu0 0
      %1280 = vmatpush1.bf16.msra.mxu0 0
      %1281 = vmatprep.subr.bf16.mxu0 0
      %1282 = vmatpush1.bf16.msra.mxu0 0
      %1283 = vmatprep.subr.bf16.mxu0 0
      %1284 = vmatpush1.bf16.msra.mxu0 0
      %1285 = vmatprep.subr.bf16.mxu0 0
      %1286 = vmatpush1.bf16.msra.mxu0 0
      %1287 = vmatprep.subr.bf16.mxu0 0
      %1288 = vmatpush1.bf16.msra.mxu0 0
      %1289 = vmatprep.subr.bf16.mxu0 0
      %1290 = vmatpush1.bf16.msra.mxu0 %v1054
      %1291 = vmatprep.subr.bf16.mxu0 0
      %1292 = vmatpush2.bf16.msra.mxu0 0
      %1293 = vmatprep.subr.bf16.mxu0 0
      %1294 = vmatpush2.bf16.msra.mxu0 0
      %1295 = vmatprep.subr.bf16.mxu0 0
      %1296 = vmatpush2.bf16.msra.mxu0 0
      %1297 = vmatprep.subr.bf16.mxu0 0
      %1298 = vmatpush2.bf16.msra.mxu0 0
      %1299 = vmatprep.subr.bf16.mxu0 0
      %1300 = vmatpush2.bf16.msra.mxu0 0
      %1301 = vmatprep.subr.bf16.mxu0 0
      %1302 = vmatpush2.bf16.msra.mxu0 0
      %1303 = vmatprep.subr.bf16.mxu0 0
      %1304 = vmatpush2.bf16.msra.mxu0 0
      %1305 = vmatprep.subr.bf16.mxu0 0
      %1306 = vmatpush2.bf16.msra.mxu0 0
      %1307 = vmatprep.mubr.bf16.mxu0 0
      %1308 = vmatmul.mubr.bf16.gmra.mxu0 %v1206
      %v1309 = vpop.f32.mrf.mxu0
      %v1310 = vadd.f32 0.0, %v1309
      %v1311 = vpop.f32.mrf.mxu0
      %v1312 = vpop.f32.mrf.mxu0
      %v1313 = vadd.f32 0.0, %v1312
      %v1314 = vpop.f32.mrf.mxu0
      %1315 = vdwg.mxu0
      %1316 = vmatprep.subr.bf16.mxu0 0
      %1317 = vmatpush1.bf16.msra.mxu0 0
      %1318 = vmatprep.subr.bf16.mxu0 0
      %1319 = vmatpush1.bf16.msra.mxu0 0
      %1320 = vmatprep.subr.bf16.mxu0 0
      %1321 = vmatpush1.bf16.msra.mxu0 0
      %1322 = vmatprep.subr.bf16.mxu0 0
      %1323 = vmatpush1.bf16.msra.mxu0 0
      %1324 = vmatprep.subr.bf16.mxu0 0
      %1325 = vmatpush1.bf16.msra.mxu0 0
      %1326 = vmatprep.subr.bf16.mxu0 0
      %1327 = vmatpush1.bf16.msra.mxu0 0
      %1328 = vmatprep.subr.bf16.mxu0 0
      %1329 = vmatpush1.bf16.msra.mxu0 0
      %1330 = vmatprep.subr.bf16.mxu0 0
      %1331 = vmatpush1.bf16.msra.mxu0 %v1103
      %1332 = vmatprep.subr.bf16.mxu0 0
      %1333 = vmatpush2.bf16.msra.mxu0 0
      %1334 = vmatprep.subr.bf16.mxu0 0
      %1335 = vmatpush2.bf16.msra.mxu0 0
      %1336 = vmatprep.subr.bf16.mxu0 0
      %1337 = vmatpush2.bf16.msra.mxu0 0
      %1338 = vmatprep.subr.bf16.mxu0 0
      %1339 = vmatpush2.bf16.msra.mxu0 0
      %1340 = vmatprep.subr.bf16.mxu0 0
      %1341 = vmatpush2.bf16.msra.mxu0 0
      %1342 = vmatprep.subr.bf16.mxu0 0
      %1343 = vmatpush2.bf16.msra.mxu0 0
      %1344 = vmatprep.subr.bf16.mxu0 0
      %1345 = vmatpush2.bf16.msra.mxu0 0
      %1346 = vmatprep.subr.bf16.mxu0 0
      %1347 = vmatpush2.bf16.msra.mxu0 0
      %1348 = vmatprep.mubr.bf16.mxu0 0
      %1349 = vmatmul.mubr.bf16.gmra.mxu0 %v1152
      %v1350 = vpop.f32.mrf.mxu0
      %v1351 = vadd.f32 %v1310, %v1350
      %v1352 = vpop.f32.mrf.mxu0
      %v1353 = vpop.f32.mrf.mxu0
      %v1354 = vadd.f32 %v1313, %v1353
      %v1355 = vpop.f32.mrf.mxu0
      %1356 = vdwg.mxu0
      %1357 = vrot.lane.b32.xlu0 %v1148, 112
      %v1358 = vpop.permute.xlu0 %1357
      %v1360 = vsel %vm1004, %v1358, 0
      %1362 = vmatprep.subr.bf16.mxu0 0
      %1363 = vmatpush1.bf16.msra.mxu0 0
      %1364 = vmatprep.subr.bf16.mxu0 0
      %1365 = vmatpush1.bf16.msra.mxu0 0
      %1366 = vmatprep.subr.bf16.mxu0 0
      %1367 = vmatpush1.bf16.msra.mxu0 0
      %1368 = vmatprep.subr.bf16.mxu0 0
      %1369 = vmatpush1.bf16.msra.mxu0 0
      %1370 = vmatprep.subr.bf16.mxu0 0
      %1371 = vmatpush1.bf16.msra.mxu0 0
      %1372 = vmatprep.subr.bf16.mxu0 0
      %1373 = vmatpush1.bf16.msra.mxu0 0
      %1374 = vmatprep.subr.bf16.mxu0 0
      %1375 = vmatpush1.bf16.msra.mxu0 0
      %1376 = vmatprep.subr.bf16.mxu0 0
      %1377 = vmatpush1.bf16.msra.mxu0 %v1155
      %1378 = vmatprep.subr.bf16.mxu0 0
      %1379 = vmatpush2.bf16.msra.mxu0 0
      %1380 = vmatprep.subr.bf16.mxu0 0
      %1381 = vmatpush2.bf16.msra.mxu0 0
      %1382 = vmatprep.subr.bf16.mxu0 0
      %1383 = vmatpush2.bf16.msra.mxu0 0
      %1384 = vmatprep.subr.bf16.mxu0 0
      %1385 = vmatpush2.bf16.msra.mxu0 0
      %1386 = vmatprep.subr.bf16.mxu0 0
      %1387 = vmatpush2.bf16.msra.mxu0 0
      %1388 = vmatprep.subr.bf16.mxu0 0
      %1389 = vmatpush2.bf16.msra.mxu0 0
      %1390 = vmatprep.subr.bf16.mxu0 0
      %1391 = vmatpush2.bf16.msra.mxu0 0
      %1392 = vmatprep.subr.bf16.mxu0 0
      %1393 = vmatpush2.bf16.msra.mxu0 0
      %1394 = vmatprep.mubr.bf16.mxu0 0
      %1395 = vmatmul.mubr.bf16.gmra.mxu0 %v1360
      %v1396 = vpop.f32.mrf.mxu0
      %v1397 = vadd.f32 0.0, %v1396
      %v1398 = vpop.f32.mrf.mxu0
      %v1399 = vpop.f32.mrf.mxu0
      %v1400 = vadd.f32 0.0, %v1399
      %v1401 = vpop.f32.mrf.mxu0
      %1402 = vdwg.mxu0
      %v1403 = vadd.f32 %v1351, %v1397
      %v1404 = vadd.f32 %v1354, %v1400
      %1405 = vrot.lane.b32.xlu0 %v1148, 104
      %v1406 = vpop.permute.xlu0 %1405
      %v1408 = vsel %vm1004, %v1406, 0
      %1410 = vmatprep.subr.bf16.mxu0 0
      %1411 = vmatpush1.bf16.msra.mxu0 0
      %1412 = vmatprep.subr.bf16.mxu0 0
      %1413 = vmatpush1.bf16.msra.mxu0 0
      %1414 = vmatprep.subr.bf16.mxu0 0
      %1415 = vmatpush1.bf16.msra.mxu0 0
      %1416 = vmatprep.subr.bf16.mxu0 0
      %1417 = vmatpush1.bf16.msra.mxu0 0
      %1418 = vmatprep.subr.bf16.mxu0 0
      %1419 = vmatpush1.bf16.msra.mxu0 0
      %1420 = vmatprep.subr.bf16.mxu0 0
      %1421 = vmatpush1.bf16.msra.mxu0 0
      %1422 = vmatprep.subr.bf16.mxu0 0
      %1423 = vmatpush1.bf16.msra.mxu0 0
      %1424 = vmatprep.subr.bf16.mxu0 0
      %1425 = vmatpush1.bf16.msra.mxu0 %v1209
      %1426 = vmatprep.subr.bf16.mxu0 0
      %1427 = vmatpush2.bf16.msra.mxu0 0
      %1428 = vmatprep.subr.bf16.mxu0 0
      %1429 = vmatpush2.bf16.msra.mxu0 0
      %1430 = vmatprep.subr.bf16.mxu0 0
      %1431 = vmatpush2.bf16.msra.mxu0 0
      %1432 = vmatprep.subr.bf16.mxu0 0
      %1433 = vmatpush2.bf16.msra.mxu0 0
      %1434 = vmatprep.subr.bf16.mxu0 0
      %1435 = vmatpush2.bf16.msra.mxu0 0
      %1436 = vmatprep.subr.bf16.mxu0 0
      %1437 = vmatpush2.bf16.msra.mxu0 0
      %1438 = vmatprep.subr.bf16.mxu0 0
      %1439 = vmatpush2.bf16.msra.mxu0 0
      %1440 = vmatprep.subr.bf16.mxu0 0
      %1441 = vmatpush2.bf16.msra.mxu0 0
      %1442 = vmatprep.mubr.bf16.mxu0 0
      %1443 = vmatmul.mubr.bf16.gmra.mxu0 %v1408
      %v1444 = vpop.f32.mrf.mxu0
      %v1445 = vadd.f32 0.0, %v1444
      %v1446 = vpop.f32.mrf.mxu0
      %v1447 = vpop.f32.mrf.mxu0
      %v1448 = vadd.f32 0.0, %v1447
      %v1449 = vpop.f32.mrf.mxu0
      %1450 = vdwg.mxu0
      %v1451 = vadd.f32 %v1403, %v1445
      %v1452 = vadd.f32 %v1404, %v1448
      %v1453 = vadd.f32 %v1451, %v1259
      %v1454 = vadd.f32 %v1452, %v1259
      %vm1455 = vcmp.gt.f32.partialorder %v1453, 0.0
      %vm1456 = vcmp.gt.f32.partialorder %v1454, 0.0
      %v1457 = vmin.f32 %v1453, 0.0
      %v1458 = vmin.f32 %v1454, 0.0
      %v1459 = vmul.f32 %v1457, 1.442695
      %v1460 = vpow.pop %v1459
      %v1461 = vmul.f32 %v1458, 1.442695
      %v1462 = vpow.pop %v1461
      %v1463 = vsub.f32 %v1460, 1.0
      %v1464 = vsub.f32 %v1462, 1.0
      %v1465 = vsel %vm1455, %v1453, %v1463
      %v1466 = vsel %vm1456, %v1454, %v1464
      %vm1467 = vcmask 130048
      %1468 = vst.msk [vmem:[#allocation2 + $0x8] sm:$0xff] %vm1467, %v1273
      %1469 = vst.msk [vmem:[#allocation2 + $0x10] sm:$0xff] %vm1467, %v1274
      %1472 = vrot.lane.b32.xlu0 %v1465, 16
      %v1473 = vpop.permute.xlu0 %1472
      %1474 = vrot.lane.b32.xlu0 %v1466, 16
      %v1475 = vpop.permute.xlu0 %1474
      %vm1478 = vcmask 261248
      %1479 = vst.msk [vmem:[#allocation2 + $0x8] sm:$0xff] %vm1478, %v1473
      %1480 = vst.msk [vmem:[#allocation2 + $0x10] sm:$0xff] %vm1478, %v1475
      %v1481 = vld [vmem:[#allocation2 + $0x7] sm:$0xff]
      %v1482 = vld [vmem:[#allocation2 + $0xf] sm:$0xff]
      %v1483 = vpack.c.bf16 %v1482, %v1481
      %v1484 = vld [vmem:[%s3] sm:$0xf]
      %v1485 = vld [vmem:[%s3 + $0x4] sm:$0xf]
      %s1486 = scalar_lea.vmem %s3, 8
      %v1487 = vld [vmem:[%s1486] sm:$0xf]
      %v1488 = vld [vmem:[%s1486 + $0x4] sm:$0xf]
      %1490 = vrot.lane.b32.xlu0 %v1483, 112
      %v1491 = vpop.permute.xlu0 %1490
      %v1494 = vunpack.c.l.b16 %v1487
      %v1495 = vunpack.c.l.b16 %v1488
      %v1496 = vpack.c.b16 %v1495, %v1494
      %v1499 = vsel %vm1467, %v1491, 0
      %1501 = vmatprep.subr.bf16.mxu0 0
      %1502 = vmatpush1.bf16.msra.mxu0 0
      %1503 = vmatprep.subr.bf16.mxu0 0
      %1504 = vmatpush1.bf16.msra.mxu0 0
      %1505 = vmatprep.subr.bf16.mxu0 0
      %1506 = vmatpush1.bf16.msra.mxu0 0
      %1507 = vmatprep.subr.bf16.mxu0 0
      %1508 = vmatpush1.bf16.msra.mxu0 0
      %1509 = vmatprep.subr.bf16.mxu0 0
      %1510 = vmatpush1.bf16.msra.mxu0 0
      %1511 = vmatprep.subr.bf16.mxu0 0
      %1512 = vmatpush1.bf16.msra.mxu0 0
      %1513 = vmatprep.subr.bf16.mxu0 0
      %1514 = vmatpush1.bf16.msra.mxu0 0
      %1515 = vmatprep.subr.bf16.mxu0 0
      %1516 = vmatpush1.bf16.msra.mxu0 %v1496
      %1517 = vmatprep.subr.bf16.mxu0 0
      %1518 = vmatpush2.bf16.msra.mxu0 0
      %1519 = vmatprep.subr.bf16.mxu0 0
      %1520 = vmatpush2.bf16.msra.mxu0 0
      %1521 = vmatprep.subr.bf16.mxu0 0
      %1522 = vmatpush2.bf16.msra.mxu0 0
      %1523 = vmatprep.subr.bf16.mxu0 0
      %1524 = vmatpush2.bf16.msra.mxu0 0
      %1525 = vmatprep.subr.bf16.mxu0 0
      %1526 = vmatpush2.bf16.msra.mxu0 0
      %1527 = vmatprep.subr.bf16.mxu0 0
      %1528 = vmatpush2.bf16.msra.mxu0 0
      %1529 = vmatprep.subr.bf16.mxu0 0
      %1530 = vmatpush2.bf16.msra.mxu0 0
      %1531 = vmatprep.subr.bf16.mxu0 0
      %1532 = vmatpush2.bf16.msra.mxu0 0
      %1533 = vmatprep.mubr.bf16.mxu0 0
      %1534 = vmatmul.mubr.bf16.gmra.mxu0 %v1499
      %v1535 = vpop.f32.mrf.mxu0
      %v1536 = vadd.f32 0.0, %v1535
      %v1537 = vpop.f32.mrf.mxu0
      %v1538 = vpop.f32.mrf.mxu0
      %v1539 = vadd.f32 0.0, %v1538
      %v1540 = vpop.f32.mrf.mxu0
      %1541 = vdwg.mxu0
      %v1544 = vunpack.c.l.b16 %v1484
      %v1545 = vunpack.c.l.b16 %v1485
      %v1546 = vpack.c.b16 %v1545, %v1544
      %v1549 = vsel %vm1467, %v1483, 0
      %1551 = vmatprep.subr.bf16.mxu0 0
      %1552 = vmatpush1.bf16.msra.mxu0 0
      %1553 = vmatprep.subr.bf16.mxu0 0
      %1554 = vmatpush1.bf16.msra.mxu0 0
      %1555 = vmatprep.subr.bf16.mxu0 0
      %1556 = vmatpush1.bf16.msra.mxu0 0
      %1557 = vmatprep.subr.bf16.mxu0 0
      %1558 = vmatpush1.bf16.msra.mxu0 0
      %1559 = vmatprep.subr.bf16.mxu0 0
      %1560 = vmatpush1.bf16.msra.mxu0 0
      %1561 = vmatprep.subr.bf16.mxu0 0
      %1562 = vmatpush1.bf16.msra.mxu0 0
      %1563 = vmatprep.subr.bf16.mxu0 0
      %1564 = vmatpush1.bf16.msra.mxu0 0
      %1565 = vmatprep.subr.bf16.mxu0 0
      %1566 = vmatpush1.bf16.msra.mxu0 %v1546
      %1567 = vmatprep.subr.bf16.mxu0 0
      %1568 = vmatpush2.bf16.msra.mxu0 0
      %1569 = vmatprep.subr.bf16.mxu0 0
      %1570 = vmatpush2.bf16.msra.mxu0 0
      %1571 = vmatprep.subr.bf16.mxu0 0
      %1572 = vmatpush2.bf16.msra.mxu0 0
      %1573 = vmatprep.subr.bf16.mxu0 0
      %1574 = vmatpush2.bf16.msra.mxu0 0
      %1575 = vmatprep.subr.bf16.mxu0 0
      %1576 = vmatpush2.bf16.msra.mxu0 0
      %1577 = vmatprep.subr.bf16.mxu0 0
      %1578 = vmatpush2.bf16.msra.mxu0 0
      %1579 = vmatprep.subr.bf16.mxu0 0
      %1580 = vmatpush2.bf16.msra.mxu0 0
      %1581 = vmatprep.subr.bf16.mxu0 0
      %1582 = vmatpush2.bf16.msra.mxu0 0
      %1583 = vmatprep.mubr.bf16.mxu0 0
      %1584 = vmatmul.mubr.bf16.gmra.mxu0 %v1549
      %v1585 = vpop.f32.mrf.mxu0
      %v1586 = vadd.f32 %v1536, %v1585
      %v1587 = vpop.f32.mrf.mxu0
      %v1588 = vpop.f32.mrf.mxu0
      %v1589 = vadd.f32 %v1539, %v1588
      %v1590 = vpop.f32.mrf.mxu0
      %1591 = vdwg.mxu0
      %v1592 = vld [vmem:[#allocation2 + $0x8] sm:$0xff]
      %v1593 = vld [vmem:[#allocation2 + $0x10] sm:$0xff]
      %v1594 = vpack.c.bf16 %v1593, %v1592
      %s1595 = scalar_lea.vmem %s3, 16
      %v1596 = vld [vmem:[%s1595] sm:$0xf]
      %v1597 = vld [vmem:[%s1595 + $0x4] sm:$0xf]
      %v1600 = vunpack.c.l.b16 %v1596
      %v1601 = vunpack.c.l.b16 %v1597
      %v1602 = vpack.c.b16 %v1601, %v1600
      %v1605 = vsel %vm1467, %v1594, 0
      %1607 = vmatprep.subr.bf16.mxu0 0
      %1608 = vmatpush1.bf16.msra.mxu0 0
      %1609 = vmatprep.subr.bf16.mxu0 0
      %1610 = vmatpush1.bf16.msra.mxu0 0
      %1611 = vmatprep.subr.bf16.mxu0 0
      %1612 = vmatpush1.bf16.msra.mxu0 0
      %1613 = vmatprep.subr.bf16.mxu0 0
      %1614 = vmatpush1.bf16.msra.mxu0 0
      %1615 = vmatprep.subr.bf16.mxu0 0
      %1616 = vmatpush1.bf16.msra.mxu0 0
      %1617 = vmatprep.subr.bf16.mxu0 0
      %1618 = vmatpush1.bf16.msra.mxu0 0
      %1619 = vmatprep.subr.bf16.mxu0 0
      %1620 = vmatpush1.bf16.msra.mxu0 0
      %1621 = vmatprep.subr.bf16.mxu0 0
      %1622 = vmatpush1.bf16.msra.mxu0 %v1602
      %1623 = vmatprep.subr.bf16.mxu0 0
      %1624 = vmatpush2.bf16.msra.mxu0 0
      %1625 = vmatprep.subr.bf16.mxu0 0
      %1626 = vmatpush2.bf16.msra.mxu0 0
      %1627 = vmatprep.subr.bf16.mxu0 0
      %1628 = vmatpush2.bf16.msra.mxu0 0
      %1629 = vmatprep.subr.bf16.mxu0 0
      %1630 = vmatpush2.bf16.msra.mxu0 0
      %1631 = vmatprep.subr.bf16.mxu0 0
      %1632 = vmatpush2.bf16.msra.mxu0 0
      %1633 = vmatprep.subr.bf16.mxu0 0
      %1634 = vmatpush2.bf16.msra.mxu0 0
      %1635 = vmatprep.subr.bf16.mxu0 0
      %1636 = vmatpush2.bf16.msra.mxu0 0
      %1637 = vmatprep.subr.bf16.mxu0 0
      %1638 = vmatpush2.bf16.msra.mxu0 0
      %1639 = vmatprep.mubr.bf16.mxu0 0
      %1640 = vmatmul.mubr.bf16.gmra.mxu0 %v1605
      %v1641 = vpop.f32.mrf.mxu0
      %v1642 = vadd.f32 0.0, %v1641
      %v1643 = vpop.f32.mrf.mxu0
      %v1644 = vpop.f32.mrf.mxu0
      %v1645 = vadd.f32 0.0, %v1644
      %v1646 = vpop.f32.mrf.mxu0
      %1647 = vdwg.mxu0
      %v1648 = vadd.f32 %v1586, %v1642
      %v1649 = vadd.f32 %v1589, %v1645
      %s1650 = scalar_lea.vmem %s3, 24
      %v1651 = vld [vmem:[%s1650] sm:$0xf]
      %v1652 = vld [vmem:[%s1650 + $0x4] sm:$0xf]
      %1654 = vrot.lane.b32.xlu0 %v1594, 112
      %v1655 = vpop.permute.xlu0 %1654
      %v1658 = vunpack.c.l.b16 %v1651
      %v1659 = vunpack.c.l.b16 %v1652
      %v1660 = vpack.c.b16 %v1659, %v1658
      %v1663 = vsel %vm1467, %v1655, 0
      %1665 = vmatprep.subr.bf16.mxu0 0
      %1666 = vmatpush1.bf16.msra.mxu0 0
      %1667 = vmatprep.subr.bf16.mxu0 0
      %1668 = vmatpush1.bf16.msra.mxu0 0
      %1669 = vmatprep.subr.bf16.mxu0 0
      %1670 = vmatpush1.bf16.msra.mxu0 0
      %1671 = vmatprep.subr.bf16.mxu0 0
      %1672 = vmatpush1.bf16.msra.mxu0 0
      %1673 = vmatprep.subr.bf16.mxu0 0
      %1674 = vmatpush1.bf16.msra.mxu0 0
      %1675 = vmatprep.subr.bf16.mxu0 0
      %1676 = vmatpush1.bf16.msra.mxu0 0
      %1677 = vmatprep.subr.bf16.mxu0 0
      %1678 = vmatpush1.bf16.msra.mxu0 0
      %1679 = vmatprep.subr.bf16.mxu0 0
      %1680 = vmatpush1.bf16.msra.mxu0 %v1660
      %1681 = vmatprep.subr.bf16.mxu0 0
      %1682 = vmatpush2.bf16.msra.mxu0 0
      %1683 = vmatprep.subr.bf16.mxu0 0
      %1684 = vmatpush2.bf16.msra.mxu0 0
      %1685 = vmatprep.subr.bf16.mxu0 0
      %1686 = vmatpush2.bf16.msra.mxu0 0
      %1687 = vmatprep.subr.bf16.mxu0 0
      %1688 = vmatpush2.bf16.msra.mxu0 0
      %1689 = vmatprep.subr.bf16.mxu0 0
      %1690 = vmatpush2.bf16.msra.mxu0 0
      %1691 = vmatprep.subr.bf16.mxu0 0
      %1692 = vmatpush2.bf16.msra.mxu0 0
      %1693 = vmatprep.subr.bf16.mxu0 0
      %1694 = vmatpush2.bf16.msra.mxu0 0
      %1695 = vmatprep.subr.bf16.mxu0 0
      %1696 = vmatpush2.bf16.msra.mxu0 0
      %1697 = vmatprep.mubr.bf16.mxu0 0
      %1698 = vmatmul.mubr.bf16.gmra.mxu0 %v1663
      %v1699 = vpop.f32.mrf.mxu0
      %v1700 = vadd.f32 0.0, %v1699
      %v1701 = vpop.f32.mrf.mxu0
      %v1702 = vpop.f32.mrf.mxu0
      %v1703 = vadd.f32 0.0, %v1702
      %v1704 = vpop.f32.mrf.mxu0
      %1705 = vdwg.mxu0
      %v1706 = vadd.f32 %v1648, %v1700
      %v1707 = vadd.f32 %v1649, %v1703
      %v1708 = vld [vmem:[%s11] sm:$0x1]
      %v1710 = vlaneseq
      %v1711 = vshrl.u32 %v1710, 7
      %v1712 = vsub.s32 0, %v1711
      %v1713 = vrot.slane %v1708, %v1712
      %v1715 = vadd.f32 %v1706, %v1713
      %v1716 = vadd.f32 %v1707, %v1713
      %vm1717 = vcmp.gt.f32.partialorder %v1715, 0.0
      %vm1718 = vcmp.gt.f32.partialorder %v1716, 0.0
      %v1719 = vmin.f32 %v1715, 0.0
      %v1720 = vmin.f32 %v1716, 0.0
      %v1721 = vmul.f32 %v1719, 1.442695
      %v1722 = vpow.pop %v1721
      %v1723 = vmul.f32 %v1720, 1.442695
      %v1724 = vpow.pop %v1723
      %v1725 = vsub.f32 %v1722, 1.0
      %v1726 = vsub.f32 %v1724, 1.0
      %v1727 = vsel %vm1717, %v1715, %v1725
      %v1728 = vsel %vm1718, %v1716, %v1726
      %1729 = vst.msk [vmem:[#allocation2 + $0x8] sm:$0xff] %vm673, %v1727
      %1730 = vst.msk [vmem:[#allocation2 + $0x10] sm:$0xff] %vm673, %v1728
      %v1731 = vld [vmem:[#allocation2 + $0x2] sm:$0xff]
      %v1732 = vld [vmem:[#allocation2 + $0xa] sm:$0xff]
      %v1733 = vpack.c.bf16 %v1732, %v1731
      %v1734 = vld [vmem:[%s4] sm:$0xf]
      %v1735 = vld [vmem:[%s4 + $0x4] sm:$0xf]
      %v1736 = vld [vmem:[%s4 + $0x8] sm:$0xf]
      %v1737 = vld [vmem:[%s4 + $0xc] sm:$0xf]
      %v1738 = vld [vmem:[#allocation2 + $0x3] sm:$0xff]
      %v1739 = vld [vmem:[#allocation2 + $0xb] sm:$0xff]
      %v1740 = vpack.c.bf16 %v1739, %v1738
      %s1741 = scalar_lea.vmem %s4, 16
      %v1742 = vld [vmem:[%s1741] sm:$0xf]
      %v1743 = vld [vmem:[%s1741 + $0x4] sm:$0xf]
      %v1744 = vld [vmem:[%s1741 + $0x8] sm:$0xf]
      %v1745 = vld [vmem:[%s1741 + $0xc] sm:$0xf]
      %v1750 = vunpack.c.l.b16 %v1742
      %v1751 = vunpack.c.l.b16 %v1743
      %v1752 = vunpack.c.l.b16 %v1744
      %v1753 = vunpack.c.l.b16 %v1745
      %v1754 = vpack.c.b16 %v1751, %v1750
      %v1755 = vpack.c.b16 %v1753, %v1752
      %v1759 = vsel %vm673, %v1740, 0
      %1761 = vmatprep.subr.bf16.mxu0 0
      %1762 = vmatpush1.bf16.msra.mxu0 0
      %1763 = vmatprep.subr.bf16.mxu0 0
      %1764 = vmatpush1.bf16.msra.mxu0 0
      %1765 = vmatprep.subr.bf16.mxu0 0
      %1766 = vmatpush1.bf16.msra.mxu0 0
      %1767 = vmatprep.subr.bf16.mxu0 0
      %1768 = vmatpush1.bf16.msra.mxu0 0
      %1769 = vmatprep.subr.bf16.mxu0 0
      %1770 = vmatpush1.bf16.msra.mxu0 0
      %1771 = vmatprep.subr.bf16.mxu0 0
      %1772 = vmatpush1.bf16.msra.mxu0 0
      %1773 = vmatprep.subr.bf16.mxu0 0
      %1774 = vmatpush1.bf16.msra.mxu0 %v1755
      %1775 = vmatprep.subr.bf16.mxu0 0
      %1776 = vmatpush1.bf16.msra.mxu0 %v1754
      %1777 = vmatprep.subr.bf16.mxu0 0
      %1778 = vmatpush2.bf16.msra.mxu0 0
      %1779 = vmatprep.subr.bf16.mxu0 0
      %1780 = vmatpush2.bf16.msra.mxu0 0
      %1781 = vmatprep.subr.bf16.mxu0 0
      %1782 = vmatpush2.bf16.msra.mxu0 0
      %1783 = vmatprep.subr.bf16.mxu0 0
      %1784 = vmatpush2.bf16.msra.mxu0 0
      %1785 = vmatprep.subr.bf16.mxu0 0
      %1786 = vmatpush2.bf16.msra.mxu0 0
      %1787 = vmatprep.subr.bf16.mxu0 0
      %1788 = vmatpush2.bf16.msra.mxu0 0
      %1789 = vmatprep.subr.bf16.mxu0 0
      %1790 = vmatpush2.bf16.msra.mxu0 0
      %1791 = vmatprep.subr.bf16.mxu0 0
      %1792 = vmatpush2.bf16.msra.mxu0 0
      %1793 = vmatprep.mubr.bf16.mxu0 0
      %1794 = vmatmul.mubr.bf16.gmra.mxu0 %v1759
      %v1795 = vpop.f32.mrf.mxu0
      %v1796 = vadd.f32 0.0, %v1795
      %v1797 = vpop.f32.mrf.mxu0
      %v1798 = vpop.f32.mrf.mxu0
      %v1799 = vadd.f32 0.0, %v1798
      %v1800 = vpop.f32.mrf.mxu0
      %1801 = vdwg.mxu0
      %v1806 = vunpack.c.l.b16 %v1734
      %v1807 = vunpack.c.l.b16 %v1735
      %v1808 = vunpack.c.l.b16 %v1736
      %v1809 = vunpack.c.l.b16 %v1737
      %v1810 = vpack.c.b16 %v1807, %v1806
      %v1811 = vpack.c.b16 %v1809, %v1808
      %v1815 = vsel %vm673, %v1733, 0
      %1817 = vmatprep.subr.bf16.mxu0 0
      %1818 = vmatpush1.bf16.msra.mxu0 0
      %1819 = vmatprep.subr.bf16.mxu0 0
      %1820 = vmatpush1.bf16.msra.mxu0 0
      %1821 = vmatprep.subr.bf16.mxu0 0
      %1822 = vmatpush1.bf16.msra.mxu0 0
      %1823 = vmatprep.subr.bf16.mxu0 0
      %1824 = vmatpush1.bf16.msra.mxu0 0
      %1825 = vmatprep.subr.bf16.mxu0 0
      %1826 = vmatpush1.bf16.msra.mxu0 0
      %1827 = vmatprep.subr.bf16.mxu0 0
      %1828 = vmatpush1.bf16.msra.mxu0 0
      %1829 = vmatprep.subr.bf16.mxu0 0
      %1830 = vmatpush1.bf16.msra.mxu0 %v1811
      %1831 = vmatprep.subr.bf16.mxu0 0
      %1832 = vmatpush1.bf16.msra.mxu0 %v1810
      %1833 = vmatprep.subr.bf16.mxu0 0
      %1834 = vmatpush2.bf16.msra.mxu0 0
      %1835 = vmatprep.subr.bf16.mxu0 0
      %1836 = vmatpush2.bf16.msra.mxu0 0
      %1837 = vmatprep.subr.bf16.mxu0 0
      %1838 = vmatpush2.bf16.msra.mxu0 0
      %1839 = vmatprep.subr.bf16.mxu0 0
      %1840 = vmatpush2.bf16.msra.mxu0 0
      %1841 = vmatprep.subr.bf16.mxu0 0
      %1842 = vmatpush2.bf16.msra.mxu0 0
      %1843 = vmatprep.subr.bf16.mxu0 0
      %1844 = vmatpush2.bf16.msra.mxu0 0
      %1845 = vmatprep.subr.bf16.mxu0 0
      %1846 = vmatpush2.bf16.msra.mxu0 0
      %1847 = vmatprep.subr.bf16.mxu0 0
      %1848 = vmatpush2.bf16.msra.mxu0 0
      %1849 = vmatprep.mubr.bf16.mxu0 0
      %1850 = vmatmul.mubr.bf16.gmra.mxu0 %v1815
      %v1851 = vpop.f32.mrf.mxu0
      %v1852 = vadd.f32 %v1796, %v1851
      %v1853 = vpop.f32.mrf.mxu0
      %v1854 = vpop.f32.mrf.mxu0
      %v1855 = vadd.f32 %v1799, %v1854
      %v1856 = vpop.f32.mrf.mxu0
      %1857 = vdwg.mxu0
      %v1858 = vld [vmem:[#allocation2 + $0x4] sm:$0xff]
      %v1859 = vld [vmem:[#allocation2 + $0xc] sm:$0xff]
      %v1860 = vpack.c.bf16 %v1859, %v1858
      %s1861 = scalar_lea.vmem %s4, 32
      %v1862 = vld [vmem:[%s1861] sm:$0xf]
      %v1863 = vld [vmem:[%s1861 + $0x4] sm:$0xf]
      %v1864 = vld [vmem:[%s1861 + $0x8] sm:$0xf]
      %v1865 = vld [vmem:[%s1861 + $0xc] sm:$0xf]
      %v1870 = vunpack.c.l.b16 %v1862
      %v1871 = vunpack.c.l.b16 %v1863
      %v1872 = vunpack.c.l.b16 %v1864
      %v1873 = vunpack.c.l.b16 %v1865
      %v1874 = vpack.c.b16 %v1871, %v1870
      %v1875 = vpack.c.b16 %v1873, %v1872
      %v1879 = vsel %vm673, %v1860, 0
      %1881 = vmatprep.subr.bf16.mxu0 0
      %1882 = vmatpush1.bf16.msra.mxu0 0
      %1883 = vmatprep.subr.bf16.mxu0 0
      %1884 = vmatpush1.bf16.msra.mxu0 0
      %1885 = vmatprep.subr.bf16.mxu0 0
      %1886 = vmatpush1.bf16.msra.mxu0 0
      %1887 = vmatprep.subr.bf16.mxu0 0
      %1888 = vmatpush1.bf16.msra.mxu0 0
      %1889 = vmatprep.subr.bf16.mxu0 0
      %1890 = vmatpush1.bf16.msra.mxu0 0
      %1891 = vmatprep.subr.bf16.mxu0 0
      %1892 = vmatpush1.bf16.msra.mxu0 0
      %1893 = vmatprep.subr.bf16.mxu0 0
      %1894 = vmatpush1.bf16.msra.mxu0 %v1875
      %1895 = vmatprep.subr.bf16.mxu0 0
      %1896 = vmatpush1.bf16.msra.mxu0 %v1874
      %1897 = vmatprep.subr.bf16.mxu0 0
      %1898 = vmatpush2.bf16.msra.mxu0 0
      %1899 = vmatprep.subr.bf16.mxu0 0
      %1900 = vmatpush2.bf16.msra.mxu0 0
      %1901 = vmatprep.subr.bf16.mxu0 0
      %1902 = vmatpush2.bf16.msra.mxu0 0
      %1903 = vmatprep.subr.bf16.mxu0 0
      %1904 = vmatpush2.bf16.msra.mxu0 0
      %1905 = vmatprep.subr.bf16.mxu0 0
      %1906 = vmatpush2.bf16.msra.mxu0 0
      %1907 = vmatprep.subr.bf16.mxu0 0
      %1908 = vmatpush2.bf16.msra.mxu0 0
      %1909 = vmatprep.subr.bf16.mxu0 0
      %1910 = vmatpush2.bf16.msra.mxu0 0
      %1911 = vmatprep.subr.bf16.mxu0 0
      %1912 = vmatpush2.bf16.msra.mxu0 0
      %1913 = vmatprep.mubr.bf16.mxu0 0
      %1914 = vmatmul.mubr.bf16.gmra.mxu0 %v1879
      %v1915 = vpop.f32.mrf.mxu0
      %v1916 = vadd.f32 0.0, %v1915
      %v1917 = vpop.f32.mrf.mxu0
      %v1918 = vpop.f32.mrf.mxu0
      %v1919 = vadd.f32 0.0, %v1918
      %v1920 = vpop.f32.mrf.mxu0
      %1921 = vdwg.mxu0
      %v1922 = vadd.f32 %v1852, %v1916
      %v1923 = vadd.f32 %v1855, %v1919
      %v1924 = vld [vmem:[#allocation2 + $0x5] sm:$0xff]
      %v1925 = vld [vmem:[#allocation2 + $0xd] sm:$0xff]
      %v1926 = vpack.c.bf16 %v1925, %v1924
      %s1927 = scalar_lea.vmem %s4, 48
      %v1928 = vld [vmem:[%s1927] sm:$0xf]
      %v1929 = vld [vmem:[%s1927 + $0x4] sm:$0xf]
      %v1930 = vld [vmem:[%s1927 + $0x8] sm:$0xf]
      %v1931 = vld [vmem:[%s1927 + $0xc] sm:$0xf]
      %v1936 = vunpack.c.l.b16 %v1928
      %v1937 = vunpack.c.l.b16 %v1929
      %v1938 = vunpack.c.l.b16 %v1930
      %v1939 = vunpack.c.l.b16 %v1931
      %v1940 = vpack.c.b16 %v1937, %v1936
      %v1941 = vpack.c.b16 %v1939, %v1938
      %v1945 = vsel %vm673, %v1926, 0
      %1947 = vmatprep.subr.bf16.mxu0 0
      %1948 = vmatpush1.bf16.msra.mxu0 0
      %1949 = vmatprep.subr.bf16.mxu0 0
      %1950 = vmatpush1.bf16.msra.mxu0 0
      %1951 = vmatprep.subr.bf16.mxu0 0
      %1952 = vmatpush1.bf16.msra.mxu0 0
      %1953 = vmatprep.subr.bf16.mxu0 0
      %1954 = vmatpush1.bf16.msra.mxu0 0
      %1955 = vmatprep.subr.bf16.mxu0 0
      %1956 = vmatpush1.bf16.msra.mxu0 0
      %1957 = vmatprep.subr.bf16.mxu0 0
      %1958 = vmatpush1.bf16.msra.mxu0 0
      %1959 = vmatprep.subr.bf16.mxu0 0
      %1960 = vmatpush1.bf16.msra.mxu0 %v1941
      %1961 = vmatprep.subr.bf16.mxu0 0
      %1962 = vmatpush1.bf16.msra.mxu0 %v1940
      %1963 = vmatprep.subr.bf16.mxu0 0
      %1964 = vmatpush2.bf16.msra.mxu0 0
      %1965 = vmatprep.subr.bf16.mxu0 0
      %1966 = vmatpush2.bf16.msra.mxu0 0
      %1967 = vmatprep.subr.bf16.mxu0 0
      %1968 = vmatpush2.bf16.msra.mxu0 0
      %1969 = vmatprep.subr.bf16.mxu0 0
      %1970 = vmatpush2.bf16.msra.mxu0 0
      %1971 = vmatprep.subr.bf16.mxu0 0
      %1972 = vmatpush2.bf16.msra.mxu0 0
      %1973 = vmatprep.subr.bf16.mxu0 0
      %1974 = vmatpush2.bf16.msra.mxu0 0
      %1975 = vmatprep.subr.bf16.mxu0 0
      %1976 = vmatpush2.bf16.msra.mxu0 0
      %1977 = vmatprep.subr.bf16.mxu0 0
      %1978 = vmatpush2.bf16.msra.mxu0 0
      %1979 = vmatprep.mubr.bf16.mxu0 0
      %1980 = vmatmul.mubr.bf16.gmra.mxu0 %v1945
      %v1981 = vpop.f32.mrf.mxu0
      %v1982 = vadd.f32 0.0, %v1981
      %v1983 = vpop.f32.mrf.mxu0
      %v1984 = vpop.f32.mrf.mxu0
      %v1985 = vadd.f32 0.0, %v1984
      %v1986 = vpop.f32.mrf.mxu0
      %1987 = vdwg.mxu0
      %v1988 = vadd.f32 %v1922, %v1982
      %v1989 = vadd.f32 %v1923, %v1985
      %v1990 = vld [vmem:[#allocation2 + $0x6] sm:$0xff]
      %v1991 = vld [vmem:[#allocation2 + $0xe] sm:$0xff]
      %v1992 = vpack.c.bf16 %v1991, %v1990
      %s1993 = scalar_lea.vmem %s4, 64
      %v1994 = vld [vmem:[%s1993] sm:$0xf]
      %v1995 = vld [vmem:[%s1993 + $0x4] sm:$0xf]
      %v1996 = vld [vmem:[%s1993 + $0x8] sm:$0xf]
      %v1997 = vld [vmem:[%s1993 + $0xc] sm:$0xf]
      %v2002 = vunpack.c.l.b16 %v1994
      %v2003 = vunpack.c.l.b16 %v1995
      %v2004 = vunpack.c.l.b16 %v1996
      %v2005 = vunpack.c.l.b16 %v1997
      %v2006 = vpack.c.b16 %v2003, %v2002
      %v2007 = vpack.c.b16 %v2005, %v2004
      %v2011 = vsel %vm673, %v1992, 0
      %2013 = vmatprep.subr.bf16.mxu0 0
      %2014 = vmatpush1.bf16.msra.mxu0 0
      %2015 = vmatprep.subr.bf16.mxu0 0
      %2016 = vmatpush1.bf16.msra.mxu0 0
      %2017 = vmatprep.subr.bf16.mxu0 0
      %2018 = vmatpush1.bf16.msra.mxu0 0
      %2019 = vmatprep.subr.bf16.mxu0 0
      %2020 = vmatpush1.bf16.msra.mxu0 0
      %2021 = vmatprep.subr.bf16.mxu0 0
      %2022 = vmatpush1.bf16.msra.mxu0 0
      %2023 = vmatprep.subr.bf16.mxu0 0
      %2024 = vmatpush1.bf16.msra.mxu0 0
      %2025 = vmatprep.subr.bf16.mxu0 0
      %2026 = vmatpush1.bf16.msra.mxu0 %v2007
      %2027 = vmatprep.subr.bf16.mxu0 0
      %2028 = vmatpush1.bf16.msra.mxu0 %v2006
      %2029 = vmatprep.subr.bf16.mxu0 0
      %2030 = vmatpush2.bf16.msra.mxu0 0
      %2031 = vmatprep.subr.bf16.mxu0 0
      %2032 = vmatpush2.bf16.msra.mxu0 0
      %2033 = vmatprep.subr.bf16.mxu0 0
      %2034 = vmatpush2.bf16.msra.mxu0 0
      %2035 = vmatprep.subr.bf16.mxu0 0
      %2036 = vmatpush2.bf16.msra.mxu0 0
      %2037 = vmatprep.subr.bf16.mxu0 0
      %2038 = vmatpush2.bf16.msra.mxu0 0
      %2039 = vmatprep.subr.bf16.mxu0 0
      %2040 = vmatpush2.bf16.msra.mxu0 0
      %2041 = vmatprep.subr.bf16.mxu0 0
      %2042 = vmatpush2.bf16.msra.mxu0 0
      %2043 = vmatprep.subr.bf16.mxu0 0
      %2044 = vmatpush2.bf16.msra.mxu0 0
      %2045 = vmatprep.mubr.bf16.mxu0 0
      %2046 = vmatmul.mubr.bf16.gmra.mxu0 %v2011
      %v2047 = vpop.f32.mrf.mxu0
      %v2048 = vadd.f32 0.0, %v2047
      %v2049 = vpop.f32.mrf.mxu0
      %v2050 = vpop.f32.mrf.mxu0
      %v2051 = vadd.f32 0.0, %v2050
      %v2052 = vpop.f32.mrf.mxu0
      %2053 = vdwg.mxu0
      %v2054 = vadd.f32 %v1988, %v2048
      %v2055 = vadd.f32 %v1989, %v2051
      %v2056 = vld [vmem:[#allocation2 + $0x7] sm:$0xff]
      %v2057 = vld [vmem:[#allocation2 + $0xf] sm:$0xff]
      %v2058 = vpack.c.bf16 %v2057, %v2056
      %s2059 = scalar_lea.vmem %s4, 80
      %v2060 = vld [vmem:[%s2059] sm:$0xf]
      %v2061 = vld [vmem:[%s2059 + $0x4] sm:$0xf]
      %v2062 = vld [vmem:[%s2059 + $0x8] sm:$0xf]
      %v2063 = vld [vmem:[%s2059 + $0xc] sm:$0xf]
      %v2068 = vunpack.c.l.b16 %v2060
      %v2069 = vunpack.c.l.b16 %v2061
      %v2070 = vunpack.c.l.b16 %v2062
      %v2071 = vunpack.c.l.b16 %v2063
      %v2072 = vpack.c.b16 %v2069, %v2068
      %v2073 = vpack.c.b16 %v2071, %v2070
      %v2077 = vsel %vm673, %v2058, 0
      %2079 = vmatprep.subr.bf16.mxu0 0
      %2080 = vmatpush1.bf16.msra.mxu0 0
      %2081 = vmatprep.subr.bf16.mxu0 0
      %2082 = vmatpush1.bf16.msra.mxu0 0
      %2083 = vmatprep.subr.bf16.mxu0 0
      %2084 = vmatpush1.bf16.msra.mxu0 0
      %2085 = vmatprep.subr.bf16.mxu0 0
      %2086 = vmatpush1.bf16.msra.mxu0 0
      %2087 = vmatprep.subr.bf16.mxu0 0
      %2088 = vmatpush1.bf16.msra.mxu0 0
      %2089 = vmatprep.subr.bf16.mxu0 0
      %2090 = vmatpush1.bf16.msra.mxu0 0
      %2091 = vmatprep.subr.bf16.mxu0 0
      %2092 = vmatpush1.bf16.msra.mxu0 %v2073
      %2093 = vmatprep.subr.bf16.mxu0 0
      %2094 = vmatpush1.bf16.msra.mxu0 %v2072
      %2095 = vmatprep.subr.bf16.mxu0 0
      %2096 = vmatpush2.bf16.msra.mxu0 0
      %2097 = vmatprep.subr.bf16.mxu0 0
      %2098 = vmatpush2.bf16.msra.mxu0 0
      %2099 = vmatprep.subr.bf16.mxu0 0
      %2100 = vmatpush2.bf16.msra.mxu0 0
      %2101 = vmatprep.subr.bf16.mxu0 0
      %2102 = vmatpush2.bf16.msra.mxu0 0
      %2103 = vmatprep.subr.bf16.mxu0 0
      %2104 = vmatpush2.bf16.msra.mxu0 0
      %2105 = vmatprep.subr.bf16.mxu0 0
      %2106 = vmatpush2.bf16.msra.mxu0 0
      %2107 = vmatprep.subr.bf16.mxu0 0
      %2108 = vmatpush2.bf16.msra.mxu0 0
      %2109 = vmatprep.subr.bf16.mxu0 0
      %2110 = vmatpush2.bf16.msra.mxu0 0
      %2111 = vmatprep.mubr.bf16.mxu0 0
      %2112 = vmatmul.mubr.bf16.gmra.mxu0 %v2077
      %v2113 = vpop.f32.mrf.mxu0
      %v2114 = vadd.f32 0.0, %v2113
      %v2115 = vpop.f32.mrf.mxu0
      %v2116 = vpop.f32.mrf.mxu0
      %v2117 = vadd.f32 0.0, %v2116
      %v2118 = vpop.f32.mrf.mxu0
      %2119 = vdwg.mxu0
      %v2120 = vadd.f32 %v2054, %v2114
      %v2121 = vadd.f32 %v2055, %v2117
      %v2122 = vld [vmem:[#allocation2 + $0x8] sm:$0xff]
      %v2123 = vld [vmem:[#allocation2 + $0x10] sm:$0xff]
      %v2124 = vpack.c.bf16 %v2123, %v2122
      %s2125 = scalar_lea.vmem %s4, 96
      %v2126 = vld [vmem:[%s2125] sm:$0xf]
      %v2127 = vld [vmem:[%s2125 + $0x4] sm:$0xf]
      %v2128 = vld [vmem:[%s2125 + $0x8] sm:$0xf]
      %v2129 = vld [vmem:[%s2125 + $0xc] sm:$0xf]
      %v2134 = vunpack.c.l.b16 %v2126
      %v2135 = vunpack.c.l.b16 %v2127
      %v2136 = vunpack.c.l.b16 %v2128
      %v2137 = vunpack.c.l.b16 %v2129
      %v2138 = vpack.c.b16 %v2135, %v2134
      %v2139 = vpack.c.b16 %v2137, %v2136
      %v2143 = vsel %vm673, %v2124, 0
      %2145 = vmatprep.subr.bf16.mxu0 0
      %2146 = vmatpush1.bf16.msra.mxu0 0
      %2147 = vmatprep.subr.bf16.mxu0 0
      %2148 = vmatpush1.bf16.msra.mxu0 0
      %2149 = vmatprep.subr.bf16.mxu0 0
      %2150 = vmatpush1.bf16.msra.mxu0 0
      %2151 = vmatprep.subr.bf16.mxu0 0
      %2152 = vmatpush1.bf16.msra.mxu0 0
      %2153 = vmatprep.subr.bf16.mxu0 0
      %2154 = vmatpush1.bf16.msra.mxu0 0
      %2155 = vmatprep.subr.bf16.mxu0 0
      %2156 = vmatpush1.bf16.msra.mxu0 0
      %2157 = vmatprep.subr.bf16.mxu0 0
      %2158 = vmatpush1.bf16.msra.mxu0 %v2139
      %2159 = vmatprep.subr.bf16.mxu0 0
      %2160 = vmatpush1.bf16.msra.mxu0 %v2138
      %2161 = vmatprep.subr.bf16.mxu0 0
      %2162 = vmatpush2.bf16.msra.mxu0 0
      %2163 = vmatprep.subr.bf16.mxu0 0
      %2164 = vmatpush2.bf16.msra.mxu0 0
      %2165 = vmatprep.subr.bf16.mxu0 0
      %2166 = vmatpush2.bf16.msra.mxu0 0
      %2167 = vmatprep.subr.bf16.mxu0 0
      %2168 = vmatpush2.bf16.msra.mxu0 0
      %2169 = vmatprep.subr.bf16.mxu0 0
      %2170 = vmatpush2.bf16.msra.mxu0 0
      %2171 = vmatprep.subr.bf16.mxu0 0
      %2172 = vmatpush2.bf16.msra.mxu0 0
      %2173 = vmatprep.subr.bf16.mxu0 0
      %2174 = vmatpush2.bf16.msra.mxu0 0
      %2175 = vmatprep.subr.bf16.mxu0 0
      %2176 = vmatpush2.bf16.msra.mxu0 0
      %2177 = vmatprep.mubr.bf16.mxu0 0
      %2178 = vmatmul.mubr.bf16.gmra.mxu0 %v2143
      %v2179 = vpop.f32.mrf.mxu0
      %v2180 = vadd.f32 0.0, %v2179
      %v2181 = vpop.f32.mrf.mxu0
      %v2182 = vpop.f32.mrf.mxu0
      %v2183 = vadd.f32 0.0, %v2182
      %v2184 = vpop.f32.mrf.mxu0
      %2185 = vdwg.mxu0
      %v2186 = vadd.f32 %v2120, %v2180
      %v2187 = vadd.f32 %v2121, %v2183
      %v2188 = vld [vmem:[%s12] sm:$0x1]
      %v2190 = vlaneseq
      %v2191 = vshrl.u32 %v2190, 7
      %v2192 = vsub.s32 0, %v2191
      %v2193 = vrot.slane %v2188, %v2192
      %v2195 = vadd.f32 %v2186, %v2193
      %v2196 = vadd.f32 %v2187, %v2193
      %v2197 = vlaneseq
      %v2198 = vand.u32 %v2197, 127
      %v2199 = vcvt.s32.f32 %v2198
      %v2200 = vld [vmem:[%s18] sm:$0xff]
      %v2201 = vld [vmem:[%s18 + $0x8] sm:$0xff]
      %v2203 = vsel %vm1467, %v2195, 0
      %v2206 = vsel %vm1467, %v2196, 0
      %2208 = vmatprep.subr.mxu0 0.0
      %2209 = vmatpush1.msra.mxu0 0.0
      %2210 = vmatprep.subr.mxu0 0.0
      %2211 = vmatpush1.msra.mxu0 0.0
      %2212 = vmatprep.subr.mxu0 0.0
      %2213 = vmatpush1.msra.mxu0 0.0
      %2214 = vmatprep.subr.mxu0 0.0
      %2215 = vmatpush1.msra.mxu0 0.0
      %2216 = vmatprep.subr.mxu0 0.0
      %2217 = vmatpush1.msra.mxu0 0.0
      %2218 = vmatprep.subr.mxu0 0.0
      %2219 = vmatpush1.msra.mxu0 0.0
      %2220 = vmatprep.subr.mxu0 0.0
      %2221 = vmatpush1.msra.mxu0 0.0
      %2222 = vmatprep.subr.mxu0 0.0
      %2223 = vmatpush1.msra.mxu0 0.0
      %2224 = vmatprep.subr.mxu0 0.0
      %2225 = vmatpush1.msra.mxu0 0.0
      %2226 = vmatprep.subr.mxu0 0.0
      %2227 = vmatpush1.msra.mxu0 0.0
      %2228 = vmatprep.subr.mxu0 0.0
      %2229 = vmatpush1.msra.mxu0 0.0
      %2230 = vmatprep.subr.mxu0 0.0
      %2231 = vmatpush1.msra.mxu0 0.0
      %2232 = vmatprep.subr.mxu0 0.0
      %2233 = vmatpush1.msra.mxu0 0.0
      %2234 = vmatprep.subr.mxu0 0.0
      %2235 = vmatpush1.msra.mxu0 0.0
      %2236 = vmatprep.subr.mxu0 0.0
      %2237 = vmatpush1.msra.mxu0 %v2201
      %2238 = vmatprep.subr.mxu0 0.0
      %2239 = vmatpush1.msra.mxu0 %v2200
      %2240 = vmatprep.subr.mxu0 0.0
      %2241 = vmatpush2.msra.mxu0 0.0
      %2242 = vmatprep.subr.mxu0 0.0
      %2243 = vmatpush2.msra.mxu0 0.0
      %2244 = vmatprep.subr.mxu0 0.0
      %2245 = vmatpush2.msra.mxu0 0.0
      %2246 = vmatprep.subr.mxu0 0.0
      %2247 = vmatpush2.msra.mxu0 0.0
      %2248 = vmatprep.subr.mxu0 0.0
      %2249 = vmatpush2.msra.mxu0 0.0
      %2250 = vmatprep.subr.mxu0 0.0
      %2251 = vmatpush2.msra.mxu0 0.0
      %2252 = vmatprep.subr.mxu0 0.0
      %2253 = vmatpush2.msra.mxu0 0.0
      %2254 = vmatprep.subr.mxu0 0.0
      %2255 = vmatpush2.msra.mxu0 0.0
      %2256 = vmatprep.subr.mxu0 0.0
      %2257 = vmatpush2.msra.mxu0 0.0
      %2258 = vmatprep.subr.mxu0 0.0
      %2259 = vmatpush2.msra.mxu0 0.0
      %2260 = vmatprep.subr.mxu0 0.0
      %2261 = vmatpush2.msra.mxu0 0.0
      %2262 = vmatprep.subr.mxu0 0.0
      %2263 = vmatpush2.msra.mxu0 0.0
      %2264 = vmatprep.subr.mxu0 0.0
      %2265 = vmatpush2.msra.mxu0 0.0
      %2266 = vmatprep.subr.mxu0 0.0
      %2267 = vmatpush2.msra.mxu0 0.0
      %2268 = vmatprep.subr.mxu0 0.0
      %2269 = vmatpush2.msra.mxu0 0.0
      %2270 = vmatprep.subr.mxu0 0.0
      %2271 = vmatpush2.msra.mxu0 0.0
      %2272 = vmatprep.mubr.f32.mxu0 0.0
      %2273 = vmatmul.mubr.f32.gmra.mxu0 %v2203
      %v2274 = vpop.f32.mrf.mxu0
      %v2275 = vadd.f32 0.0, %v2274
      %v2276 = vpop.f32.mrf.mxu0
      %2277 = vmatprep.mubr.f32.mxu0 0.0
      %2278 = vmatmul.mubr.f32.gmra.mxu0 %v2206
      %v2279 = vpop.f32.mrf.mxu0
      %v2280 = vadd.f32 0.0, %v2279
      %v2281 = vpop.f32.mrf.mxu0
      %2282 = vdwg.mxu0
      %v2283 = vld [vmem:[%s19] sm:$0x1]
      %v2284 = vmul.f32 %v2275, 2.0
      %v2285 = vmul.f32 %v2280, 2.0
      %v2287 = vlaneseq
      %v2288 = vshrl.u32 %v2287, 7
      %v2289 = vsub.s32 0, %v2288
      %v2290 = vrot.slane %v2283, %v2289
      %v2292 = vsub.f32 %v2290, %v2284
      %v2293 = vsub.f32 %v2290, %v2285
      %vm2294 = vcmask 523264
      %v2295 = vsel %vm2294, %v2292, inf
      %2296 = vmin.xlane.f32.xlu0 %v2295
      %v2297 = vpop.xlane.xlu0 %2296
      %v2298 = vsel %vm2294, %v2293, inf
      %2299 = vmin.xlane.f32.xlu0 %v2298
      %v2300 = vpop.xlane.xlu0 %2299
      %vm2301 = vcmp.le.f32.partialorder %v2292, %v2297
      %vm2302 = vcmp.le.f32.partialorder %v2293, %v2300
      %v2303 = vsel %vm2301, %v2199, 64.0
      %v2304 = vsel %vm2302, %v2199, 64.0
      %v2305 = vsel %vm2294, %v2303, inf
      %2306 = vmin.xlane.f32.xlu0 %v2305
      %v2307 = vpop.xlane.xlu0 %2306
      %v2308 = vsel %vm2294, %v2304, inf
      %2309 = vmin.xlane.f32.xlu0 %v2308
      %v2310 = vpop.xlane.xlu0 %2309
      %vm2311 = vcmp.eq.f32.partialorder %v2199, %v2307
      %vm2312 = vcmp.eq.f32.partialorder %v2199, %v2310
      %v2313 = vsel %vm2311, 1, 0
      %v2314 = vsel %vm2312, 1, 0
      %v2315 = vcvt.s32.f32 %v2313
      %v2316 = vcvt.s32.f32 %v2314
      %v2317 = vld [vmem:[%s17] sm:$0xff]
      %v2318 = vld [vmem:[%s17 + $0x8] sm:$0xff]
      %v2319 = vld [vmem:[%s17 + $0x10] sm:$0xff]
      %v2320 = vld [vmem:[%s17 + $0x18] sm:$0xff]
      %v2321 = vld [vmem:[%s17 + $0x20] sm:$0xff]
      %v2322 = vld [vmem:[%s17 + $0x28] sm:$0xff]
      %v2323 = vld [vmem:[%s17 + $0x30] sm:$0xff]
      %v2324 = vld [vmem:[%s17 + $0x38] sm:$0xff]
      %v2326 = vsel %vm2294, %v2315, 0
      %v2329 = vsel %vm2294, %v2316, 0
      %2331 = vmatprep.subr.mxu0 0.0
      %2332 = vmatpush1.msra.mxu0 0.0
      %2333 = vmatprep.subr.mxu0 0.0
      %2334 = vmatpush1.msra.mxu0 0.0
      %2335 = vmatprep.subr.mxu0 0.0
      %2336 = vmatpush1.msra.mxu0 0.0
      %2337 = vmatprep.subr.mxu0 0.0
      %2338 = vmatpush1.msra.mxu0 0.0
      %2339 = vmatprep.subr.mxu0 0.0
      %2340 = vmatpush1.msra.mxu0 0.0
      %2341 = vmatprep.subr.mxu0 0.0
      %2342 = vmatpush1.msra.mxu0 0.0
      %2343 = vmatprep.subr.mxu0 0.0
      %2344 = vmatpush1.msra.mxu0 0.0
      %2345 = vmatprep.subr.mxu0 0.0
      %2346 = vmatpush1.msra.mxu0 0.0
      %2347 = vmatprep.subr.mxu0 0.0
      %2348 = vmatpush1.msra.mxu0 %v2324
      %2349 = vmatprep.subr.mxu0 0.0
      %2350 = vmatpush1.msra.mxu0 %v2323
      %2351 = vmatprep.subr.mxu0 0.0
      %2352 = vmatpush1.msra.mxu0 %v2322
      %2353 = vmatprep.subr.mxu0 0.0
      %2354 = vmatpush1.msra.mxu0 %v2321
      %2355 = vmatprep.subr.mxu0 0.0
      %2356 = vmatpush1.msra.mxu0 %v2320
      %2357 = vmatprep.subr.mxu0 0.0
      %2358 = vmatpush1.msra.mxu0 %v2319
      %2359 = vmatprep.subr.mxu0 0.0
      %2360 = vmatpush1.msra.mxu0 %v2318
      %2361 = vmatprep.subr.mxu0 0.0
      %2362 = vmatpush1.msra.mxu0 %v2317
      %2363 = vmatprep.subr.mxu0 0.0
      %2364 = vmatpush2.msra.mxu0 0.0
      %2365 = vmatprep.subr.mxu0 0.0
      %2366 = vmatpush2.msra.mxu0 0.0
      %2367 = vmatprep.subr.mxu0 0.0
      %2368 = vmatpush2.msra.mxu0 0.0
      %2369 = vmatprep.subr.mxu0 0.0
      %2370 = vmatpush2.msra.mxu0 0.0
      %2371 = vmatprep.subr.mxu0 0.0
      %2372 = vmatpush2.msra.mxu0 0.0
      %2373 = vmatprep.subr.mxu0 0.0
      %2374 = vmatpush2.msra.mxu0 0.0
      %2375 = vmatprep.subr.mxu0 0.0
      %2376 = vmatpush2.msra.mxu0 0.0
      %2377 = vmatprep.subr.mxu0 0.0
      %2378 = vmatpush2.msra.mxu0 0.0
      %2379 = vmatprep.subr.mxu0 0.0
      %2380 = vmatpush2.msra.mxu0 0.0
      %2381 = vmatprep.subr.mxu0 0.0
      %2382 = vmatpush2.msra.mxu0 0.0
      %2383 = vmatprep.subr.mxu0 0.0
      %2384 = vmatpush2.msra.mxu0 0.0
      %2385 = vmatprep.subr.mxu0 0.0
      %2386 = vmatpush2.msra.mxu0 0.0
      %2387 = vmatprep.subr.mxu0 0.0
      %2388 = vmatpush2.msra.mxu0 0.0
      %2389 = vmatprep.subr.mxu0 0.0
      %2390 = vmatpush2.msra.mxu0 0.0
      %2391 = vmatprep.subr.mxu0 0.0
      %2392 = vmatpush2.msra.mxu0 0.0
      %2393 = vmatprep.subr.mxu0 0.0
      %2394 = vmatpush2.msra.mxu0 0.0
      %2395 = vmatprep.mubr.f32.mxu0 0.0
      %2396 = vmatmul.mubr.f32.gmra.mxu0 %v2326
      %v2397 = vpop.f32.mrf.mxu0
      %v2398 = vadd.f32 0.0, %v2397
      %v2399 = vpop.f32.mrf.mxu0
      %2400 = vmatprep.mubr.f32.mxu0 0.0
      %2401 = vmatmul.mubr.f32.gmra.mxu0 %v2329
      %v2402 = vpop.f32.mrf.mxu0
      %v2403 = vadd.f32 0.0, %v2402
      %v2404 = vpop.f32.mrf.mxu0
      %2405 = vdwg.mxu0
      %v2406 = vsub.f32 %v2195, %v2398
      %v2407 = vsub.f32 %v2196, %v2403
      %v2408 = vadd.f32 %v2398, 0.0
      %v2409 = vadd.f32 %v2403, 0.0
      %vm2410 = vcmp.eq.s32.totalorder %v2198, 0
      %v2411 = vcvt.f32.s32.to.zero.pseudo %v2307
      %v2412 = vcvt.f32.s32.to.zero.pseudo %v2310
      %v2413 = vsel %vm2410, %v2411, 0
      %v2414 = vsel %vm2410, %v2412, 0
      %s2415 = scalar_lea.vmem %s18, 16
      %v2416 = vld [vmem:[%s2415] sm:$0xff]
      %v2417 = vld [vmem:[%s2415 + $0x8] sm:$0xff]
      %v2419 = vsel %vm1467, %v2406, 0
      %v2422 = vsel %vm1467, %v2407, 0
      %2424 = vmatprep.subr.mxu0 0.0
      %2425 = vmatpush1.msra.mxu0 0.0
      %2426 = vmatprep.subr.mxu0 0.0
      %2427 = vmatpush1.msra.mxu0 0.0
      %2428 = vmatprep.subr.mxu0 0.0
      %2429 = vmatpush1.msra.mxu0 0.0
      %2430 = vmatprep.subr.mxu0 0.0
      %2431 = vmatpush1.msra.mxu0 0.0
      %2432 = vmatprep.subr.mxu0 0.0
      %2433 = vmatpush1.msra.mxu0 0.0
      %2434 = vmatprep.subr.mxu0 0.0
      %2435 = vmatpush1.msra.mxu0 0.0
      %2436 = vmatprep.subr.mxu0 0.0
      %2437 = vmatpush1.msra.mxu0 0.0
      %2438 = vmatprep.subr.mxu0 0.0
      %2439 = vmatpush1.msra.mxu0 0.0
      %2440 = vmatprep.subr.mxu0 0.0
      %2441 = vmatpush1.msra.mxu0 0.0
      %2442 = vmatprep.subr.mxu0 0.0
      %2443 = vmatpush1.msra.mxu0 0.0
      %2444 = vmatprep.subr.mxu0 0.0
      %2445 = vmatpush1.msra.mxu0 0.0
      %2446 = vmatprep.subr.mxu0 0.0
      %2447 = vmatpush1.msra.mxu0 0.0
      %2448 = vmatprep.subr.mxu0 0.0
      %2449 = vmatpush1.msra.mxu0 0.0
      %2450 = vmatprep.subr.mxu0 0.0
      %2451 = vmatpush1.msra.mxu0 0.0
      %2452 = vmatprep.subr.mxu0 0.0
      %2453 = vmatpush1.msra.mxu0 %v2417
      %2454 = vmatprep.subr.mxu0 0.0
      %2455 = vmatpush1.msra.mxu0 %v2416
      %2456 = vmatprep.subr.mxu0 0.0
      %2457 = vmatpush2.msra.mxu0 0.0
      %2458 = vmatprep.subr.mxu0 0.0
      %2459 = vmatpush2.msra.mxu0 0.0
      %2460 = vmatprep.subr.mxu0 0.0
      %2461 = vmatpush2.msra.mxu0 0.0
      %2462 = vmatprep.subr.mxu0 0.0
      %2463 = vmatpush2.msra.mxu0 0.0
      %2464 = vmatprep.subr.mxu0 0.0
      %2465 = vmatpush2.msra.mxu0 0.0
      %2466 = vmatprep.subr.mxu0 0.0
      %2467 = vmatpush2.msra.mxu0 0.0
      %2468 = vmatprep.subr.mxu0 0.0
      %2469 = vmatpush2.msra.mxu0 0.0
      %2470 = vmatprep.subr.mxu0 0.0
      %2471 = vmatpush2.msra.mxu0 0.0
      %2472 = vmatprep.subr.mxu0 0.0
      %2473 = vmatpush2.msra.mxu0 0.0
      %2474 = vmatprep.subr.mxu0 0.0
      %2475 = vmatpush2.msra.mxu0 0.0
      %2476 = vmatprep.subr.mxu0 0.0
      %2477 = vmatpush2.msra.mxu0 0.0
      %2478 = vmatprep.subr.mxu0 0.0
      %2479 = vmatpush2.msra.mxu0 0.0
      %2480 = vmatprep.subr.mxu0 0.0
      %2481 = vmatpush2.msra.mxu0 0.0
      %2482 = vmatprep.subr.mxu0 0.0
      %2483 = vmatpush2.msra.mxu0 0.0
      %2484 = vmatprep.subr.mxu0 0.0
      %2485 = vmatpush2.msra.mxu0 0.0
      %2486 = vmatprep.subr.mxu0 0.0
      %2487 = vmatpush2.msra.mxu0 0.0
      %2488 = vmatprep.mubr.f32.mxu0 0.0
      %2489 = vmatmul.mubr.f32.gmra.mxu0 %v2419
      %v2490 = vpop.f32.mrf.mxu0
      %v2491 = vadd.f32 0.0, %v2490
      %v2492 = vpop.f32.mrf.mxu0
      %2493 = vmatprep.mubr.f32.mxu0 0.0
      %2494 = vmatmul.mubr.f32.gmra.mxu0 %v2422
      %v2495 = vpop.f32.mrf.mxu0
      %v2496 = vadd.f32 0.0, %v2495
      %v2497 = vpop.f32.mrf.mxu0
      %2498 = vdwg.mxu0
      %s2499 = scalar_lea.vmem %s19, 1
      %v2500 = vld [vmem:[%s2499] sm:$0x1]
      %v2501 = vmul.f32 %v2491, 2.0
      %v2502 = vmul.f32 %v2496, 2.0
      %v2504 = vlaneseq
      %v2505 = vshrl.u32 %v2504, 7
      %v2506 = vsub.s32 0, %v2505
      %v2507 = vrot.slane %v2500, %v2506
      %v2509 = vsub.f32 %v2507, %v2501
      %v2510 = vsub.f32 %v2507, %v2502
      %v2511 = vsel %vm2294, %v2509, inf
      %2512 = vmin.xlane.f32.xlu0 %v2511
      %v2513 = vpop.xlane.xlu0 %2512
      %v2514 = vsel %vm2294, %v2510, inf
      %2515 = vmin.xlane.f32.xlu0 %v2514
      %v2516 = vpop.xlane.xlu0 %2515
      %vm2517 = vcmp.le.f32.partialorder %v2509, %v2513
      %vm2518 = vcmp.le.f32.partialorder %v2510, %v2516
      %v2519 = vsel %vm2517, %v2199, 64.0
      %v2520 = vsel %vm2518, %v2199, 64.0
      %v2521 = vsel %vm2294, %v2519, inf
      %2522 = vmin.xlane.f32.xlu0 %v2521
      %v2523 = vpop.xlane.xlu0 %2522
      %v2524 = vsel %vm2294, %v2520, inf
      %2525 = vmin.xlane.f32.xlu0 %v2524
      %v2526 = vpop.xlane.xlu0 %2525
      %vm2527 = vcmp.eq.f32.partialorder %v2199, %v2523
      %vm2528 = vcmp.eq.f32.partialorder %v2199, %v2526
      %v2529 = vsel %vm2527, 1, 0
      %v2530 = vsel %vm2528, 1, 0
      %v2531 = vcvt.s32.f32 %v2529
      %v2532 = vcvt.s32.f32 %v2530
      %s2533 = scalar_lea.vmem %s17, 64
      %v2534 = vld [vmem:[%s2533] sm:$0xff]
      %v2535 = vld [vmem:[%s2533 + $0x8] sm:$0xff]
      %v2536 = vld [vmem:[%s2533 + $0x10] sm:$0xff]
      %v2537 = vld [vmem:[%s2533 + $0x18] sm:$0xff]
      %v2538 = vld [vmem:[%s2533 + $0x20] sm:$0xff]
      %v2539 = vld [vmem:[%s2533 + $0x28] sm:$0xff]
      %v2540 = vld [vmem:[%s2533 + $0x30] sm:$0xff]
      %v2541 = vld [vmem:[%s2533 + $0x38] sm:$0xff]
      %v2543 = vsel %vm2294, %v2531, 0
      %v2546 = vsel %vm2294, %v2532, 0
      %2548 = vmatprep.subr.mxu0 0.0
      %2549 = vmatpush1.msra.mxu0 0.0
      %2550 = vmatprep.subr.mxu0 0.0
      %2551 = vmatpush1.msra.mxu0 0.0
      %2552 = vmatprep.subr.mxu0 0.0
      %2553 = vmatpush1.msra.mxu0 0.0
      %2554 = vmatprep.subr.mxu0 0.0
      %2555 = vmatpush1.msra.mxu0 0.0
      %2556 = vmatprep.subr.mxu0 0.0
      %2557 = vmatpush1.msra.mxu0 0.0
      %2558 = vmatprep.subr.mxu0 0.0
      %2559 = vmatpush1.msra.mxu0 0.0
      %2560 = vmatprep.subr.mxu0 0.0
      %2561 = vmatpush1.msra.mxu0 0.0
      %2562 = vmatprep.subr.mxu0 0.0
      %2563 = vmatpush1.msra.mxu0 0.0
      %2564 = vmatprep.subr.mxu0 0.0
      %2565 = vmatpush1.msra.mxu0 %v2541
      %2566 = vmatprep.subr.mxu0 0.0
      %2567 = vmatpush1.msra.mxu0 %v2540
      %2568 = vmatprep.subr.mxu0 0.0
      %2569 = vmatpush1.msra.mxu0 %v2539
      %2570 = vmatprep.subr.mxu0 0.0
      %2571 = vmatpush1.msra.mxu0 %v2538
      %2572 = vmatprep.subr.mxu0 0.0
      %2573 = vmatpush1.msra.mxu0 %v2537
      %2574 = vmatprep.subr.mxu0 0.0
      %2575 = vmatpush1.msra.mxu0 %v2536
      %2576 = vmatprep.subr.mxu0 0.0
      %2577 = vmatpush1.msra.mxu0 %v2535
      %2578 = vmatprep.subr.mxu0 0.0
      %2579 = vmatpush1.msra.mxu0 %v2534
      %2580 = vmatprep.subr.mxu0 0.0
      %2581 = vmatpush2.msra.mxu0 0.0
      %2582 = vmatprep.subr.mxu0 0.0
      %2583 = vmatpush2.msra.mxu0 0.0
      %2584 = vmatprep.subr.mxu0 0.0
      %2585 = vmatpush2.msra.mxu0 0.0
      %2586 = vmatprep.subr.mxu0 0.0
      %2587 = vmatpush2.msra.mxu0 0.0
      %2588 = vmatprep.subr.mxu0 0.0
      %2589 = vmatpush2.msra.mxu0 0.0
      %2590 = vmatprep.subr.mxu0 0.0
      %2591 = vmatpush2.msra.mxu0 0.0
      %2592 = vmatprep.subr.mxu0 0.0
      %2593 = vmatpush2.msra.mxu0 0.0
      %2594 = vmatprep.subr.mxu0 0.0
      %2595 = vmatpush2.msra.mxu0 0.0
      %2596 = vmatprep.subr.mxu0 0.0
      %2597 = vmatpush2.msra.mxu0 0.0
      %2598 = vmatprep.subr.mxu0 0.0
      %2599 = vmatpush2.msra.mxu0 0.0
      %2600 = vmatprep.subr.mxu0 0.0
      %2601 = vmatpush2.msra.mxu0 0.0
      %2602 = vmatprep.subr.mxu0 0.0
      %2603 = vmatpush2.msra.mxu0 0.0
      %2604 = vmatprep.subr.mxu0 0.0
      %2605 = vmatpush2.msra.mxu0 0.0
      %2606 = vmatprep.subr.mxu0 0.0
      %2607 = vmatpush2.msra.mxu0 0.0
      %2608 = vmatprep.subr.mxu0 0.0
      %2609 = vmatpush2.msra.mxu0 0.0
      %2610 = vmatprep.subr.mxu0 0.0
      %2611 = vmatpush2.msra.mxu0 0.0
      %2612 = vmatprep.mubr.f32.mxu0 0.0
      %2613 = vmatmul.mubr.f32.gmra.mxu0 %v2543
      %v2614 = vpop.f32.mrf.mxu0
      %v2615 = vadd.f32 0.0, %v2614
      %v2616 = vpop.f32.mrf.mxu0
      %2617 = vmatprep.mubr.f32.mxu0 0.0
      %2618 = vmatmul.mubr.f32.gmra.mxu0 %v2546
      %v2619 = vpop.f32.mrf.mxu0
      %v2620 = vadd.f32 0.0, %v2619
      %v2621 = vpop.f32.mrf.mxu0
      %2622 = vdwg.mxu0
      %v2623 = vsub.f32 %v2406, %v2615
      %v2624 = vsub.f32 %v2407, %v2620
      %v2625 = vadd.f32 %v2408, %v2615
      %v2626 = vadd.f32 %v2409, %v2620
      %vm2627 = vcmp.eq.s32.totalorder %v2198, 1
      %v2628 = vcvt.f32.s32.to.zero.pseudo %v2523
      %v2629 = vcvt.f32.s32.to.zero.pseudo %v2526
      %v2630 = vsel %vm2627, %v2628, %v2413
      %v2631 = vsel %vm2627, %v2629, %v2414
      %s2632 = scalar_lea.vmem %s18, 32
      %v2633 = vld [vmem:[%s2632] sm:$0xff]
      %v2634 = vld [vmem:[%s2632 + $0x8] sm:$0xff]
      %v2636 = vsel %vm1467, %v2623, 0
      %v2639 = vsel %vm1467, %v2624, 0
      %2641 = vmatprep.subr.mxu0 0.0
      %2642 = vmatpush1.msra.mxu0 0.0
      %2643 = vmatprep.subr.mxu0 0.0
      %2644 = vmatpush1.msra.mxu0 0.0
      %2645 = vmatprep.subr.mxu0 0.0
      %2646 = vmatpush1.msra.mxu0 0.0
      %2647 = vmatprep.subr.mxu0 0.0
      %2648 = vmatpush1.msra.mxu0 0.0
      %2649 = vmatprep.subr.mxu0 0.0
      %2650 = vmatpush1.msra.mxu0 0.0
      %2651 = vmatprep.subr.mxu0 0.0
      %2652 = vmatpush1.msra.mxu0 0.0
      %2653 = vmatprep.subr.mxu0 0.0
      %2654 = vmatpush1.msra.mxu0 0.0
      %2655 = vmatprep.subr.mxu0 0.0
      %2656 = vmatpush1.msra.mxu0 0.0
      %2657 = vmatprep.subr.mxu0 0.0
      %2658 = vmatpush1.msra.mxu0 0.0
      %2659 = vmatprep.subr.mxu0 0.0
      %2660 = vmatpush1.msra.mxu0 0.0
      %2661 = vmatprep.subr.mxu0 0.0
      %2662 = vmatpush1.msra.mxu0 0.0
      %2663 = vmatprep.subr.mxu0 0.0
      %2664 = vmatpush1.msra.mxu0 0.0
      %2665 = vmatprep.subr.mxu0 0.0
      %2666 = vmatpush1.msra.mxu0 0.0
      %2667 = vmatprep.subr.mxu0 0.0
      %2668 = vmatpush1.msra.mxu0 0.0
      %2669 = vmatprep.subr.mxu0 0.0
      %2670 = vmatpush1.msra.mxu0 %v2634
      %2671 = vmatprep.subr.mxu0 0.0
      %2672 = vmatpush1.msra.mxu0 %v2633
      %2673 = vmatprep.subr.mxu0 0.0
      %2674 = vmatpush2.msra.mxu0 0.0
      %2675 = vmatprep.subr.mxu0 0.0
      %2676 = vmatpush2.msra.mxu0 0.0
      %2677 = vmatprep.subr.mxu0 0.0
      %2678 = vmatpush2.msra.mxu0 0.0
      %2679 = vmatprep.subr.mxu0 0.0
      %2680 = vmatpush2.msra.mxu0 0.0
      %2681 = vmatprep.subr.mxu0 0.0
      %2682 = vmatpush2.msra.mxu0 0.0
      %2683 = vmatprep.subr.mxu0 0.0
      %2684 = vmatpush2.msra.mxu0 0.0
      %2685 = vmatprep.subr.mxu0 0.0
      %2686 = vmatpush2.msra.mxu0 0.0
      %2687 = vmatprep.subr.mxu0 0.0
      %2688 = vmatpush2.msra.mxu0 0.0
      %2689 = vmatprep.subr.mxu0 0.0
      %2690 = vmatpush2.msra.mxu0 0.0
      %2691 = vmatprep.subr.mxu0 0.0
      %2692 = vmatpush2.msra.mxu0 0.0
      %2693 = vmatprep.subr.mxu0 0.0
      %2694 = vmatpush2.msra.mxu0 0.0
      %2695 = vmatprep.subr.mxu0 0.0
      %2696 = vmatpush2.msra.mxu0 0.0
      %2697 = vmatprep.subr.mxu0 0.0
      %2698 = vmatpush2.msra.mxu0 0.0
      %2699 = vmatprep.subr.mxu0 0.0
      %2700 = vmatpush2.msra.mxu0 0.0
      %2701 = vmatprep.subr.mxu0 0.0
      %2702 = vmatpush2.msra.mxu0 0.0
      %2703 = vmatprep.subr.mxu0 0.0
      %2704 = vmatpush2.msra.mxu0 0.0
      %2705 = vmatprep.mubr.f32.mxu0 0.0
      %2706 = vmatmul.mubr.f32.gmra.mxu0 %v2636
      %v2707 = vpop.f32.mrf.mxu0
      %v2708 = vadd.f32 0.0, %v2707
      %v2709 = vpop.f32.mrf.mxu0
      %2710 = vmatprep.mubr.f32.mxu0 0.0
      %2711 = vmatmul.mubr.f32.gmra.mxu0 %v2639
      %v2712 = vpop.f32.mrf.mxu0
      %v2713 = vadd.f32 0.0, %v2712
      %v2714 = vpop.f32.mrf.mxu0
      %2715 = vdwg.mxu0
      %s2716 = scalar_lea.vmem %s19, 2
      %v2717 = vld [vmem:[%s2716] sm:$0x1]
      %v2718 = vmul.f32 %v2708, 2.0
      %v2719 = vmul.f32 %v2713, 2.0
      %v2721 = vlaneseq
      %v2722 = vshrl.u32 %v2721, 7
      %v2723 = vsub.s32 0, %v2722
      %v2724 = vrot.slane %v2717, %v2723
      %v2726 = vsub.f32 %v2724, %v2718
      %v2727 = vsub.f32 %v2724, %v2719
      %v2728 = vsel %vm2294, %v2726, inf
      %2729 = vmin.xlane.f32.xlu0 %v2728
      %v2730 = vpop.xlane.xlu0 %2729
      %v2731 = vsel %vm2294, %v2727, inf
      %2732 = vmin.xlane.f32.xlu0 %v2731
      %v2733 = vpop.xlane.xlu0 %2732
      %vm2734 = vcmp.le.f32.partialorder %v2726, %v2730
      %vm2735 = vcmp.le.f32.partialorder %v2727, %v2733
      %v2736 = vsel %vm2734, %v2199, 64.0
      %v2737 = vsel %vm2735, %v2199, 64.0
      %v2738 = vsel %vm2294, %v2736, inf
      %2739 = vmin.xlane.f32.xlu0 %v2738
      %v2740 = vpop.xlane.xlu0 %2739
      %v2741 = vsel %vm2294, %v2737, inf
      %2742 = vmin.xlane.f32.xlu0 %v2741
      %v2743 = vpop.xlane.xlu0 %2742
      %vm2744 = vcmp.eq.f32.partialorder %v2199, %v2740
      %vm2745 = vcmp.eq.f32.partialorder %v2199, %v2743
      %v2746 = vsel %vm2744, 1, 0
      %v2747 = vsel %vm2745, 1, 0
      %v2748 = vcvt.s32.f32 %v2746
      %v2749 = vcvt.s32.f32 %v2747
      %s2750 = scalar_lea.vmem %s17, 128
      %v2751 = vld [vmem:[%s2750] sm:$0xff]
      %v2752 = vld [vmem:[%s2750 + $0x8] sm:$0xff]
      %v2753 = vld [vmem:[%s2750 + $0x10] sm:$0xff]
      %v2754 = vld [vmem:[%s2750 + $0x18] sm:$0xff]
      %v2755 = vld [vmem:[%s2750 + $0x20] sm:$0xff]
      %v2756 = vld [vmem:[%s2750 + $0x28] sm:$0xff]
      %v2757 = vld [vmem:[%s2750 + $0x30] sm:$0xff]
      %v2758 = vld [vmem:[%s2750 + $0x38] sm:$0xff]
      %v2760 = vsel %vm2294, %v2748, 0
      %v2763 = vsel %vm2294, %v2749, 0
      %2765 = vmatprep.subr.mxu0 0.0
      %2766 = vmatpush1.msra.mxu0 0.0
      %2767 = vmatprep.subr.mxu0 0.0
      %2768 = vmatpush1.msra.mxu0 0.0
      %2769 = vmatprep.subr.mxu0 0.0
      %2770 = vmatpush1.msra.mxu0 0.0
      %2771 = vmatprep.subr.mxu0 0.0
      %2772 = vmatpush1.msra.mxu0 0.0
      %2773 = vmatprep.subr.mxu0 0.0
      %2774 = vmatpush1.msra.mxu0 0.0
      %2775 = vmatprep.subr.mxu0 0.0
      %2776 = vmatpush1.msra.mxu0 0.0
      %2777 = vmatprep.subr.mxu0 0.0
      %2778 = vmatpush1.msra.mxu0 0.0
      %2779 = vmatprep.subr.mxu0 0.0
      %2780 = vmatpush1.msra.mxu0 0.0
      %2781 = vmatprep.subr.mxu0 0.0
      %2782 = vmatpush1.msra.mxu0 %v2758
      %2783 = vmatprep.subr.mxu0 0.0
      %2784 = vmatpush1.msra.mxu0 %v2757
      %2785 = vmatprep.subr.mxu0 0.0
      %2786 = vmatpush1.msra.mxu0 %v2756
      %2787 = vmatprep.subr.mxu0 0.0
      %2788 = vmatpush1.msra.mxu0 %v2755
      %2789 = vmatprep.subr.mxu0 0.0
      %2790 = vmatpush1.msra.mxu0 %v2754
      %2791 = vmatprep.subr.mxu0 0.0
      %2792 = vmatpush1.msra.mxu0 %v2753
      %2793 = vmatprep.subr.mxu0 0.0
      %2794 = vmatpush1.msra.mxu0 %v2752
      %2795 = vmatprep.subr.mxu0 0.0
      %2796 = vmatpush1.msra.mxu0 %v2751
      %2797 = vmatprep.subr.mxu0 0.0
      %2798 = vmatpush2.msra.mxu0 0.0
      %2799 = vmatprep.subr.mxu0 0.0
      %2800 = vmatpush2.msra.mxu0 0.0
      %2801 = vmatprep.subr.mxu0 0.0
      %2802 = vmatpush2.msra.mxu0 0.0
      %2803 = vmatprep.subr.mxu0 0.0
      %2804 = vmatpush2.msra.mxu0 0.0
      %2805 = vmatprep.subr.mxu0 0.0
      %2806 = vmatpush2.msra.mxu0 0.0
      %2807 = vmatprep.subr.mxu0 0.0
      %2808 = vmatpush2.msra.mxu0 0.0
      %2809 = vmatprep.subr.mxu0 0.0
      %2810 = vmatpush2.msra.mxu0 0.0
      %2811 = vmatprep.subr.mxu0 0.0
      %2812 = vmatpush2.msra.mxu0 0.0
      %2813 = vmatprep.subr.mxu0 0.0
      %2814 = vmatpush2.msra.mxu0 0.0
      %2815 = vmatprep.subr.mxu0 0.0
      %2816 = vmatpush2.msra.mxu0 0.0
      %2817 = vmatprep.subr.mxu0 0.0
      %2818 = vmatpush2.msra.mxu0 0.0
      %2819 = vmatprep.subr.mxu0 0.0
      %2820 = vmatpush2.msra.mxu0 0.0
      %2821 = vmatprep.subr.mxu0 0.0
      %2822 = vmatpush2.msra.mxu0 0.0
      %2823 = vmatprep.subr.mxu0 0.0
      %2824 = vmatpush2.msra.mxu0 0.0
      %2825 = vmatprep.subr.mxu0 0.0
      %2826 = vmatpush2.msra.mxu0 0.0
      %2827 = vmatprep.subr.mxu0 0.0
      %2828 = vmatpush2.msra.mxu0 0.0
      %2829 = vmatprep.mubr.f32.mxu0 0.0
      %2830 = vmatmul.mubr.f32.gmra.mxu0 %v2760
      %v2831 = vpop.f32.mrf.mxu0
      %v2832 = vadd.f32 0.0, %v2831
      %v2833 = vpop.f32.mrf.mxu0
      %2834 = vmatprep.mubr.f32.mxu0 0.0
      %2835 = vmatmul.mubr.f32.gmra.mxu0 %v2763
      %v2836 = vpop.f32.mrf.mxu0
      %v2837 = vadd.f32 0.0, %v2836
      %v2838 = vpop.f32.mrf.mxu0
      %2839 = vdwg.mxu0
      %v2840 = vsub.f32 %v2623, %v2832
      %v2841 = vsub.f32 %v2624, %v2837
      %v2842 = vadd.f32 %v2625, %v2832
      %v2843 = vadd.f32 %v2626, %v2837
      %vm2844 = vcmp.eq.s32.totalorder %v2198, 2
      %v2845 = vcvt.f32.s32.to.zero.pseudo %v2740
      %v2846 = vcvt.f32.s32.to.zero.pseudo %v2743
      %v2847 = vsel %vm2844, %v2845, %v2630
      %v2848 = vsel %vm2844, %v2846, %v2631
      %s2849 = scalar_lea.vmem %s18, 48
      %v2850 = vld [vmem:[%s2849] sm:$0xff]
      %v2851 = vld [vmem:[%s2849 + $0x8] sm:$0xff]
      %v2853 = vsel %vm1467, %v2840, 0
      %v2856 = vsel %vm1467, %v2841, 0
      %2858 = vmatprep.subr.mxu0 0.0
      %2859 = vmatpush1.msra.mxu0 0.0
      %2860 = vmatprep.subr.mxu0 0.0
      %2861 = vmatpush1.msra.mxu0 0.0
      %2862 = vmatprep.subr.mxu0 0.0
      %2863 = vmatpush1.msra.mxu0 0.0
      %2864 = vmatprep.subr.mxu0 0.0
      %2865 = vmatpush1.msra.mxu0 0.0
      %2866 = vmatprep.subr.mxu0 0.0
      %2867 = vmatpush1.msra.mxu0 0.0
      %2868 = vmatprep.subr.mxu0 0.0
      %2869 = vmatpush1.msra.mxu0 0.0
      %2870 = vmatprep.subr.mxu0 0.0
      %2871 = vmatpush1.msra.mxu0 0.0
      %2872 = vmatprep.subr.mxu0 0.0
      %2873 = vmatpush1.msra.mxu0 0.0
      %2874 = vmatprep.subr.mxu0 0.0
      %2875 = vmatpush1.msra.mxu0 0.0
      %2876 = vmatprep.subr.mxu0 0.0
      %2877 = vmatpush1.msra.mxu0 0.0
      %2878 = vmatprep.subr.mxu0 0.0
      %2879 = vmatpush1.msra.mxu0 0.0
      %2880 = vmatprep.subr.mxu0 0.0
      %2881 = vmatpush1.msra.mxu0 0.0
      %2882 = vmatprep.subr.mxu0 0.0
      %2883 = vmatpush1.msra.mxu0 0.0
      %2884 = vmatprep.subr.mxu0 0.0
      %2885 = vmatpush1.msra.mxu0 0.0
      %2886 = vmatprep.subr.mxu0 0.0
      %2887 = vmatpush1.msra.mxu0 %v2851
      %2888 = vmatprep.subr.mxu0 0.0
      %2889 = vmatpush1.msra.mxu0 %v2850
      %2890 = vmatprep.subr.mxu0 0.0
      %2891 = vmatpush2.msra.mxu0 0.0
      %2892 = vmatprep.subr.mxu0 0.0
      %2893 = vmatpush2.msra.mxu0 0.0
      %2894 = vmatprep.subr.mxu0 0.0
      %2895 = vmatpush2.msra.mxu0 0.0
      %2896 = vmatprep.subr.mxu0 0.0
      %2897 = vmatpush2.msra.mxu0 0.0
      %2898 = vmatprep.subr.mxu0 0.0
      %2899 = vmatpush2.msra.mxu0 0.0
      %2900 = vmatprep.subr.mxu0 0.0
      %2901 = vmatpush2.msra.mxu0 0.0
      %2902 = vmatprep.subr.mxu0 0.0
      %2903 = vmatpush2.msra.mxu0 0.0
      %2904 = vmatprep.subr.mxu0 0.0
      %2905 = vmatpush2.msra.mxu0 0.0
      %2906 = vmatprep.subr.mxu0 0.0
      %2907 = vmatpush2.msra.mxu0 0.0
      %2908 = vmatprep.subr.mxu0 0.0
      %2909 = vmatpush2.msra.mxu0 0.0
      %2910 = vmatprep.subr.mxu0 0.0
      %2911 = vmatpush2.msra.mxu0 0.0
      %2912 = vmatprep.subr.mxu0 0.0
      %2913 = vmatpush2.msra.mxu0 0.0
      %2914 = vmatprep.subr.mxu0 0.0
      %2915 = vmatpush2.msra.mxu0 0.0
      %2916 = vmatprep.subr.mxu0 0.0
      %2917 = vmatpush2.msra.mxu0 0.0
      %2918 = vmatprep.subr.mxu0 0.0
      %2919 = vmatpush2.msra.mxu0 0.0
      %2920 = vmatprep.subr.mxu0 0.0
      %2921 = vmatpush2.msra.mxu0 0.0
      %2922 = vmatprep.mubr.f32.mxu0 0.0
      %2923 = vmatmul.mubr.f32.gmra.mxu0 %v2853
      %v2924 = vpop.f32.mrf.mxu0
      %v2925 = vadd.f32 0.0, %v2924
      %v2926 = vpop.f32.mrf.mxu0
      %2927 = vmatprep.mubr.f32.mxu0 0.0
      %2928 = vmatmul.mubr.f32.gmra.mxu0 %v2856
      %v2929 = vpop.f32.mrf.mxu0
      %v2930 = vadd.f32 0.0, %v2929
      %v2931 = vpop.f32.mrf.mxu0
      %2932 = vdwg.mxu0
      %s2933 = scalar_lea.vmem %s19, 3
      %v2934 = vld [vmem:[%s2933] sm:$0x1]
      %v2935 = vmul.f32 %v2925, 2.0
      %v2936 = vmul.f32 %v2930, 2.0
      %v2938 = vlaneseq
      %v2939 = vshrl.u32 %v2938, 7
      %v2940 = vsub.s32 0, %v2939
      %v2941 = vrot.slane %v2934, %v2940
      %v2943 = vsub.f32 %v2941, %v2935
      %v2944 = vsub.f32 %v2941, %v2936
      %v2945 = vsel %vm2294, %v2943, inf
      %2946 = vmin.xlane.f32.xlu0 %v2945
      %v2947 = vpop.xlane.xlu0 %2946
      %v2948 = vsel %vm2294, %v2944, inf
      %2949 = vmin.xlane.f32.xlu0 %v2948
      %v2950 = vpop.xlane.xlu0 %2949
      %vm2951 = vcmp.le.f32.partialorder %v2943, %v2947
      %vm2952 = vcmp.le.f32.partialorder %v2944, %v2950
      %v2953 = vsel %vm2951, %v2199, 64.0
      %v2954 = vsel %vm2952, %v2199, 64.0
      %v2955 = vsel %vm2294, %v2953, inf
      %2956 = vmin.xlane.f32.xlu0 %v2955
      %v2957 = vpop.xlane.xlu0 %2956
      %v2958 = vsel %vm2294, %v2954, inf
      %2959 = vmin.xlane.f32.xlu0 %v2958
      %v2960 = vpop.xlane.xlu0 %2959
      %vm2961 = vcmp.eq.f32.partialorder %v2199, %v2957
      %vm2962 = vcmp.eq.f32.partialorder %v2199, %v2960
      %v2963 = vsel %vm2961, 1, 0
      %v2964 = vsel %vm2962, 1, 0
      %v2965 = vcvt.s32.f32 %v2963
      %v2966 = vcvt.s32.f32 %v2964
      %s2967 = scalar_lea.vmem %s17, 192
      %v2968 = vld [vmem:[%s2967] sm:$0xff]
      %v2969 = vld [vmem:[%s2967 + $0x8] sm:$0xff]
      %v2970 = vld [vmem:[%s2967 + $0x10] sm:$0xff]
      %v2971 = vld [vmem:[%s2967 + $0x18] sm:$0xff]
      %v2972 = vld [vmem:[%s2967 + $0x20] sm:$0xff]
      %v2973 = vld [vmem:[%s2967 + $0x28] sm:$0xff]
      %v2974 = vld [vmem:[%s2967 + $0x30] sm:$0xff]
      %v2975 = vld [vmem:[%s2967 + $0x38] sm:$0xff]
      %v2977 = vsel %vm2294, %v2965, 0
      %v2980 = vsel %vm2294, %v2966, 0
      %2982 = vmatprep.subr.mxu0 0.0
      %2983 = vmatpush1.msra.mxu0 0.0
      %2984 = vmatprep.subr.mxu0 0.0
      %2985 = vmatpush1.msra.mxu0 0.0
      %2986 = vmatprep.subr.mxu0 0.0
      %2987 = vmatpush1.msra.mxu0 0.0
      %2988 = vmatprep.subr.mxu0 0.0
      %2989 = vmatpush1.msra.mxu0 0.0
      %2990 = vmatprep.subr.mxu0 0.0
      %2991 = vmatpush1.msra.mxu0 0.0
      %2992 = vmatprep.subr.mxu0 0.0
      %2993 = vmatpush1.msra.mxu0 0.0
      %2994 = vmatprep.subr.mxu0 0.0
      %2995 = vmatpush1.msra.mxu0 0.0
      %2996 = vmatprep.subr.mxu0 0.0
      %2997 = vmatpush1.msra.mxu0 0.0
      %2998 = vmatprep.subr.mxu0 0.0
      %2999 = vmatpush1.msra.mxu0 %v2975
      %3000 = vmatprep.subr.mxu0 0.0
      %3001 = vmatpush1.msra.mxu0 %v2974
      %3002 = vmatprep.subr.mxu0 0.0
      %3003 = vmatpush1.msra.mxu0 %v2973
      %3004 = vmatprep.subr.mxu0 0.0
      %3005 = vmatpush1.msra.mxu0 %v2972
      %3006 = vmatprep.subr.mxu0 0.0
      %3007 = vmatpush1.msra.mxu0 %v2971
      %3008 = vmatprep.subr.mxu0 0.0
      %3009 = vmatpush1.msra.mxu0 %v2970
      %3010 = vmatprep.subr.mxu0 0.0
      %3011 = vmatpush1.msra.mxu0 %v2969
      %3012 = vmatprep.subr.mxu0 0.0
      %3013 = vmatpush1.msra.mxu0 %v2968
      %3014 = vmatprep.subr.mxu0 0.0
      %3015 = vmatpush2.msra.mxu0 0.0
      %3016 = vmatprep.subr.mxu0 0.0
      %3017 = vmatpush2.msra.mxu0 0.0
      %3018 = vmatprep.subr.mxu0 0.0
      %3019 = vmatpush2.msra.mxu0 0.0
      %3020 = vmatprep.subr.mxu0 0.0
      %3021 = vmatpush2.msra.mxu0 0.0
      %3022 = vmatprep.subr.mxu0 0.0
      %3023 = vmatpush2.msra.mxu0 0.0
      %3024 = vmatprep.subr.mxu0 0.0
      %3025 = vmatpush2.msra.mxu0 0.0
      %3026 = vmatprep.subr.mxu0 0.0
      %3027 = vmatpush2.msra.mxu0 0.0
      %3028 = vmatprep.subr.mxu0 0.0
      %3029 = vmatpush2.msra.mxu0 0.0
      %3030 = vmatprep.subr.mxu0 0.0
      %3031 = vmatpush2.msra.mxu0 0.0
      %3032 = vmatprep.subr.mxu0 0.0
      %3033 = vmatpush2.msra.mxu0 0.0
      %3034 = vmatprep.subr.mxu0 0.0
      %3035 = vmatpush2.msra.mxu0 0.0
      %3036 = vmatprep.subr.mxu0 0.0
      %3037 = vmatpush2.msra.mxu0 0.0
      %3038 = vmatprep.subr.mxu0 0.0
      %3039 = vmatpush2.msra.mxu0 0.0
      %3040 = vmatprep.subr.mxu0 0.0
      %3041 = vmatpush2.msra.mxu0 0.0
      %3042 = vmatprep.subr.mxu0 0.0
      %3043 = vmatpush2.msra.mxu0 0.0
      %3044 = vmatprep.subr.mxu0 0.0
      %3045 = vmatpush2.msra.mxu0 0.0
      %3046 = vmatprep.mubr.f32.mxu0 0.0
      %3047 = vmatmul.mubr.f32.gmra.mxu0 %v2977
      %v3048 = vpop.f32.mrf.mxu0
      %v3049 = vadd.f32 0.0, %v3048
      %v3050 = vpop.f32.mrf.mxu0
      %3051 = vmatprep.mubr.f32.mxu0 0.0
      %3052 = vmatmul.mubr.f32.gmra.mxu0 %v2980
      %v3053 = vpop.f32.mrf.mxu0
      %v3054 = vadd.f32 0.0, %v3053
      %v3055 = vpop.f32.mrf.mxu0
      %3056 = vdwg.mxu0
      %v3057 = vadd.f32 %v2842, %v3049
      %v3058 = vadd.f32 %v2843, %v3054
      %vm3059 = vcmp.eq.s32.totalorder %v2198, 3
      %v3060 = vcvt.f32.s32.to.zero.pseudo %v2957
      %v3061 = vcvt.f32.s32.to.zero.pseudo %v2960
      %v3062 = vsel %vm3059, %v3060, %v2847
      %v3063 = vsel %vm3059, %v3061, %v2848
      %3064 = vst.msk [vmem:[%s671] sm:$0xff] %vm677, %v3062
      %3065 = vst.msk [vmem:[%s671 + $0x8] sm:$0xff] %vm677, %v3063
      %3066 = vst.msk [vmem:[#allocation2 + $0x8] sm:$0xff] %vm1467, %v3057
      %3067 = vst.msk [vmem:[#allocation2 + $0x10] sm:$0xff] %vm1467, %v3058
      %v3068 = vld [vmem:[#allocation2 + $0x2] sm:$0xff]
      %v3069 = vld [vmem:[#allocation2 + $0xa] sm:$0xff]
      %v3070 = vpack.c.bf16 %v3069, %v3068
      %v3071 = vld [vmem:[%s5] sm:$0xf]
      %v3072 = vld [vmem:[%s5 + $0x4] sm:$0xf]
      %v3073 = vld [vmem:[#allocation2 + $0x3] sm:$0xff]
      %v3074 = vld [vmem:[#allocation2 + $0xb] sm:$0xff]
      %v3075 = vpack.c.bf16 %v3074, %v3073
      %s3076 = scalar_lea.vmem %s5, 8
      %v3077 = vld [vmem:[%s3076] sm:$0xf]
      %v3078 = vld [vmem:[%s3076 + $0x4] sm:$0xf]
      %v3081 = vunpack.c.l.b16 %v3077
      %v3082 = vunpack.c.l.b16 %v3078
      %v3083 = vpack.c.b16 %v3082, %v3081
      %v3086 = vsel %vm1467, %v3075, 0
      %3088 = vmatprep.subr.bf16.mxu0 0
      %3089 = vmatpush1.bf16.msra.mxu0 0
      %3090 = vmatprep.subr.bf16.mxu0 0
      %3091 = vmatpush1.bf16.msra.mxu0 0
      %3092 = vmatprep.subr.bf16.mxu0 0
      %3093 = vmatpush1.bf16.msra.mxu0 0
      %3094 = vmatprep.subr.bf16.mxu0 0
      %3095 = vmatpush1.bf16.msra.mxu0 0
      %3096 = vmatprep.subr.bf16.mxu0 0
      %3097 = vmatpush1.bf16.msra.mxu0 0
      %3098 = vmatprep.subr.bf16.mxu0 0
      %3099 = vmatpush1.bf16.msra.mxu0 0
      %3100 = vmatprep.subr.bf16.mxu0 0
      %3101 = vmatpush1.bf16.msra.mxu0 0
      %3102 = vmatprep.subr.bf16.mxu0 0
      %3103 = vmatpush1.bf16.msra.mxu0 %v3083
      %3104 = vmatprep.subr.bf16.mxu0 0
      %3105 = vmatpush2.bf16.msra.mxu0 0
      %3106 = vmatprep.subr.bf16.mxu0 0
      %3107 = vmatpush2.bf16.msra.mxu0 0
      %3108 = vmatprep.subr.bf16.mxu0 0
      %3109 = vmatpush2.bf16.msra.mxu0 0
      %3110 = vmatprep.subr.bf16.mxu0 0
      %3111 = vmatpush2.bf16.msra.mxu0 0
      %3112 = vmatprep.subr.bf16.mxu0 0
      %3113 = vmatpush2.bf16.msra.mxu0 0
      %3114 = vmatprep.subr.bf16.mxu0 0
      %3115 = vmatpush2.bf16.msra.mxu0 0
      %3116 = vmatprep.subr.bf16.mxu0 0
      %3117 = vmatpush2.bf16.msra.mxu0 0
      %3118 = vmatprep.subr.bf16.mxu0 0
      %3119 = vmatpush2.bf16.msra.mxu0 0
      %3120 = vmatprep.mubr.bf16.mxu0 0
      %3121 = vmatmul.mubr.bf16.gmra.mxu0 %v3086
      %v3122 = vpop.f32.mrf.mxu0
      %v3123 = vadd.f32 0.0, %v3122
      %v3124 = vpop.f32.mrf.mxu0
      %v3125 = vpop.f32.mrf.mxu0
      %v3126 = vadd.f32 0.0, %v3125
      %v3127 = vpop.f32.mrf.mxu0
      %3128 = vdwg.mxu0
      %v3131 = vunpack.c.l.b16 %v3071
      %v3132 = vunpack.c.l.b16 %v3072
      %v3133 = vpack.c.b16 %v3132, %v3131
      %v3136 = vsel %vm1467, %v3070, 0
      %3138 = vmatprep.subr.bf16.mxu0 0
      %3139 = vmatpush1.bf16.msra.mxu0 0
      %3140 = vmatprep.subr.bf16.mxu0 0
      %3141 = vmatpush1.bf16.msra.mxu0 0
      %3142 = vmatprep.subr.bf16.mxu0 0
      %3143 = vmatpush1.bf16.msra.mxu0 0
      %3144 = vmatprep.subr.bf16.mxu0 0
      %3145 = vmatpush1.bf16.msra.mxu0 0
      %3146 = vmatprep.subr.bf16.mxu0 0
      %3147 = vmatpush1.bf16.msra.mxu0 0
      %3148 = vmatprep.subr.bf16.mxu0 0
      %3149 = vmatpush1.bf16.msra.mxu0 0
      %3150 = vmatprep.subr.bf16.mxu0 0
      %3151 = vmatpush1.bf16.msra.mxu0 0
      %3152 = vmatprep.subr.bf16.mxu0 0
      %3153 = vmatpush1.bf16.msra.mxu0 %v3133
      %3154 = vmatprep.subr.bf16.mxu0 0
      %3155 = vmatpush2.bf16.msra.mxu0 0
      %3156 = vmatprep.subr.bf16.mxu0 0
      %3157 = vmatpush2.bf16.msra.mxu0 0
      %3158 = vmatprep.subr.bf16.mxu0 0
      %3159 = vmatpush2.bf16.msra.mxu0 0
      %3160 = vmatprep.subr.bf16.mxu0 0
      %3161 = vmatpush2.bf16.msra.mxu0 0
      %3162 = vmatprep.subr.bf16.mxu0 0
      %3163 = vmatpush2.bf16.msra.mxu0 0
      %3164 = vmatprep.subr.bf16.mxu0 0
      %3165 = vmatpush2.bf16.msra.mxu0 0
      %3166 = vmatprep.subr.bf16.mxu0 0
      %3167 = vmatpush2.bf16.msra.mxu0 0
      %3168 = vmatprep.subr.bf16.mxu0 0
      %3169 = vmatpush2.bf16.msra.mxu0 0
      %3170 = vmatprep.mubr.bf16.mxu0 0
      %3171 = vmatmul.mubr.bf16.gmra.mxu0 %v3136
      %v3172 = vpop.f32.mrf.mxu0
      %v3173 = vadd.f32 %v3123, %v3172
      %v3174 = vpop.f32.mrf.mxu0
      %v3175 = vpop.f32.mrf.mxu0
      %v3176 = vadd.f32 %v3126, %v3175
      %v3177 = vpop.f32.mrf.mxu0
      %3178 = vdwg.mxu0
      %v3179 = vld [vmem:[#allocation2 + $0x4] sm:$0xff]
      %v3180 = vld [vmem:[#allocation2 + $0xc] sm:$0xff]
      %v3181 = vpack.c.bf16 %v3180, %v3179
      %s3182 = scalar_lea.vmem %s5, 16
      %v3183 = vld [vmem:[%s3182] sm:$0xf]
      %v3184 = vld [vmem:[%s3182 + $0x4] sm:$0xf]
      %v3187 = vunpack.c.l.b16 %v3183
      %v3188 = vunpack.c.l.b16 %v3184
      %v3189 = vpack.c.b16 %v3188, %v3187
      %v3192 = vsel %vm1467, %v3181, 0
      %3194 = vmatprep.subr.bf16.mxu0 0
      %3195 = vmatpush1.bf16.msra.mxu0 0
      %3196 = vmatprep.subr.bf16.mxu0 0
      %3197 = vmatpush1.bf16.msra.mxu0 0
      %3198 = vmatprep.subr.bf16.mxu0 0
      %3199 = vmatpush1.bf16.msra.mxu0 0
      %3200 = vmatprep.subr.bf16.mxu0 0
      %3201 = vmatpush1.bf16.msra.mxu0 0
      %3202 = vmatprep.subr.bf16.mxu0 0
      %3203 = vmatpush1.bf16.msra.mxu0 0
      %3204 = vmatprep.subr.bf16.mxu0 0
      %3205 = vmatpush1.bf16.msra.mxu0 0
      %3206 = vmatprep.subr.bf16.mxu0 0
      %3207 = vmatpush1.bf16.msra.mxu0 0
      %3208 = vmatprep.subr.bf16.mxu0 0
      %3209 = vmatpush1.bf16.msra.mxu0 %v3189
      %3210 = vmatprep.subr.bf16.mxu0 0
      %3211 = vmatpush2.bf16.msra.mxu0 0
      %3212 = vmatprep.subr.bf16.mxu0 0
      %3213 = vmatpush2.bf16.msra.mxu0 0
      %3214 = vmatprep.subr.bf16.mxu0 0
      %3215 = vmatpush2.bf16.msra.mxu0 0
      %3216 = vmatprep.subr.bf16.mxu0 0
      %3217 = vmatpush2.bf16.msra.mxu0 0
      %3218 = vmatprep.subr.bf16.mxu0 0
      %3219 = vmatpush2.bf16.msra.mxu0 0
      %3220 = vmatprep.subr.bf16.mxu0 0
      %3221 = vmatpush2.bf16.msra.mxu0 0
      %3222 = vmatprep.subr.bf16.mxu0 0
      %3223 = vmatpush2.bf16.msra.mxu0 0
      %3224 = vmatprep.subr.bf16.mxu0 0
      %3225 = vmatpush2.bf16.msra.mxu0 0
      %3226 = vmatprep.mubr.bf16.mxu0 0
      %3227 = vmatmul.mubr.bf16.gmra.mxu0 %v3192
      %v3228 = vpop.f32.mrf.mxu0
      %v3229 = vadd.f32 0.0, %v3228
      %v3230 = vpop.f32.mrf.mxu0
      %v3231 = vpop.f32.mrf.mxu0
      %v3232 = vadd.f32 0.0, %v3231
      %v3233 = vpop.f32.mrf.mxu0
      %3234 = vdwg.mxu0
      %v3235 = vadd.f32 %v3173, %v3229
      %v3236 = vadd.f32 %v3176, %v3232
      %v3237 = vld [vmem:[#allocation2 + $0x5] sm:$0xff]
      %v3238 = vld [vmem:[#allocation2 + $0xd] sm:$0xff]
      %v3239 = vpack.c.bf16 %v3238, %v3237
      %s3240 = scalar_lea.vmem %s5, 24
      %v3241 = vld [vmem:[%s3240] sm:$0xf]
      %v3242 = vld [vmem:[%s3240 + $0x4] sm:$0xf]
      %v3245 = vunpack.c.l.b16 %v3241
      %v3246 = vunpack.c.l.b16 %v3242
      %v3247 = vpack.c.b16 %v3246, %v3245
      %v3250 = vsel %vm1467, %v3239, 0
      %3252 = vmatprep.subr.bf16.mxu0 0
      %3253 = vmatpush1.bf16.msra.mxu0 0
      %3254 = vmatprep.subr.bf16.mxu0 0
      %3255 = vmatpush1.bf16.msra.mxu0 0
      %3256 = vmatprep.subr.bf16.mxu0 0
      %3257 = vmatpush1.bf16.msra.mxu0 0
      %3258 = vmatprep.subr.bf16.mxu0 0
      %3259 = vmatpush1.bf16.msra.mxu0 0
      %3260 = vmatprep.subr.bf16.mxu0 0
      %3261 = vmatpush1.bf16.msra.mxu0 0
      %3262 = vmatprep.subr.bf16.mxu0 0
      %3263 = vmatpush1.bf16.msra.mxu0 0
      %3264 = vmatprep.subr.bf16.mxu0 0
      %3265 = vmatpush1.bf16.msra.mxu0 0
      %3266 = vmatprep.subr.bf16.mxu0 0
      %3267 = vmatpush1.bf16.msra.mxu0 %v3247
      %3268 = vmatprep.subr.bf16.mxu0 0
      %3269 = vmatpush2.bf16.msra.mxu0 0
      %3270 = vmatprep.subr.bf16.mxu0 0
      %3271 = vmatpush2.bf16.msra.mxu0 0
      %3272 = vmatprep.subr.bf16.mxu0 0
      %3273 = vmatpush2.bf16.msra.mxu0 0
      %3274 = vmatprep.subr.bf16.mxu0 0
      %3275 = vmatpush2.bf16.msra.mxu0 0
      %3276 = vmatprep.subr.bf16.mxu0 0
      %3277 = vmatpush2.bf16.msra.mxu0 0
      %3278 = vmatprep.subr.bf16.mxu0 0
      %3279 = vmatpush2.bf16.msra.mxu0 0
      %3280 = vmatprep.subr.bf16.mxu0 0
      %3281 = vmatpush2.bf16.msra.mxu0 0
      %3282 = vmatprep.subr.bf16.mxu0 0
      %3283 = vmatpush2.bf16.msra.mxu0 0
      %3284 = vmatprep.mubr.bf16.mxu0 0
      %3285 = vmatmul.mubr.bf16.gmra.mxu0 %v3250
      %v3286 = vpop.f32.mrf.mxu0
      %v3287 = vadd.f32 0.0, %v3286
      %v3288 = vpop.f32.mrf.mxu0
      %v3289 = vpop.f32.mrf.mxu0
      %v3290 = vadd.f32 0.0, %v3289
      %v3291 = vpop.f32.mrf.mxu0
      %3292 = vdwg.mxu0
      %v3293 = vadd.f32 %v3235, %v3287
      %v3294 = vadd.f32 %v3236, %v3290
      %v3295 = vld [vmem:[#allocation2 + $0x6] sm:$0xff]
      %v3296 = vld [vmem:[#allocation2 + $0xe] sm:$0xff]
      %v3297 = vpack.c.bf16 %v3296, %v3295
      %s3298 = scalar_lea.vmem %s5, 32
      %v3299 = vld [vmem:[%s3298] sm:$0xf]
      %v3300 = vld [vmem:[%s3298 + $0x4] sm:$0xf]
      %v3303 = vunpack.c.l.b16 %v3299
      %v3304 = vunpack.c.l.b16 %v3300
      %v3305 = vpack.c.b16 %v3304, %v3303
      %v3308 = vsel %vm1467, %v3297, 0
      %3310 = vmatprep.subr.bf16.mxu0 0
      %3311 = vmatpush1.bf16.msra.mxu0 0
      %3312 = vmatprep.subr.bf16.mxu0 0
      %3313 = vmatpush1.bf16.msra.mxu0 0
      %3314 = vmatprep.subr.bf16.mxu0 0
      %3315 = vmatpush1.bf16.msra.mxu0 0
      %3316 = vmatprep.subr.bf16.mxu0 0
      %3317 = vmatpush1.bf16.msra.mxu0 0
      %3318 = vmatprep.subr.bf16.mxu0 0
      %3319 = vmatpush1.bf16.msra.mxu0 0
      %3320 = vmatprep.subr.bf16.mxu0 0
      %3321 = vmatpush1.bf16.msra.mxu0 0
      %3322 = vmatprep.subr.bf16.mxu0 0
      %3323 = vmatpush1.bf16.msra.mxu0 0
      %3324 = vmatprep.subr.bf16.mxu0 0
      %3325 = vmatpush1.bf16.msra.mxu0 %v3305
      %3326 = vmatprep.subr.bf16.mxu0 0
      %3327 = vmatpush2.bf16.msra.mxu0 0
      %3328 = vmatprep.subr.bf16.mxu0 0
      %3329 = vmatpush2.bf16.msra.mxu0 0
      %3330 = vmatprep.subr.bf16.mxu0 0
      %3331 = vmatpush2.bf16.msra.mxu0 0
      %3332 = vmatprep.subr.bf16.mxu0 0
      %3333 = vmatpush2.bf16.msra.mxu0 0
      %3334 = vmatprep.subr.bf16.mxu0 0
      %3335 = vmatpush2.bf16.msra.mxu0 0
      %3336 = vmatprep.subr.bf16.mxu0 0
      %3337 = vmatpush2.bf16.msra.mxu0 0
      %3338 = vmatprep.subr.bf16.mxu0 0
      %3339 = vmatpush2.bf16.msra.mxu0 0
      %3340 = vmatprep.subr.bf16.mxu0 0
      %3341 = vmatpush2.bf16.msra.mxu0 0
      %3342 = vmatprep.mubr.bf16.mxu0 0
      %3343 = vmatmul.mubr.bf16.gmra.mxu0 %v3308
      %v3344 = vpop.f32.mrf.mxu0
      %v3345 = vadd.f32 0.0, %v3344
      %v3346 = vpop.f32.mrf.mxu0
      %v3347 = vpop.f32.mrf.mxu0
      %v3348 = vadd.f32 0.0, %v3347
      %v3349 = vpop.f32.mrf.mxu0
      %3350 = vdwg.mxu0
      %v3351 = vadd.f32 %v3293, %v3345
      %v3352 = vadd.f32 %v3294, %v3348
      %v3353 = vld [vmem:[#allocation2 + $0x7] sm:$0xff]
      %v3354 = vld [vmem:[#allocation2 + $0xf] sm:$0xff]
      %v3355 = vpack.c.bf16 %v3354, %v3353
      %s3356 = scalar_lea.vmem %s5, 40
      %v3357 = vld [vmem:[%s3356] sm:$0xf]
      %v3358 = vld [vmem:[%s3356 + $0x4] sm:$0xf]
      %v3361 = vunpack.c.l.b16 %v3357
      %v3362 = vunpack.c.l.b16 %v3358
      %v3363 = vpack.c.b16 %v3362, %v3361
      %v3366 = vsel %vm1467, %v3355, 0
      %3368 = vmatprep.subr.bf16.mxu0 0
      %3369 = vmatpush1.bf16.msra.mxu0 0
      %3370 = vmatprep.subr.bf16.mxu0 0
      %3371 = vmatpush1.bf16.msra.mxu0 0
      %3372 = vmatprep.subr.bf16.mxu0 0
      %3373 = vmatpush1.bf16.msra.mxu0 0
      %3374 = vmatprep.subr.bf16.mxu0 0
      %3375 = vmatpush1.bf16.msra.mxu0 0
      %3376 = vmatprep.subr.bf16.mxu0 0
      %3377 = vmatpush1.bf16.msra.mxu0 0
      %3378 = vmatprep.subr.bf16.mxu0 0
      %3379 = vmatpush1.bf16.msra.mxu0 0
      %3380 = vmatprep.subr.bf16.mxu0 0
      %3381 = vmatpush1.bf16.msra.mxu0 0
      %3382 = vmatprep.subr.bf16.mxu0 0
      %3383 = vmatpush1.bf16.msra.mxu0 %v3363
      %3384 = vmatprep.subr.bf16.mxu0 0
      %3385 = vmatpush2.bf16.msra.mxu0 0
      %3386 = vmatprep.subr.bf16.mxu0 0
      %3387 = vmatpush2.bf16.msra.mxu0 0
      %3388 = vmatprep.subr.bf16.mxu0 0
      %3389 = vmatpush2.bf16.msra.mxu0 0
      %3390 = vmatprep.subr.bf16.mxu0 0
      %3391 = vmatpush2.bf16.msra.mxu0 0
      %3392 = vmatprep.subr.bf16.mxu0 0
      %3393 = vmatpush2.bf16.msra.mxu0 0
      %3394 = vmatprep.subr.bf16.mxu0 0
      %3395 = vmatpush2.bf16.msra.mxu0 0
      %3396 = vmatprep.subr.bf16.mxu0 0
      %3397 = vmatpush2.bf16.msra.mxu0 0
      %3398 = vmatprep.subr.bf16.mxu0 0
      %3399 = vmatpush2.bf16.msra.mxu0 0
      %3400 = vmatprep.mubr.bf16.mxu0 0
      %3401 = vmatmul.mubr.bf16.gmra.mxu0 %v3366
      %v3402 = vpop.f32.mrf.mxu0
      %v3403 = vadd.f32 0.0, %v3402
      %v3404 = vpop.f32.mrf.mxu0
      %v3405 = vpop.f32.mrf.mxu0
      %v3406 = vadd.f32 0.0, %v3405
      %v3407 = vpop.f32.mrf.mxu0
      %3408 = vdwg.mxu0
      %v3409 = vadd.f32 %v3351, %v3403
      %v3410 = vadd.f32 %v3352, %v3406
      %v3411 = vld [vmem:[#allocation2 + $0x8] sm:$0xff]
      %v3412 = vld [vmem:[#allocation2 + $0x10] sm:$0xff]
      %v3413 = vpack.c.bf16 %v3412, %v3411
      %s3414 = scalar_lea.vmem %s5, 48
      %v3415 = vld [vmem:[%s3414] sm:$0xf]
      %v3416 = vld [vmem:[%s3414 + $0x4] sm:$0xf]
      %v3419 = vunpack.c.l.b16 %v3415
      %v3420 = vunpack.c.l.b16 %v3416
      %v3421 = vpack.c.b16 %v3420, %v3419
      %v3424 = vsel %vm1467, %v3413, 0
      %3426 = vmatprep.subr.bf16.mxu0 0
      %3427 = vmatpush1.bf16.msra.mxu0 0
      %3428 = vmatprep.subr.bf16.mxu0 0
      %3429 = vmatpush1.bf16.msra.mxu0 0
      %3430 = vmatprep.subr.bf16.mxu0 0
      %3431 = vmatpush1.bf16.msra.mxu0 0
      %3432 = vmatprep.subr.bf16.mxu0 0
      %3433 = vmatpush1.bf16.msra.mxu0 0
      %3434 = vmatprep.subr.bf16.mxu0 0
      %3435 = vmatpush1.bf16.msra.mxu0 0
      %3436 = vmatprep.subr.bf16.mxu0 0
      %3437 = vmatpush1.bf16.msra.mxu0 0
      %3438 = vmatprep.subr.bf16.mxu0 0
      %3439 = vmatpush1.bf16.msra.mxu0 0
      %3440 = vmatprep.subr.bf16.mxu0 0
      %3441 = vmatpush1.bf16.msra.mxu0 %v3421
      %3442 = vmatprep.subr.bf16.mxu0 0
      %3443 = vmatpush2.bf16.msra.mxu0 0
      %3444 = vmatprep.subr.bf16.mxu0 0
      %3445 = vmatpush2.bf16.msra.mxu0 0
      %3446 = vmatprep.subr.bf16.mxu0 0
      %3447 = vmatpush2.bf16.msra.mxu0 0
      %3448 = vmatprep.subr.bf16.mxu0 0
      %3449 = vmatpush2.bf16.msra.mxu0 0
      %3450 = vmatprep.subr.bf16.mxu0 0
      %3451 = vmatpush2.bf16.msra.mxu0 0
      %3452 = vmatprep.subr.bf16.mxu0 0
      %3453 = vmatpush2.bf16.msra.mxu0 0
      %3454 = vmatprep.subr.bf16.mxu0 0
      %3455 = vmatpush2.bf16.msra.mxu0 0
      %3456 = vmatprep.subr.bf16.mxu0 0
      %3457 = vmatpush2.bf16.msra.mxu0 0
      %3458 = vmatprep.mubr.bf16.mxu0 0
      %3459 = vmatmul.mubr.bf16.gmra.mxu0 %v3424
      %v3460 = vpop.f32.mrf.mxu0
      %v3461 = vadd.f32 0.0, %v3460
      %v3462 = vpop.f32.mrf.mxu0
      %v3463 = vpop.f32.mrf.mxu0
      %v3464 = vadd.f32 0.0, %v3463
      %v3465 = vpop.f32.mrf.mxu0
      %3466 = vdwg.mxu0
      %v3467 = vadd.f32 %v3409, %v3461
      %v3468 = vadd.f32 %v3410, %v3464
      %v3469 = vld [vmem:[%s13] sm:$0x1]
      %v3471 = vlaneseq
      %v3472 = vshrl.u32 %v3471, 7
      %v3473 = vsub.s32 0, %v3472
      %v3474 = vrot.slane %v3469, %v3473
      %v3476 = vadd.f32 %v3467, %v3474
      %v3477 = vadd.f32 %v3468, %v3474
      %vm3478 = vcmp.gt.f32.partialorder %v3476, 0.0
      %vm3479 = vcmp.gt.f32.partialorder %v3477, 0.0
      %v3480 = vmin.f32 %v3476, 0.0
      %v3481 = vmin.f32 %v3477, 0.0
      %v3482 = vmul.f32 %v3480, 1.442695
      %v3483 = vpow.pop %v3482
      %v3484 = vmul.f32 %v3481, 1.442695
      %v3485 = vpow.pop %v3484
      %v3486 = vsub.f32 %v3483, 1.0
      %v3487 = vsub.f32 %v3485, 1.0
      %v3488 = vsel %vm3478, %v3476, %v3486
      %v3489 = vsel %vm3479, %v3477, %v3487
      %3490 = vst.msk [vmem:[#allocation2 + $0x8] sm:$0xff] %vm673, %v3488
      %3491 = vst.msk [vmem:[#allocation2 + $0x10] sm:$0xff] %vm673, %v3489
      %v3492 = vld [vmem:[#allocation2 + $0x8] sm:$0xff]
      %v3493 = vld [vmem:[#allocation2 + $0x10] sm:$0xff]
      %v3494 = vpack.c.bf16 %v3493, %v3492
      %v3495 = vld [vmem:[%s6] sm:$0xf]
      %v3496 = vld [vmem:[%s6 + $0x4] sm:$0xf]
      %v3497 = vld [vmem:[%s6 + $0x8] sm:$0xf]
      %v3498 = vld [vmem:[%s6 + $0xc] sm:$0xf]
      %v3499 = vld [vmem:[#allocation2 + $0x7] sm:$0xff]
      %v3500 = vld [vmem:[#allocation2 + $0xf] sm:$0xff]
      %v3501 = vpack.c.bf16 %v3500, %v3499
      %s3502 = scalar_lea.vmem %s6, 32
      %v3503 = vld [vmem:[%s3502] sm:$0xf]
      %v3504 = vld [vmem:[%s3502 + $0x4] sm:$0xf]
      %v3505 = vld [vmem:[%s3502 + $0x8] sm:$0xf]
      %v3506 = vld [vmem:[%s3502 + $0xc] sm:$0xf]
      %v3511 = vunpack.c.l.b16 %v3503
      %v3512 = vunpack.c.l.b16 %v3504
      %v3513 = vunpack.c.l.b16 %v3505
      %v3514 = vunpack.c.l.b16 %v3506
      %v3515 = vpack.c.b16 %v3512, %v3511
      %v3516 = vpack.c.b16 %v3514, %v3513
      %v3520 = vsel %vm673, %v3501, 0
      %3522 = vmatprep.subr.bf16.mxu0 0
      %3523 = vmatpush1.bf16.msra.mxu0 0
      %3524 = vmatprep.subr.bf16.mxu0 0
      %3525 = vmatpush1.bf16.msra.mxu0 0
      %3526 = vmatprep.subr.bf16.mxu0 0
      %3527 = vmatpush1.bf16.msra.mxu0 0
      %3528 = vmatprep.subr.bf16.mxu0 0
      %3529 = vmatpush1.bf16.msra.mxu0 0
      %3530 = vmatprep.subr.bf16.mxu0 0
      %3531 = vmatpush1.bf16.msra.mxu0 0
      %3532 = vmatprep.subr.bf16.mxu0 0
      %3533 = vmatpush1.bf16.msra.mxu0 0
      %3534 = vmatprep.subr.bf16.mxu0 0
      %3535 = vmatpush1.bf16.msra.mxu0 %v3516
      %3536 = vmatprep.subr.bf16.mxu0 0
      %3537 = vmatpush1.bf16.msra.mxu0 %v3515
      %3538 = vmatprep.subr.bf16.mxu0 0
      %3539 = vmatpush2.bf16.msra.mxu0 0
      %3540 = vmatprep.subr.bf16.mxu0 0
      %3541 = vmatpush2.bf16.msra.mxu0 0
      %3542 = vmatprep.subr.bf16.mxu0 0
      %3543 = vmatpush2.bf16.msra.mxu0 0
      %3544 = vmatprep.subr.bf16.mxu0 0
      %3545 = vmatpush2.bf16.msra.mxu0 0
      %3546 = vmatprep.subr.bf16.mxu0 0
      %3547 = vmatpush2.bf16.msra.mxu0 0
      %3548 = vmatprep.subr.bf16.mxu0 0
      %3549 = vmatpush2.bf16.msra.mxu0 0
      %3550 = vmatprep.subr.bf16.mxu0 0
      %3551 = vmatpush2.bf16.msra.mxu0 0
      %3552 = vmatprep.subr.bf16.mxu0 0
      %3553 = vmatpush2.bf16.msra.mxu0 0
      %3554 = vmatprep.mubr.bf16.mxu0 0
      %3555 = vmatmul.mubr.bf16.gmra.mxu0 %v3520
      %v3556 = vpop.f32.mrf.mxu0
      %v3557 = vadd.f32 0.0, %v3556
      %v3558 = vpop.f32.mrf.mxu0
      %v3559 = vpop.f32.mrf.mxu0
      %v3560 = vadd.f32 0.0, %v3559
      %v3561 = vpop.f32.mrf.mxu0
      %3562 = vdwg.mxu0
      %v3567 = vunpack.c.l.b16 %v3495
      %v3568 = vunpack.c.l.b16 %v3496
      %v3569 = vunpack.c.l.b16 %v3497
      %v3570 = vunpack.c.l.b16 %v3498
      %v3571 = vpack.c.b16 %v3568, %v3567
      %v3572 = vpack.c.b16 %v3570, %v3569
      %v3576 = vsel %vm673, %v3494, 0
      %3578 = vmatprep.subr.bf16.mxu0 0
      %3579 = vmatpush1.bf16.msra.mxu0 0
      %3580 = vmatprep.subr.bf16.mxu0 0
      %3581 = vmatpush1.bf16.msra.mxu0 0
      %3582 = vmatprep.subr.bf16.mxu0 0
      %3583 = vmatpush1.bf16.msra.mxu0 0
      %3584 = vmatprep.subr.bf16.mxu0 0
      %3585 = vmatpush1.bf16.msra.mxu0 0
      %3586 = vmatprep.subr.bf16.mxu0 0
      %3587 = vmatpush1.bf16.msra.mxu0 0
      %3588 = vmatprep.subr.bf16.mxu0 0
      %3589 = vmatpush1.bf16.msra.mxu0 0
      %3590 = vmatprep.subr.bf16.mxu0 0
      %3591 = vmatpush1.bf16.msra.mxu0 %v3572
      %3592 = vmatprep.subr.bf16.mxu0 0
      %3593 = vmatpush1.bf16.msra.mxu0 %v3571
      %3594 = vmatprep.subr.bf16.mxu0 0
      %3595 = vmatpush2.bf16.msra.mxu0 0
      %3596 = vmatprep.subr.bf16.mxu0 0
      %3597 = vmatpush2.bf16.msra.mxu0 0
      %3598 = vmatprep.subr.bf16.mxu0 0
      %3599 = vmatpush2.bf16.msra.mxu0 0
      %3600 = vmatprep.subr.bf16.mxu0 0
      %3601 = vmatpush2.bf16.msra.mxu0 0
      %3602 = vmatprep.subr.bf16.mxu0 0
      %3603 = vmatpush2.bf16.msra.mxu0 0
      %3604 = vmatprep.subr.bf16.mxu0 0
      %3605 = vmatpush2.bf16.msra.mxu0 0
      %3606 = vmatprep.subr.bf16.mxu0 0
      %3607 = vmatpush2.bf16.msra.mxu0 0
      %3608 = vmatprep.subr.bf16.mxu0 0
      %3609 = vmatpush2.bf16.msra.mxu0 0
      %3610 = vmatprep.mubr.bf16.mxu0 0
      %3611 = vmatmul.mubr.bf16.gmra.mxu0 %v3576
      %v3612 = vpop.f32.mrf.mxu0
      %v3613 = vadd.f32 %v3557, %v3612
      %v3614 = vpop.f32.mrf.mxu0
      %v3615 = vpop.f32.mrf.mxu0
      %v3616 = vadd.f32 %v3560, %v3615
      %v3617 = vpop.f32.mrf.mxu0
      %3618 = vdwg.mxu0
      %v3619 = vld [vmem:[%s14] sm:$0x1]
      %v3621 = vlaneseq
      %v3622 = vshrl.u32 %v3621, 7
      %v3623 = vsub.s32 0, %v3622
      %v3624 = vrot.slane %v3619, %v3623
      %v3626 = vadd.f32 %v3613, %v3624
      %v3627 = vadd.f32 %v3616, %v3624
      %vm3628 = vcmp.gt.f32.partialorder %v3626, 0.0
      %vm3629 = vcmp.gt.f32.partialorder %v3627, 0.0
      %v3630 = vmin.f32 %v3626, 0.0
      %v3631 = vmin.f32 %v3627, 0.0
      %v3632 = vmul.f32 %v3630, 1.442695
      %v3633 = vpow.pop %v3632
      %v3634 = vmul.f32 %v3631, 1.442695
      %v3635 = vpow.pop %v3634
      %v3636 = vsub.f32 %v3633, 1.0
      %v3637 = vsub.f32 %v3635, 1.0
      %v3638 = vsel %vm3628, %v3626, %v3636
      %v3639 = vsel %vm3629, %v3627, %v3637
      %s3640 = scalar_lea.vmem %s6, 16
      %v3641 = vld [vmem:[%s3640] sm:$0xf]
      %v3642 = vld [vmem:[%s3640 + $0x4] sm:$0xf]
      %v3643 = vld [vmem:[%s3640 + $0x8] sm:$0xf]
      %v3644 = vld [vmem:[%s3640 + $0xc] sm:$0xf]
      %s3645 = scalar_lea.vmem %s6, 48
      %v3646 = vld [vmem:[%s3645] sm:$0xf]
      %v3647 = vld [vmem:[%s3645 + $0x4] sm:$0xf]
      %v3648 = vld [vmem:[%s3645 + $0x8] sm:$0xf]
      %v3649 = vld [vmem:[%s3645 + $0xc] sm:$0xf]
      %v3654 = vunpack.c.l.b16 %v3646
      %v3655 = vunpack.c.l.b16 %v3647
      %v3656 = vunpack.c.l.b16 %v3648
      %v3657 = vunpack.c.l.b16 %v3649
      %v3658 = vpack.c.b16 %v3655, %v3654
      %v3659 = vpack.c.b16 %v3657, %v3656
      %3662 = vmatprep.subr.bf16.mxu0 0
      %3663 = vmatpush1.bf16.msra.mxu0 0
      %3664 = vmatprep.subr.bf16.mxu0 0
      %3665 = vmatpush1.bf16.msra.mxu0 0
      %3666 = vmatprep.subr.bf16.mxu0 0
      %3667 = vmatpush1.bf16.msra.mxu0 0
      %3668 = vmatprep.subr.bf16.mxu0 0
      %3669 = vmatpush1.bf16.msra.mxu0 0
      %3670 = vmatprep.subr.bf16.mxu0 0
      %3671 = vmatpush1.bf16.msra.mxu0 0
      %3672 = vmatprep.subr.bf16.mxu0 0
      %3673 = vmatpush1.bf16.msra.mxu0 0
      %3674 = vmatprep.subr.bf16.mxu0 0
      %3675 = vmatpush1.bf16.msra.mxu0 %v3659
      %3676 = vmatprep.subr.bf16.mxu0 0
      %3677 = vmatpush1.bf16.msra.mxu0 %v3658
      %3678 = vmatprep.subr.bf16.mxu0 0
      %3679 = vmatpush2.bf16.msra.mxu0 0
      %3680 = vmatprep.subr.bf16.mxu0 0
      %3681 = vmatpush2.bf16.msra.mxu0 0
      %3682 = vmatprep.subr.bf16.mxu0 0
      %3683 = vmatpush2.bf16.msra.mxu0 0
      %3684 = vmatprep.subr.bf16.mxu0 0
      %3685 = vmatpush2.bf16.msra.mxu0 0
      %3686 = vmatprep.subr.bf16.mxu0 0
      %3687 = vmatpush2.bf16.msra.mxu0 0
      %3688 = vmatprep.subr.bf16.mxu0 0
      %3689 = vmatpush2.bf16.msra.mxu0 0
      %3690 = vmatprep.subr.bf16.mxu0 0
      %3691 = vmatpush2.bf16.msra.mxu0 0
      %3692 = vmatprep.subr.bf16.mxu0 0
      %3693 = vmatpush2.bf16.msra.mxu0 0
      %3694 = vmatprep.mubr.bf16.mxu0 0
      %3695 = vmatmul.mubr.bf16.gmra.mxu0 %v3520
      %v3696 = vpop.f32.mrf.mxu0
      %v3697 = vadd.f32 0.0, %v3696
      %v3698 = vpop.f32.mrf.mxu0
      %v3699 = vpop.f32.mrf.mxu0
      %v3700 = vadd.f32 0.0, %v3699
      %v3701 = vpop.f32.mrf.mxu0
      %3702 = vdwg.mxu0
      %v3707 = vunpack.c.l.b16 %v3641
      %v3708 = vunpack.c.l.b16 %v3642
      %v3709 = vunpack.c.l.b16 %v3643
      %v3710 = vunpack.c.l.b16 %v3644
      %v3711 = vpack.c.b16 %v3708, %v3707
      %v3712 = vpack.c.b16 %v3710, %v3709
      %3715 = vmatprep.subr.bf16.mxu0 0
      %3716 = vmatpush1.bf16.msra.mxu0 0
      %3717 = vmatprep.subr.bf16.mxu0 0
      %3718 = vmatpush1.bf16.msra.mxu0 0
      %3719 = vmatprep.subr.bf16.mxu0 0
      %3720 = vmatpush1.bf16.msra.mxu0 0
      %3721 = vmatprep.subr.bf16.mxu0 0
      %3722 = vmatpush1.bf16.msra.mxu0 0
      %3723 = vmatprep.subr.bf16.mxu0 0
      %3724 = vmatpush1.bf16.msra.mxu0 0
      %3725 = vmatprep.subr.bf16.mxu0 0
      %3726 = vmatpush1.bf16.msra.mxu0 0
      %3727 = vmatprep.subr.bf16.mxu0 0
      %3728 = vmatpush1.bf16.msra.mxu0 %v3712
      %3729 = vmatprep.subr.bf16.mxu0 0
      %3730 = vmatpush1.bf16.msra.mxu0 %v3711
      %3731 = vmatprep.subr.bf16.mxu0 0
      %3732 = vmatpush2.bf16.msra.mxu0 0
      %3733 = vmatprep.subr.bf16.mxu0 0
      %3734 = vmatpush2.bf16.msra.mxu0 0
      %3735 = vmatprep.subr.bf16.mxu0 0
      %3736 = vmatpush2.bf16.msra.mxu0 0
      %3737 = vmatprep.subr.bf16.mxu0 0
      %3738 = vmatpush2.bf16.msra.mxu0 0
      %3739 = vmatprep.subr.bf16.mxu0 0
      %3740 = vmatpush2.bf16.msra.mxu0 0
      %3741 = vmatprep.subr.bf16.mxu0 0
      %3742 = vmatpush2.bf16.msra.mxu0 0
      %3743 = vmatprep.subr.bf16.mxu0 0
      %3744 = vmatpush2.bf16.msra.mxu0 0
      %3745 = vmatprep.subr.bf16.mxu0 0
      %3746 = vmatpush2.bf16.msra.mxu0 0
      %3747 = vmatprep.mubr.bf16.mxu0 0
      %3748 = vmatmul.mubr.bf16.gmra.mxu0 %v3576
      %v3749 = vpop.f32.mrf.mxu0
      %v3750 = vadd.f32 %v3697, %v3749
      %v3751 = vpop.f32.mrf.mxu0
      %v3752 = vpop.f32.mrf.mxu0
      %v3753 = vadd.f32 %v3700, %v3752
      %v3754 = vpop.f32.mrf.mxu0
      %3755 = vdwg.mxu0
      %v3756 = vadd.f32 %v3750, %v3624
      %v3757 = vadd.f32 %v3753, %v3624
      %vm3758 = vcmp.gt.f32.partialorder %v3756, 0.0
      %vm3759 = vcmp.gt.f32.partialorder %v3757, 0.0
      %v3760 = vmin.f32 %v3756, 0.0
      %v3761 = vmin.f32 %v3757, 0.0
      %v3762 = vmul.f32 %v3760, 1.442695
      %v3763 = vpow.pop %v3762
      %v3764 = vmul.f32 %v3761, 1.442695
      %v3765 = vpow.pop %v3764
      %v3766 = vsub.f32 %v3763, 1.0
      %v3767 = vsub.f32 %v3765, 1.0
      %v3768 = vsel %vm3758, %v3756, %v3766
      %v3769 = vsel %vm3759, %v3757, %v3767
      %3770 = vst.msk [vmem:[#allocation2 + $0x8] sm:$0xff] %vm1467, %v3638
      %3771 = vst.msk [vmem:[#allocation2 + $0x10] sm:$0xff] %vm1467, %v3639
      %3774 = vrot.lane.b32.xlu0 %v3768, 16
      %v3775 = vpop.permute.xlu0 %3774
      %3776 = vrot.lane.b32.xlu0 %v3769, 16
      %v3777 = vpop.permute.xlu0 %3776
      %3780 = vst.msk [vmem:[#allocation2 + $0x8] sm:$0xff] %vm1478, %v3775
      %3781 = vst.msk [vmem:[#allocation2 + $0x10] sm:$0xff] %vm1478, %v3777
      %v3782 = vld [vmem:[#allocation2 + $0x8] sm:$0xff]
      %v3783 = vld [vmem:[#allocation2 + $0x10] sm:$0xff]
      %v3784 = vpack.c.bf16 %v3783, %v3782
      %v3785 = vld [vmem:[%s7] sm:$0xf]
      %v3786 = vld [vmem:[%s7 + $0x4] sm:$0xf]
      %v3787 = vld [vmem:[#allocation2 + $0x7] sm:$0xff]
      %v3788 = vld [vmem:[#allocation2 + $0xf] sm:$0xff]
      %v3789 = vpack.c.bf16 %v3788, %v3787
      %s3790 = scalar_lea.vmem %s7, 16
      %v3791 = vld [vmem:[%s3790] sm:$0xf]
      %v3792 = vld [vmem:[%s3790 + $0x4] sm:$0xf]
      %3794 = vrot.lane.b32.xlu0 %v3789, 112
      %v3795 = vpop.permute.xlu0 %3794
      %v3798 = vunpack.c.l.b16 %v3791
      %v3799 = vunpack.c.l.b16 %v3792
      %v3800 = vpack.c.b16 %v3799, %v3798
      %v3803 = vsel %vm1467, %v3795, 0
      %3805 = vmatprep.subr.bf16.mxu0 0
      %3806 = vmatpush1.bf16.msra.mxu0 0
      %3807 = vmatprep.subr.bf16.mxu0 0
      %3808 = vmatpush1.bf16.msra.mxu0 0
      %3809 = vmatprep.subr.bf16.mxu0 0
      %3810 = vmatpush1.bf16.msra.mxu0 0
      %3811 = vmatprep.subr.bf16.mxu0 0
      %3812 = vmatpush1.bf16.msra.mxu0 0
      %3813 = vmatprep.subr.bf16.mxu0 0
      %3814 = vmatpush1.bf16.msra.mxu0 0
      %3815 = vmatprep.subr.bf16.mxu0 0
      %3816 = vmatpush1.bf16.msra.mxu0 0
      %3817 = vmatprep.subr.bf16.mxu0 0
      %3818 = vmatpush1.bf16.msra.mxu0 0
      %3819 = vmatprep.subr.bf16.mxu0 0
      %3820 = vmatpush1.bf16.msra.mxu0 %v3800
      %3821 = vmatprep.subr.bf16.mxu0 0
      %3822 = vmatpush2.bf16.msra.mxu0 0
      %3823 = vmatprep.subr.bf16.mxu0 0
      %3824 = vmatpush2.bf16.msra.mxu0 0
      %3825 = vmatprep.subr.bf16.mxu0 0
      %3826 = vmatpush2.bf16.msra.mxu0 0
      %3827 = vmatprep.subr.bf16.mxu0 0
      %3828 = vmatpush2.bf16.msra.mxu0 0
      %3829 = vmatprep.subr.bf16.mxu0 0
      %3830 = vmatpush2.bf16.msra.mxu0 0
      %3831 = vmatprep.subr.bf16.mxu0 0
      %3832 = vmatpush2.bf16.msra.mxu0 0
      %3833 = vmatprep.subr.bf16.mxu0 0
      %3834 = vmatpush2.bf16.msra.mxu0 0
      %3835 = vmatprep.subr.bf16.mxu0 0
      %3836 = vmatpush2.bf16.msra.mxu0 0
      %3837 = vmatprep.mubr.bf16.mxu0 0
      %3838 = vmatmul.mubr.bf16.gmra.mxu0 %v3803
      %v3839 = vpop.f32.mrf.mxu0
      %v3840 = vadd.f32 0.0, %v3839
      %v3841 = vpop.f32.mrf.mxu0
      %v3842 = vpop.f32.mrf.mxu0
      %v3843 = vadd.f32 0.0, %v3842
      %v3844 = vpop.f32.mrf.mxu0
      %3845 = vdwg.mxu0
      %v3848 = vunpack.c.l.b16 %v3785
      %v3849 = vunpack.c.l.b16 %v3786
      %v3850 = vpack.c.b16 %v3849, %v3848
      %v3853 = vsel %vm1467, %v3784, 0
      %3855 = vmatprep.subr.bf16.mxu0 0
      %3856 = vmatpush1.bf16.msra.mxu0 0
      %3857 = vmatprep.subr.bf16.mxu0 0
      %3858 = vmatpush1.bf16.msra.mxu0 0
      %3859 = vmatprep.subr.bf16.mxu0 0
      %3860 = vmatpush1.bf16.msra.mxu0 0
      %3861 = vmatprep.subr.bf16.mxu0 0
      %3862 = vmatpush1.bf16.msra.mxu0 0
      %3863 = vmatprep.subr.bf16.mxu0 0
      %3864 = vmatpush1.bf16.msra.mxu0 0
      %3865 = vmatprep.subr.bf16.mxu0 0
      %3866 = vmatpush1.bf16.msra.mxu0 0
      %3867 = vmatprep.subr.bf16.mxu0 0
      %3868 = vmatpush1.bf16.msra.mxu0 0
      %3869 = vmatprep.subr.bf16.mxu0 0
      %3870 = vmatpush1.bf16.msra.mxu0 %v3850
      %3871 = vmatprep.subr.bf16.mxu0 0
      %3872 = vmatpush2.bf16.msra.mxu0 0
      %3873 = vmatprep.subr.bf16.mxu0 0
      %3874 = vmatpush2.bf16.msra.mxu0 0
      %3875 = vmatprep.subr.bf16.mxu0 0
      %3876 = vmatpush2.bf16.msra.mxu0 0
      %3877 = vmatprep.subr.bf16.mxu0 0
      %3878 = vmatpush2.bf16.msra.mxu0 0
      %3879 = vmatprep.subr.bf16.mxu0 0
      %3880 = vmatpush2.bf16.msra.mxu0 0
      %3881 = vmatprep.subr.bf16.mxu0 0
      %3882 = vmatpush2.bf16.msra.mxu0 0
      %3883 = vmatprep.subr.bf16.mxu0 0
      %3884 = vmatpush2.bf16.msra.mxu0 0
      %3885 = vmatprep.subr.bf16.mxu0 0
      %3886 = vmatpush2.bf16.msra.mxu0 0
      %3887 = vmatprep.mubr.bf16.mxu0 0
      %3888 = vmatmul.mubr.bf16.gmra.mxu0 %v3853
      %v3889 = vpop.f32.mrf.mxu0
      %v3890 = vadd.f32 %v3840, %v3889
      %v3891 = vpop.f32.mrf.mxu0
      %v3892 = vpop.f32.mrf.mxu0
      %v3893 = vadd.f32 %v3843, %v3892
      %v3894 = vpop.f32.mrf.mxu0
      %3895 = vdwg.mxu0
      %v3896 = vld [vmem:[%s15] sm:$0x1]
      %v3898 = vlaneseq
      %v3899 = vshrl.u32 %v3898, 7
      %v3900 = vsub.s32 0, %v3899
      %v3901 = vrot.slane %v3896, %v3900
      %v3903 = vadd.f32 %v3890, %v3901
      %v3904 = vadd.f32 %v3893, %v3901
      %vm3905 = vcmp.gt.f32.partialorder %v3903, 0.0
      %vm3906 = vcmp.gt.f32.partialorder %v3904, 0.0
      %v3907 = vmin.f32 %v3903, 0.0
      %v3908 = vmin.f32 %v3904, 0.0
      %v3909 = vmul.f32 %v3907, 1.442695
      %v3910 = vpow.pop %v3909
      %v3911 = vmul.f32 %v3908, 1.442695
      %v3912 = vpow.pop %v3911
      %v3913 = vsub.f32 %v3910, 1.0
      %v3914 = vsub.f32 %v3912, 1.0
      %v3915 = vsel %vm3905, %v3903, %v3913
      %v3916 = vsel %vm3906, %v3904, %v3914
      %s3917 = scalar_lea.vmem %s7, 8
      %v3918 = vld [vmem:[%s3917] sm:$0xf]
      %v3919 = vld [vmem:[%s3917 + $0x4] sm:$0xf]
      %s3920 = scalar_lea.vmem %s7, 24
      %v3921 = vld [vmem:[%s3920] sm:$0xf]
      %v3922 = vld [vmem:[%s3920 + $0x4] sm:$0xf]
      %v3925 = vunpack.c.l.b16 %v3921
      %v3926 = vunpack.c.l.b16 %v3922
      %v3927 = vpack.c.b16 %v3926, %v3925
      %3929 = vmatprep.subr.bf16.mxu0 0
      %3930 = vmatpush1.bf16.msra.mxu0 0
      %3931 = vmatprep.subr.bf16.mxu0 0
      %3932 = vmatpush1.bf16.msra.mxu0 0
      %3933 = vmatprep.subr.bf16.mxu0 0
      %3934 = vmatpush1.bf16.msra.mxu0 0
      %3935 = vmatprep.subr.bf16.mxu0 0
      %3936 = vmatpush1.bf16.msra.mxu0 0
      %3937 = vmatprep.subr.bf16.mxu0 0
      %3938 = vmatpush1.bf16.msra.mxu0 0
      %3939 = vmatprep.subr.bf16.mxu0 0
      %3940 = vmatpush1.bf16.msra.mxu0 0
      %3941 = vmatprep.subr.bf16.mxu0 0
      %3942 = vmatpush1.bf16.msra.mxu0 0
      %3943 = vmatprep.subr.bf16.mxu0 0
      %3944 = vmatpush1.bf16.msra.mxu0 %v3927
      %3945 = vmatprep.subr.bf16.mxu0 0
      %3946 = vmatpush2.bf16.msra.mxu0 0
      %3947 = vmatprep.subr.bf16.mxu0 0
      %3948 = vmatpush2.bf16.msra.mxu0 0
      %3949 = vmatprep.subr.bf16.mxu0 0
      %3950 = vmatpush2.bf16.msra.mxu0 0
      %3951 = vmatprep.subr.bf16.mxu0 0
      %3952 = vmatpush2.bf16.msra.mxu0 0
      %3953 = vmatprep.subr.bf16.mxu0 0
      %3954 = vmatpush2.bf16.msra.mxu0 0
      %3955 = vmatprep.subr.bf16.mxu0 0
      %3956 = vmatpush2.bf16.msra.mxu0 0
      %3957 = vmatprep.subr.bf16.mxu0 0
      %3958 = vmatpush2.bf16.msra.mxu0 0
      %3959 = vmatprep.subr.bf16.mxu0 0
      %3960 = vmatpush2.bf16.msra.mxu0 0
      %3961 = vmatprep.mubr.bf16.mxu0 0
      %3962 = vmatmul.mubr.bf16.gmra.mxu0 %v3803
      %v3963 = vpop.f32.mrf.mxu0
      %v3964 = vadd.f32 0.0, %v3963
      %v3965 = vpop.f32.mrf.mxu0
      %v3966 = vpop.f32.mrf.mxu0
      %v3967 = vadd.f32 0.0, %v3966
      %v3968 = vpop.f32.mrf.mxu0
      %3969 = vdwg.mxu0
      %v3972 = vunpack.c.l.b16 %v3918
      %v3973 = vunpack.c.l.b16 %v3919
      %v3974 = vpack.c.b16 %v3973, %v3972
      %3976 = vmatprep.subr.bf16.mxu0 0
      %3977 = vmatpush1.bf16.msra.mxu0 0
      %3978 = vmatprep.subr.bf16.mxu0 0
      %3979 = vmatpush1.bf16.msra.mxu0 0
      %3980 = vmatprep.subr.bf16.mxu0 0
      %3981 = vmatpush1.bf16.msra.mxu0 0
      %3982 = vmatprep.subr.bf16.mxu0 0
      %3983 = vmatpush1.bf16.msra.mxu0 0
      %3984 = vmatprep.subr.bf16.mxu0 0
      %3985 = vmatpush1.bf16.msra.mxu0 0
      %3986 = vmatprep.subr.bf16.mxu0 0
      %3987 = vmatpush1.bf16.msra.mxu0 0
      %3988 = vmatprep.subr.bf16.mxu0 0
      %3989 = vmatpush1.bf16.msra.mxu0 0
      %3990 = vmatprep.subr.bf16.mxu0 0
      %3991 = vmatpush1.bf16.msra.mxu0 %v3974
      %3992 = vmatprep.subr.bf16.mxu0 0
      %3993 = vmatpush2.bf16.msra.mxu0 0
      %3994 = vmatprep.subr.bf16.mxu0 0
      %3995 = vmatpush2.bf16.msra.mxu0 0
      %3996 = vmatprep.subr.bf16.mxu0 0
      %3997 = vmatpush2.bf16.msra.mxu0 0
      %3998 = vmatprep.subr.bf16.mxu0 0
      %3999 = vmatpush2.bf16.msra.mxu0 0
      %4000 = vmatprep.subr.bf16.mxu0 0
      %4001 = vmatpush2.bf16.msra.mxu0 0
      %4002 = vmatprep.subr.bf16.mxu0 0
      %4003 = vmatpush2.bf16.msra.mxu0 0
      %4004 = vmatprep.subr.bf16.mxu0 0
      %4005 = vmatpush2.bf16.msra.mxu0 0
      %4006 = vmatprep.subr.bf16.mxu0 0
      %4007 = vmatpush2.bf16.msra.mxu0 0
      %4008 = vmatprep.mubr.bf16.mxu0 0
      %4009 = vmatmul.mubr.bf16.gmra.mxu0 %v3853
      %v4010 = vpop.f32.mrf.mxu0
      %v4011 = vadd.f32 %v3964, %v4010
      %v4012 = vpop.f32.mrf.mxu0
      %v4013 = vpop.f32.mrf.mxu0
      %v4014 = vadd.f32 %v3967, %v4013
      %v4015 = vpop.f32.mrf.mxu0
      %4016 = vdwg.mxu0
      %v4017 = vadd.f32 %v4011, %v3901
      %v4018 = vadd.f32 %v4014, %v3901
      %vm4019 = vcmp.gt.f32.partialorder %v4017, 0.0
      %vm4020 = vcmp.gt.f32.partialorder %v4018, 0.0
      %v4021 = vmin.f32 %v4017, 0.0
      %v4022 = vmin.f32 %v4018, 0.0
      %v4023 = vmul.f32 %v4021, 1.442695
      %v4024 = vpow.pop %v4023
      %v4025 = vmul.f32 %v4022, 1.442695
      %v4026 = vpow.pop %v4025
      %v4027 = vsub.f32 %v4024, 1.0
      %v4028 = vsub.f32 %v4026, 1.0
      %v4029 = vsel %vm4019, %v4017, %v4027
      %v4030 = vsel %vm4020, %v4018, %v4028
      %4031 = vmatprep.subr.bf16.mxu0 0
      %4032 = vmatpush1.bf16.msra.mxu0 0
      %4033 = vmatprep.subr.bf16.mxu0 0
      %4034 = vmatpush1.bf16.msra.mxu0 0
      %4035 = vmatprep.subr.bf16.mxu0 0
      %4036 = vmatpush1.bf16.msra.mxu0 0
      %4037 = vmatprep.subr.bf16.mxu0 0
      %4038 = vmatpush1.bf16.msra.mxu0 0
      %4039 = vmatprep.subr.bf16.mxu0 0
      %4040 = vmatpush1.bf16.msra.mxu0 0
      %4041 = vmatprep.subr.bf16.mxu0 0
      %4042 = vmatpush1.bf16.msra.mxu0 0
      %4043 = vmatprep.subr.bf16.mxu0 0
      %4044 = vmatpush1.bf16.msra.mxu0 0
      %4045 = vmatprep.subr.bf16.mxu0 0
      %4046 = vmatpush1.bf16.msra.mxu0 %v3800
      %4047 = vmatprep.subr.bf16.mxu0 0
      %4048 = vmatpush2.bf16.msra.mxu0 0
      %4049 = vmatprep.subr.bf16.mxu0 0
      %4050 = vmatpush2.bf16.msra.mxu0 0
      %4051 = vmatprep.subr.bf16.mxu0 0
      %4052 = vmatpush2.bf16.msra.mxu0 0
      %4053 = vmatprep.subr.bf16.mxu0 0
      %4054 = vmatpush2.bf16.msra.mxu0 0
      %4055 = vmatprep.subr.bf16.mxu0 0
      %4056 = vmatpush2.bf16.msra.mxu0 0
      %4057 = vmatprep.subr.bf16.mxu0 0
      %4058 = vmatpush2.bf16.msra.mxu0 0
      %4059 = vmatprep.subr.bf16.mxu0 0
      %4060 = vmatpush2.bf16.msra.mxu0 0
      %4061 = vmatprep.subr.bf16.mxu0 0
      %4062 = vmatpush2.bf16.msra.mxu0 0
      %4063 = vmatprep.mubr.bf16.mxu0 0
      %4064 = vmatmul.mubr.bf16.gmra.mxu0 %v3853
      %v4065 = vpop.f32.mrf.mxu0
      %v4066 = vadd.f32 0.0, %v4065
      %v4067 = vpop.f32.mrf.mxu0
      %v4068 = vpop.f32.mrf.mxu0
      %v4069 = vadd.f32 0.0, %v4068
      %v4070 = vpop.f32.mrf.mxu0
      %4071 = vdwg.mxu0
      %4073 = vrot.lane.b32.xlu0 %v3784, 112
      %v4074 = vpop.permute.xlu0 %4073
      %v4076 = vsel %vm1467, %v4074, 0
      %4078 = vmatprep.subr.bf16.mxu0 0
      %4079 = vmatpush1.bf16.msra.mxu0 0
      %4080 = vmatprep.subr.bf16.mxu0 0
      %4081 = vmatpush1.bf16.msra.mxu0 0
      %4082 = vmatprep.subr.bf16.mxu0 0
      %4083 = vmatpush1.bf16.msra.mxu0 0
      %4084 = vmatprep.subr.bf16.mxu0 0
      %4085 = vmatpush1.bf16.msra.mxu0 0
      %4086 = vmatprep.subr.bf16.mxu0 0
      %4087 = vmatpush1.bf16.msra.mxu0 0
      %4088 = vmatprep.subr.bf16.mxu0 0
      %4089 = vmatpush1.bf16.msra.mxu0 0
      %4090 = vmatprep.subr.bf16.mxu0 0
      %4091 = vmatpush1.bf16.msra.mxu0 0
      %4092 = vmatprep.subr.bf16.mxu0 0
      %4093 = vmatpush1.bf16.msra.mxu0 %v3850
      %4094 = vmatprep.subr.bf16.mxu0 0
      %4095 = vmatpush2.bf16.msra.mxu0 0
      %4096 = vmatprep.subr.bf16.mxu0 0
      %4097 = vmatpush2.bf16.msra.mxu0 0
      %4098 = vmatprep.subr.bf16.mxu0 0
      %4099 = vmatpush2.bf16.msra.mxu0 0
      %4100 = vmatprep.subr.bf16.mxu0 0
      %4101 = vmatpush2.bf16.msra.mxu0 0
      %4102 = vmatprep.subr.bf16.mxu0 0
      %4103 = vmatpush2.bf16.msra.mxu0 0
      %4104 = vmatprep.subr.bf16.mxu0 0
      %4105 = vmatpush2.bf16.msra.mxu0 0
      %4106 = vmatprep.subr.bf16.mxu0 0
      %4107 = vmatpush2.bf16.msra.mxu0 0
      %4108 = vmatprep.subr.bf16.mxu0 0
      %4109 = vmatpush2.bf16.msra.mxu0 0
      %4110 = vmatprep.mubr.bf16.mxu0 0
      %4111 = vmatmul.mubr.bf16.gmra.mxu0 %v4076
      %v4112 = vpop.f32.mrf.mxu0
      %v4113 = vadd.f32 %v4066, %v4112
      %v4114 = vpop.f32.mrf.mxu0
      %v4115 = vpop.f32.mrf.mxu0
      %v4116 = vadd.f32 %v4069, %v4115
      %v4117 = vpop.f32.mrf.mxu0
      %4118 = vdwg.mxu0
      %v4119 = vadd.f32 %v4113, %v3901
      %v4120 = vadd.f32 %v4116, %v3901
      %vm4121 = vcmp.gt.f32.partialorder %v4119, 0.0
      %vm4122 = vcmp.gt.f32.partialorder %v4120, 0.0
      %v4123 = vmin.f32 %v4119, 0.0
      %v4124 = vmin.f32 %v4120, 0.0
      %v4125 = vmul.f32 %v4123, 1.442695
      %v4126 = vpow.pop %v4125
      %v4127 = vmul.f32 %v4124, 1.442695
      %v4128 = vpow.pop %v4127
      %v4129 = vsub.f32 %v4126, 1.0
      %v4130 = vsub.f32 %v4128, 1.0
      %v4131 = vsel %vm4121, %v4119, %v4129
      %v4132 = vsel %vm4122, %v4120, %v4130
      %4133 = vmatprep.subr.bf16.mxu0 0
      %4134 = vmatpush1.bf16.msra.mxu0 0
      %4135 = vmatprep.subr.bf16.mxu0 0
      %4136 = vmatpush1.bf16.msra.mxu0 0
      %4137 = vmatprep.subr.bf16.mxu0 0
      %4138 = vmatpush1.bf16.msra.mxu0 0
      %4139 = vmatprep.subr.bf16.mxu0 0
      %4140 = vmatpush1.bf16.msra.mxu0 0
      %4141 = vmatprep.subr.bf16.mxu0 0
      %4142 = vmatpush1.bf16.msra.mxu0 0
      %4143 = vmatprep.subr.bf16.mxu0 0
      %4144 = vmatpush1.bf16.msra.mxu0 0
      %4145 = vmatprep.subr.bf16.mxu0 0
      %4146 = vmatpush1.bf16.msra.mxu0 0
      %4147 = vmatprep.subr.bf16.mxu0 0
      %4148 = vmatpush1.bf16.msra.mxu0 %v3927
      %4149 = vmatprep.subr.bf16.mxu0 0
      %4150 = vmatpush2.bf16.msra.mxu0 0
      %4151 = vmatprep.subr.bf16.mxu0 0
      %4152 = vmatpush2.bf16.msra.mxu0 0
      %4153 = vmatprep.subr.bf16.mxu0 0
      %4154 = vmatpush2.bf16.msra.mxu0 0
      %4155 = vmatprep.subr.bf16.mxu0 0
      %4156 = vmatpush2.bf16.msra.mxu0 0
      %4157 = vmatprep.subr.bf16.mxu0 0
      %4158 = vmatpush2.bf16.msra.mxu0 0
      %4159 = vmatprep.subr.bf16.mxu0 0
      %4160 = vmatpush2.bf16.msra.mxu0 0
      %4161 = vmatprep.subr.bf16.mxu0 0
      %4162 = vmatpush2.bf16.msra.mxu0 0
      %4163 = vmatprep.subr.bf16.mxu0 0
      %4164 = vmatpush2.bf16.msra.mxu0 0
      %4165 = vmatprep.mubr.bf16.mxu0 0
      %4166 = vmatmul.mubr.bf16.gmra.mxu0 %v3853
      %v4167 = vpop.f32.mrf.mxu0
      %v4168 = vadd.f32 0.0, %v4167
      %v4169 = vpop.f32.mrf.mxu0
      %v4170 = vpop.f32.mrf.mxu0
      %v4171 = vadd.f32 0.0, %v4170
      %v4172 = vpop.f32.mrf.mxu0
      %4173 = vdwg.mxu0
      %4174 = vmatprep.subr.bf16.mxu0 0
      %4175 = vmatpush1.bf16.msra.mxu0 0
      %4176 = vmatprep.subr.bf16.mxu0 0
      %4177 = vmatpush1.bf16.msra.mxu0 0
      %4178 = vmatprep.subr.bf16.mxu0 0
      %4179 = vmatpush1.bf16.msra.mxu0 0
      %4180 = vmatprep.subr.bf16.mxu0 0
      %4181 = vmatpush1.bf16.msra.mxu0 0
      %4182 = vmatprep.subr.bf16.mxu0 0
      %4183 = vmatpush1.bf16.msra.mxu0 0
      %4184 = vmatprep.subr.bf16.mxu0 0
      %4185 = vmatpush1.bf16.msra.mxu0 0
      %4186 = vmatprep.subr.bf16.mxu0 0
      %4187 = vmatpush1.bf16.msra.mxu0 0
      %4188 = vmatprep.subr.bf16.mxu0 0
      %4189 = vmatpush1.bf16.msra.mxu0 %v3974
      %4190 = vmatprep.subr.bf16.mxu0 0
      %4191 = vmatpush2.bf16.msra.mxu0 0
      %4192 = vmatprep.subr.bf16.mxu0 0
      %4193 = vmatpush2.bf16.msra.mxu0 0
      %4194 = vmatprep.subr.bf16.mxu0 0
      %4195 = vmatpush2.bf16.msra.mxu0 0
      %4196 = vmatprep.subr.bf16.mxu0 0
      %4197 = vmatpush2.bf16.msra.mxu0 0
      %4198 = vmatprep.subr.bf16.mxu0 0
      %4199 = vmatpush2.bf16.msra.mxu0 0
      %4200 = vmatprep.subr.bf16.mxu0 0
      %4201 = vmatpush2.bf16.msra.mxu0 0
      %4202 = vmatprep.subr.bf16.mxu0 0
      %4203 = vmatpush2.bf16.msra.mxu0 0
      %4204 = vmatprep.subr.bf16.mxu0 0
      %4205 = vmatpush2.bf16.msra.mxu0 0
      %4206 = vmatprep.mubr.bf16.mxu0 0
      %4207 = vmatmul.mubr.bf16.gmra.mxu0 %v4076
      %v4208 = vpop.f32.mrf.mxu0
      %v4209 = vadd.f32 %v4168, %v4208
      %v4210 = vpop.f32.mrf.mxu0
      %v4211 = vpop.f32.mrf.mxu0
      %v4212 = vadd.f32 %v4171, %v4211
      %v4213 = vpop.f32.mrf.mxu0
      %4214 = vdwg.mxu0
      %v4215 = vadd.f32 %v4209, %v3901
      %v4216 = vadd.f32 %v4212, %v3901
      %vm4217 = vcmp.gt.f32.partialorder %v4215, 0.0
      %vm4218 = vcmp.gt.f32.partialorder %v4216, 0.0
      %v4219 = vmin.f32 %v4215, 0.0
      %v4220 = vmin.f32 %v4216, 0.0
      %v4221 = vmul.f32 %v4219, 1.442695
      %v4222 = vpow.pop %v4221
      %v4223 = vmul.f32 %v4220, 1.442695
      %v4224 = vpow.pop %v4223
      %v4225 = vsub.f32 %v4222, 1.0
      %v4226 = vsub.f32 %v4224, 1.0
      %v4227 = vsel %vm4217, %v4215, %v4225
      %v4228 = vsel %vm4218, %v4216, %v4226
      %4229 = vst.msk [vmem:[#allocation2 + $0x8] sm:$0xff] %vm1004, %v3915
      %4230 = vst.msk [vmem:[#allocation2 + $0x10] sm:$0xff] %vm1004, %v3916
      %4233 = vrot.lane.b32.xlu0 %v4029, 8
      %v4234 = vpop.permute.xlu0 %4233
      %4235 = vrot.lane.b32.xlu0 %v4030, 8
      %v4236 = vpop.permute.xlu0 %4235
      %4239 = vst.msk [vmem:[#allocation2 + $0x8] sm:$0xff] %vm1015, %v4234
      %4240 = vst.msk [vmem:[#allocation2 + $0x10] sm:$0xff] %vm1015, %v4236
      %4243 = vrot.lane.b32.xlu0 %v4131, 16
      %v4244 = vpop.permute.xlu0 %4243
      %4245 = vrot.lane.b32.xlu0 %v4132, 16
      %v4246 = vpop.permute.xlu0 %4245
      %4249 = vst.msk [vmem:[#allocation2 + $0x8] sm:$0xff] %vm1026, %v4244
      %4250 = vst.msk [vmem:[#allocation2 + $0x10] sm:$0xff] %vm1026, %v4246
      %4253 = vrot.lane.b32.xlu0 %v4227, 24
      %v4254 = vpop.permute.xlu0 %4253
      %4255 = vrot.lane.b32.xlu0 %v4228, 24
      %v4256 = vpop.permute.xlu0 %4255
      %4259 = vst.msk [vmem:[#allocation2 + $0x8] sm:$0xff] %vm1037, %v4254
      %4260 = vst.msk [vmem:[#allocation2 + $0x10] sm:$0xff] %vm1037, %v4256
      %v4261 = vld [vmem:[#allocation2 + $0x6] sm:$0xff]
      %v4262 = vld [vmem:[#allocation2 + $0xe] sm:$0xff]
      %v4263 = vpack.c.bf16 %v4262, %v4261
      %v4264 = vld [vmem:[%s8] sm:$0xf]
      %s4265 = scalar_lea.vmem %s8, 4
      %v4266 = vld [vmem:[%s4265] sm:$0xf]
      %4268 = vrot.lane.b32.xlu0 %v4263, 104
      %v4269 = vpop.permute.xlu0 %4268
      %v4271 = vsel %vm1004, %v4269, 0
      %v4274 = vsel %vm1052, %v4266, 0
      %4276 = vmatprep.subr.bf16.mxu0 0
      %4277 = vmatpush1.bf16.msra.mxu0 0
      %4278 = vmatprep.subr.bf16.mxu0 0
      %4279 = vmatpush1.bf16.msra.mxu0 0
      %4280 = vmatprep.subr.bf16.mxu0 0
      %4281 = vmatpush1.bf16.msra.mxu0 0
      %4282 = vmatprep.subr.bf16.mxu0 0
      %4283 = vmatpush1.bf16.msra.mxu0 0
      %4284 = vmatprep.subr.bf16.mxu0 0
      %4285 = vmatpush1.bf16.msra.mxu0 0
      %4286 = vmatprep.subr.bf16.mxu0 0
      %4287 = vmatpush1.bf16.msra.mxu0 0
      %4288 = vmatprep.subr.bf16.mxu0 0
      %4289 = vmatpush1.bf16.msra.mxu0 0
      %4290 = vmatprep.subr.bf16.mxu0 0
      %4291 = vmatpush1.bf16.msra.mxu0 %v4274
      %4292 = vmatprep.subr.bf16.mxu0 0
      %4293 = vmatpush2.bf16.msra.mxu0 0
      %4294 = vmatprep.subr.bf16.mxu0 0
      %4295 = vmatpush2.bf16.msra.mxu0 0
      %4296 = vmatprep.subr.bf16.mxu0 0
      %4297 = vmatpush2.bf16.msra.mxu0 0
      %4298 = vmatprep.subr.bf16.mxu0 0
      %4299 = vmatpush2.bf16.msra.mxu0 0
      %4300 = vmatprep.subr.bf16.mxu0 0
      %4301 = vmatpush2.bf16.msra.mxu0 0
      %4302 = vmatprep.subr.bf16.mxu0 0
      %4303 = vmatpush2.bf16.msra.mxu0 0
      %4304 = vmatprep.subr.bf16.mxu0 0
      %4305 = vmatpush2.bf16.msra.mxu0 0
      %4306 = vmatprep.subr.bf16.mxu0 0
      %4307 = vmatpush2.bf16.msra.mxu0 0
      %4308 = vmatprep.mubr.bf16.mxu0 0
      %4309 = vmatmul.mubr.bf16.gmra.mxu0 %v4271
      %v4310 = vpop.f32.mrf.mxu0
      %v4311 = vadd.f32 0.0, %v4310
      %v4312 = vpop.f32.mrf.mxu0
      %v4313 = vpop.f32.mrf.mxu0
      %v4314 = vadd.f32 0.0, %v4313
      %v4315 = vpop.f32.mrf.mxu0
      %4316 = vdwg.mxu0
      %4317 = vrot.lane.b32.xlu0 %v4263, 112
      %v4318 = vpop.permute.xlu0 %4317
      %v4320 = vsel %vm1004, %v4318, 0
      %v4323 = vsel %vm1052, %v4264, 0
      %4325 = vmatprep.subr.bf16.mxu0 0
      %4326 = vmatpush1.bf16.msra.mxu0 0
      %4327 = vmatprep.subr.bf16.mxu0 0
      %4328 = vmatpush1.bf16.msra.mxu0 0
      %4329 = vmatprep.subr.bf16.mxu0 0
      %4330 = vmatpush1.bf16.msra.mxu0 0
      %4331 = vmatprep.subr.bf16.mxu0 0
      %4332 = vmatpush1.bf16.msra.mxu0 0
      %4333 = vmatprep.subr.bf16.mxu0 0
      %4334 = vmatpush1.bf16.msra.mxu0 0
      %4335 = vmatprep.subr.bf16.mxu0 0
      %4336 = vmatpush1.bf16.msra.mxu0 0
      %4337 = vmatprep.subr.bf16.mxu0 0
      %4338 = vmatpush1.bf16.msra.mxu0 0
      %4339 = vmatprep.subr.bf16.mxu0 0
      %4340 = vmatpush1.bf16.msra.mxu0 %v4323
      %4341 = vmatprep.subr.bf16.mxu0 0
      %4342 = vmatpush2.bf16.msra.mxu0 0
      %4343 = vmatprep.subr.bf16.mxu0 0
      %4344 = vmatpush2.bf16.msra.mxu0 0
      %4345 = vmatprep.subr.bf16.mxu0 0
      %4346 = vmatpush2.bf16.msra.mxu0 0
      %4347 = vmatprep.subr.bf16.mxu0 0
      %4348 = vmatpush2.bf16.msra.mxu0 0
      %4349 = vmatprep.subr.bf16.mxu0 0
      %4350 = vmatpush2.bf16.msra.mxu0 0
      %4351 = vmatprep.subr.bf16.mxu0 0
      %4352 = vmatpush2.bf16.msra.mxu0 0
      %4353 = vmatprep.subr.bf16.mxu0 0
      %4354 = vmatpush2.bf16.msra.mxu0 0
      %4355 = vmatprep.subr.bf16.mxu0 0
      %4356 = vmatpush2.bf16.msra.mxu0 0
      %4357 = vmatprep.mubr.bf16.mxu0 0
      %4358 = vmatmul.mubr.bf16.gmra.mxu0 %v4320
      %v4359 = vpop.f32.mrf.mxu0
      %v4360 = vadd.f32 %v4311, %v4359
      %v4361 = vpop.f32.mrf.mxu0
      %v4362 = vpop.f32.mrf.mxu0
      %v4363 = vadd.f32 %v4314, %v4362
      %v4364 = vpop.f32.mrf.mxu0
      %4365 = vdwg.mxu0
      %v4366 = vld [vmem:[#allocation2 + $0x7] sm:$0xff]
      %v4367 = vld [vmem:[#allocation2 + $0xf] sm:$0xff]
      %v4368 = vpack.c.bf16 %v4367, %v4366
      %s4369 = scalar_lea.vmem %s8, 8
      %v4370 = vld [vmem:[%s4369] sm:$0xf]
      %v4372 = vsel %vm1004, %v4368, 0
      %v4375 = vsel %vm1052, %v4370, 0
      %4377 = vmatprep.subr.bf16.mxu0 0
      %4378 = vmatpush1.bf16.msra.mxu0 0
      %4379 = vmatprep.subr.bf16.mxu0 0
      %4380 = vmatpush1.bf16.msra.mxu0 0
      %4381 = vmatprep.subr.bf16.mxu0 0
      %4382 = vmatpush1.bf16.msra.mxu0 0
      %4383 = vmatprep.subr.bf16.mxu0 0
      %4384 = vmatpush1.bf16.msra.mxu0 0
      %4385 = vmatprep.subr.bf16.mxu0 0
      %4386 = vmatpush1.bf16.msra.mxu0 0
      %4387 = vmatprep.subr.bf16.mxu0 0
      %4388 = vmatpush1.bf16.msra.mxu0 0
      %4389 = vmatprep.subr.bf16.mxu0 0
      %4390 = vmatpush1.bf16.msra.mxu0 0
      %4391 = vmatprep.subr.bf16.mxu0 0
      %4392 = vmatpush1.bf16.msra.mxu0 %v4375
      %4393 = vmatprep.subr.bf16.mxu0 0
      %4394 = vmatpush2.bf16.msra.mxu0 0
      %4395 = vmatprep.subr.bf16.mxu0 0
      %4396 = vmatpush2.bf16.msra.mxu0 0
      %4397 = vmatprep.subr.bf16.mxu0 0
      %4398 = vmatpush2.bf16.msra.mxu0 0
      %4399 = vmatprep.subr.bf16.mxu0 0
      %4400 = vmatpush2.bf16.msra.mxu0 0
      %4401 = vmatprep.subr.bf16.mxu0 0
      %4402 = vmatpush2.bf16.msra.mxu0 0
      %4403 = vmatprep.subr.bf16.mxu0 0
      %4404 = vmatpush2.bf16.msra.mxu0 0
      %4405 = vmatprep.subr.bf16.mxu0 0
      %4406 = vmatpush2.bf16.msra.mxu0 0
      %4407 = vmatprep.subr.bf16.mxu0 0
      %4408 = vmatpush2.bf16.msra.mxu0 0
      %4409 = vmatprep.mubr.bf16.mxu0 0
      %4410 = vmatmul.mubr.bf16.gmra.mxu0 %v4372
      %v4411 = vpop.f32.mrf.mxu0
      %v4412 = vadd.f32 0.0, %v4411
      %v4413 = vpop.f32.mrf.mxu0
      %v4414 = vpop.f32.mrf.mxu0
      %v4415 = vadd.f32 0.0, %v4414
      %v4416 = vpop.f32.mrf.mxu0
      %4417 = vdwg.mxu0
      %v4418 = vadd.f32 %v4360, %v4412
      %v4419 = vadd.f32 %v4363, %v4415
      %s4420 = scalar_lea.vmem %s8, 12
      %v4421 = vld [vmem:[%s4420] sm:$0xf]
      %4423 = vrot.lane.b32.xlu0 %v4368, 120
      %v4424 = vpop.permute.xlu0 %4423
      %v4426 = vsel %vm1004, %v4424, 0
      %v4429 = vsel %vm1052, %v4421, 0
      %4431 = vmatprep.subr.bf16.mxu0 0
      %4432 = vmatpush1.bf16.msra.mxu0 0
      %4433 = vmatprep.subr.bf16.mxu0 0
      %4434 = vmatpush1.bf16.msra.mxu0 0
      %4435 = vmatprep.subr.bf16.mxu0 0
      %4436 = vmatpush1.bf16.msra.mxu0 0
      %4437 = vmatprep.subr.bf16.mxu0 0
      %4438 = vmatpush1.bf16.msra.mxu0 0
      %4439 = vmatprep.subr.bf16.mxu0 0
      %4440 = vmatpush1.bf16.msra.mxu0 0
      %4441 = vmatprep.subr.bf16.mxu0 0
      %4442 = vmatpush1.bf16.msra.mxu0 0
      %4443 = vmatprep.subr.bf16.mxu0 0
      %4444 = vmatpush1.bf16.msra.mxu0 0
      %4445 = vmatprep.subr.bf16.mxu0 0
      %4446 = vmatpush1.bf16.msra.mxu0 %v4429
      %4447 = vmatprep.subr.bf16.mxu0 0
      %4448 = vmatpush2.bf16.msra.mxu0 0
      %4449 = vmatprep.subr.bf16.mxu0 0
      %4450 = vmatpush2.bf16.msra.mxu0 0
      %4451 = vmatprep.subr.bf16.mxu0 0
      %4452 = vmatpush2.bf16.msra.mxu0 0
      %4453 = vmatprep.subr.bf16.mxu0 0
      %4454 = vmatpush2.bf16.msra.mxu0 0
      %4455 = vmatprep.subr.bf16.mxu0 0
      %4456 = vmatpush2.bf16.msra.mxu0 0
      %4457 = vmatprep.subr.bf16.mxu0 0
      %4458 = vmatpush2.bf16.msra.mxu0 0
      %4459 = vmatprep.subr.bf16.mxu0 0
      %4460 = vmatpush2.bf16.msra.mxu0 0
      %4461 = vmatprep.subr.bf16.mxu0 0
      %4462 = vmatpush2.bf16.msra.mxu0 0
      %4463 = vmatprep.mubr.bf16.mxu0 0
      %4464 = vmatmul.mubr.bf16.gmra.mxu0 %v4426
      %v4465 = vpop.f32.mrf.mxu0
      %v4466 = vadd.f32 0.0, %v4465
      %v4467 = vpop.f32.mrf.mxu0
      %v4468 = vpop.f32.mrf.mxu0
      %v4469 = vadd.f32 0.0, %v4468
      %v4470 = vpop.f32.mrf.mxu0
      %4471 = vdwg.mxu0
      %v4472 = vadd.f32 %v4418, %v4466
      %v4473 = vadd.f32 %v4419, %v4469
      %s4474 = scalar_lea.vmem %s8, 16
      %v4475 = vld [vmem:[%s4474] sm:$0xf]
      %4476 = vrot.lane.b32.xlu0 %v4368, 112
      %v4477 = vpop.permute.xlu0 %4476
      %v4479 = vsel %vm1004, %v4477, 0
      %v4482 = vsel %vm1052, %v4475, 0
      %4484 = vmatprep.subr.bf16.mxu0 0
      %4485 = vmatpush1.bf16.msra.mxu0 0
      %4486 = vmatprep.subr.bf16.mxu0 0
      %4487 = vmatpush1.bf16.msra.mxu0 0
      %4488 = vmatprep.subr.bf16.mxu0 0
      %4489 = vmatpush1.bf16.msra.mxu0 0
      %4490 = vmatprep.subr.bf16.mxu0 0
      %4491 = vmatpush1.bf16.msra.mxu0 0
      %4492 = vmatprep.subr.bf16.mxu0 0
      %4493 = vmatpush1.bf16.msra.mxu0 0
      %4494 = vmatprep.subr.bf16.mxu0 0
      %4495 = vmatpush1.bf16.msra.mxu0 0
      %4496 = vmatprep.subr.bf16.mxu0 0
      %4497 = vmatpush1.bf16.msra.mxu0 0
      %4498 = vmatprep.subr.bf16.mxu0 0
      %4499 = vmatpush1.bf16.msra.mxu0 %v4482
      %4500 = vmatprep.subr.bf16.mxu0 0
      %4501 = vmatpush2.bf16.msra.mxu0 0
      %4502 = vmatprep.subr.bf16.mxu0 0
      %4503 = vmatpush2.bf16.msra.mxu0 0
      %4504 = vmatprep.subr.bf16.mxu0 0
      %4505 = vmatpush2.bf16.msra.mxu0 0
      %4506 = vmatprep.subr.bf16.mxu0 0
      %4507 = vmatpush2.bf16.msra.mxu0 0
      %4508 = vmatprep.subr.bf16.mxu0 0
      %4509 = vmatpush2.bf16.msra.mxu0 0
      %4510 = vmatprep.subr.bf16.mxu0 0
      %4511 = vmatpush2.bf16.msra.mxu0 0
      %4512 = vmatprep.subr.bf16.mxu0 0
      %4513 = vmatpush2.bf16.msra.mxu0 0
      %4514 = vmatprep.subr.bf16.mxu0 0
      %4515 = vmatpush2.bf16.msra.mxu0 0
      %4516 = vmatprep.mubr.bf16.mxu0 0
      %4517 = vmatmul.mubr.bf16.gmra.mxu0 %v4479
      %v4518 = vpop.f32.mrf.mxu0
      %v4519 = vadd.f32 0.0, %v4518
      %v4520 = vpop.f32.mrf.mxu0
      %v4521 = vpop.f32.mrf.mxu0
      %v4522 = vadd.f32 0.0, %v4521
      %v4523 = vpop.f32.mrf.mxu0
      %4524 = vdwg.mxu0
      %v4525 = vadd.f32 %v4472, %v4519
      %v4526 = vadd.f32 %v4473, %v4522
      %s4527 = scalar_lea.vmem %s8, 20
      %v4528 = vld [vmem:[%s4527] sm:$0xf]
      %4529 = vrot.lane.b32.xlu0 %v4368, 104
      %v4530 = vpop.permute.xlu0 %4529
      %v4532 = vsel %vm1004, %v4530, 0
      %v4535 = vsel %vm1052, %v4528, 0
      %4537 = vmatprep.subr.bf16.mxu0 0
      %4538 = vmatpush1.bf16.msra.mxu0 0
      %4539 = vmatprep.subr.bf16.mxu0 0
      %4540 = vmatpush1.bf16.msra.mxu0 0
      %4541 = vmatprep.subr.bf16.mxu0 0
      %4542 = vmatpush1.bf16.msra.mxu0 0
      %4543 = vmatprep.subr.bf16.mxu0 0
      %4544 = vmatpush1.bf16.msra.mxu0 0
      %4545 = vmatprep.subr.bf16.mxu0 0
      %4546 = vmatpush1.bf16.msra.mxu0 0
      %4547 = vmatprep.subr.bf16.mxu0 0
      %4548 = vmatpush1.bf16.msra.mxu0 0
      %4549 = vmatprep.subr.bf16.mxu0 0
      %4550 = vmatpush1.bf16.msra.mxu0 0
      %4551 = vmatprep.subr.bf16.mxu0 0
      %4552 = vmatpush1.bf16.msra.mxu0 %v4535
      %4553 = vmatprep.subr.bf16.mxu0 0
      %4554 = vmatpush2.bf16.msra.mxu0 0
      %4555 = vmatprep.subr.bf16.mxu0 0
      %4556 = vmatpush2.bf16.msra.mxu0 0
      %4557 = vmatprep.subr.bf16.mxu0 0
      %4558 = vmatpush2.bf16.msra.mxu0 0
      %4559 = vmatprep.subr.bf16.mxu0 0
      %4560 = vmatpush2.bf16.msra.mxu0 0
      %4561 = vmatprep.subr.bf16.mxu0 0
      %4562 = vmatpush2.bf16.msra.mxu0 0
      %4563 = vmatprep.subr.bf16.mxu0 0
      %4564 = vmatpush2.bf16.msra.mxu0 0
      %4565 = vmatprep.subr.bf16.mxu0 0
      %4566 = vmatpush2.bf16.msra.mxu0 0
      %4567 = vmatprep.subr.bf16.mxu0 0
      %4568 = vmatpush2.bf16.msra.mxu0 0
      %4569 = vmatprep.mubr.bf16.mxu0 0
      %4570 = vmatmul.mubr.bf16.gmra.mxu0 %v4532
      %v4571 = vpop.f32.mrf.mxu0
      %v4572 = vadd.f32 0.0, %v4571
      %v4573 = vpop.f32.mrf.mxu0
      %v4574 = vpop.f32.mrf.mxu0
      %v4575 = vadd.f32 0.0, %v4574
      %v4576 = vpop.f32.mrf.mxu0
      %4577 = vdwg.mxu0
      %v4578 = vadd.f32 %v4525, %v4572
      %v4579 = vadd.f32 %v4526, %v4575
      %v4580 = vld [vmem:[#allocation2 + $0x8] sm:$0xff]
      %v4581 = vld [vmem:[#allocation2 + $0x10] sm:$0xff]
      %v4582 = vpack.c.bf16 %v4581, %v4580
      %s4583 = scalar_lea.vmem %s8, 24
      %v4584 = vld [vmem:[%s4583] sm:$0xf]
      %v4586 = vsel %vm1004, %v4582, 0
      %v4589 = vsel %vm1052, %v4584, 0
      %4591 = vmatprep.subr.bf16.mxu0 0
      %4592 = vmatpush1.bf16.msra.mxu0 0
      %4593 = vmatprep.subr.bf16.mxu0 0
      %4594 = vmatpush1.bf16.msra.mxu0 0
      %4595 = vmatprep.subr.bf16.mxu0 0
      %4596 = vmatpush1.bf16.msra.mxu0 0
      %4597 = vmatprep.subr.bf16.mxu0 0
      %4598 = vmatpush1.bf16.msra.mxu0 0
      %4599 = vmatprep.subr.bf16.mxu0 0
      %4600 = vmatpush1.bf16.msra.mxu0 0
      %4601 = vmatprep.subr.bf16.mxu0 0
      %4602 = vmatpush1.bf16.msra.mxu0 0
      %4603 = vmatprep.subr.bf16.mxu0 0
      %4604 = vmatpush1.bf16.msra.mxu0 0
      %4605 = vmatprep.subr.bf16.mxu0 0
      %4606 = vmatpush1.bf16.msra.mxu0 %v4589
      %4607 = vmatprep.subr.bf16.mxu0 0
      %4608 = vmatpush2.bf16.msra.mxu0 0
      %4609 = vmatprep.subr.bf16.mxu0 0
      %4610 = vmatpush2.bf16.msra.mxu0 0
      %4611 = vmatprep.subr.bf16.mxu0 0
      %4612 = vmatpush2.bf16.msra.mxu0 0
      %4613 = vmatprep.subr.bf16.mxu0 0
      %4614 = vmatpush2.bf16.msra.mxu0 0
      %4615 = vmatprep.subr.bf16.mxu0 0
      %4616 = vmatpush2.bf16.msra.mxu0 0
      %4617 = vmatprep.subr.bf16.mxu0 0
      %4618 = vmatpush2.bf16.msra.mxu0 0
      %4619 = vmatprep.subr.bf16.mxu0 0
      %4620 = vmatpush2.bf16.msra.mxu0 0
      %4621 = vmatprep.subr.bf16.mxu0 0
      %4622 = vmatpush2.bf16.msra.mxu0 0
      %4623 = vmatprep.mubr.bf16.mxu0 0
      %4624 = vmatmul.mubr.bf16.gmra.mxu0 %v4586
      %v4625 = vpop.f32.mrf.mxu0
      %v4626 = vadd.f32 0.0, %v4625
      %v4627 = vpop.f32.mrf.mxu0
      %v4628 = vpop.f32.mrf.mxu0
      %v4629 = vadd.f32 0.0, %v4628
      %v4630 = vpop.f32.mrf.mxu0
      %4631 = vdwg.mxu0
      %v4632 = vadd.f32 %v4578, %v4626
      %v4633 = vadd.f32 %v4579, %v4629
      %v4634 = vld [vmem:[#allocation3] sm:$0x1]
      %v4636 = vlaneseq
      %v4637 = vshrl.u32 %v4636, 7
      %v4638 = vsub.s32 0, %v4637
      %v4639 = vrot.slane %v4634, %v4638
      %v4641 = vadd.f32 %v4632, %v4639
      %v4642 = vadd.f32 %v4633, %v4639
      %4643 = vmatprep.subr.bf16.mxu0 0
      %4644 = vmatpush1.bf16.msra.mxu0 0
      %4645 = vmatprep.subr.bf16.mxu0 0
      %4646 = vmatpush1.bf16.msra.mxu0 0
      %4647 = vmatprep.subr.bf16.mxu0 0
      %4648 = vmatpush1.bf16.msra.mxu0 0
      %4649 = vmatprep.subr.bf16.mxu0 0
      %4650 = vmatpush1.bf16.msra.mxu0 0
      %4651 = vmatprep.subr.bf16.mxu0 0
      %4652 = vmatpush1.bf16.msra.mxu0 0
      %4653 = vmatprep.subr.bf16.mxu0 0
      %4654 = vmatpush1.bf16.msra.mxu0 0
      %4655 = vmatprep.subr.bf16.mxu0 0
      %4656 = vmatpush1.bf16.msra.mxu0 0
      %4657 = vmatprep.subr.bf16.mxu0 0
      %4658 = vmatpush1.bf16.msra.mxu0 %v4274
      %4659 = vmatprep.subr.bf16.mxu0 0
      %4660 = vmatpush2.bf16.msra.mxu0 0
      %4661 = vmatprep.subr.bf16.mxu0 0
      %4662 = vmatpush2.bf16.msra.mxu0 0
      %4663 = vmatprep.subr.bf16.mxu0 0
      %4664 = vmatpush2.bf16.msra.mxu0 0
      %4665 = vmatprep.subr.bf16.mxu0 0
      %4666 = vmatpush2.bf16.msra.mxu0 0
      %4667 = vmatprep.subr.bf16.mxu0 0
      %4668 = vmatpush2.bf16.msra.mxu0 0
      %4669 = vmatprep.subr.bf16.mxu0 0
      %4670 = vmatpush2.bf16.msra.mxu0 0
      %4671 = vmatprep.subr.bf16.mxu0 0
      %4672 = vmatpush2.bf16.msra.mxu0 0
      %4673 = vmatprep.subr.bf16.mxu0 0
      %4674 = vmatpush2.bf16.msra.mxu0 0
      %4675 = vmatprep.mubr.bf16.mxu0 0
      %4676 = vmatmul.mubr.bf16.gmra.mxu0 %v4372
      %v4677 = vpop.f32.mrf.mxu0
      %v4678 = vadd.f32 0.0, %v4677
      %v4679 = vpop.f32.mrf.mxu0
      %v4680 = vpop.f32.mrf.mxu0
      %v4681 = vadd.f32 0.0, %v4680
      %v4682 = vpop.f32.mrf.mxu0
      %4683 = vdwg.mxu0
      %4684 = vmatprep.subr.bf16.mxu0 0
      %4685 = vmatpush1.bf16.msra.mxu0 0
      %4686 = vmatprep.subr.bf16.mxu0 0
      %4687 = vmatpush1.bf16.msra.mxu0 0
      %4688 = vmatprep.subr.bf16.mxu0 0
      %4689 = vmatpush1.bf16.msra.mxu0 0
      %4690 = vmatprep.subr.bf16.mxu0 0
      %4691 = vmatpush1.bf16.msra.mxu0 0
      %4692 = vmatprep.subr.bf16.mxu0 0
      %4693 = vmatpush1.bf16.msra.mxu0 0
      %4694 = vmatprep.subr.bf16.mxu0 0
      %4695 = vmatpush1.bf16.msra.mxu0 0
      %4696 = vmatprep.subr.bf16.mxu0 0
      %4697 = vmatpush1.bf16.msra.mxu0 0
      %4698 = vmatprep.subr.bf16.mxu0 0
      %4699 = vmatpush1.bf16.msra.mxu0 %v4323
      %4700 = vmatprep.subr.bf16.mxu0 0
      %4701 = vmatpush2.bf16.msra.mxu0 0
      %4702 = vmatprep.subr.bf16.mxu0 0
      %4703 = vmatpush2.bf16.msra.mxu0 0
      %4704 = vmatprep.subr.bf16.mxu0 0
      %4705 = vmatpush2.bf16.msra.mxu0 0
      %4706 = vmatprep.subr.bf16.mxu0 0
      %4707 = vmatpush2.bf16.msra.mxu0 0
      %4708 = vmatprep.subr.bf16.mxu0 0
      %4709 = vmatpush2.bf16.msra.mxu0 0
      %4710 = vmatprep.subr.bf16.mxu0 0
      %4711 = vmatpush2.bf16.msra.mxu0 0
      %4712 = vmatprep.subr.bf16.mxu0 0
      %4713 = vmatpush2.bf16.msra.mxu0 0
      %4714 = vmatprep.subr.bf16.mxu0 0
      %4715 = vmatpush2.bf16.msra.mxu0 0
      %4716 = vmatprep.mubr.bf16.mxu0 0
      %4717 = vmatmul.mubr.bf16.gmra.mxu0 %v4271
      %v4718 = vpop.f32.mrf.mxu0
      %v4719 = vadd.f32 %v4678, %v4718
      %v4720 = vpop.f32.mrf.mxu0
      %v4721 = vpop.f32.mrf.mxu0
      %v4722 = vadd.f32 %v4681, %v4721
      %v4723 = vpop.f32.mrf.mxu0
      %4724 = vdwg.mxu0
      %4725 = vmatprep.subr.bf16.mxu0 0
      %4726 = vmatpush1.bf16.msra.mxu0 0
      %4727 = vmatprep.subr.bf16.mxu0 0
      %4728 = vmatpush1.bf16.msra.mxu0 0
      %4729 = vmatprep.subr.bf16.mxu0 0
      %4730 = vmatpush1.bf16.msra.mxu0 0
      %4731 = vmatprep.subr.bf16.mxu0 0
      %4732 = vmatpush1.bf16.msra.mxu0 0
      %4733 = vmatprep.subr.bf16.mxu0 0
      %4734 = vmatpush1.bf16.msra.mxu0 0
      %4735 = vmatprep.subr.bf16.mxu0 0
      %4736 = vmatpush1.bf16.msra.mxu0 0
      %4737 = vmatprep.subr.bf16.mxu0 0
      %4738 = vmatpush1.bf16.msra.mxu0 0
      %4739 = vmatprep.subr.bf16.mxu0 0
      %4740 = vmatpush1.bf16.msra.mxu0 %v4375
      %4741 = vmatprep.subr.bf16.mxu0 0
      %4742 = vmatpush2.bf16.msra.mxu0 0
      %4743 = vmatprep.subr.bf16.mxu0 0
      %4744 = vmatpush2.bf16.msra.mxu0 0
      %4745 = vmatprep.subr.bf16.mxu0 0
      %4746 = vmatpush2.bf16.msra.mxu0 0
      %4747 = vmatprep.subr.bf16.mxu0 0
      %4748 = vmatpush2.bf16.msra.mxu0 0
      %4749 = vmatprep.subr.bf16.mxu0 0
      %4750 = vmatpush2.bf16.msra.mxu0 0
      %4751 = vmatprep.subr.bf16.mxu0 0
      %4752 = vmatpush2.bf16.msra.mxu0 0
      %4753 = vmatprep.subr.bf16.mxu0 0
      %4754 = vmatpush2.bf16.msra.mxu0 0
      %4755 = vmatprep.subr.bf16.mxu0 0
      %4756 = vmatpush2.bf16.msra.mxu0 0
      %4757 = vmatprep.mubr.bf16.mxu0 0
      %4758 = vmatmul.mubr.bf16.gmra.mxu0 %v4426
      %v4759 = vpop.f32.mrf.mxu0
      %v4760 = vadd.f32 0.0, %v4759
      %v4761 = vpop.f32.mrf.mxu0
      %v4762 = vpop.f32.mrf.mxu0
      %v4763 = vadd.f32 0.0, %v4762
      %v4764 = vpop.f32.mrf.mxu0
      %4765 = vdwg.mxu0
      %v4766 = vadd.f32 %v4719, %v4760
      %v4767 = vadd.f32 %v4722, %v4763
      %4768 = vmatprep.subr.bf16.mxu0 0
      %4769 = vmatpush1.bf16.msra.mxu0 0
      %4770 = vmatprep.subr.bf16.mxu0 0
      %4771 = vmatpush1.bf16.msra.mxu0 0
      %4772 = vmatprep.subr.bf16.mxu0 0
      %4773 = vmatpush1.bf16.msra.mxu0 0
      %4774 = vmatprep.subr.bf16.mxu0 0
      %4775 = vmatpush1.bf16.msra.mxu0 0
      %4776 = vmatprep.subr.bf16.mxu0 0
      %4777 = vmatpush1.bf16.msra.mxu0 0
      %4778 = vmatprep.subr.bf16.mxu0 0
      %4779 = vmatpush1.bf16.msra.mxu0 0
      %4780 = vmatprep.subr.bf16.mxu0 0
      %4781 = vmatpush1.bf16.msra.mxu0 0
      %4782 = vmatprep.subr.bf16.mxu0 0
      %4783 = vmatpush1.bf16.msra.mxu0 %v4429
      %4784 = vmatprep.subr.bf16.mxu0 0
      %4785 = vmatpush2.bf16.msra.mxu0 0
      %4786 = vmatprep.subr.bf16.mxu0 0
      %4787 = vmatpush2.bf16.msra.mxu0 0
      %4788 = vmatprep.subr.bf16.mxu0 0
      %4789 = vmatpush2.bf16.msra.mxu0 0
      %4790 = vmatprep.subr.bf16.mxu0 0
      %4791 = vmatpush2.bf16.msra.mxu0 0
      %4792 = vmatprep.subr.bf16.mxu0 0
      %4793 = vmatpush2.bf16.msra.mxu0 0
      %4794 = vmatprep.subr.bf16.mxu0 0
      %4795 = vmatpush2.bf16.msra.mxu0 0
      %4796 = vmatprep.subr.bf16.mxu0 0
      %4797 = vmatpush2.bf16.msra.mxu0 0
      %4798 = vmatprep.subr.bf16.mxu0 0
      %4799 = vmatpush2.bf16.msra.mxu0 0
      %4800 = vmatprep.mubr.bf16.mxu0 0
      %4801 = vmatmul.mubr.bf16.gmra.mxu0 %v4479
      %v4802 = vpop.f32.mrf.mxu0
      %v4803 = vadd.f32 0.0, %v4802
      %v4804 = vpop.f32.mrf.mxu0
      %v4805 = vpop.f32.mrf.mxu0
      %v4806 = vadd.f32 0.0, %v4805
      %v4807 = vpop.f32.mrf.mxu0
      %4808 = vdwg.mxu0
      %v4809 = vadd.f32 %v4766, %v4803
      %v4810 = vadd.f32 %v4767, %v4806
      %4811 = vmatprep.subr.bf16.mxu0 0
      %4812 = vmatpush1.bf16.msra.mxu0 0
      %4813 = vmatprep.subr.bf16.mxu0 0
      %4814 = vmatpush1.bf16.msra.mxu0 0
      %4815 = vmatprep.subr.bf16.mxu0 0
      %4816 = vmatpush1.bf16.msra.mxu0 0
      %4817 = vmatprep.subr.bf16.mxu0 0
      %4818 = vmatpush1.bf16.msra.mxu0 0
      %4819 = vmatprep.subr.bf16.mxu0 0
      %4820 = vmatpush1.bf16.msra.mxu0 0
      %4821 = vmatprep.subr.bf16.mxu0 0
      %4822 = vmatpush1.bf16.msra.mxu0 0
      %4823 = vmatprep.subr.bf16.mxu0 0
      %4824 = vmatpush1.bf16.msra.mxu0 0
      %4825 = vmatprep.subr.bf16.mxu0 0
      %4826 = vmatpush1.bf16.msra.mxu0 %v4482
      %4827 = vmatprep.subr.bf16.mxu0 0
      %4828 = vmatpush2.bf16.msra.mxu0 0
      %4829 = vmatprep.subr.bf16.mxu0 0
      %4830 = vmatpush2.bf16.msra.mxu0 0
      %4831 = vmatprep.subr.bf16.mxu0 0
      %4832 = vmatpush2.bf16.msra.mxu0 0
      %4833 = vmatprep.subr.bf16.mxu0 0
      %4834 = vmatpush2.bf16.msra.mxu0 0
      %4835 = vmatprep.subr.bf16.mxu0 0
      %4836 = vmatpush2.bf16.msra.mxu0 0
      %4837 = vmatprep.subr.bf16.mxu0 0
      %4838 = vmatpush2.bf16.msra.mxu0 0
      %4839 = vmatprep.subr.bf16.mxu0 0
      %4840 = vmatpush2.bf16.msra.mxu0 0
      %4841 = vmatprep.subr.bf16.mxu0 0
      %4842 = vmatpush2.bf16.msra.mxu0 0
      %4843 = vmatprep.mubr.bf16.mxu0 0
      %4844 = vmatmul.mubr.bf16.gmra.mxu0 %v4532
      %v4845 = vpop.f32.mrf.mxu0
      %v4846 = vadd.f32 0.0, %v4845
      %v4847 = vpop.f32.mrf.mxu0
      %v4848 = vpop.f32.mrf.mxu0
      %v4849 = vadd.f32 0.0, %v4848
      %v4850 = vpop.f32.mrf.mxu0
      %4851 = vdwg.mxu0
      %v4852 = vadd.f32 %v4809, %v4846
      %v4853 = vadd.f32 %v4810, %v4849
      %4854 = vmatprep.subr.bf16.mxu0 0
      %4855 = vmatpush1.bf16.msra.mxu0 0
      %4856 = vmatprep.subr.bf16.mxu0 0
      %4857 = vmatpush1.bf16.msra.mxu0 0
      %4858 = vmatprep.subr.bf16.mxu0 0
      %4859 = vmatpush1.bf16.msra.mxu0 0
      %4860 = vmatprep.subr.bf16.mxu0 0
      %4861 = vmatpush1.bf16.msra.mxu0 0
      %4862 = vmatprep.subr.bf16.mxu0 0
      %4863 = vmatpush1.bf16.msra.mxu0 0
      %4864 = vmatprep.subr.bf16.mxu0 0
      %4865 = vmatpush1.bf16.msra.mxu0 0
      %4866 = vmatprep.subr.bf16.mxu0 0
      %4867 = vmatpush1.bf16.msra.mxu0 0
      %4868 = vmatprep.subr.bf16.mxu0 0
      %4869 = vmatpush1.bf16.msra.mxu0 %v4535
      %4870 = vmatprep.subr.bf16.mxu0 0
      %4871 = vmatpush2.bf16.msra.mxu0 0
      %4872 = vmatprep.subr.bf16.mxu0 0
      %4873 = vmatpush2.bf16.msra.mxu0 0
      %4874 = vmatprep.subr.bf16.mxu0 0
      %4875 = vmatpush2.bf16.msra.mxu0 0
      %4876 = vmatprep.subr.bf16.mxu0 0
      %4877 = vmatpush2.bf16.msra.mxu0 0
      %4878 = vmatprep.subr.bf16.mxu0 0
      %4879 = vmatpush2.bf16.msra.mxu0 0
      %4880 = vmatprep.subr.bf16.mxu0 0
      %4881 = vmatpush2.bf16.msra.mxu0 0
      %4882 = vmatprep.subr.bf16.mxu0 0
      %4883 = vmatpush2.bf16.msra.mxu0 0
      %4884 = vmatprep.subr.bf16.mxu0 0
      %4885 = vmatpush2.bf16.msra.mxu0 0
      %4886 = vmatprep.mubr.bf16.mxu0 0
      %4887 = vmatmul.mubr.bf16.gmra.mxu0 %v4586
      %v4888 = vpop.f32.mrf.mxu0
      %v4889 = vadd.f32 0.0, %v4888
      %v4890 = vpop.f32.mrf.mxu0
      %v4891 = vpop.f32.mrf.mxu0
      %v4892 = vadd.f32 0.0, %v4891
      %v4893 = vpop.f32.mrf.mxu0
      %4894 = vdwg.mxu0
      %v4895 = vadd.f32 %v4852, %v4889
      %v4896 = vadd.f32 %v4853, %v4892
      %4898 = vrot.lane.b32.xlu0 %v4582, 120
      %v4899 = vpop.permute.xlu0 %4898
      %v4901 = vsel %vm1004, %v4899, 0
      %4903 = vmatprep.subr.bf16.mxu0 0
      %4904 = vmatpush1.bf16.msra.mxu0 0
      %4905 = vmatprep.subr.bf16.mxu0 0
      %4906 = vmatpush1.bf16.msra.mxu0 0
      %4907 = vmatprep.subr.bf16.mxu0 0
      %4908 = vmatpush1.bf16.msra.mxu0 0
      %4909 = vmatprep.subr.bf16.mxu0 0
      %4910 = vmatpush1.bf16.msra.mxu0 0
      %4911 = vmatprep.subr.bf16.mxu0 0
      %4912 = vmatpush1.bf16.msra.mxu0 0
      %4913 = vmatprep.subr.bf16.mxu0 0
      %4914 = vmatpush1.bf16.msra.mxu0 0
      %4915 = vmatprep.subr.bf16.mxu0 0
      %4916 = vmatpush1.bf16.msra.mxu0 0
      %4917 = vmatprep.subr.bf16.mxu0 0
      %4918 = vmatpush1.bf16.msra.mxu0 %v4589
      %4919 = vmatprep.subr.bf16.mxu0 0
      %4920 = vmatpush2.bf16.msra.mxu0 0
      %4921 = vmatprep.subr.bf16.mxu0 0
      %4922 = vmatpush2.bf16.msra.mxu0 0
      %4923 = vmatprep.subr.bf16.mxu0 0
      %4924 = vmatpush2.bf16.msra.mxu0 0
      %4925 = vmatprep.subr.bf16.mxu0 0
      %4926 = vmatpush2.bf16.msra.mxu0 0
      %4927 = vmatprep.subr.bf16.mxu0 0
      %4928 = vmatpush2.bf16.msra.mxu0 0
      %4929 = vmatprep.subr.bf16.mxu0 0
      %4930 = vmatpush2.bf16.msra.mxu0 0
      %4931 = vmatprep.subr.bf16.mxu0 0
      %4932 = vmatpush2.bf16.msra.mxu0 0
      %4933 = vmatprep.subr.bf16.mxu0 0
      %4934 = vmatpush2.bf16.msra.mxu0 0
      %4935 = vmatprep.mubr.bf16.mxu0 0
      %4936 = vmatmul.mubr.bf16.gmra.mxu0 %v4901
      %v4937 = vpop.f32.mrf.mxu0
      %v4938 = vadd.f32 0.0, %v4937
      %v4939 = vpop.f32.mrf.mxu0
      %v4940 = vpop.f32.mrf.mxu0
      %v4941 = vadd.f32 0.0, %v4940
      %v4942 = vpop.f32.mrf.mxu0
      %4943 = vdwg.mxu0
      %v4944 = vadd.f32 %v4895, %v4938
      %v4945 = vadd.f32 %v4896, %v4941
      %v4946 = vadd.f32 %v4944, %v4639
      %v4947 = vadd.f32 %v4945, %v4639
      %4948 = vmatprep.subr.bf16.mxu0 0
      %4949 = vmatpush1.bf16.msra.mxu0 0
      %4950 = vmatprep.subr.bf16.mxu0 0
      %4951 = vmatpush1.bf16.msra.mxu0 0
      %4952 = vmatprep.subr.bf16.mxu0 0
      %4953 = vmatpush1.bf16.msra.mxu0 0
      %4954 = vmatprep.subr.bf16.mxu0 0
      %4955 = vmatpush1.bf16.msra.mxu0 0
      %4956 = vmatprep.subr.bf16.mxu0 0
      %4957 = vmatpush1.bf16.msra.mxu0 0
      %4958 = vmatprep.subr.bf16.mxu0 0
      %4959 = vmatpush1.bf16.msra.mxu0 0
      %4960 = vmatprep.subr.bf16.mxu0 0
      %4961 = vmatpush1.bf16.msra.mxu0 0
      %4962 = vmatprep.subr.bf16.mxu0 0
      %4963 = vmatpush1.bf16.msra.mxu0 %v4274
      %4964 = vmatprep.subr.bf16.mxu0 0
      %4965 = vmatpush2.bf16.msra.mxu0 0
      %4966 = vmatprep.subr.bf16.mxu0 0
      %4967 = vmatpush2.bf16.msra.mxu0 0
      %4968 = vmatprep.subr.bf16.mxu0 0
      %4969 = vmatpush2.bf16.msra.mxu0 0
      %4970 = vmatprep.subr.bf16.mxu0 0
      %4971 = vmatpush2.bf16.msra.mxu0 0
      %4972 = vmatprep.subr.bf16.mxu0 0
      %4973 = vmatpush2.bf16.msra.mxu0 0
      %4974 = vmatprep.subr.bf16.mxu0 0
      %4975 = vmatpush2.bf16.msra.mxu0 0
      %4976 = vmatprep.subr.bf16.mxu0 0
      %4977 = vmatpush2.bf16.msra.mxu0 0
      %4978 = vmatprep.subr.bf16.mxu0 0
      %4979 = vmatpush2.bf16.msra.mxu0 0
      %4980 = vmatprep.mubr.bf16.mxu0 0
      %4981 = vmatmul.mubr.bf16.gmra.mxu0 %v4426
      %v4982 = vpop.f32.mrf.mxu0
      %v4983 = vadd.f32 0.0, %v4982
      %v4984 = vpop.f32.mrf.mxu0
      %v4985 = vpop.f32.mrf.mxu0
      %v4986 = vadd.f32 0.0, %v4985
      %v4987 = vpop.f32.mrf.mxu0
      %4988 = vdwg.mxu0
      %4989 = vmatprep.subr.bf16.mxu0 0
      %4990 = vmatpush1.bf16.msra.mxu0 0
      %4991 = vmatprep.subr.bf16.mxu0 0
      %4992 = vmatpush1.bf16.msra.mxu0 0
      %4993 = vmatprep.subr.bf16.mxu0 0
      %4994 = vmatpush1.bf16.msra.mxu0 0
      %4995 = vmatprep.subr.bf16.mxu0 0
      %4996 = vmatpush1.bf16.msra.mxu0 0
      %4997 = vmatprep.subr.bf16.mxu0 0
      %4998 = vmatpush1.bf16.msra.mxu0 0
      %4999 = vmatprep.subr.bf16.mxu0 0
      %5000 = vmatpush1.bf16.msra.mxu0 0
      %5001 = vmatprep.subr.bf16.mxu0 0
      %5002 = vmatpush1.bf16.msra.mxu0 0
      %5003 = vmatprep.subr.bf16.mxu0 0
      %5004 = vmatpush1.bf16.msra.mxu0 %v4323
      %5005 = vmatprep.subr.bf16.mxu0 0
      %5006 = vmatpush2.bf16.msra.mxu0 0
      %5007 = vmatprep.subr.bf16.mxu0 0
      %5008 = vmatpush2.bf16.msra.mxu0 0
      %5009 = vmatprep.subr.bf16.mxu0 0
      %5010 = vmatpush2.bf16.msra.mxu0 0
      %5011 = vmatprep.subr.bf16.mxu0 0
      %5012 = vmatpush2.bf16.msra.mxu0 0
      %5013 = vmatprep.subr.bf16.mxu0 0
      %5014 = vmatpush2.bf16.msra.mxu0 0
      %5015 = vmatprep.subr.bf16.mxu0 0
      %5016 = vmatpush2.bf16.msra.mxu0 0
      %5017 = vmatprep.subr.bf16.mxu0 0
      %5018 = vmatpush2.bf16.msra.mxu0 0
      %5019 = vmatprep.subr.bf16.mxu0 0
      %5020 = vmatpush2.bf16.msra.mxu0 0
      %5021 = vmatprep.mubr.bf16.mxu0 0
      %5022 = vmatmul.mubr.bf16.gmra.mxu0 %v4372
      %v5023 = vpop.f32.mrf.mxu0
      %v5024 = vadd.f32 %v4983, %v5023
      %v5025 = vpop.f32.mrf.mxu0
      %v5026 = vpop.f32.mrf.mxu0
      %v5027 = vadd.f32 %v4986, %v5026
      %v5028 = vpop.f32.mrf.mxu0
      %5029 = vdwg.mxu0
      %5030 = vmatprep.subr.bf16.mxu0 0
      %5031 = vmatpush1.bf16.msra.mxu0 0
      %5032 = vmatprep.subr.bf16.mxu0 0
      %5033 = vmatpush1.bf16.msra.mxu0 0
      %5034 = vmatprep.subr.bf16.mxu0 0
      %5035 = vmatpush1.bf16.msra.mxu0 0
      %5036 = vmatprep.subr.bf16.mxu0 0
      %5037 = vmatpush1.bf16.msra.mxu0 0
      %5038 = vmatprep.subr.bf16.mxu0 0
      %5039 = vmatpush1.bf16.msra.mxu0 0
      %5040 = vmatprep.subr.bf16.mxu0 0
      %5041 = vmatpush1.bf16.msra.mxu0 0
      %5042 = vmatprep.subr.bf16.mxu0 0
      %5043 = vmatpush1.bf16.msra.mxu0 0
      %5044 = vmatprep.subr.bf16.mxu0 0
      %5045 = vmatpush1.bf16.msra.mxu0 %v4375
      %5046 = vmatprep.subr.bf16.mxu0 0
      %5047 = vmatpush2.bf16.msra.mxu0 0
      %5048 = vmatprep.subr.bf16.mxu0 0
      %5049 = vmatpush2.bf16.msra.mxu0 0
      %5050 = vmatprep.subr.bf16.mxu0 0
      %5051 = vmatpush2.bf16.msra.mxu0 0
      %5052 = vmatprep.subr.bf16.mxu0 0
      %5053 = vmatpush2.bf16.msra.mxu0 0
      %5054 = vmatprep.subr.bf16.mxu0 0
      %5055 = vmatpush2.bf16.msra.mxu0 0
      %5056 = vmatprep.subr.bf16.mxu0 0
      %5057 = vmatpush2.bf16.msra.mxu0 0
      %5058 = vmatprep.subr.bf16.mxu0 0
      %5059 = vmatpush2.bf16.msra.mxu0 0
      %5060 = vmatprep.subr.bf16.mxu0 0
      %5061 = vmatpush2.bf16.msra.mxu0 0
      %5062 = vmatprep.mubr.bf16.mxu0 0
      %5063 = vmatmul.mubr.bf16.gmra.mxu0 %v4479
      %v5064 = vpop.f32.mrf.mxu0
      %v5065 = vadd.f32 0.0, %v5064
      %v5066 = vpop.f32.mrf.mxu0
      %v5067 = vpop.f32.mrf.mxu0
      %v5068 = vadd.f32 0.0, %v5067
      %v5069 = vpop.f32.mrf.mxu0
      %5070 = vdwg.mxu0
      %v5071 = vadd.f32 %v5024, %v5065
      %v5072 = vadd.f32 %v5027, %v5068
      %5073 = vmatprep.subr.bf16.mxu0 0
      %5074 = vmatpush1.bf16.msra.mxu0 0
      %5075 = vmatprep.subr.bf16.mxu0 0
      %5076 = vmatpush1.bf16.msra.mxu0 0
      %5077 = vmatprep.subr.bf16.mxu0 0
      %5078 = vmatpush1.bf16.msra.mxu0 0
      %5079 = vmatprep.subr.bf16.mxu0 0
      %5080 = vmatpush1.bf16.msra.mxu0 0
      %5081 = vmatprep.subr.bf16.mxu0 0
      %5082 = vmatpush1.bf16.msra.mxu0 0
      %5083 = vmatprep.subr.bf16.mxu0 0
      %5084 = vmatpush1.bf16.msra.mxu0 0
      %5085 = vmatprep.subr.bf16.mxu0 0
      %5086 = vmatpush1.bf16.msra.mxu0 0
      %5087 = vmatprep.subr.bf16.mxu0 0
      %5088 = vmatpush1.bf16.msra.mxu0 %v4429
      %5089 = vmatprep.subr.bf16.mxu0 0
      %5090 = vmatpush2.bf16.msra.mxu0 0
      %5091 = vmatprep.subr.bf16.mxu0 0
      %5092 = vmatpush2.bf16.msra.mxu0 0
      %5093 = vmatprep.subr.bf16.mxu0 0
      %5094 = vmatpush2.bf16.msra.mxu0 0
      %5095 = vmatprep.subr.bf16.mxu0 0
      %5096 = vmatpush2.bf16.msra.mxu0 0
      %5097 = vmatprep.subr.bf16.mxu0 0
      %5098 = vmatpush2.bf16.msra.mxu0 0
      %5099 = vmatprep.subr.bf16.mxu0 0
      %5100 = vmatpush2.bf16.msra.mxu0 0
      %5101 = vmatprep.subr.bf16.mxu0 0
      %5102 = vmatpush2.bf16.msra.mxu0 0
      %5103 = vmatprep.subr.bf16.mxu0 0
      %5104 = vmatpush2.bf16.msra.mxu0 0
      %5105 = vmatprep.mubr.bf16.mxu0 0
      %5106 = vmatmul.mubr.bf16.gmra.mxu0 %v4532
      %v5107 = vpop.f32.mrf.mxu0
      %v5108 = vadd.f32 0.0, %v5107
      %v5109 = vpop.f32.mrf.mxu0
      %v5110 = vpop.f32.mrf.mxu0
      %v5111 = vadd.f32 0.0, %v5110
      %v5112 = vpop.f32.mrf.mxu0
      %5113 = vdwg.mxu0
      %v5114 = vadd.f32 %v5071, %v5108
      %v5115 = vadd.f32 %v5072, %v5111
      %5116 = vmatprep.subr.bf16.mxu0 0
      %5117 = vmatpush1.bf16.msra.mxu0 0
      %5118 = vmatprep.subr.bf16.mxu0 0
      %5119 = vmatpush1.bf16.msra.mxu0 0
      %5120 = vmatprep.subr.bf16.mxu0 0
      %5121 = vmatpush1.bf16.msra.mxu0 0
      %5122 = vmatprep.subr.bf16.mxu0 0
      %5123 = vmatpush1.bf16.msra.mxu0 0
      %5124 = vmatprep.subr.bf16.mxu0 0
      %5125 = vmatpush1.bf16.msra.mxu0 0
      %5126 = vmatprep.subr.bf16.mxu0 0
      %5127 = vmatpush1.bf16.msra.mxu0 0
      %5128 = vmatprep.subr.bf16.mxu0 0
      %5129 = vmatpush1.bf16.msra.mxu0 0
      %5130 = vmatprep.subr.bf16.mxu0 0
      %5131 = vmatpush1.bf16.msra.mxu0 %v4482
      %5132 = vmatprep.subr.bf16.mxu0 0
      %5133 = vmatpush2.bf16.msra.mxu0 0
      %5134 = vmatprep.subr.bf16.mxu0 0
      %5135 = vmatpush2.bf16.msra.mxu0 0
      %5136 = vmatprep.subr.bf16.mxu0 0
      %5137 = vmatpush2.bf16.msra.mxu0 0
      %5138 = vmatprep.subr.bf16.mxu0 0
      %5139 = vmatpush2.bf16.msra.mxu0 0
      %5140 = vmatprep.subr.bf16.mxu0 0
      %5141 = vmatpush2.bf16.msra.mxu0 0
      %5142 = vmatprep.subr.bf16.mxu0 0
      %5143 = vmatpush2.bf16.msra.mxu0 0
      %5144 = vmatprep.subr.bf16.mxu0 0
      %5145 = vmatpush2.bf16.msra.mxu0 0
      %5146 = vmatprep.subr.bf16.mxu0 0
      %5147 = vmatpush2.bf16.msra.mxu0 0
      %5148 = vmatprep.mubr.bf16.mxu0 0
      %5149 = vmatmul.mubr.bf16.gmra.mxu0 %v4586
      %v5150 = vpop.f32.mrf.mxu0
      %v5151 = vadd.f32 0.0, %v5150
      %v5152 = vpop.f32.mrf.mxu0
      %v5153 = vpop.f32.mrf.mxu0
      %v5154 = vadd.f32 0.0, %v5153
      %v5155 = vpop.f32.mrf.mxu0
      %5156 = vdwg.mxu0
      %v5157 = vadd.f32 %v5114, %v5151
      %v5158 = vadd.f32 %v5115, %v5154
      %5159 = vmatprep.subr.bf16.mxu0 0
      %5160 = vmatpush1.bf16.msra.mxu0 0
      %5161 = vmatprep.subr.bf16.mxu0 0
      %5162 = vmatpush1.bf16.msra.mxu0 0
      %5163 = vmatprep.subr.bf16.mxu0 0
      %5164 = vmatpush1.bf16.msra.mxu0 0
      %5165 = vmatprep.subr.bf16.mxu0 0
      %5166 = vmatpush1.bf16.msra.mxu0 0
      %5167 = vmatprep.subr.bf16.mxu0 0
      %5168 = vmatpush1.bf16.msra.mxu0 0
      %5169 = vmatprep.subr.bf16.mxu0 0
      %5170 = vmatpush1.bf16.msra.mxu0 0
      %5171 = vmatprep.subr.bf16.mxu0 0
      %5172 = vmatpush1.bf16.msra.mxu0 0
      %5173 = vmatprep.subr.bf16.mxu0 0
      %5174 = vmatpush1.bf16.msra.mxu0 %v4535
      %5175 = vmatprep.subr.bf16.mxu0 0
      %5176 = vmatpush2.bf16.msra.mxu0 0
      %5177 = vmatprep.subr.bf16.mxu0 0
      %5178 = vmatpush2.bf16.msra.mxu0 0
      %5179 = vmatprep.subr.bf16.mxu0 0
      %5180 = vmatpush2.bf16.msra.mxu0 0
      %5181 = vmatprep.subr.bf16.mxu0 0
      %5182 = vmatpush2.bf16.msra.mxu0 0
      %5183 = vmatprep.subr.bf16.mxu0 0
      %5184 = vmatpush2.bf16.msra.mxu0 0
      %5185 = vmatprep.subr.bf16.mxu0 0
      %5186 = vmatpush2.bf16.msra.mxu0 0
      %5187 = vmatprep.subr.bf16.mxu0 0
      %5188 = vmatpush2.bf16.msra.mxu0 0
      %5189 = vmatprep.subr.bf16.mxu0 0
      %5190 = vmatpush2.bf16.msra.mxu0 0
      %5191 = vmatprep.mubr.bf16.mxu0 0
      %5192 = vmatmul.mubr.bf16.gmra.mxu0 %v4901
      %v5193 = vpop.f32.mrf.mxu0
      %v5194 = vadd.f32 0.0, %v5193
      %v5195 = vpop.f32.mrf.mxu0
      %v5196 = vpop.f32.mrf.mxu0
      %v5197 = vadd.f32 0.0, %v5196
      %v5198 = vpop.f32.mrf.mxu0
      %5199 = vdwg.mxu0
      %v5200 = vadd.f32 %v5157, %v5194
      %v5201 = vadd.f32 %v5158, %v5197
      %5202 = vrot.lane.b32.xlu0 %v4582, 112
      %v5203 = vpop.permute.xlu0 %5202
      %v5205 = vsel %vm1004, %v5203, 0
      %5207 = vmatprep.subr.bf16.mxu0 0
      %5208 = vmatpush1.bf16.msra.mxu0 0
      %5209 = vmatprep.subr.bf16.mxu0 0
      %5210 = vmatpush1.bf16.msra.mxu0 0
      %5211 = vmatprep.subr.bf16.mxu0 0
      %5212 = vmatpush1.bf16.msra.mxu0 0
      %5213 = vmatprep.subr.bf16.mxu0 0
      %5214 = vmatpush1.bf16.msra.mxu0 0
      %5215 = vmatprep.subr.bf16.mxu0 0
      %5216 = vmatpush1.bf16.msra.mxu0 0
      %5217 = vmatprep.subr.bf16.mxu0 0
      %5218 = vmatpush1.bf16.msra.mxu0 0
      %5219 = vmatprep.subr.bf16.mxu0 0
      %5220 = vmatpush1.bf16.msra.mxu0 0
      %5221 = vmatprep.subr.bf16.mxu0 0
      %5222 = vmatpush1.bf16.msra.mxu0 %v4589
      %5223 = vmatprep.subr.bf16.mxu0 0
      %5224 = vmatpush2.bf16.msra.mxu0 0
      %5225 = vmatprep.subr.bf16.mxu0 0
      %5226 = vmatpush2.bf16.msra.mxu0 0
      %5227 = vmatprep.subr.bf16.mxu0 0
      %5228 = vmatpush2.bf16.msra.mxu0 0
      %5229 = vmatprep.subr.bf16.mxu0 0
      %5230 = vmatpush2.bf16.msra.mxu0 0
      %5231 = vmatprep.subr.bf16.mxu0 0
      %5232 = vmatpush2.bf16.msra.mxu0 0
      %5233 = vmatprep.subr.bf16.mxu0 0
      %5234 = vmatpush2.bf16.msra.mxu0 0
      %5235 = vmatprep.subr.bf16.mxu0 0
      %5236 = vmatpush2.bf16.msra.mxu0 0
      %5237 = vmatprep.subr.bf16.mxu0 0
      %5238 = vmatpush2.bf16.msra.mxu0 0
      %5239 = vmatprep.mubr.bf16.mxu0 0
      %5240 = vmatmul.mubr.bf16.gmra.mxu0 %v5205
      %v5241 = vpop.f32.mrf.mxu0
      %v5242 = vadd.f32 0.0, %v5241
      %v5243 = vpop.f32.mrf.mxu0
      %v5244 = vpop.f32.mrf.mxu0
      %v5245 = vadd.f32 0.0, %v5244
      %v5246 = vpop.f32.mrf.mxu0
      %5247 = vdwg.mxu0
      %v5248 = vadd.f32 %v5200, %v5242
      %v5249 = vadd.f32 %v5201, %v5245
      %v5250 = vadd.f32 %v5248, %v4639
      %v5251 = vadd.f32 %v5249, %v4639
      %5252 = vmatprep.subr.bf16.mxu0 0
      %5253 = vmatpush1.bf16.msra.mxu0 0
      %5254 = vmatprep.subr.bf16.mxu0 0
      %5255 = vmatpush1.bf16.msra.mxu0 0
      %5256 = vmatprep.subr.bf16.mxu0 0
      %5257 = vmatpush1.bf16.msra.mxu0 0
      %5258 = vmatprep.subr.bf16.mxu0 0
      %5259 = vmatpush1.bf16.msra.mxu0 0
      %5260 = vmatprep.subr.bf16.mxu0 0
      %5261 = vmatpush1.bf16.msra.mxu0 0
      %5262 = vmatprep.subr.bf16.mxu0 0
      %5263 = vmatpush1.bf16.msra.mxu0 0
      %5264 = vmatprep.subr.bf16.mxu0 0
      %5265 = vmatpush1.bf16.msra.mxu0 0
      %5266 = vmatprep.subr.bf16.mxu0 0
      %5267 = vmatpush1.bf16.msra.mxu0 %v4274
      %5268 = vmatprep.subr.bf16.mxu0 0
      %5269 = vmatpush2.bf16.msra.mxu0 0
      %5270 = vmatprep.subr.bf16.mxu0 0
      %5271 = vmatpush2.bf16.msra.mxu0 0
      %5272 = vmatprep.subr.bf16.mxu0 0
      %5273 = vmatpush2.bf16.msra.mxu0 0
      %5274 = vmatprep.subr.bf16.mxu0 0
      %5275 = vmatpush2.bf16.msra.mxu0 0
      %5276 = vmatprep.subr.bf16.mxu0 0
      %5277 = vmatpush2.bf16.msra.mxu0 0
      %5278 = vmatprep.subr.bf16.mxu0 0
      %5279 = vmatpush2.bf16.msra.mxu0 0
      %5280 = vmatprep.subr.bf16.mxu0 0
      %5281 = vmatpush2.bf16.msra.mxu0 0
      %5282 = vmatprep.subr.bf16.mxu0 0
      %5283 = vmatpush2.bf16.msra.mxu0 0
      %5284 = vmatprep.mubr.bf16.mxu0 0
      %5285 = vmatmul.mubr.bf16.gmra.mxu0 %v4479
      %v5286 = vpop.f32.mrf.mxu0
      %v5287 = vadd.f32 0.0, %v5286
      %v5288 = vpop.f32.mrf.mxu0
      %v5289 = vpop.f32.mrf.mxu0
      %v5290 = vadd.f32 0.0, %v5289
      %v5291 = vpop.f32.mrf.mxu0
      %5292 = vdwg.mxu0
      %5293 = vmatprep.subr.bf16.mxu0 0
      %5294 = vmatpush1.bf16.msra.mxu0 0
      %5295 = vmatprep.subr.bf16.mxu0 0
      %5296 = vmatpush1.bf16.msra.mxu0 0
      %5297 = vmatprep.subr.bf16.mxu0 0
      %5298 = vmatpush1.bf16.msra.mxu0 0
      %5299 = vmatprep.subr.bf16.mxu0 0
      %5300 = vmatpush1.bf16.msra.mxu0 0
      %5301 = vmatprep.subr.bf16.mxu0 0
      %5302 = vmatpush1.bf16.msra.mxu0 0
      %5303 = vmatprep.subr.bf16.mxu0 0
      %5304 = vmatpush1.bf16.msra.mxu0 0
      %5305 = vmatprep.subr.bf16.mxu0 0
      %5306 = vmatpush1.bf16.msra.mxu0 0
      %5307 = vmatprep.subr.bf16.mxu0 0
      %5308 = vmatpush1.bf16.msra.mxu0 %v4323
      %5309 = vmatprep.subr.bf16.mxu0 0
      %5310 = vmatpush2.bf16.msra.mxu0 0
      %5311 = vmatprep.subr.bf16.mxu0 0
      %5312 = vmatpush2.bf16.msra.mxu0 0
      %5313 = vmatprep.subr.bf16.mxu0 0
      %5314 = vmatpush2.bf16.msra.mxu0 0
      %5315 = vmatprep.subr.bf16.mxu0 0
      %5316 = vmatpush2.bf16.msra.mxu0 0
      %5317 = vmatprep.subr.bf16.mxu0 0
      %5318 = vmatpush2.bf16.msra.mxu0 0
      %5319 = vmatprep.subr.bf16.mxu0 0
      %5320 = vmatpush2.bf16.msra.mxu0 0
      %5321 = vmatprep.subr.bf16.mxu0 0
      %5322 = vmatpush2.bf16.msra.mxu0 0
      %5323 = vmatprep.subr.bf16.mxu0 0
      %5324 = vmatpush2.bf16.msra.mxu0 0
      %5325 = vmatprep.mubr.bf16.mxu0 0
      %5326 = vmatmul.mubr.bf16.gmra.mxu0 %v4426
      %v5327 = vpop.f32.mrf.mxu0
      %v5328 = vadd.f32 %v5287, %v5327
      %v5329 = vpop.f32.mrf.mxu0
      %v5330 = vpop.f32.mrf.mxu0
      %v5331 = vadd.f32 %v5290, %v5330
      %v5332 = vpop.f32.mrf.mxu0
      %5333 = vdwg.mxu0
      %5334 = vmatprep.subr.bf16.mxu0 0
      %5335 = vmatpush1.bf16.msra.mxu0 0
      %5336 = vmatprep.subr.bf16.mxu0 0
      %5337 = vmatpush1.bf16.msra.mxu0 0
      %5338 = vmatprep.subr.bf16.mxu0 0
      %5339 = vmatpush1.bf16.msra.mxu0 0
      %5340 = vmatprep.subr.bf16.mxu0 0
      %5341 = vmatpush1.bf16.msra.mxu0 0
      %5342 = vmatprep.subr.bf16.mxu0 0
      %5343 = vmatpush1.bf16.msra.mxu0 0
      %5344 = vmatprep.subr.bf16.mxu0 0
      %5345 = vmatpush1.bf16.msra.mxu0 0
      %5346 = vmatprep.subr.bf16.mxu0 0
      %5347 = vmatpush1.bf16.msra.mxu0 0
      %5348 = vmatprep.subr.bf16.mxu0 0
      %5349 = vmatpush1.bf16.msra.mxu0 %v4375
      %5350 = vmatprep.subr.bf16.mxu0 0
      %5351 = vmatpush2.bf16.msra.mxu0 0
      %5352 = vmatprep.subr.bf16.mxu0 0
      %5353 = vmatpush2.bf16.msra.mxu0 0
      %5354 = vmatprep.subr.bf16.mxu0 0
      %5355 = vmatpush2.bf16.msra.mxu0 0
      %5356 = vmatprep.subr.bf16.mxu0 0
      %5357 = vmatpush2.bf16.msra.mxu0 0
      %5358 = vmatprep.subr.bf16.mxu0 0
      %5359 = vmatpush2.bf16.msra.mxu0 0
      %5360 = vmatprep.subr.bf16.mxu0 0
      %5361 = vmatpush2.bf16.msra.mxu0 0
      %5362 = vmatprep.subr.bf16.mxu0 0
      %5363 = vmatpush2.bf16.msra.mxu0 0
      %5364 = vmatprep.subr.bf16.mxu0 0
      %5365 = vmatpush2.bf16.msra.mxu0 0
      %5366 = vmatprep.mubr.bf16.mxu0 0
      %5367 = vmatmul.mubr.bf16.gmra.mxu0 %v4532
      %v5368 = vpop.f32.mrf.mxu0
      %v5369 = vadd.f32 0.0, %v5368
      %v5370 = vpop.f32.mrf.mxu0
      %v5371 = vpop.f32.mrf.mxu0
      %v5372 = vadd.f32 0.0, %v5371
      %v5373 = vpop.f32.mrf.mxu0
      %5374 = vdwg.mxu0
      %v5375 = vadd.f32 %v5328, %v5369
      %v5376 = vadd.f32 %v5331, %v5372
      %5377 = vmatprep.subr.bf16.mxu0 0
      %5378 = vmatpush1.bf16.msra.mxu0 0
      %5379 = vmatprep.subr.bf16.mxu0 0
      %5380 = vmatpush1.bf16.msra.mxu0 0
      %5381 = vmatprep.subr.bf16.mxu0 0
      %5382 = vmatpush1.bf16.msra.mxu0 0
      %5383 = vmatprep.subr.bf16.mxu0 0
      %5384 = vmatpush1.bf16.msra.mxu0 0
      %5385 = vmatprep.subr.bf16.mxu0 0
      %5386 = vmatpush1.bf16.msra.mxu0 0
      %5387 = vmatprep.subr.bf16.mxu0 0
      %5388 = vmatpush1.bf16.msra.mxu0 0
      %5389 = vmatprep.subr.bf16.mxu0 0
      %5390 = vmatpush1.bf16.msra.mxu0 0
      %5391 = vmatprep.subr.bf16.mxu0 0
      %5392 = vmatpush1.bf16.msra.mxu0 %v4429
      %5393 = vmatprep.subr.bf16.mxu0 0
      %5394 = vmatpush2.bf16.msra.mxu0 0
      %5395 = vmatprep.subr.bf16.mxu0 0
      %5396 = vmatpush2.bf16.msra.mxu0 0
      %5397 = vmatprep.subr.bf16.mxu0 0
      %5398 = vmatpush2.bf16.msra.mxu0 0
      %5399 = vmatprep.subr.bf16.mxu0 0
      %5400 = vmatpush2.bf16.msra.mxu0 0
      %5401 = vmatprep.subr.bf16.mxu0 0
      %5402 = vmatpush2.bf16.msra.mxu0 0
      %5403 = vmatprep.subr.bf16.mxu0 0
      %5404 = vmatpush2.bf16.msra.mxu0 0
      %5405 = vmatprep.subr.bf16.mxu0 0
      %5406 = vmatpush2.bf16.msra.mxu0 0
      %5407 = vmatprep.subr.bf16.mxu0 0
      %5408 = vmatpush2.bf16.msra.mxu0 0
      %5409 = vmatprep.mubr.bf16.mxu0 0
      %5410 = vmatmul.mubr.bf16.gmra.mxu0 %v4586
      %v5411 = vpop.f32.mrf.mxu0
      %v5412 = vadd.f32 0.0, %v5411
      %v5413 = vpop.f32.mrf.mxu0
      %v5414 = vpop.f32.mrf.mxu0
      %v5415 = vadd.f32 0.0, %v5414
      %v5416 = vpop.f32.mrf.mxu0
      %5417 = vdwg.mxu0
      %v5418 = vadd.f32 %v5375, %v5412
      %v5419 = vadd.f32 %v5376, %v5415
      %5420 = vmatprep.subr.bf16.mxu0 0
      %5421 = vmatpush1.bf16.msra.mxu0 0
      %5422 = vmatprep.subr.bf16.mxu0 0
      %5423 = vmatpush1.bf16.msra.mxu0 0
      %5424 = vmatprep.subr.bf16.mxu0 0
      %5425 = vmatpush1.bf16.msra.mxu0 0
      %5426 = vmatprep.subr.bf16.mxu0 0
      %5427 = vmatpush1.bf16.msra.mxu0 0
      %5428 = vmatprep.subr.bf16.mxu0 0
      %5429 = vmatpush1.bf16.msra.mxu0 0
      %5430 = vmatprep.subr.bf16.mxu0 0
      %5431 = vmatpush1.bf16.msra.mxu0 0
      %5432 = vmatprep.subr.bf16.mxu0 0
      %5433 = vmatpush1.bf16.msra.mxu0 0
      %5434 = vmatprep.subr.bf16.mxu0 0
      %5435 = vmatpush1.bf16.msra.mxu0 %v4482
      %5436 = vmatprep.subr.bf16.mxu0 0
      %5437 = vmatpush2.bf16.msra.mxu0 0
      %5438 = vmatprep.subr.bf16.mxu0 0
      %5439 = vmatpush2.bf16.msra.mxu0 0
      %5440 = vmatprep.subr.bf16.mxu0 0
      %5441 = vmatpush2.bf16.msra.mxu0 0
      %5442 = vmatprep.subr.bf16.mxu0 0
      %5443 = vmatpush2.bf16.msra.mxu0 0
      %5444 = vmatprep.subr.bf16.mxu0 0
      %5445 = vmatpush2.bf16.msra.mxu0 0
      %5446 = vmatprep.subr.bf16.mxu0 0
      %5447 = vmatpush2.bf16.msra.mxu0 0
      %5448 = vmatprep.subr.bf16.mxu0 0
      %5449 = vmatpush2.bf16.msra.mxu0 0
      %5450 = vmatprep.subr.bf16.mxu0 0
      %5451 = vmatpush2.bf16.msra.mxu0 0
      %5452 = vmatprep.mubr.bf16.mxu0 0
      %5453 = vmatmul.mubr.bf16.gmra.mxu0 %v4901
      %v5454 = vpop.f32.mrf.mxu0
      %v5455 = vadd.f32 0.0, %v5454
      %v5456 = vpop.f32.mrf.mxu0
      %v5457 = vpop.f32.mrf.mxu0
      %v5458 = vadd.f32 0.0, %v5457
      %v5459 = vpop.f32.mrf.mxu0
      %5460 = vdwg.mxu0
      %v5461 = vadd.f32 %v5418, %v5455
      %v5462 = vadd.f32 %v5419, %v5458
      %5463 = vmatprep.subr.bf16.mxu0 0
      %5464 = vmatpush1.bf16.msra.mxu0 0
      %5465 = vmatprep.subr.bf16.mxu0 0
      %5466 = vmatpush1.bf16.msra.mxu0 0
      %5467 = vmatprep.subr.bf16.mxu0 0
      %5468 = vmatpush1.bf16.msra.mxu0 0
      %5469 = vmatprep.subr.bf16.mxu0 0
      %5470 = vmatpush1.bf16.msra.mxu0 0
      %5471 = vmatprep.subr.bf16.mxu0 0
      %5472 = vmatpush1.bf16.msra.mxu0 0
      %5473 = vmatprep.subr.bf16.mxu0 0
      %5474 = vmatpush1.bf16.msra.mxu0 0
      %5475 = vmatprep.subr.bf16.mxu0 0
      %5476 = vmatpush1.bf16.msra.mxu0 0
      %5477 = vmatprep.subr.bf16.mxu0 0
      %5478 = vmatpush1.bf16.msra.mxu0 %v4535
      %5479 = vmatprep.subr.bf16.mxu0 0
      %5480 = vmatpush2.bf16.msra.mxu0 0
      %5481 = vmatprep.subr.bf16.mxu0 0
      %5482 = vmatpush2.bf16.msra.mxu0 0
      %5483 = vmatprep.subr.bf16.mxu0 0
      %5484 = vmatpush2.bf16.msra.mxu0 0
      %5485 = vmatprep.subr.bf16.mxu0 0
      %5486 = vmatpush2.bf16.msra.mxu0 0
      %5487 = vmatprep.subr.bf16.mxu0 0
      %5488 = vmatpush2.bf16.msra.mxu0 0
      %5489 = vmatprep.subr.bf16.mxu0 0
      %5490 = vmatpush2.bf16.msra.mxu0 0
      %5491 = vmatprep.subr.bf16.mxu0 0
      %5492 = vmatpush2.bf16.msra.mxu0 0
      %5493 = vmatprep.subr.bf16.mxu0 0
      %5494 = vmatpush2.bf16.msra.mxu0 0
      %5495 = vmatprep.mubr.bf16.mxu0 0
      %5496 = vmatmul.mubr.bf16.gmra.mxu0 %v5205
      %v5497 = vpop.f32.mrf.mxu0
      %v5498 = vadd.f32 0.0, %v5497
      %v5499 = vpop.f32.mrf.mxu0
      %v5500 = vpop.f32.mrf.mxu0
      %v5501 = vadd.f32 0.0, %v5500
      %v5502 = vpop.f32.mrf.mxu0
      %5503 = vdwg.mxu0
      %v5504 = vadd.f32 %v5461, %v5498
      %v5505 = vadd.f32 %v5462, %v5501
      %5506 = vrot.lane.b32.xlu0 %v4582, 104
      %v5507 = vpop.permute.xlu0 %5506
      %v5509 = vsel %vm1004, %v5507, 0
      %5511 = vmatprep.subr.bf16.mxu0 0
      %5512 = vmatpush1.bf16.msra.mxu0 0
      %5513 = vmatprep.subr.bf16.mxu0 0
      %5514 = vmatpush1.bf16.msra.mxu0 0
      %5515 = vmatprep.subr.bf16.mxu0 0
      %5516 = vmatpush1.bf16.msra.mxu0 0
      %5517 = vmatprep.subr.bf16.mxu0 0
      %5518 = vmatpush1.bf16.msra.mxu0 0
      %5519 = vmatprep.subr.bf16.mxu0 0
      %5520 = vmatpush1.bf16.msra.mxu0 0
      %5521 = vmatprep.subr.bf16.mxu0 0
      %5522 = vmatpush1.bf16.msra.mxu0 0
      %5523 = vmatprep.subr.bf16.mxu0 0
      %5524 = vmatpush1.bf16.msra.mxu0 0
      %5525 = vmatprep.subr.bf16.mxu0 0
      %5526 = vmatpush1.bf16.msra.mxu0 %v4589
      %5527 = vmatprep.subr.bf16.mxu0 0
      %5528 = vmatpush2.bf16.msra.mxu0 0
      %5529 = vmatprep.subr.bf16.mxu0 0
      %5530 = vmatpush2.bf16.msra.mxu0 0
      %5531 = vmatprep.subr.bf16.mxu0 0
      %5532 = vmatpush2.bf16.msra.mxu0 0
      %5533 = vmatprep.subr.bf16.mxu0 0
      %5534 = vmatpush2.bf16.msra.mxu0 0
      %5535 = vmatprep.subr.bf16.mxu0 0
      %5536 = vmatpush2.bf16.msra.mxu0 0
      %5537 = vmatprep.subr.bf16.mxu0 0
      %5538 = vmatpush2.bf16.msra.mxu0 0
      %5539 = vmatprep.subr.bf16.mxu0 0
      %5540 = vmatpush2.bf16.msra.mxu0 0
      %5541 = vmatprep.subr.bf16.mxu0 0
      %5542 = vmatpush2.bf16.msra.mxu0 0
      %5543 = vmatprep.mubr.bf16.mxu0 0
      %5544 = vmatmul.mubr.bf16.gmra.mxu0 %v5509
      %v5545 = vpop.f32.mrf.mxu0
      %v5546 = vadd.f32 0.0, %v5545
      %v5547 = vpop.f32.mrf.mxu0
      %v5548 = vpop.f32.mrf.mxu0
      %v5549 = vadd.f32 0.0, %v5548
      %v5550 = vpop.f32.mrf.mxu0
      %5551 = vdwg.mxu0
      %v5552 = vadd.f32 %v5504, %v5546
      %v5553 = vadd.f32 %v5505, %v5549
      %v5554 = vadd.f32 %v5552, %v4639
      %v5555 = vadd.f32 %v5553, %v4639
      %5557 = vset.pattern.permute.xlu0 0
      %5558 = vperm.xlu0 %5557, %v4641
      %v5559 = vpop.permute.xlu0 %5558
      %5562 = vset.pattern.permute.xlu0 0
      %5563 = vperm.xlu0 %5562, %v4642
      %v5564 = vpop.permute.xlu0 %5563
      %v5566 = vsel %vm2410, %v5559, 0.0
      %v5567 = vsel %vm2410, %v5564, 0.0
      %5569 = vset.pattern.permute.xlu0 0
      %5570 = vperm.xlu0 %5569, %v4946
      %v5571 = vpop.permute.xlu0 %5570
      %5574 = vset.pattern.permute.xlu0 0
      %5575 = vperm.xlu0 %5574, %v4947
      %v5576 = vpop.permute.xlu0 %5575
      %v5578 = vsel %vm2627, %v5571, %v5566
      %v5579 = vsel %vm2627, %v5576, %v5567
      %5581 = vset.pattern.permute.xlu0 0
      %5582 = vperm.xlu0 %5581, %v5250
      %v5583 = vpop.permute.xlu0 %5582
      %5586 = vset.pattern.permute.xlu0 0
      %5587 = vperm.xlu0 %5586, %v5251
      %v5588 = vpop.permute.xlu0 %5587
      %v5590 = vsel %vm2844, %v5583, %v5578
      %v5591 = vsel %vm2844, %v5588, %v5579
      %5593 = vset.pattern.permute.xlu0 0
      %5594 = vperm.xlu0 %5593, %v5554
      %v5595 = vpop.permute.xlu0 %5594
      %5598 = vset.pattern.permute.xlu0 0
      %5599 = vperm.xlu0 %5598, %v5555
      %v5600 = vpop.permute.xlu0 %5599
      %v5602 = vsel %vm3059, %v5595, %v5590
      %v5603 = vsel %vm3059, %v5600, %v5591
      %5604 = vst.msk [vmem:[%s666] sm:$0xff] %vm677, %v5602
      %5605 = vst.msk [vmem:[%s666 + $0x8] sm:$0xff] %vm677, %v5603
      %p5606 = scmp.lt.s32.totalorder %s35, 1
      %s5607 = scalar_select %p5606, %s35, 1
      %s5608 = smul.addr %s5607, 2
      %s5609 = smul.addr %s5608, 8
      %s5610 = scalar_lea.vmem %s20, %s5609
      %p5611 = scmp.lt.s32.totalorder %s35, 1
      %s5612 = scalar_select %p5611, %s35, 1
      %s5613 = smul.addr %s5612, 2
      %s5614 = smul.addr %s5613, 8
      %s5615 = scalar_lea.vmem %s21, %s5614
      // Predicated region
      $region101: #{tpu_custom_call.1} parent=99 // pred_check
        %p5616 = pneg %p478
      $region102: #{tpu_custom_call.1} parent=99 // pred_check_branch
        %5618 = sbr.rel (%p5616) target = $region104
      $region103: #{tpu_custom_call.1} parent=99 // pred_region
        _
      $region104: #{tpu_custom_call.1} parent=99 // pred_fallthru
        _
      // Predicated region
      $region105: #{tpu_custom_call.1} parent=99 // pred_check
        %p5619 = pneg %p504
      $region106: #{tpu_custom_call.1} parent=99 // pred_check_branch
        %5621 = sbr.rel (%p5619) target = $region108
      $region107: #{tpu_custom_call.1} parent=99 // pred_region
        _
      $region108: #{tpu_custom_call.1} parent=99 // pred_fallthru
        _
    $region100: #{tpu_custom_call.1} parent=5 // pred_fallthru
      _
    %p5622 = scmp.le.s32.totalorder 2, %s30
    // Predicated region
    $region109: #{tpu_custom_call.1} parent=5 // pred_check
      %p5623 = pneg %p5622
    $region110: #{tpu_custom_call.1} parent=5 // pred_check_branch
      %5625 = sbr.rel (%p5623) target = $region112
    $region111: #{tpu_custom_call.1} parent=5 // pred_region
      %s5626 = ssub.s32 %s30, 2
      // Predicated region
      $region113: #{tpu_custom_call.1} parent=111 // pred_check
        %p5627 = pneg %p484
      $region114: #{tpu_custom_call.1} parent=111 // pred_check_branch
        %5629 = sbr.rel (%p5627) target = $region116
      $region115: #{tpu_custom_call.1} parent=111 // pred_region
        %p5630 = scmp.lt.s32.totalorder %s36, 1
        %s5631 = scalar_select %p5630, %s36, 1
        %s5632 = smul.addr %s5631, 2
        %s5633 = smul.addr %s5632, 8
        %s5634 = scalar_lea.vmem %s20, %s5633
      $region116: #{tpu_custom_call.1} parent=111 // pred_fallthru
        _
      // Predicated region
      $region117: #{tpu_custom_call.1} parent=111 // pred_check
        %p5635 = pneg %p510
      $region118: #{tpu_custom_call.1} parent=111 // pred_check_branch
        %5637 = sbr.rel (%p5635) target = $region120
      $region119: #{tpu_custom_call.1} parent=111 // pred_region
        %p5638 = scmp.lt.s32.totalorder %s36, 1
        %s5639 = scalar_select %p5638, %s36, 1
        %s5640 = smul.addr %s5639, 2
        %s5641 = smul.addr %s5640, 8
        %s5642 = scalar_lea.vmem %s21, %s5641
      $region120: #{tpu_custom_call.1} parent=111 // pred_fallthru
        _
    $region112: #{tpu_custom_call.1} parent=5 // pred_fallthru
      _
  $region6: #{tpu_custom_call.1} parent=0 // loop_footer
    %s34 = sadd.s32 1, %s30
  $region7: #{tpu_custom_call.1} parent=0 // loop_footer_branch
    %29 = sbr.rel target = $region3
  $region8: #{tpu_custom_call.1} parent=0 // loop_exit
    _

</llo_original>
